<compile_context>
chip_gen: v7x
topology: tpu7x:2x2x1
jax: 0.10.0
libtpu: 0.0.40
codegen_flags: <defaults>
</compile_context>

<pallas_src>
import jax
import jax.numpy as jnp
from jax.experimental import pallas as pl
from jax.experimental.pallas import tpu as pltpu

LN_EPS = 1e-5
D_IN, D1, D2, D_OUT = 2, 512, 4096, 50001

# Chip-dependent final-linear strategy: native i8 MXU on v5/v6, dequant elsewhere.
_KIND = jax.devices()[0].device_kind.lower()
USE_INT8_DOT = ("v5" in _KIND) or ("v6" in _KIND)

if USE_INT8_DOT:
    TN = 3200            # 16 x 12.5 MiB int8 tiles; NT even; fewer grid steps
else:
    TN = 1792            # 28 x 7 MiB int8 tiles; NT even; small dequant buffer (v7x VMEM)
NT = pl.cdiv(D_OUT, TN)  # 16 or 28 (both even)
N_PAD = NT * TN          # 51200 or 50176


# ----------------------------------------------------------------------------
# Shared numerics helpers (pure jnp: usable inside kernels and in the reference)
# ----------------------------------------------------------------------------
def _layer_norm(h, g, b, n):
    mu = jnp.sum(h, axis=-1, keepdims=True) * (1.0 / n)
    d = h - mu
    var = jnp.sum(d * d, axis=-1, keepdims=True) * (1.0 / n)
    return d * jax.lax.rsqrt(var + LN_EPS) * g + b


def _quantize_rows(h):
    """Symmetric per-row int8 quantization; safe for all-zero rows."""
    amax = jnp.max(jnp.abs(h), axis=-1, keepdims=True)
    scale = jnp.where(amax > 0.0, amax / 127.0, 1.0)
    q = jnp.clip(jnp.round(h / scale), -127.0, 127.0).astype(jnp.int8)
    return q, scale


# ----------------------------------------------------------------------------
# Kernel A: fused  Linear(2,512) -> ReLU -> LayerNorm(512)
#                 -> Linear(512,4096) -> ReLU -> LayerNorm(4096)
# Whole problem fits in VMEM for small batch; no grid. Emits h as bf16 plus the
# int8 / per-row-scale pair used by the native-int8 final linear.
# ----------------------------------------------------------------------------
def mlp_front_kernel(x_ref, w1_ref, b1_ref, g1_ref, be1_ref,
                     w2_ref, b2_ref, g2_ref, be2_ref,
                     hb_ref, hq_ref, hs_ref):
    x = x_ref[...]                       # (B, 2)  f32
    w1 = w1_ref[...]                     # (2, 512) f32

    # Linear(2, 512) as a VPU outer product (K=2 would waste the MXU) + ReLU.
    h1 = x[:, 0:1] * w1[0:1, :] + x[:, 1:2] * w1[1:2, :] + b1_ref[...]
    h1 = jnp.maximum(h1, 0.0)
    h1 = _layer_norm(h1, g1_ref[...], be1_ref[...], D1)

    # Linear(512, 4096) with bf16 weights, f32 accumulation, + ReLU.
    h2 = jnp.dot(h1.astype(jnp.bfloat16), w2_ref[...],
                 preferred_element_type=jnp.float32) + b2_ref[...]
    h2 = jnp.maximum(h2, 0.0)
    h2 = _layer_norm(h2, g2_ref[...], be2_ref[...], D2)

    hb_ref[...] = h2.astype(jnp.bfloat16)
    hq, hs = _quantize_rows(h2)
    hq_ref[...] = hq
    hs_ref[...] = hs


def mlp_front(x2d, w1, b1, g1, be1, w2, b2, g2, be2):
    B = x2d.shape[0]
    return pl.pallas_call(
        mlp_front_kernel,
        out_shape=(jax.ShapeDtypeStruct((B, D2), jnp.bfloat16),
                   jax.ShapeDtypeStruct((B, D2), jnp.int8),
                   jax.ShapeDtypeStruct((B, 1), jnp.float32)),
    )(x2d, w1, b1, g1, be1, w2, b2, g2, be2)


# ----------------------------------------------------------------------------
# Kernel B: final Linear(4096, 50001), tiled over the (padded, pre-blocked)
# output dim. One grid step = one fully contiguous int8 weight tile (4096 x TN).
# ----------------------------------------------------------------------------
def final_linear_int8_kernel(hq_ref, hs_ref, w_ref, s_ref, b_ref, o_ref):
    # Native s8 x s8 -> s32 MXU matmul; scales applied after the accumulation.
    acc = jax.lax.dot_general(hq_ref[...], w_ref[...],
                              dimension_numbers=(((1,), (0,)), ((), ())),
                              preferred_element_type=jnp.int32)
    o_ref[...] = acc.astype(jnp.float32) * hs_ref[...] * s_ref[...] + b_ref[...]


def final_linear_deq_kernel(hb_ref, w_ref, s_ref, b_ref, o_ref):
    # int8 -> bf16 dequant in-kernel (column scale folded in after the dot).
    w = w_ref[...].astype(jnp.bfloat16)
    acc = jnp.dot(hb_ref[...], w, preferred_element_type=jnp.float32)
    o_ref[...] = acc * s_ref[...] + b_ref[...]


def final_linear(h_bf16, h_q, h_s, w3_blk, w3_scale, b3_pad):
    B = h_q.shape[0]
    w_spec = pl.BlockSpec((None, D2, TN), lambda j: (j, 0, 0))   # contiguous int8 tile, squeezed lead dim
    s_spec = pl.BlockSpec((1, TN), lambda j: (0, j))             # per-column f32 scales
    b_spec = pl.BlockSpec((1, TN), lambda j: (0, j))             # bias tile
    o_spec = pl.BlockSpec((B, TN), lambda j: (0, j))             # lane-dense output tile
    cparams = pltpu.CompilerParams(
        dimension_semantics=("parallel",),   # megacore-shard the (even) N tiles on v7x
        vmem_limit_bytes=48 << 20,           # 2x weight bufs + h/out + headroom
    )
    if USE_INT8_DOT:
        return pl.pallas_call(
            final_linear_int8_kernel,
            out_shape=jax.ShapeDtypeStruct((B, N_PAD), jnp.float32),
            grid_spec=pltpu.PrefetchScalarGridSpec(
                num_scalar_prefetch=0, grid=(NT,),
                in_specs=[pl.BlockSpec((B, D2), lambda j: (0, 0)),   # h int8, resident
                          pl.BlockSpec((B, 1), lambda j: (0, 0)),    # per-row h scales
                          w_spec, s_spec, b_spec],
                out_specs=o_spec),
            compiler_params=cparams,
        )(h_q, h_s, w3_blk, w3_scale, b3_pad)
    return pl.pallas_call(
        final_linear_deq_kernel,
        out_shape=jax.ShapeDtypeStruct((B, N_PAD), jnp.float32),
        grid_spec=pltpu.PrefetchScalarGridSpec(
            num_scalar_prefetch=0, grid=(NT,),
            in_specs=[pl.BlockSpec((B, D2), lambda j: (0, 0)),       # h bf16, resident
                      w_spec, s_spec, b_spec],
            out_specs=o_spec),
        compiler_params=cparams,
    )(h_bf16, w3_blk, w3_scale, b3_pad)


# ----------------------------------------------------------------------------
# Forward + params
# ----------------------------------------------------------------------------
def test_nn_forward(x, params):
    """Equivalent of TestNN.forward: Flatten + linear_relu_stack."""
    B = x.shape[0]
    x2d = x.reshape(B, -1)                                       # nn.Flatten()
    h_bf16, h_q, h_s = mlp_front(
        x2d, params["w1"], params["b1"], params["g1"], params["be1"],
        params["w2"], params["b2"], params["g2"], params["be2"])
    out_pad = final_linear(h_bf16, h_q, h_s,
                           params["w3_blk"], params["w3_scale"], params["b3_pad"])
    return out_pad[:, :D_OUT]                                    # unpad to 50001


def make_params(key):
    """Deterministic parameter init (shapes from TestNN.__init__)."""
    ks = jax.random.split(key, 6)
    w1 = jax.random.normal(ks[0], (D_IN, D1), jnp.float32) * 0.05
    b1 = jax.random.normal(ks[1], (1, D1), jnp.float32) * 0.01
    w2 = (jax.random.normal(ks[2], (D1, D2), jnp.float32) * 0.05).astype(jnp.bfloat16)
    b2 = jax.random.normal(ks[3], (1, D2), jnp.float32) * 0.01
    w3 = jax.random.normal(ks[4], (D2, D_OUT), jnp.float32) * 0.02
    b3 = jax.random.normal(ks[5], (1, D_OUT), jnp.float32) * 0.01

    # LayerNorm affine params (PyTorch default: weight=1, bias=0)
    g1, be1 = jnp.ones((1, D1), jnp.float32), jnp.zeros((1, D1), jnp.float32)
    g2, be2 = jnp.ones((1, D2), jnp.float32), jnp.zeros((1, D2), jnp.float32)

    # Pad final layer to N_PAD, int8-quantize per output column (safe scale for
    # the all-zero padded tail), and pre-block to (NT, D2, TN) so each grid step
    # DMAs one fully contiguous int8 weight tile.
    w3_pad = jnp.zeros((D2, N_PAD), jnp.float32).at[:, :D_OUT].set(w3)
    amax = jnp.max(jnp.abs(w3_pad), axis=0, keepdims=True)
    w3_scale = jnp.where(amax > 0.0, amax / 127.0, 1.0)              # (1, N_PAD) f32
    w3_q = jnp.clip(jnp.round(w3_pad / w3_scale), -127.0, 127.0).astype(jnp.int8)
    w3_blk = w3_q.reshape(D2, NT, TN).transpose(1, 0, 2)             # (NT, D2, TN) int8
    b3_pad = jnp.zeros((1, N_PAD), jnp.float32).at[:, :D_OUT].set(b3)

    return dict(w1=w1, b1=b1, g1=g1, be1=be1, w2=w2, b2=b2, g2=g2, be2=be2,
                w3_blk=w3_blk, w3_scale=w3_scale, b3_pad=b3_pad)


# ----------------------------------------------------------------------------
# Pure-JAX references (same quantized operands as the kernels -> tight checks)
# ----------------------------------------------------------------------------
def reference_front(x2d, params):
    w1, b1 = params["w1"], params["b1"]
    h = x2d[:, 0:1] * w1[0:1, :] + x2d[:, 1:2] * w1[1:2, :] + b1
    h = jnp.maximum(h, 0.0)
    h = _layer_norm(h, params["g1"], params["be1"], D1)
    h = jnp.dot(h.astype(jnp.bfloat16), params["w2"],
                preferred_element_type=jnp.float32) + params["b2"]
    h = jnp.maximum(h, 0.0)
    h = _layer_norm(h, params["g2"], params["be2"], D2)
    return h


def reference_final(h_bf16, h_q, h_s, params):
    """Final linear recomputed in plain JAX on the kernel's own operands."""
    w3_blk, w3_scale, b3 = params["w3_blk"], params["w3_scale"], params["b3_pad"]
    h_deq = h_q.astype(jnp.float32) * h_s
    outs = []
    for j in range(NT):
        s_tile = w3_scale[:, j * TN:(j + 1) * TN]
        b_tile = b3[:, j * TN:(j + 1) * TN]
        if USE_INT8_DOT:
            acc = jnp.dot(h_deq, w3_blk[j].astype(jnp.float32),
                          preferred_element_type=jnp.float32)
        else:
            acc = jnp.dot(h_bf16, w3_blk[j].astype(jnp.bfloat16),
                          preferred_element_type=jnp.float32)
        outs.append(acc * s_tile + b_tile)
    return jnp.concatenate(outs, axis=1)[:, :D_OUT]


if __name__ == "__main__":
    key = jax.random.PRNGKey(0)
    kx, kp = jax.random.split(key)

    # Input: batch=8, flattens to (8, 2) as required by Linear(2, 512).
    x = jax.random.normal(kx, (8, 1, 2), jnp.float32)
    params = make_params(kp)

    out = test_nn_forward(x, params)
    out = jax.block_until_ready(out)
    assert out.shape == (8, D_OUT), out.shape

    # Stage 1: front MLP vs pure JAX (tolerance bounded by bf16 rounding of h).
    B = x.shape[0]
    x2d = x.reshape(B, -1)
    h_bf16, h_q, h_s = mlp_front(
        x2d, params["w1"], params["b1"], params["g1"], params["be1"],
        params["w2"], params["b2"], params["g2"], params["be2"])
    h_ref = reference_front(x2d, params)
    assert jnp.allclose(h_bf16.astype(jnp.float32), h_ref, atol=5e-2, rtol=2e-2), \
        float(jnp.max(jnp.abs(h_bf16.astype(jnp.float32) - h_ref)))

    # Stage 2: final linear vs pure JAX on the same quantized operands.
    ref = reference_final(h_bf16, h_q, h_s, params)
    assert jnp.allclose(out, ref, atol=2e-3, rtol=2e-3), \
        float(jnp.max(jnp.abs(out - ref)))

    print("KERNEL_OK")
</pallas_src>

<mosaic_0001>
module attributes {stable_mosaic.version = 11 : i64} {
  func.func @mlp_front_kernel(%arg0: memref<8x2xf32, #tpu.memory_space<vmem>>, %arg1: memref<2x512xf32, #tpu.memory_space<vmem>>, %arg2: memref<1x512xf32, #tpu.memory_space<vmem>>, %arg3: memref<1x512xf32, #tpu.memory_space<vmem>>, %arg4: memref<1x512xf32, #tpu.memory_space<vmem>>, %arg5: memref<512x4096xbf16, #tpu.memory_space<vmem>>, %arg6: memref<1x4096xf32, #tpu.memory_space<vmem>>, %arg7: memref<1x4096xf32, #tpu.memory_space<vmem>>, %arg8: memref<1x4096xf32, #tpu.memory_space<vmem>>, %arg9: memref<8x4096xbf16, #tpu.memory_space<vmem>>, %arg10: memref<8x4096xi8, #tpu.memory_space<vmem>>, %arg11: memref<8x1xf32, #tpu.memory_space<vmem>>) attributes {dimension_semantics = [], scalar_prefetch = 0 : i64, scratch_operands = 0 : i64, tpu.core_type = #tpu.core_type<tc>} {
    %c0 = arith.constant 0 : index
    %c0_0 = arith.constant 0 : index
    %0 = vector.load %arg0[%c0, %c0_0] : memref<8x2xf32, #tpu.memory_space<vmem>>, vector<8x2xf32>
    %c0_1 = arith.constant 0 : index
    %c0_2 = arith.constant 0 : index
    %1 = vector.load %arg1[%c0_1, %c0_2] : memref<2x512xf32, #tpu.memory_space<vmem>>, vector<2x512xf32>
    %2 = vector.extract_strided_slice %0 {offsets = [0, 0], sizes = [8, 1], strides = [1, 1]} : vector<8x2xf32> to vector<8x1xf32>
    %3 = vector.extract_strided_slice %1 {offsets = [0, 0], sizes = [1, 512], strides = [1, 1]} : vector<2x512xf32> to vector<1x512xf32>
    %4 = vector.broadcast %2 : vector<8x1xf32> to vector<8x512xf32>
    %5 = vector.broadcast %3 : vector<1x512xf32> to vector<8x512xf32>
    %6 = arith.mulf %4, %5 : vector<8x512xf32>
    %7 = vector.extract_strided_slice %0 {offsets = [0, 1], sizes = [8, 1], strides = [1, 1]} : vector<8x2xf32> to vector<8x1xf32>
    %8 = vector.extract_strided_slice %1 {offsets = [1, 0], sizes = [1, 512], strides = [1, 1]} : vector<2x512xf32> to vector<1x512xf32>
    %9 = vector.broadcast %7 : vector<8x1xf32> to vector<8x512xf32>
    %10 = vector.broadcast %8 : vector<1x512xf32> to vector<8x512xf32>
    %11 = arith.mulf %9, %10 : vector<8x512xf32>
    %12 = arith.addf %6, %11 : vector<8x512xf32>
    %c0_3 = arith.constant 0 : index
    %c0_4 = arith.constant 0 : index
    %13 = vector.load %arg2[%c0_3, %c0_4] : memref<1x512xf32, #tpu.memory_space<vmem>>, vector<1x512xf32>
    %14 = vector.broadcast %13 : vector<1x512xf32> to vector<8x512xf32>
    %15 = arith.addf %12, %14 : vector<8x512xf32>
    %cst = arith.constant 0.000000e+00 : f32
    %16 = vector.broadcast %cst : f32 to vector<8x512xf32>
    %17 = arith.maximumf %15, %16 : vector<8x512xf32>
    %c0_5 = arith.constant 0 : index
    %c0_6 = arith.constant 0 : index
    %18 = vector.load %arg3[%c0_5, %c0_6] : memref<1x512xf32, #tpu.memory_space<vmem>>, vector<1x512xf32>
    %c0_7 = arith.constant 0 : index
    %c0_8 = arith.constant 0 : index
    %19 = vector.load %arg4[%c0_7, %c0_8] : memref<1x512xf32, #tpu.memory_space<vmem>>, vector<1x512xf32>
    %cst_9 = arith.constant dense<0.000000e+00> : vector<8xf32>
    %20 = vector.multi_reduction <add>, %17, %cst_9 [1] : vector<8x512xf32> to vector<8xf32>
    %21 = vector.shape_cast %20 : vector<8xf32> to vector<8x1xf32>
    %cst_10 = arith.constant 0.001953125 : f32
    %22 = vector.broadcast %cst_10 : f32 to vector<8x1xf32>
    %23 = arith.mulf %21, %22 : vector<8x1xf32>
    %24 = vector.broadcast %23 : vector<8x1xf32> to vector<8x512xf32>
    %25 = arith.subf %17, %24 : vector<8x512xf32>
    %26 = arith.mulf %25, %25 : vector<8x512xf32>
    %cst_11 = arith.constant dense<0.000000e+00> : vector<8xf32>
    %27 = vector.multi_reduction <add>, %26, %cst_11 [1] : vector<8x512xf32> to vector<8xf32>
    %28 = vector.shape_cast %27 : vector<8xf32> to vector<8x1xf32>
    %cst_12 = arith.constant 0.001953125 : f32
    %29 = vector.broadcast %cst_12 : f32 to vector<8x1xf32>
    %30 = arith.mulf %28, %29 : vector<8x1xf32>
    %cst_13 = arith.constant 9.99999974E-6 : f32
    %31 = vector.broadcast %cst_13 : f32 to vector<8x1xf32>
    %32 = arith.addf %30, %31 : vector<8x1xf32>
    %33 = math.rsqrt %32 : vector<8x1xf32>
    %34 = vector.broadcast %33 : vector<8x1xf32> to vector<8x512xf32>
    %35 = arith.mulf %25, %34 : vector<8x512xf32>
    %36 = vector.broadcast %18 : vector<1x512xf32> to vector<8x512xf32>
    %37 = arith.mulf %35, %36 : vector<8x512xf32>
    %38 = vector.broadcast %19 : vector<1x512xf32> to vector<8x512xf32>
    %39 = arith.addf %37, %38 : vector<8x512xf32>
    %40 = arith.truncf %39 : vector<8x512xf32> to vector<8x512xbf16>
    %c0_14 = arith.constant 0 : index
    %c0_15 = arith.constant 0 : index
    %41 = vector.load %arg5[%c0_14, %c0_15] : memref<512x4096xbf16, #tpu.memory_space<vmem>>, vector<512x4096xbf16>
    %cst_16 = arith.constant dense<0.000000e+00> : vector<8x4096xf32>
    %42 = tpu.matmul %40, %41, %cst_16 {dimension_numbers = #tpu.dot_dimension_numbers<[1], [0], [0], [1], [0, 0, 1, 1], [], []>} : vector<8x512xbf16>, vector<512x4096xbf16>, vector<8x4096xf32> -> vector<8x4096xf32>
    %c0_17 = arith.constant 0 : index
    %c0_18 = arith.constant 0 : index
    %43 = vector.load %arg6[%c0_17, %c0_18] : memref<1x4096xf32, #tpu.memory_space<vmem>>, vector<1x4096xf32>
    %44 = vector.broadcast %43 : vector<1x4096xf32> to vector<8x4096xf32>
    %45 = arith.addf %42, %44 : vector<8x4096xf32>
    %cst_19 = arith.constant 0.000000e+00 : f32
    %46 = vector.broadcast %cst_19 : f32 to vector<8x4096xf32>
    %47 = arith.maximumf %45, %46 : vector<8x4096xf32>
    %c0_20 = arith.constant 0 : index
    %c0_21 = arith.constant 0 : index
    %48 = vector.load %arg7[%c0_20, %c0_21] : memref<1x4096xf32, #tpu.memory_space<vmem>>, vector<1x4096xf32>
    %c0_22 = arith.constant 0 : index
    %c0_23 = arith.constant 0 : index
    %49 = vector.load %arg8[%c0_22, %c0_23] : memref<1x4096xf32, #tpu.memory_space<vmem>>, vector<1x4096xf32>
    %cst_24 = arith.constant dense<0.000000e+00> : vector<8xf32>
    %50 = vector.multi_reduction <add>, %47, %cst_24 [1] : vector<8x4096xf32> to vector<8xf32>
    %51 = vector.shape_cast %50 : vector<8xf32> to vector<8x1xf32>
    %cst_25 = arith.constant 2.44140625E-4 : f32
    %52 = vector.broadcast %cst_25 : f32 to vector<8x1xf32>
    %53 = arith.mulf %51, %52 : vector<8x1xf32>
    %54 = vector.broadcast %53 : vector<8x1xf32> to vector<8x4096xf32>
    %55 = arith.subf %47, %54 : vector<8x4096xf32>
    %56 = arith.mulf %55, %55 : vector<8x4096xf32>
    %cst_26 = arith.constant dense<0.000000e+00> : vector<8xf32>
    %57 = vector.multi_reduction <add>, %56, %cst_26 [1] : vector<8x4096xf32> to vector<8xf32>
    %58 = vector.shape_cast %57 : vector<8xf32> to vector<8x1xf32>
    %cst_27 = arith.constant 2.44140625E-4 : f32
    %59 = vector.broadcast %cst_27 : f32 to vector<8x1xf32>
    %60 = arith.mulf %58, %59 : vector<8x1xf32>
    %cst_28 = arith.constant 9.99999974E-6 : f32
    %61 = vector.broadcast %cst_28 : f32 to vector<8x1xf32>
    %62 = arith.addf %60, %61 : vector<8x1xf32>
    %63 = math.rsqrt %62 : vector<8x1xf32>
    %64 = vector.broadcast %63 : vector<8x1xf32> to vector<8x4096xf32>
    %65 = arith.mulf %55, %64 : vector<8x4096xf32>
    %66 = vector.broadcast %48 : vector<1x4096xf32> to vector<8x4096xf32>
    %67 = arith.mulf %65, %66 : vector<8x4096xf32>
    %68 = vector.broadcast %49 : vector<1x4096xf32> to vector<8x4096xf32>
    %69 = arith.addf %67, %68 : vector<8x4096xf32>
    %70 = arith.truncf %69 : vector<8x4096xf32> to vector<8x4096xbf16>
    %c0_29 = arith.constant 0 : index
    %c0_30 = arith.constant 0 : index
    %71 = vector.load %arg9[%c0_29, %c0_30] : memref<8x4096xbf16, #tpu.memory_space<vmem>>, vector<8x4096xbf16>
    tpu.vector_store %arg9[%c0_29, %c0_30], %70 {strides = array<i32>} : memref<8x4096xbf16, #tpu.memory_space<vmem>>, vector<8x4096xbf16>,
    %72 = math.absf %69 : vector<8x4096xf32>
    %cst_31 = arith.constant dense<0xFF800000> : vector<8xf32>
    %73 = vector.multi_reduction <maximumf>, %72, %cst_31 [1] : vector<8x4096xf32> to vector<8xf32>
    %74 = vector.shape_cast %73 : vector<8xf32> to vector<8x1xf32>
    %cst_32 = arith.constant 0.000000e+00 : f32
    %75 = vector.broadcast %cst_32 : f32 to vector<8x1xf32>
    %76 = arith.cmpf ogt, %74, %75 : vector<8x1xf32>
    %cst_33 = arith.constant 1.270000e+02 : f32
    %77 = vector.broadcast %cst_33 : f32 to vector<8x1xf32>
    %78 = arith.divf %74, %77 : vector<8x1xf32>
    %cst_34 = arith.constant 1.000000e+00 : f32
    %79 = vector.broadcast %cst_34 : f32 to vector<8x1xf32>
    %80 = arith.select %76, %78, %79 : vector<8x1xi1>, vector<8x1xf32>
    %81 = vector.broadcast %80 : vector<8x1xf32> to vector<8x4096xf32>
    %82 = arith.divf %69, %81 : vector<8x4096xf32>
    %83 = math.roundeven %82 : vector<8x4096xf32>
    %cst_35 = arith.constant -1.270000e+02 : f32
    %cst_36 = arith.constant 1.270000e+02 : f32
    %84 = vector.broadcast %cst_35 : f32 to vector<8x4096xf32>
    %85 = arith.maximumf %84, %83 : vector<8x4096xf32>
    %86 = vector.broadcast %cst_36 : f32 to vector<8x4096xf32>
    %87 = arith.minimumf %86, %85 : vector<8x4096xf32>
    %88 = arith.fptosi %87 : vector<8x4096xf32> to vector<8x4096xi8>
    %c0_37 = arith.constant 0 : index
    %c0_38 = arith.constant 0 : index
    %89 = vector.load %arg10[%c0_37, %c0_38] : memref<8x4096xi8, #tpu.memory_space<vmem>>, vector<8x4096xi8>
    tpu.vector_store %arg10[%c0_37, %c0_38], %88 {strides = array<i32>} : memref<8x4096xi8, #tpu.memory_space<vmem>>, vector<8x4096xi8>,
    %c0_39 = arith.constant 0 : index
    %c0_40 = arith.constant 0 : index
    %90 = vector.load %arg11[%c0_39, %c0_40] : memref<8x1xf32, #tpu.memory_space<vmem>>, vector<8x1xf32>
    tpu.vector_store %arg11[%c0_39, %c0_40], %80 {strides = array<i32>} : memref<8x1xf32, #tpu.memory_space<vmem>>, vector<8x1xf32>,
    return
  }
}

</mosaic_0001>

<llo_original>
// kernel: tpu_custom_call.1
$region0: #{tpu_custom_call.1}
  #allocation0 [shape = 'u32[]', space=smem, size = 0x4, offset = 0x4, fixed_abs, tag = 'smem constant byte address 0x4 - core index']
  #allocation1 [shape = 'u32[144,128]{1,0:T(1,128)}', space=vmem, size = 0x12000, scoped, tag = 'internal scratch']
  %s0 = inlined_call_operand.vmem [shape: f32[8,2], index: 0, kind: input, shape index: {}]
  %s1 = inlined_call_operand.hbm [shape: f32[2,512], index: 1, kind: input, shape index: {}]
  %s2 = inlined_call_operand.hbm [shape: f32[1,512], index: 2, kind: input, shape index: {}]
  %s3 = inlined_call_operand.hbm [shape: f32[1,512], index: 3, kind: input, shape index: {}]
  %s4 = inlined_call_operand.hbm [shape: f32[1,512], index: 4, kind: input, shape index: {}]
  %s5 = inlined_call_operand.hbm [shape: bf16[512,4096], index: 5, kind: input, shape index: {}]
  %s6 = inlined_call_operand.hbm [shape: f32[1,4096], index: 6, kind: input, shape index: {}]
  %s7 = inlined_call_operand.hbm [shape: f32[1,4096], index: 7, kind: input, shape index: {}]
  %s8 = inlined_call_operand.hbm [shape: f32[1,4096], index: 8, kind: input, shape index: {}]
  %s9 = inlined_call_operand.hbm [shape: bf16[8,4096], index: 9, kind: output, shape index: {0}]
  %s10 = inlined_call_operand.hbm [shape: s8[8,4096], index: 10, kind: output, shape index: {1}]
  %s11 = inlined_call_operand.vmem [shape: f32[8,1], index: 11, kind: output, shape index: {2}]
  %12 = xla_tuple %s9, %s10, %s11
  %s13 = sld [smem:[#allocation0]]
  $region94: #{tpu_custom_call.1} parent=0
    _
  %s15 = ssub.s32 1, %s13
  %s16 = scalar_select 0, %s15, %s13
  $region1: #{tpu_custom_call.1} parent=0
    #allocation2 [shape = 'u8[4096]{0}', space=vmem, size = 0x1000, scoped, tag = 'input window, operand 1, single buffered']
    #allocation3 [shape = 's32[1]{0}', space=sflag, size = 0x4, scoped, tag = 'scoped memory for tpu_custom_call.1']
    #allocation4 [shape = 's32[1]{0}', space=sflag, size = 0x4, scoped, tag = 'scoped memory for tpu_custom_call.1']
    #allocation5 [shape = 'u8[2048]{0}', space=vmem, size = 0x800, scoped, tag = 'input window, operand 2, single buffered']
    #allocation6 [shape = 's32[1]{0}', space=sflag, size = 0x4, scoped, tag = 'scoped memory for tpu_custom_call.1']
    #allocation7 [shape = 'u8[2048]{0}', space=vmem, size = 0x800, scoped, tag = 'input window, operand 3, single buffered']
    #allocation8 [shape = 'u8[2048]{0}', space=vmem, size = 0x800, scoped, tag = 'input window, operand 4, single buffered']
    #allocation9 [shape = 's32[1]{0}', space=sflag, size = 0x4, scoped, tag = 'scoped memory for tpu_custom_call.1']
    #allocation10 [shape = 'u8[4194304]{0}', space=vmem, size = 0x400000, scoped, tag = 'input window, operand 5, single buffered']
    #allocation11 [shape = 'u8[16384]{0}', space=vmem, size = 0x4000, scoped, tag = 'input window, operand 6, single buffered']
    #allocation12 [shape = 's32[1]{0}', space=sflag, size = 0x4, scoped, tag = 'scoped memory for tpu_custom_call.1']
    #allocation13 [shape = 'u8[16384]{0}', space=vmem, size = 0x4000, scoped, tag = 'input window, operand 7, single buffered']
    #allocation14 [shape = 'u8[16384]{0}', space=vmem, size = 0x4000, scoped, tag = 'input window, operand 8, single buffered']
    #allocation15 [shape = 's32[1]{0}', space=sflag, size = 0x4, scoped, tag = 'scoped memory for tpu_custom_call.1']
    #allocation16 [shape = 'u8[65536]{0}', space=vmem, size = 0x10000, scoped, tag = 'output window, operand 0, single buffered']
    #allocation17 [shape = 'u8[32768]{0}', space=vmem, size = 0x8000, scoped, tag = 'output window, operand 1, single buffered']
    #allocation18 [shape = 's32[1]{0}', space=sflag, size = 0x4, scoped, tag = 'scoped memory for tpu_custom_call.1']
    %17 = vsyncpa [#allocation3], 0
    %18 = vsyncpa [#allocation6], 0
    %19 = vsyncpa [#allocation9], 0
    %20 = vsyncpa [#allocation12], 0
    %21 = vsyncpa [#allocation15], 0
    %22 = vsyncpa [#allocation4], 0
    %23 = vsyncpa [#allocation18], 0
    // Predicated region
    $region2: #{tpu_custom_call.1} parent=1 // pred_check
      _
    $region3: #{tpu_custom_call.1} parent=1 // pred_check_branch
      %25 = sbr.rel (0) target = $region5
    $region4: #{tpu_custom_call.1} parent=1 // pred_region
      _
    $region5: #{tpu_custom_call.1} parent=1 // pred_fallthru
      _
    // Predicated region
    $region6: #{tpu_custom_call.1} parent=1 // pred_check
      _
    $region7: #{tpu_custom_call.1} parent=1 // pred_check_branch
      %27 = sbr.rel (0) target = $region9
    $region8: #{tpu_custom_call.1} parent=1 // pred_region
      %s29 = ssub.s32 128, 128
      %30 = vsyncadd [#allocation3], %s29
      %s32 = sshll.u32 [#allocation2], 4
      %s33 = int_to_ptr.vmem [resolvable:$true] %s32
      %35 = dma.hbm_to_vmem [thread:$0]  %s1, 128, %s33, [#allocation3]
    $region9: #{tpu_custom_call.1} parent=1 // pred_fallthru
      _
    // Predicated region
    $region10: #{tpu_custom_call.1} parent=1 // pred_check
      _
    $region11: #{tpu_custom_call.1} parent=1 // pred_check_branch
      %37 = sbr.rel (0) target = $region13
    $region12: #{tpu_custom_call.1} parent=1 // pred_region
      %s39 = ssub.s32 64, 64
      %40 = vsyncadd [#allocation6], %s39
      %s42 = sshll.u32 [#allocation5], 4
      %s43 = int_to_ptr.vmem [resolvable:$true] %s42
      %45 = dma.hbm_to_vmem [thread:$0]  %s2, 64, %s43, [#allocation6]
    $region13: #{tpu_custom_call.1} parent=1 // pred_fallthru
      _
    // Predicated region
    $region14: #{tpu_custom_call.1} parent=1 // pred_check
      _
    $region15: #{tpu_custom_call.1} parent=1 // pred_check_branch
      %47 = sbr.rel (0) target = $region17
    $region16: #{tpu_custom_call.1} parent=1 // pred_region
      %s49 = ssub.s32 64, 64
      %50 = vsyncadd [#allocation6], %s49
      %s52 = sshll.u32 [#allocation7], 4
      %s53 = int_to_ptr.vmem [resolvable:$true] %s52
      %55 = dma.hbm_to_vmem [thread:$0]  %s3, 64, %s53, [#allocation6]
    $region17: #{tpu_custom_call.1} parent=1 // pred_fallthru
      _
    // Predicated region
    $region18: #{tpu_custom_call.1} parent=1 // pred_check
      _
    $region19: #{tpu_custom_call.1} parent=1 // pred_check_branch
      %57 = sbr.rel (0) target = $region21
    $region20: #{tpu_custom_call.1} parent=1 // pred_region
      %s59 = ssub.s32 64, 64
      %60 = vsyncadd [#allocation9], %s59
      %s62 = sshll.u32 [#allocation8], 4
      %s63 = int_to_ptr.vmem [resolvable:$true] %s62
      %65 = dma.hbm_to_vmem [thread:$0]  %s4, 64, %s63, [#allocation9]
    $region21: #{tpu_custom_call.1} parent=1 // pred_fallthru
      _
    // Predicated region
    $region22: #{tpu_custom_call.1} parent=1 // pred_check
      _
    $region23: #{tpu_custom_call.1} parent=1 // pred_check_branch
      %67 = sbr.rel (0) target = $region25
    $region24: #{tpu_custom_call.1} parent=1 // pred_region
      %s69 = ssub.s32 131072, 131072
      %70 = vsyncadd [#allocation9], %s69
      %s71 = sshll.u32 [#allocation10], 4
      %s72 = int_to_ptr.vmem [resolvable:$true] %s71
      %77 = dma.hbm_to_vmem [thread:$0]  %s5, 131072, %s72, [#allocation9], 2048, 2048, 128
    $region25: #{tpu_custom_call.1} parent=1 // pred_fallthru
      _
    // Predicated region
    $region26: #{tpu_custom_call.1} parent=1 // pred_check
      _
    $region27: #{tpu_custom_call.1} parent=1 // pred_check_branch
      %79 = sbr.rel (0) target = $region29
    $region28: #{tpu_custom_call.1} parent=1 // pred_region
      %s81 = ssub.s32 512, 512
      %82 = vsyncadd [#allocation12], %s81
      %s84 = sshll.u32 [#allocation11], 4
      %s85 = int_to_ptr.vmem [resolvable:$true] %s84
      %87 = dma.hbm_to_vmem [thread:$0]  %s6, 512, %s85, [#allocation12]
    $region29: #{tpu_custom_call.1} parent=1 // pred_fallthru
      _
    // Predicated region
    $region30: #{tpu_custom_call.1} parent=1 // pred_check
      _
    $region31: #{tpu_custom_call.1} parent=1 // pred_check_branch
      %89 = sbr.rel (0) target = $region33
    $region32: #{tpu_custom_call.1} parent=1 // pred_region
      %s91 = ssub.s32 512, 512
      %92 = vsyncadd [#allocation12], %s91
      %s94 = sshll.u32 [#allocation13], 4
      %s95 = int_to_ptr.vmem [resolvable:$true] %s94
      %97 = dma.hbm_to_vmem [thread:$0]  %s7, 512, %s95, [#allocation12]
    $region33: #{tpu_custom_call.1} parent=1 // pred_fallthru
      _
    // Predicated region
    $region34: #{tpu_custom_call.1} parent=1 // pred_check
      _
    $region35: #{tpu_custom_call.1} parent=1 // pred_check_branch
      %99 = sbr.rel (0) target = $region37
    $region36: #{tpu_custom_call.1} parent=1 // pred_region
      %s101 = ssub.s32 512, 512
      %102 = vsyncadd [#allocation15], %s101
      %s104 = sshll.u32 [#allocation14], 4
      %s105 = int_to_ptr.vmem [resolvable:$true] %s104
      %107 = dma.hbm_to_vmem [thread:$0]  %s8, 512, %s105, [#allocation15]
    $region37: #{tpu_custom_call.1} parent=1 // pred_fallthru
      _
    // Predicated region
    $region38: #{tpu_custom_call.1} parent=1 // pred_check
      _
    $region39: #{tpu_custom_call.1} parent=1 // pred_check_branch
      %109 = sbr.rel (0) target = $region41
    $region40: #{tpu_custom_call.1} parent=1 // pred_region
      %110 = dma.done [#allocation3], 128
    $region41: #{tpu_custom_call.1} parent=1 // pred_fallthru
      _
    // Predicated region
    $region42: #{tpu_custom_call.1} parent=1 // pred_check
      _
    $region43: #{tpu_custom_call.1} parent=1 // pred_check_branch
      %112 = sbr.rel (0) target = $region45
    $region44: #{tpu_custom_call.1} parent=1 // pred_region
      %113 = dma.done [#allocation6], 64
    $region45: #{tpu_custom_call.1} parent=1 // pred_fallthru
      _
    // Predicated region
    $region46: #{tpu_custom_call.1} parent=1 // pred_check
      _
    $region47: #{tpu_custom_call.1} parent=1 // pred_check_branch
      %115 = sbr.rel (0) target = $region49
    $region48: #{tpu_custom_call.1} parent=1 // pred_region
      %116 = dma.done [#allocation6], 64
    $region49: #{tpu_custom_call.1} parent=1 // pred_fallthru
      _
    // Predicated region
    $region50: #{tpu_custom_call.1} parent=1 // pred_check
      _
    $region51: #{tpu_custom_call.1} parent=1 // pred_check_branch
      %118 = sbr.rel (0) target = $region53
    $region52: #{tpu_custom_call.1} parent=1 // pred_region
      %119 = dma.done [#allocation9], 64
    $region53: #{tpu_custom_call.1} parent=1 // pred_fallthru
      _
    // Predicated region
    $region54: #{tpu_custom_call.1} parent=1 // pred_check
      _
    $region55: #{tpu_custom_call.1} parent=1 // pred_check_branch
      %121 = sbr.rel (0) target = $region57
    $region56: #{tpu_custom_call.1} parent=1 // pred_region
      %122 = dma.done [#allocation9], 131072
    $region57: #{tpu_custom_call.1} parent=1 // pred_fallthru
      _
    // Predicated region
    $region58: #{tpu_custom_call.1} parent=1 // pred_check
      _
    $region59: #{tpu_custom_call.1} parent=1 // pred_check_branch
      %124 = sbr.rel (0) target = $region61
    $region60: #{tpu_custom_call.1} parent=1 // pred_region
      %125 = dma.done [#allocation12], 512
    $region61: #{tpu_custom_call.1} parent=1 // pred_fallthru
      _
    // Predicated region
    $region62: #{tpu_custom_call.1} parent=1 // pred_check
      _
    $region63: #{tpu_custom_call.1} parent=1 // pred_check_branch
      %127 = sbr.rel (0) target = $region65
    $region64: #{tpu_custom_call.1} parent=1 // pred_region
      %128 = dma.done [#allocation12], 512
    $region65: #{tpu_custom_call.1} parent=1 // pred_fallthru
      _
    // Predicated region
    $region66: #{tpu_custom_call.1} parent=1 // pred_check
      _
    $region67: #{tpu_custom_call.1} parent=1 // pred_check_branch
      %130 = sbr.rel (0) target = $region69
    $region68: #{tpu_custom_call.1} parent=1 // pred_region
      %131 = dma.done [#allocation15], 512
    $region69: #{tpu_custom_call.1} parent=1 // pred_fallthru
      _
    %v132 = vld [vmem:[%s0] sm:$0xff]
    %v133 = vld [vmem:[#allocation2] sm:$0xff]
    %135 = vset.pattern.permute.xlu0 0
    %136 = vperm.xlu0 %135, %v132
    %v137 = vpop.permute.xlu0 %136
    %v140 = vlaneseq
    %v141 = vshrl.u32 %v140, 7
    %v142 = vsub.s32 0, %v141
    %v143 = vrot.slane %v133, %v142
    %v144 = vlaneseq
    %v145 = vshrl.u32 %v144, 7
    %v146 = vsub.s32 2, %v145
    %v147 = vrot.slane %v133, %v146
    %v148 = vlaneseq
    %v149 = vshrl.u32 %v148, 7
    %v150 = vsub.s32 4, %v149
    %v151 = vrot.slane %v133, %v150
    %v152 = vlaneseq
    %v153 = vshrl.u32 %v152, 7
    %v154 = vsub.s32 6, %v153
    %v155 = vrot.slane %v133, %v154
    %v160 = vlaneseq
    %v161 = vshrl.u32 %v160, 7
    %v162 = vsub.s32 0, %v161
    %v163 = vrot.slane %v143, %v162
    %v164 = vlaneseq
    %v165 = vshrl.u32 %v164, 7
    %v166 = vsub.s32 0, %v165
    %v167 = vrot.slane %v147, %v166
    %v168 = vlaneseq
    %v169 = vshrl.u32 %v168, 7
    %v170 = vsub.s32 0, %v169
    %v171 = vrot.slane %v151, %v170
    %v172 = vlaneseq
    %v173 = vshrl.u32 %v172, 7
    %v174 = vsub.s32 0, %v173
    %v175 = vrot.slane %v155, %v174
    %v176 = vmul.f32 %v137, %v163
    %v177 = vmul.f32 %v137, %v167
    %v178 = vmul.f32 %v137, %v171
    %v179 = vmul.f32 %v137, %v175
    %180 = vset.pattern.permute.xlu0 1
    %181 = vperm.xlu0 %180, %v132
    %v182 = vpop.permute.xlu0 %181
    %v184 = vlaneseq
    %v185 = vshrl.u32 %v184, 7
    %v186 = vsub.s32 1, %v185
    %v187 = vrot.slane %v133, %v186
    %v188 = vlaneseq
    %v189 = vshrl.u32 %v188, 7
    %v190 = vsub.s32 3, %v189
    %v191 = vrot.slane %v133, %v190
    %v192 = vlaneseq
    %v193 = vshrl.u32 %v192, 7
    %v194 = vsub.s32 5, %v193
    %v195 = vrot.slane %v133, %v194
    %v196 = vlaneseq
    %v197 = vshrl.u32 %v196, 7
    %v198 = vsub.s32 7, %v197
    %v199 = vrot.slane %v133, %v198
    %v204 = vlaneseq
    %v205 = vshrl.u32 %v204, 7
    %v206 = vsub.s32 1, %v205
    %v207 = vrot.slane %v187, %v206
    %v208 = vlaneseq
    %v209 = vshrl.u32 %v208, 7
    %v210 = vsub.s32 1, %v209
    %v211 = vrot.slane %v191, %v210
    %v212 = vlaneseq
    %v213 = vshrl.u32 %v212, 7
    %v214 = vsub.s32 1, %v213
    %v215 = vrot.slane %v195, %v214
    %v216 = vlaneseq
    %v217 = vshrl.u32 %v216, 7
    %v218 = vsub.s32 1, %v217
    %v219 = vrot.slane %v199, %v218
    %v220 = vmul.f32 %v182, %v207
    %v221 = vmul.f32 %v182, %v211
    %v222 = vmul.f32 %v182, %v215
    %v223 = vmul.f32 %v182, %v219
    %v224 = vadd.f32 %v176, %v220
    %v225 = vadd.f32 %v177, %v221
    %v226 = vadd.f32 %v178, %v222
    %v227 = vadd.f32 %v179, %v223
    %v228 = vld [vmem:[#allocation5] sm:$0xf]
    %v230 = vlaneseq
    %v231 = vshrl.u32 %v230, 7
    %v232 = vsub.s32 0, %v231
    %v233 = vrot.slane %v228, %v232
    %v234 = vlaneseq
    %v235 = vshrl.u32 %v234, 7
    %v236 = vsub.s32 1, %v235
    %v237 = vrot.slane %v228, %v236
    %v238 = vlaneseq
    %v239 = vshrl.u32 %v238, 7
    %v240 = vsub.s32 2, %v239
    %v241 = vrot.slane %v228, %v240
    %v242 = vlaneseq
    %v243 = vshrl.u32 %v242, 7
    %v244 = vsub.s32 3, %v243
    %v245 = vrot.slane %v228, %v244
    %v250 = vadd.f32 %v224, %v233
    %v251 = vadd.f32 %v225, %v237
    %v252 = vadd.f32 %v226, %v241
    %v253 = vadd.f32 %v227, %v245
    %v254 = vmax.f32 %v250, 0.0
    %v255 = vmax.f32 %v251, 0.0
    %v256 = vmax.f32 %v252, 0.0
    %v257 = vmax.f32 %v253, 0.0
    %v258 = vld [vmem:[#allocation7] sm:$0xf]
    %v259 = vld [vmem:[#allocation8] sm:$0xf]
    %v260 = vadd.f32 %v254, %v255
    %v261 = vadd.f32 %v260, %v256
    %v262 = vadd.f32 %v261, %v257
    %263 = vadd.xlane.f32.xlu0 %v262
    %v264 = vpop.xlane.xlu0 %263
    %v265 = vmul.f32 %v264, 0.001953125
    %v266 = vsub.f32 %v254, %v265
    %v267 = vsub.f32 %v255, %v265
    %v268 = vsub.f32 %v256, %v265
    %v269 = vsub.f32 %v257, %v265
    %v270 = vmul.f32 %v266, %v266
    %v271 = vmul.f32 %v267, %v267
    %v272 = vmul.f32 %v268, %v268
    %v273 = vmul.f32 %v269, %v269
    %v274 = vadd.f32 %v270, %v271
    %v275 = vadd.f32 %v274, %v272
    %v276 = vadd.f32 %v275, %v273
    %277 = vadd.xlane.f32.xlu0 %v276
    %v278 = vpop.xlane.xlu0 %277
    %v279 = vmul.f32 %v278, 0.001953125
    %v280 = vadd.f32 %v279, 1e-05
    %v281 = vrsqrt.pop %v280
    %v282 = vmul.f32 %v266, %v281
    %v283 = vmul.f32 %v267, %v281
    %v284 = vmul.f32 %v268, %v281
    %v285 = vmul.f32 %v269, %v281
    %v287 = vlaneseq
    %v288 = vshrl.u32 %v287, 7
    %v289 = vsub.s32 0, %v288
    %v290 = vrot.slane %v258, %v289
    %v291 = vlaneseq
    %v292 = vshrl.u32 %v291, 7
    %v293 = vsub.s32 1, %v292
    %v294 = vrot.slane %v258, %v293
    %v295 = vlaneseq
    %v296 = vshrl.u32 %v295, 7
    %v297 = vsub.s32 2, %v296
    %v298 = vrot.slane %v258, %v297
    %v299 = vlaneseq
    %v300 = vshrl.u32 %v299, 7
    %v301 = vsub.s32 3, %v300
    %v302 = vrot.slane %v258, %v301
    %v307 = vmul.f32 %v282, %v290
    %v308 = vmul.f32 %v283, %v294
    %v309 = vmul.f32 %v284, %v298
    %v310 = vmul.f32 %v285, %v302
    %v312 = vlaneseq
    %v313 = vshrl.u32 %v312, 7
    %v314 = vsub.s32 0, %v313
    %v315 = vrot.slane %v259, %v314
    %v316 = vlaneseq
    %v317 = vshrl.u32 %v316, 7
    %v318 = vsub.s32 1, %v317
    %v319 = vrot.slane %v259, %v318
    %v320 = vlaneseq
    %v321 = vshrl.u32 %v320, 7
    %v322 = vsub.s32 2, %v321
    %v323 = vrot.slane %v259, %v322
    %v324 = vlaneseq
    %v325 = vshrl.u32 %v324, 7
    %v326 = vsub.s32 3, %v325
    %v327 = vrot.slane %v259, %v326
    %v332 = vadd.f32 %v307, %v315
    %v333 = vadd.f32 %v308, %v319
    %v334 = vadd.f32 %v309, %v323
    %v335 = vadd.f32 %v310, %v327
    %v336 = vpack.c.bf16 %v332, %v332
    %v337 = vpack.c.bf16 %v333, %v333
    %v338 = vpack.c.bf16 %v334, %v334
    %v339 = vpack.c.bf16 %v335, %v335
    %v340 = vld [vmem:[#allocation10] sm:$0xff]
    %v341 = vld [vmem:[#allocation10 + $0x8] sm:$0xff]
    %v342 = vld [vmem:[#allocation10 + $0x10] sm:$0xff]
    %v343 = vld [vmem:[#allocation10 + $0x18] sm:$0xff]
    %v344 = vld [vmem:[#allocation10 + $0x20] sm:$0xff]
    %v345 = vld [vmem:[#allocation10 + $0x28] sm:$0xff]
    %v346 = vld [vmem:[#allocation10 + $0x30] sm:$0xff]
    %v347 = vld [vmem:[#allocation10 + $0x38] sm:$0xff]
    %v348 = vld [vmem:[#allocation10 + $0x40] sm:$0xff]
    %v349 = vld [vmem:[#allocation10 + $0x48] sm:$0xff]
    %v350 = vld [vmem:[#allocation10 + $0x50] sm:$0xff]
    %v351 = vld [vmem:[#allocation10 + $0x58] sm:$0xff]
    %v352 = vld [vmem:[#allocation10 + $0x60] sm:$0xff]
    %v353 = vld [vmem:[#allocation10 + $0x68] sm:$0xff]
    %v354 = vld [vmem:[#allocation10 + $0x70] sm:$0xff]
    %v355 = vld [vmem:[#allocation10 + $0x78] sm:$0xff]
    %v356 = vld [vmem:[#allocation10 + $0x80] sm:$0xff]
    %v357 = vld [vmem:[#allocation10 + $0x88] sm:$0xff]
    %v358 = vld [vmem:[#allocation10 + $0x90] sm:$0xff]
    %v359 = vld [vmem:[#allocation10 + $0x98] sm:$0xff]
    %v360 = vld [vmem:[#allocation10 + $0xa0] sm:$0xff]
    %v361 = vld [vmem:[#allocation10 + $0xa8] sm:$0xff]
    %v362 = vld [vmem:[#allocation10 + $0xb0] sm:$0xff]
    %v363 = vld [vmem:[#allocation10 + $0xb8] sm:$0xff]
    %v364 = vld [vmem:[#allocation10 + $0xc0] sm:$0xff]
    %v365 = vld [vmem:[#allocation10 + $0xc8] sm:$0xff]
    %v366 = vld [vmem:[#allocation10 + $0xd0] sm:$0xff]
    %v367 = vld [vmem:[#allocation10 + $0xd8] sm:$0xff]
    %v368 = vld [vmem:[#allocation10 + $0xe0] sm:$0xff]
    %v369 = vld [vmem:[#allocation10 + $0xe8] sm:$0xff]
    %v370 = vld [vmem:[#allocation10 + $0xf0] sm:$0xff]
    %v371 = vld [vmem:[#allocation10 + $0xf8] sm:$0xff]
    %v372 = vld [vmem:[#allocation10 + $0x100] sm:$0xff]
    %v373 = vld [vmem:[#allocation10 + $0x108] sm:$0xff]
    %v374 = vld [vmem:[#allocation10 + $0x110] sm:$0xff]
    %v375 = vld [vmem:[#allocation10 + $0x118] sm:$0xff]
    %v376 = vld [vmem:[#allocation10 + $0x120] sm:$0xff]
    %v377 = vld [vmem:[#allocation10 + $0x128] sm:$0xff]
    %v378 = vld [vmem:[#allocation10 + $0x130] sm:$0xff]
    %v379 = vld [vmem:[#allocation10 + $0x138] sm:$0xff]
    %v380 = vld [vmem:[#allocation10 + $0x140] sm:$0xff]
    %v381 = vld [vmem:[#allocation10 + $0x148] sm:$0xff]
    %v382 = vld [vmem:[#allocation10 + $0x150] sm:$0xff]
    %v383 = vld [vmem:[#allocation10 + $0x158] sm:$0xff]
    %v384 = vld [vmem:[#allocation10 + $0x160] sm:$0xff]
    %v385 = vld [vmem:[#allocation10 + $0x168] sm:$0xff]
    %v386 = vld [vmem:[#allocation10 + $0x170] sm:$0xff]
    %v387 = vld [vmem:[#allocation10 + $0x178] sm:$0xff]
    %v388 = vld [vmem:[#allocation10 + $0x180] sm:$0xff]
    %v389 = vld [vmem:[#allocation10 + $0x188] sm:$0xff]
    %v390 = vld [vmem:[#allocation10 + $0x190] sm:$0xff]
    %v391 = vld [vmem:[#allocation10 + $0x198] sm:$0xff]
    %v392 = vld [vmem:[#allocation10 + $0x1a0] sm:$0xff]
    %v393 = vld [vmem:[#allocation10 + $0x1a8] sm:$0xff]
    %v394 = vld [vmem:[#allocation10 + $0x1b0] sm:$0xff]
    %v395 = vld [vmem:[#allocation10 + $0x1b8] sm:$0xff]
    %v396 = vld [vmem:[#allocation10 + $0x1c0] sm:$0xff]
    %v397 = vld [vmem:[#allocation10 + $0x1c8] sm:$0xff]
    %v398 = vld [vmem:[#allocation10 + $0x1d0] sm:$0xff]
    %v399 = vld [vmem:[#allocation10 + $0x1d8] sm:$0xff]
    %v400 = vld [vmem:[#allocation10 + $0x1e0] sm:$0xff]
    %v401 = vld [vmem:[#allocation10 + $0x1e8] sm:$0xff]
    %v402 = vld [vmem:[#allocation10 + $0x1f0] sm:$0xff]
    %v403 = vld [vmem:[#allocation10 + $0x1f8] sm:$0xff]
    %v404 = vld [vmem:[#allocation10 + $0x200] sm:$0xff]
    %v405 = vld [vmem:[#allocation10 + $0x208] sm:$0xff]
    %v406 = vld [vmem:[#allocation10 + $0x210] sm:$0xff]
    %v407 = vld [vmem:[#allocation10 + $0x218] sm:$0xff]
    %v408 = vld [vmem:[#allocation10 + $0x220] sm:$0xff]
    %v409 = vld [vmem:[#allocation10 + $0x228] sm:$0xff]
    %v410 = vld [vmem:[#allocation10 + $0x230] sm:$0xff]
    %v411 = vld [vmem:[#allocation10 + $0x238] sm:$0xff]
    %v412 = vld [vmem:[#allocation10 + $0x240] sm:$0xff]
    %v413 = vld [vmem:[#allocation10 + $0x248] sm:$0xff]
    %v414 = vld [vmem:[#allocation10 + $0x250] sm:$0xff]
    %v415 = vld [vmem:[#allocation10 + $0x258] sm:$0xff]
    %v416 = vld [vmem:[#allocation10 + $0x260] sm:$0xff]
    %v417 = vld [vmem:[#allocation10 + $0x268] sm:$0xff]
    %v418 = vld [vmem:[#allocation10 + $0x270] sm:$0xff]
    %v419 = vld [vmem:[#allocation10 + $0x278] sm:$0xff]
    %v420 = vld [vmem:[#allocation10 + $0x280] sm:$0xff]
    %v421 = vld [vmem:[#allocation10 + $0x288] sm:$0xff]
    %v422 = vld [vmem:[#allocation10 + $0x290] sm:$0xff]
    %v423 = vld [vmem:[#allocation10 + $0x298] sm:$0xff]
    %v424 = vld [vmem:[#allocation10 + $0x2a0] sm:$0xff]
    %v425 = vld [vmem:[#allocation10 + $0x2a8] sm:$0xff]
    %v426 = vld [vmem:[#allocation10 + $0x2b0] sm:$0xff]
    %v427 = vld [vmem:[#allocation10 + $0x2b8] sm:$0xff]
    %v428 = vld [vmem:[#allocation10 + $0x2c0] sm:$0xff]
    %v429 = vld [vmem:[#allocation10 + $0x2c8] sm:$0xff]
    %v430 = vld [vmem:[#allocation10 + $0x2d0] sm:$0xff]
    %v431 = vld [vmem:[#allocation10 + $0x2d8] sm:$0xff]
    %v432 = vld [vmem:[#allocation10 + $0x2e0] sm:$0xff]
    %v433 = vld [vmem:[#allocation10 + $0x2e8] sm:$0xff]
    %v434 = vld [vmem:[#allocation10 + $0x2f0] sm:$0xff]
    %v435 = vld [vmem:[#allocation10 + $0x2f8] sm:$0xff]
    %v436 = vld [vmem:[#allocation10 + $0x300] sm:$0xff]
    %v437 = vld [vmem:[#allocation10 + $0x308] sm:$0xff]
    %v438 = vld [vmem:[#allocation10 + $0x310] sm:$0xff]
    %v439 = vld [vmem:[#allocation10 + $0x318] sm:$0xff]
    %v440 = vld [vmem:[#allocation10 + $0x320] sm:$0xff]
    %v441 = vld [vmem:[#allocation10 + $0x328] sm:$0xff]
    %v442 = vld [vmem:[#allocation10 + $0x330] sm:$0xff]
    %v443 = vld [vmem:[#allocation10 + $0x338] sm:$0xff]
    %v444 = vld [vmem:[#allocation10 + $0x340] sm:$0xff]
    %v445 = vld [vmem:[#allocation10 + $0x348] sm:$0xff]
    %v446 = vld [vmem:[#allocation10 + $0x350] sm:$0xff]
    %v447 = vld [vmem:[#allocation10 + $0x358] sm:$0xff]
    %v448 = vld [vmem:[#allocation10 + $0x360] sm:$0xff]
    %v449 = vld [vmem:[#allocation10 + $0x368] sm:$0xff]
    %v450 = vld [vmem:[#allocation10 + $0x370] sm:$0xff]
    %v451 = vld [vmem:[#allocation10 + $0x378] sm:$0xff]
    %v452 = vld [vmem:[#allocation10 + $0x380] sm:$0xff]
    %v453 = vld [vmem:[#allocation10 + $0x388] sm:$0xff]
    %v454 = vld [vmem:[#allocation10 + $0x390] sm:$0xff]
    %v455 = vld [vmem:[#allocation10 + $0x398] sm:$0xff]
    %v456 = vld [vmem:[#allocation10 + $0x3a0] sm:$0xff]
    %v457 = vld [vmem:[#allocation10 + $0x3a8] sm:$0xff]
    %v458 = vld [vmem:[#allocation10 + $0x3b0] sm:$0xff]
    %v459 = vld [vmem:[#allocation10 + $0x3b8] sm:$0xff]
    %v460 = vld [vmem:[#allocation10 + $0x3c0] sm:$0xff]
    %v461 = vld [vmem:[#allocation10 + $0x3c8] sm:$0xff]
    %v462 = vld [vmem:[#allocation10 + $0x3d0] sm:$0xff]
    %v463 = vld [vmem:[#allocation10 + $0x3d8] sm:$0xff]
    %v464 = vld [vmem:[#allocation10 + $0x3e0] sm:$0xff]
    %v465 = vld [vmem:[#allocation10 + $0x3e8] sm:$0xff]
    %v466 = vld [vmem:[#allocation10 + $0x3f0] sm:$0xff]
    %v467 = vld [vmem:[#allocation10 + $0x3f8] sm:$0xff]
    %v468 = vld [vmem:[#allocation10 + $0x400] sm:$0xff]
    %v469 = vld [vmem:[#allocation10 + $0x408] sm:$0xff]
    %v470 = vld [vmem:[#allocation10 + $0x410] sm:$0xff]
    %v471 = vld [vmem:[#allocation10 + $0x418] sm:$0xff]
    %v472 = vld [vmem:[#allocation10 + $0x420] sm:$0xff]
    %v473 = vld [vmem:[#allocation10 + $0x428] sm:$0xff]
    %v474 = vld [vmem:[#allocation10 + $0x430] sm:$0xff]
    %v475 = vld [vmem:[#allocation10 + $0x438] sm:$0xff]
    %v476 = vld [vmem:[#allocation10 + $0x440] sm:$0xff]
    %v477 = vld [vmem:[#allocation10 + $0x448] sm:$0xff]
    %v478 = vld [vmem:[#allocation10 + $0x450] sm:$0xff]
    %v479 = vld [vmem:[#allocation10 + $0x458] sm:$0xff]
    %v480 = vld [vmem:[#allocation10 + $0x460] sm:$0xff]
    %v481 = vld [vmem:[#allocation10 + $0x468] sm:$0xff]
    %v482 = vld [vmem:[#allocation10 + $0x470] sm:$0xff]
    %v483 = vld [vmem:[#allocation10 + $0x478] sm:$0xff]
    %v484 = vld [vmem:[#allocation10 + $0x480] sm:$0xff]
    %v485 = vld [vmem:[#allocation10 + $0x488] sm:$0xff]
    %v486 = vld [vmem:[#allocation10 + $0x490] sm:$0xff]
    %v487 = vld [vmem:[#allocation10 + $0x498] sm:$0xff]
    %v488 = vld [vmem:[#allocation10 + $0x4a0] sm:$0xff]
    %v489 = vld [vmem:[#allocation10 + $0x4a8] sm:$0xff]
    %v490 = vld [vmem:[#allocation10 + $0x4b0] sm:$0xff]
    %v491 = vld [vmem:[#allocation10 + $0x4b8] sm:$0xff]
    %v492 = vld [vmem:[#allocation10 + $0x4c0] sm:$0xff]
    %v493 = vld [vmem:[#allocation10 + $0x4c8] sm:$0xff]
    %v494 = vld [vmem:[#allocation10 + $0x4d0] sm:$0xff]
    %v495 = vld [vmem:[#allocation10 + $0x4d8] sm:$0xff]
    %v496 = vld [vmem:[#allocation10 + $0x4e0] sm:$0xff]
    %v497 = vld [vmem:[#allocation10 + $0x4e8] sm:$0xff]
    %v498 = vld [vmem:[#allocation10 + $0x4f0] sm:$0xff]
    %v499 = vld [vmem:[#allocation10 + $0x4f8] sm:$0xff]
    %v500 = vld [vmem:[#allocation10 + $0x500] sm:$0xff]
    %v501 = vld [vmem:[#allocation10 + $0x508] sm:$0xff]
    %v502 = vld [vmem:[#allocation10 + $0x510] sm:$0xff]
    %v503 = vld [vmem:[#allocation10 + $0x518] sm:$0xff]
    %v504 = vld [vmem:[#allocation10 + $0x520] sm:$0xff]
    %v505 = vld [vmem:[#allocation10 + $0x528] sm:$0xff]
    %v506 = vld [vmem:[#allocation10 + $0x530] sm:$0xff]
    %v507 = vld [vmem:[#allocation10 + $0x538] sm:$0xff]
    %v508 = vld [vmem:[#allocation10 + $0x540] sm:$0xff]
    %v509 = vld [vmem:[#allocation10 + $0x548] sm:$0xff]
    %v510 = vld [vmem:[#allocation10 + $0x550] sm:$0xff]
    %v511 = vld [vmem:[#allocation10 + $0x558] sm:$0xff]
    %v512 = vld [vmem:[#allocation10 + $0x560] sm:$0xff]
    %v513 = vld [vmem:[#allocation10 + $0x568] sm:$0xff]
    %v514 = vld [vmem:[#allocation10 + $0x570] sm:$0xff]
    %v515 = vld [vmem:[#allocation10 + $0x578] sm:$0xff]
    %v516 = vld [vmem:[#allocation10 + $0x580] sm:$0xff]
    %v517 = vld [vmem:[#allocation10 + $0x588] sm:$0xff]
    %v518 = vld [vmem:[#allocation10 + $0x590] sm:$0xff]
    %v519 = vld [vmem:[#allocation10 + $0x598] sm:$0xff]
    %v520 = vld [vmem:[#allocation10 + $0x5a0] sm:$0xff]
    %v521 = vld [vmem:[#allocation10 + $0x5a8] sm:$0xff]
    %v522 = vld [vmem:[#allocation10 + $0x5b0] sm:$0xff]
    %v523 = vld [vmem:[#allocation10 + $0x5b8] sm:$0xff]
    %v524 = vld [vmem:[#allocation10 + $0x5c0] sm:$0xff]
    %v525 = vld [vmem:[#allocation10 + $0x5c8] sm:$0xff]
    %v526 = vld [vmem:[#allocation10 + $0x5d0] sm:$0xff]
    %v527 = vld [vmem:[#allocation10 + $0x5d8] sm:$0xff]
    %v528 = vld [vmem:[#allocation10 + $0x5e0] sm:$0xff]
    %v529 = vld [vmem:[#allocation10 + $0x5e8] sm:$0xff]
    %v530 = vld [vmem:[#allocation10 + $0x5f0] sm:$0xff]
    %v531 = vld [vmem:[#allocation10 + $0x5f8] sm:$0xff]
    %v532 = vld [vmem:[#allocation10 + $0x600] sm:$0xff]
    %v533 = vld [vmem:[#allocation10 + $0x608] sm:$0xff]
    %v534 = vld [vmem:[#allocation10 + $0x610] sm:$0xff]
    %v535 = vld [vmem:[#allocation10 + $0x618] sm:$0xff]
    %v536 = vld [vmem:[#allocation10 + $0x620] sm:$0xff]
    %v537 = vld [vmem:[#allocation10 + $0x628] sm:$0xff]
    %v538 = vld [vmem:[#allocation10 + $0x630] sm:$0xff]
    %v539 = vld [vmem:[#allocation10 + $0x638] sm:$0xff]
    %v540 = vld [vmem:[#allocation10 + $0x640] sm:$0xff]
    %v541 = vld [vmem:[#allocation10 + $0x648] sm:$0xff]
    %v542 = vld [vmem:[#allocation10 + $0x650] sm:$0xff]
    %v543 = vld [vmem:[#allocation10 + $0x658] sm:$0xff]
    %v544 = vld [vmem:[#allocation10 + $0x660] sm:$0xff]
    %v545 = vld [vmem:[#allocation10 + $0x668] sm:$0xff]
    %v546 = vld [vmem:[#allocation10 + $0x670] sm:$0xff]
    %v547 = vld [vmem:[#allocation10 + $0x678] sm:$0xff]
    %v548 = vld [vmem:[#allocation10 + $0x680] sm:$0xff]
    %v549 = vld [vmem:[#allocation10 + $0x688] sm:$0xff]
    %v550 = vld [vmem:[#allocation10 + $0x690] sm:$0xff]
    %v551 = vld [vmem:[#allocation10 + $0x698] sm:$0xff]
    %v552 = vld [vmem:[#allocation10 + $0x6a0] sm:$0xff]
    %v553 = vld [vmem:[#allocation10 + $0x6a8] sm:$0xff]
    %v554 = vld [vmem:[#allocation10 + $0x6b0] sm:$0xff]
    %v555 = vld [vmem:[#allocation10 + $0x6b8] sm:$0xff]
    %v556 = vld [vmem:[#allocation10 + $0x6c0] sm:$0xff]
    %v557 = vld [vmem:[#allocation10 + $0x6c8] sm:$0xff]
    %v558 = vld [vmem:[#allocation10 + $0x6d0] sm:$0xff]
    %v559 = vld [vmem:[#allocation10 + $0x6d8] sm:$0xff]
    %v560 = vld [vmem:[#allocation10 + $0x6e0] sm:$0xff]
    %v561 = vld [vmem:[#allocation10 + $0x6e8] sm:$0xff]
    %v562 = vld [vmem:[#allocation10 + $0x6f0] sm:$0xff]
    %v563 = vld [vmem:[#allocation10 + $0x6f8] sm:$0xff]
    %v564 = vld [vmem:[#allocation10 + $0x700] sm:$0xff]
    %v565 = vld [vmem:[#allocation10 + $0x708] sm:$0xff]
    %v566 = vld [vmem:[#allocation10 + $0x710] sm:$0xff]
    %v567 = vld [vmem:[#allocation10 + $0x718] sm:$0xff]
    %v568 = vld [vmem:[#allocation10 + $0x720] sm:$0xff]
    %v569 = vld [vmem:[#allocation10 + $0x728] sm:$0xff]
    %v570 = vld [vmem:[#allocation10 + $0x730] sm:$0xff]
    %v571 = vld [vmem:[#allocation10 + $0x738] sm:$0xff]
    %v572 = vld [vmem:[#allocation10 + $0x740] sm:$0xff]
    %v573 = vld [vmem:[#allocation10 + $0x748] sm:$0xff]
    %v574 = vld [vmem:[#allocation10 + $0x750] sm:$0xff]
    %v575 = vld [vmem:[#allocation10 + $0x758] sm:$0xff]
    %v576 = vld [vmem:[#allocation10 + $0x760] sm:$0xff]
    %v577 = vld [vmem:[#allocation10 + $0x768] sm:$0xff]
    %v578 = vld [vmem:[#allocation10 + $0x770] sm:$0xff]
    %v579 = vld [vmem:[#allocation10 + $0x778] sm:$0xff]
    %v580 = vld [vmem:[#allocation10 + $0x780] sm:$0xff]
    %v581 = vld [vmem:[#allocation10 + $0x788] sm:$0xff]
    %v582 = vld [vmem:[#allocation10 + $0x790] sm:$0xff]
    %v583 = vld [vmem:[#allocation10 + $0x798] sm:$0xff]
    %v584 = vld [vmem:[#allocation10 + $0x7a0] sm:$0xff]
    %v585 = vld [vmem:[#allocation10 + $0x7a8] sm:$0xff]
    %v586 = vld [vmem:[#allocation10 + $0x7b0] sm:$0xff]
    %v587 = vld [vmem:[#allocation10 + $0x7b8] sm:$0xff]
    %v588 = vld [vmem:[#allocation10 + $0x7c0] sm:$0xff]
    %v589 = vld [vmem:[#allocation10 + $0x7c8] sm:$0xff]
    %v590 = vld [vmem:[#allocation10 + $0x7d0] sm:$0xff]
    %v591 = vld [vmem:[#allocation10 + $0x7d8] sm:$0xff]
    %v592 = vld [vmem:[#allocation10 + $0x7e0] sm:$0xff]
    %v593 = vld [vmem:[#allocation10 + $0x7e8] sm:$0xff]
    %v594 = vld [vmem:[#allocation10 + $0x7f0] sm:$0xff]
    %v595 = vld [vmem:[#allocation10 + $0x7f8] sm:$0xff]
    %v596 = vld [vmem:[#allocation10 + $0x800] sm:$0xff]
    %v597 = vld [vmem:[#allocation10 + $0x808] sm:$0xff]
    %v598 = vld [vmem:[#allocation10 + $0x810] sm:$0xff]
    %v599 = vld [vmem:[#allocation10 + $0x818] sm:$0xff]
    %v600 = vld [vmem:[#allocation10 + $0x820] sm:$0xff]
    %v601 = vld [vmem:[#allocation10 + $0x828] sm:$0xff]
    %v602 = vld [vmem:[#allocation10 + $0x830] sm:$0xff]
    %v603 = vld [vmem:[#allocation10 + $0x838] sm:$0xff]
    %v604 = vld [vmem:[#allocation10 + $0x840] sm:$0xff]
    %v605 = vld [vmem:[#allocation10 + $0x848] sm:$0xff]
    %v606 = vld [vmem:[#allocation10 + $0x850] sm:$0xff]
    %v607 = vld [vmem:[#allocation10 + $0x858] sm:$0xff]
    %v608 = vld [vmem:[#allocation10 + $0x860] sm:$0xff]
    %v609 = vld [vmem:[#allocation10 + $0x868] sm:$0xff]
    %v610 = vld [vmem:[#allocation10 + $0x870] sm:$0xff]
    %v611 = vld [vmem:[#allocation10 + $0x878] sm:$0xff]
    %v612 = vld [vmem:[#allocation10 + $0x880] sm:$0xff]
    %v613 = vld [vmem:[#allocation10 + $0x888] sm:$0xff]
    %v614 = vld [vmem:[#allocation10 + $0x890] sm:$0xff]
    %v615 = vld [vmem:[#allocation10 + $0x898] sm:$0xff]
    %v616 = vld [vmem:[#allocation10 + $0x8a0] sm:$0xff]
    %v617 = vld [vmem:[#allocation10 + $0x8a8] sm:$0xff]
    %v618 = vld [vmem:[#allocation10 + $0x8b0] sm:$0xff]
    %v619 = vld [vmem:[#allocation10 + $0x8b8] sm:$0xff]
    %v620 = vld [vmem:[#allocation10 + $0x8c0] sm:$0xff]
    %v621 = vld [vmem:[#allocation10 + $0x8c8] sm:$0xff]
    %v622 = vld [vmem:[#allocation10 + $0x8d0] sm:$0xff]
    %v623 = vld [vmem:[#allocation10 + $0x8d8] sm:$0xff]
    %v624 = vld [vmem:[#allocation10 + $0x8e0] sm:$0xff]
    %v625 = vld [vmem:[#allocation10 + $0x8e8] sm:$0xff]
    %v626 = vld [vmem:[#allocation10 + $0x8f0] sm:$0xff]
    %v627 = vld [vmem:[#allocation10 + $0x8f8] sm:$0xff]
    %v628 = vld [vmem:[#allocation10 + $0x900] sm:$0xff]
    %v629 = vld [vmem:[#allocation10 + $0x908] sm:$0xff]
    %v630 = vld [vmem:[#allocation10 + $0x910] sm:$0xff]
    %v631 = vld [vmem:[#allocation10 + $0x918] sm:$0xff]
    %v632 = vld [vmem:[#allocation10 + $0x920] sm:$0xff]
    %v633 = vld [vmem:[#allocation10 + $0x928] sm:$0xff]
    %v634 = vld [vmem:[#allocation10 + $0x930] sm:$0xff]
    %v635 = vld [vmem:[#allocation10 + $0x938] sm:$0xff]
    %v636 = vld [vmem:[#allocation10 + $0x940] sm:$0xff]
    %v637 = vld [vmem:[#allocation10 + $0x948] sm:$0xff]
    %v638 = vld [vmem:[#allocation10 + $0x950] sm:$0xff]
    %v639 = vld [vmem:[#allocation10 + $0x958] sm:$0xff]
    %v640 = vld [vmem:[#allocation10 + $0x960] sm:$0xff]
    %v641 = vld [vmem:[#allocation10 + $0x968] sm:$0xff]
    %v642 = vld [vmem:[#allocation10 + $0x970] sm:$0xff]
    %v643 = vld [vmem:[#allocation10 + $0x978] sm:$0xff]
    %v644 = vld [vmem:[#allocation10 + $0x980] sm:$0xff]
    %v645 = vld [vmem:[#allocation10 + $0x988] sm:$0xff]
    %v646 = vld [vmem:[#allocation10 + $0x990] sm:$0xff]
    %v647 = vld [vmem:[#allocation10 + $0x998] sm:$0xff]
    %v648 = vld [vmem:[#allocation10 + $0x9a0] sm:$0xff]
    %v649 = vld [vmem:[#allocation10 + $0x9a8] sm:$0xff]
    %v650 = vld [vmem:[#allocation10 + $0x9b0] sm:$0xff]
    %v651 = vld [vmem:[#allocation10 + $0x9b8] sm:$0xff]
    %v652 = vld [vmem:[#allocation10 + $0x9c0] sm:$0xff]
    %v653 = vld [vmem:[#allocation10 + $0x9c8] sm:$0xff]
    %v654 = vld [vmem:[#allocation10 + $0x9d0] sm:$0xff]
    %v655 = vld [vmem:[#allocation10 + $0x9d8] sm:$0xff]
    %v656 = vld [vmem:[#allocation10 + $0x9e0] sm:$0xff]
    %v657 = vld [vmem:[#allocation10 + $0x9e8] sm:$0xff]
    %v658 = vld [vmem:[#allocation10 + $0x9f0] sm:$0xff]
    %v659 = vld [vmem:[#allocation10 + $0x9f8] sm:$0xff]
    %v660 = vld [vmem:[#allocation10 + $0xa00] sm:$0xff]
    %v661 = vld [vmem:[#allocation10 + $0xa08] sm:$0xff]
    %v662 = vld [vmem:[#allocation10 + $0xa10] sm:$0xff]
    %v663 = vld [vmem:[#allocation10 + $0xa18] sm:$0xff]
    %v664 = vld [vmem:[#allocation10 + $0xa20] sm:$0xff]
    %v665 = vld [vmem:[#allocation10 + $0xa28] sm:$0xff]
    %v666 = vld [vmem:[#allocation10 + $0xa30] sm:$0xff]
    %v667 = vld [vmem:[#allocation10 + $0xa38] sm:$0xff]
    %v668 = vld [vmem:[#allocation10 + $0xa40] sm:$0xff]
    %v669 = vld [vmem:[#allocation10 + $0xa48] sm:$0xff]
    %v670 = vld [vmem:[#allocation10 + $0xa50] sm:$0xff]
    %v671 = vld [vmem:[#allocation10 + $0xa58] sm:$0xff]
    %v672 = vld [vmem:[#allocation10 + $0xa60] sm:$0xff]
    %v673 = vld [vmem:[#allocation10 + $0xa68] sm:$0xff]
    %v674 = vld [vmem:[#allocation10 + $0xa70] sm:$0xff]
    %v675 = vld [vmem:[#allocation10 + $0xa78] sm:$0xff]
    %v676 = vld [vmem:[#allocation10 + $0xa80] sm:$0xff]
    %v677 = vld [vmem:[#allocation10 + $0xa88] sm:$0xff]
    %v678 = vld [vmem:[#allocation10 + $0xa90] sm:$0xff]
    %v679 = vld [vmem:[#allocation10 + $0xa98] sm:$0xff]
    %v680 = vld [vmem:[#allocation10 + $0xaa0] sm:$0xff]
    %v681 = vld [vmem:[#allocation10 + $0xaa8] sm:$0xff]
    %v682 = vld [vmem:[#allocation10 + $0xab0] sm:$0xff]
    %v683 = vld [vmem:[#allocation10 + $0xab8] sm:$0xff]
    %v684 = vld [vmem:[#allocation10 + $0xac0] sm:$0xff]
    %v685 = vld [vmem:[#allocation10 + $0xac8] sm:$0xff]
    %v686 = vld [vmem:[#allocation10 + $0xad0] sm:$0xff]
    %v687 = vld [vmem:[#allocation10 + $0xad8] sm:$0xff]
    %v688 = vld [vmem:[#allocation10 + $0xae0] sm:$0xff]
    %v689 = vld [vmem:[#allocation10 + $0xae8] sm:$0xff]
    %v690 = vld [vmem:[#allocation10 + $0xaf0] sm:$0xff]
    %v691 = vld [vmem:[#allocation10 + $0xaf8] sm:$0xff]
    %v692 = vld [vmem:[#allocation10 + $0xb00] sm:$0xff]
    %v693 = vld [vmem:[#allocation10 + $0xb08] sm:$0xff]
    %v694 = vld [vmem:[#allocation10 + $0xb10] sm:$0xff]
    %v695 = vld [vmem:[#allocation10 + $0xb18] sm:$0xff]
    %v696 = vld [vmem:[#allocation10 + $0xb20] sm:$0xff]
    %v697 = vld [vmem:[#allocation10 + $0xb28] sm:$0xff]
    %v698 = vld [vmem:[#allocation10 + $0xb30] sm:$0xff]
    %v699 = vld [vmem:[#allocation10 + $0xb38] sm:$0xff]
    %v700 = vld [vmem:[#allocation10 + $0xb40] sm:$0xff]
    %v701 = vld [vmem:[#allocation10 + $0xb48] sm:$0xff]
    %v702 = vld [vmem:[#allocation10 + $0xb50] sm:$0xff]
    %v703 = vld [vmem:[#allocation10 + $0xb58] sm:$0xff]
    %v704 = vld [vmem:[#allocation10 + $0xb60] sm:$0xff]
    %v705 = vld [vmem:[#allocation10 + $0xb68] sm:$0xff]
    %v706 = vld [vmem:[#allocation10 + $0xb70] sm:$0xff]
    %v707 = vld [vmem:[#allocation10 + $0xb78] sm:$0xff]
    %v708 = vld [vmem:[#allocation10 + $0xb80] sm:$0xff]
    %v709 = vld [vmem:[#allocation10 + $0xb88] sm:$0xff]
    %v710 = vld [vmem:[#allocation10 + $0xb90] sm:$0xff]
    %v711 = vld [vmem:[#allocation10 + $0xb98] sm:$0xff]
    %v712 = vld [vmem:[#allocation10 + $0xba0] sm:$0xff]
    %v713 = vld [vmem:[#allocation10 + $0xba8] sm:$0xff]
    %v714 = vld [vmem:[#allocation10 + $0xbb0] sm:$0xff]
    %v715 = vld [vmem:[#allocation10 + $0xbb8] sm:$0xff]
    %v716 = vld [vmem:[#allocation10 + $0xbc0] sm:$0xff]
    %v717 = vld [vmem:[#allocation10 + $0xbc8] sm:$0xff]
    %v718 = vld [vmem:[#allocation10 + $0xbd0] sm:$0xff]
    %v719 = vld [vmem:[#allocation10 + $0xbd8] sm:$0xff]
    %v720 = vld [vmem:[#allocation10 + $0xbe0] sm:$0xff]
    %v721 = vld [vmem:[#allocation10 + $0xbe8] sm:$0xff]
    %v722 = vld [vmem:[#allocation10 + $0xbf0] sm:$0xff]
    %v723 = vld [vmem:[#allocation10 + $0xbf8] sm:$0xff]
    %v724 = vld [vmem:[#allocation10 + $0xc00] sm:$0xff]
    %v725 = vld [vmem:[#allocation10 + $0xc08] sm:$0xff]
    %v726 = vld [vmem:[#allocation10 + $0xc10] sm:$0xff]
    %v727 = vld [vmem:[#allocation10 + $0xc18] sm:$0xff]
    %v728 = vld [vmem:[#allocation10 + $0xc20] sm:$0xff]
    %v729 = vld [vmem:[#allocation10 + $0xc28] sm:$0xff]
    %v730 = vld [vmem:[#allocation10 + $0xc30] sm:$0xff]
    %v731 = vld [vmem:[#allocation10 + $0xc38] sm:$0xff]
    %v732 = vld [vmem:[#allocation10 + $0xc40] sm:$0xff]
    %v733 = vld [vmem:[#allocation10 + $0xc48] sm:$0xff]
    %v734 = vld [vmem:[#allocation10 + $0xc50] sm:$0xff]
    %v735 = vld [vmem:[#allocation10 + $0xc58] sm:$0xff]
    %v736 = vld [vmem:[#allocation10 + $0xc60] sm:$0xff]
    %v737 = vld [vmem:[#allocation10 + $0xc68] sm:$0xff]
    %v738 = vld [vmem:[#allocation10 + $0xc70] sm:$0xff]
    %v739 = vld [vmem:[#allocation10 + $0xc78] sm:$0xff]
    %v740 = vld [vmem:[#allocation10 + $0xc80] sm:$0xff]
    %v741 = vld [vmem:[#allocation10 + $0xc88] sm:$0xff]
    %v742 = vld [vmem:[#allocation10 + $0xc90] sm:$0xff]
    %v743 = vld [vmem:[#allocation10 + $0xc98] sm:$0xff]
    %v744 = vld [vmem:[#allocation10 + $0xca0] sm:$0xff]
    %v745 = vld [vmem:[#allocation10 + $0xca8] sm:$0xff]
    %v746 = vld [vmem:[#allocation10 + $0xcb0] sm:$0xff]
    %v747 = vld [vmem:[#allocation10 + $0xcb8] sm:$0xff]
    %v748 = vld [vmem:[#allocation10 + $0xcc0] sm:$0xff]
    %v749 = vld [vmem:[#allocation10 + $0xcc8] sm:$0xff]
    %v750 = vld [vmem:[#allocation10 + $0xcd0] sm:$0xff]
    %v751 = vld [vmem:[#allocation10 + $0xcd8] sm:$0xff]
    %v752 = vld [vmem:[#allocation10 + $0xce0] sm:$0xff]
    %v753 = vld [vmem:[#allocation10 + $0xce8] sm:$0xff]
    %v754 = vld [vmem:[#allocation10 + $0xcf0] sm:$0xff]
    %v755 = vld [vmem:[#allocation10 + $0xcf8] sm:$0xff]
    %v756 = vld [vmem:[#allocation10 + $0xd00] sm:$0xff]
    %v757 = vld [vmem:[#allocation10 + $0xd08] sm:$0xff]
    %v758 = vld [vmem:[#allocation10 + $0xd10] sm:$0xff]
    %v759 = vld [vmem:[#allocation10 + $0xd18] sm:$0xff]
    %v760 = vld [vmem:[#allocation10 + $0xd20] sm:$0xff]
    %v761 = vld [vmem:[#allocation10 + $0xd28] sm:$0xff]
    %v762 = vld [vmem:[#allocation10 + $0xd30] sm:$0xff]
    %v763 = vld [vmem:[#allocation10 + $0xd38] sm:$0xff]
    %v764 = vld [vmem:[#allocation10 + $0xd40] sm:$0xff]
    %v765 = vld [vmem:[#allocation10 + $0xd48] sm:$0xff]
    %v766 = vld [vmem:[#allocation10 + $0xd50] sm:$0xff]
    %v767 = vld [vmem:[#allocation10 + $0xd58] sm:$0xff]
    %v768 = vld [vmem:[#allocation10 + $0xd60] sm:$0xff]
    %v769 = vld [vmem:[#allocation10 + $0xd68] sm:$0xff]
    %v770 = vld [vmem:[#allocation10 + $0xd70] sm:$0xff]
    %v771 = vld [vmem:[#allocation10 + $0xd78] sm:$0xff]
    %v772 = vld [vmem:[#allocation10 + $0xd80] sm:$0xff]
    %v773 = vld [vmem:[#allocation10 + $0xd88] sm:$0xff]
    %v774 = vld [vmem:[#allocation10 + $0xd90] sm:$0xff]
    %v775 = vld [vmem:[#allocation10 + $0xd98] sm:$0xff]
    %v776 = vld [vmem:[#allocation10 + $0xda0] sm:$0xff]
    %v777 = vld [vmem:[#allocation10 + $0xda8] sm:$0xff]
    %v778 = vld [vmem:[#allocation10 + $0xdb0] sm:$0xff]
    %v779 = vld [vmem:[#allocation10 + $0xdb8] sm:$0xff]
    %v780 = vld [vmem:[#allocation10 + $0xdc0] sm:$0xff]
    %v781 = vld [vmem:[#allocation10 + $0xdc8] sm:$0xff]
    %v782 = vld [vmem:[#allocation10 + $0xdd0] sm:$0xff]
    %v783 = vld [vmem:[#allocation10 + $0xdd8] sm:$0xff]
    %v784 = vld [vmem:[#allocation10 + $0xde0] sm:$0xff]
    %v785 = vld [vmem:[#allocation10 + $0xde8] sm:$0xff]
    %v786 = vld [vmem:[#allocation10 + $0xdf0] sm:$0xff]
    %v787 = vld [vmem:[#allocation10 + $0xdf8] sm:$0xff]
    %v788 = vld [vmem:[#allocation10 + $0xe00] sm:$0xff]
    %v789 = vld [vmem:[#allocation10 + $0xe08] sm:$0xff]
    %v790 = vld [vmem:[#allocation10 + $0xe10] sm:$0xff]
    %v791 = vld [vmem:[#allocation10 + $0xe18] sm:$0xff]
    %v792 = vld [vmem:[#allocation10 + $0xe20] sm:$0xff]
    %v793 = vld [vmem:[#allocation10 + $0xe28] sm:$0xff]
    %v794 = vld [vmem:[#allocation10 + $0xe30] sm:$0xff]
    %v795 = vld [vmem:[#allocation10 + $0xe38] sm:$0xff]
    %v796 = vld [vmem:[#allocation10 + $0xe40] sm:$0xff]
    %v797 = vld [vmem:[#allocation10 + $0xe48] sm:$0xff]
    %v798 = vld [vmem:[#allocation10 + $0xe50] sm:$0xff]
    %v799 = vld [vmem:[#allocation10 + $0xe58] sm:$0xff]
    %v800 = vld [vmem:[#allocation10 + $0xe60] sm:$0xff]
    %v801 = vld [vmem:[#allocation10 + $0xe68] sm:$0xff]
    %v802 = vld [vmem:[#allocation10 + $0xe70] sm:$0xff]
    %v803 = vld [vmem:[#allocation10 + $0xe78] sm:$0xff]
    %v804 = vld [vmem:[#allocation10 + $0xe80] sm:$0xff]
    %v805 = vld [vmem:[#allocation10 + $0xe88] sm:$0xff]
    %v806 = vld [vmem:[#allocation10 + $0xe90] sm:$0xff]
    %v807 = vld [vmem:[#allocation10 + $0xe98] sm:$0xff]
    %v808 = vld [vmem:[#allocation10 + $0xea0] sm:$0xff]
    %v809 = vld [vmem:[#allocation10 + $0xea8] sm:$0xff]
    %v810 = vld [vmem:[#allocation10 + $0xeb0] sm:$0xff]
    %v811 = vld [vmem:[#allocation10 + $0xeb8] sm:$0xff]
    %v812 = vld [vmem:[#allocation10 + $0xec0] sm:$0xff]
    %v813 = vld [vmem:[#allocation10 + $0xec8] sm:$0xff]
    %v814 = vld [vmem:[#allocation10 + $0xed0] sm:$0xff]
    %v815 = vld [vmem:[#allocation10 + $0xed8] sm:$0xff]
    %v816 = vld [vmem:[#allocation10 + $0xee0] sm:$0xff]
    %v817 = vld [vmem:[#allocation10 + $0xee8] sm:$0xff]
    %v818 = vld [vmem:[#allocation10 + $0xef0] sm:$0xff]
    %v819 = vld [vmem:[#allocation10 + $0xef8] sm:$0xff]
    %v820 = vld [vmem:[#allocation10 + $0xf00] sm:$0xff]
    %v821 = vld [vmem:[#allocation10 + $0xf08] sm:$0xff]
    %v822 = vld [vmem:[#allocation10 + $0xf10] sm:$0xff]
    %v823 = vld [vmem:[#allocation10 + $0xf18] sm:$0xff]
    %v824 = vld [vmem:[#allocation10 + $0xf20] sm:$0xff]
    %v825 = vld [vmem:[#allocation10 + $0xf28] sm:$0xff]
    %v826 = vld [vmem:[#allocation10 + $0xf30] sm:$0xff]
    %v827 = vld [vmem:[#allocation10 + $0xf38] sm:$0xff]
    %v828 = vld [vmem:[#allocation10 + $0xf40] sm:$0xff]
    %v829 = vld [vmem:[#allocation10 + $0xf48] sm:$0xff]
    %v830 = vld [vmem:[#allocation10 + $0xf50] sm:$0xff]
    %v831 = vld [vmem:[#allocation10 + $0xf58] sm:$0xff]
    %v832 = vld [vmem:[#allocation10 + $0xf60] sm:$0xff]
    %v833 = vld [vmem:[#allocation10 + $0xf68] sm:$0xff]
    %v834 = vld [vmem:[#allocation10 + $0xf70] sm:$0xff]
    %v835 = vld [vmem:[#allocation10 + $0xf78] sm:$0xff]
    %v836 = vld [vmem:[#allocation10 + $0xf80] sm:$0xff]
    %v837 = vld [vmem:[#allocation10 + $0xf88] sm:$0xff]
    %v838 = vld [vmem:[#allocation10 + $0xf90] sm:$0xff]
    %v839 = vld [vmem:[#allocation10 + $0xf98] sm:$0xff]
    %v840 = vld [vmem:[#allocation10 + $0xfa0] sm:$0xff]
    %v841 = vld [vmem:[#allocation10 + $0xfa8] sm:$0xff]
    %v842 = vld [vmem:[#allocation10 + $0xfb0] sm:$0xff]
    %v843 = vld [vmem:[#allocation10 + $0xfb8] sm:$0xff]
    %v844 = vld [vmem:[#allocation10 + $0xfc0] sm:$0xff]
    %v845 = vld [vmem:[#allocation10 + $0xfc8] sm:$0xff]
    %v846 = vld [vmem:[#allocation10 + $0xfd0] sm:$0xff]
    %v847 = vld [vmem:[#allocation10 + $0xfd8] sm:$0xff]
    %v848 = vld [vmem:[#allocation10 + $0xfe0] sm:$0xff]
    %v849 = vld [vmem:[#allocation10 + $0xfe8] sm:$0xff]
    %v850 = vld [vmem:[#allocation10 + $0xff0] sm:$0xff]
    %v851 = vld [vmem:[#allocation10 + $0xff8] sm:$0xff]
    %v852 = vld [vmem:[#allocation10 + $0x1000] sm:$0xff]
    %v853 = vld [vmem:[#allocation10 + $0x1008] sm:$0xff]
    %v854 = vld [vmem:[#allocation10 + $0x1010] sm:$0xff]
    %v855 = vld [vmem:[#allocation10 + $0x1018] sm:$0xff]
    %v856 = vld [vmem:[#allocation10 + $0x1020] sm:$0xff]
    %v857 = vld [vmem:[#allocation10 + $0x1028] sm:$0xff]
    %v858 = vld [vmem:[#allocation10 + $0x1030] sm:$0xff]
    %v859 = vld [vmem:[#allocation10 + $0x1038] sm:$0xff]
    %v860 = vld [vmem:[#allocation10 + $0x1040] sm:$0xff]
    %v861 = vld [vmem:[#allocation10 + $0x1048] sm:$0xff]
    %v862 = vld [vmem:[#allocation10 + $0x1050] sm:$0xff]
    %v863 = vld [vmem:[#allocation10 + $0x1058] sm:$0xff]
    %v864 = vld [vmem:[#allocation10 + $0x1060] sm:$0xff]
    %v865 = vld [vmem:[#allocation10 + $0x1068] sm:$0xff]
    %v866 = vld [vmem:[#allocation10 + $0x1070] sm:$0xff]
    %v867 = vld [vmem:[#allocation10 + $0x1078] sm:$0xff]
    %v868 = vld [vmem:[#allocation10 + $0x1080] sm:$0xff]
    %v869 = vld [vmem:[#allocation10 + $0x1088] sm:$0xff]
    %v870 = vld [vmem:[#allocation10 + $0x1090] sm:$0xff]
    %v871 = vld [vmem:[#allocation10 + $0x1098] sm:$0xff]
    %v872 = vld [vmem:[#allocation10 + $0x10a0] sm:$0xff]
    %v873 = vld [vmem:[#allocation10 + $0x10a8] sm:$0xff]
    %v874 = vld [vmem:[#allocation10 + $0x10b0] sm:$0xff]
    %v875 = vld [vmem:[#allocation10 + $0x10b8] sm:$0xff]
    %v876 = vld [vmem:[#allocation10 + $0x10c0] sm:$0xff]
    %v877 = vld [vmem:[#allocation10 + $0x10c8] sm:$0xff]
    %v878 = vld [vmem:[#allocation10 + $0x10d0] sm:$0xff]
    %v879 = vld [vmem:[#allocation10 + $0x10d8] sm:$0xff]
    %v880 = vld [vmem:[#allocation10 + $0x10e0] sm:$0xff]
    %v881 = vld [vmem:[#allocation10 + $0x10e8] sm:$0xff]
    %v882 = vld [vmem:[#allocation10 + $0x10f0] sm:$0xff]
    %v883 = vld [vmem:[#allocation10 + $0x10f8] sm:$0xff]
    %v884 = vld [vmem:[#allocation10 + $0x1100] sm:$0xff]
    %v885 = vld [vmem:[#allocation10 + $0x1108] sm:$0xff]
    %v886 = vld [vmem:[#allocation10 + $0x1110] sm:$0xff]
    %v887 = vld [vmem:[#allocation10 + $0x1118] sm:$0xff]
    %v888 = vld [vmem:[#allocation10 + $0x1120] sm:$0xff]
    %v889 = vld [vmem:[#allocation10 + $0x1128] sm:$0xff]
    %v890 = vld [vmem:[#allocation10 + $0x1130] sm:$0xff]
    %v891 = vld [vmem:[#allocation10 + $0x1138] sm:$0xff]
    %v892 = vld [vmem:[#allocation10 + $0x1140] sm:$0xff]
    %v893 = vld [vmem:[#allocation10 + $0x1148] sm:$0xff]
    %v894 = vld [vmem:[#allocation10 + $0x1150] sm:$0xff]
    %v895 = vld [vmem:[#allocation10 + $0x1158] sm:$0xff]
    %v896 = vld [vmem:[#allocation10 + $0x1160] sm:$0xff]
    %v897 = vld [vmem:[#allocation10 + $0x1168] sm:$0xff]
    %v898 = vld [vmem:[#allocation10 + $0x1170] sm:$0xff]
    %v899 = vld [vmem:[#allocation10 + $0x1178] sm:$0xff]
    %v900 = vld [vmem:[#allocation10 + $0x1180] sm:$0xff]
    %v901 = vld [vmem:[#allocation10 + $0x1188] sm:$0xff]
    %v902 = vld [vmem:[#allocation10 + $0x1190] sm:$0xff]
    %v903 = vld [vmem:[#allocation10 + $0x1198] sm:$0xff]
    %v904 = vld [vmem:[#allocation10 + $0x11a0] sm:$0xff]
    %v905 = vld [vmem:[#allocation10 + $0x11a8] sm:$0xff]
    %v906 = vld [vmem:[#allocation10 + $0x11b0] sm:$0xff]
    %v907 = vld [vmem:[#allocation10 + $0x11b8] sm:$0xff]
    %v908 = vld [vmem:[#allocation10 + $0x11c0] sm:$0xff]
    %v909 = vld [vmem:[#allocation10 + $0x11c8] sm:$0xff]
    %v910 = vld [vmem:[#allocation10 + $0x11d0] sm:$0xff]
    %v911 = vld [vmem:[#allocation10 + $0x11d8] sm:$0xff]
    %v912 = vld [vmem:[#allocation10 + $0x11e0] sm:$0xff]
    %v913 = vld [vmem:[#allocation10 + $0x11e8] sm:$0xff]
    %v914 = vld [vmem:[#allocation10 + $0x11f0] sm:$0xff]
    %v915 = vld [vmem:[#allocation10 + $0x11f8] sm:$0xff]
    %v916 = vld [vmem:[#allocation10 + $0x1200] sm:$0xff]
    %v917 = vld [vmem:[#allocation10 + $0x1208] sm:$0xff]
    %v918 = vld [vmem:[#allocation10 + $0x1210] sm:$0xff]
    %v919 = vld [vmem:[#allocation10 + $0x1218] sm:$0xff]
    %v920 = vld [vmem:[#allocation10 + $0x1220] sm:$0xff]
    %v921 = vld [vmem:[#allocation10 + $0x1228] sm:$0xff]
    %v922 = vld [vmem:[#allocation10 + $0x1230] sm:$0xff]
    %v923 = vld [vmem:[#allocation10 + $0x1238] sm:$0xff]
    %v924 = vld [vmem:[#allocation10 + $0x1240] sm:$0xff]
    %v925 = vld [vmem:[#allocation10 + $0x1248] sm:$0xff]
    %v926 = vld [vmem:[#allocation10 + $0x1250] sm:$0xff]
    %v927 = vld [vmem:[#allocation10 + $0x1258] sm:$0xff]
    %v928 = vld [vmem:[#allocation10 + $0x1260] sm:$0xff]
    %v929 = vld [vmem:[#allocation10 + $0x1268] sm:$0xff]
    %v930 = vld [vmem:[#allocation10 + $0x1270] sm:$0xff]
    %v931 = vld [vmem:[#allocation10 + $0x1278] sm:$0xff]
    %v932 = vld [vmem:[#allocation10 + $0x1280] sm:$0xff]
    %v933 = vld [vmem:[#allocation10 + $0x1288] sm:$0xff]
    %v934 = vld [vmem:[#allocation10 + $0x1290] sm:$0xff]
    %v935 = vld [vmem:[#allocation10 + $0x1298] sm:$0xff]
    %v936 = vld [vmem:[#allocation10 + $0x12a0] sm:$0xff]
    %v937 = vld [vmem:[#allocation10 + $0x12a8] sm:$0xff]
    %v938 = vld [vmem:[#allocation10 + $0x12b0] sm:$0xff]
    %v939 = vld [vmem:[#allocation10 + $0x12b8] sm:$0xff]
    %v940 = vld [vmem:[#allocation10 + $0x12c0] sm:$0xff]
    %v941 = vld [vmem:[#allocation10 + $0x12c8] sm:$0xff]
    %v942 = vld [vmem:[#allocation10 + $0x12d0] sm:$0xff]
    %v943 = vld [vmem:[#allocation10 + $0x12d8] sm:$0xff]
    %v944 = vld [vmem:[#allocation10 + $0x12e0] sm:$0xff]
    %v945 = vld [vmem:[#allocation10 + $0x12e8] sm:$0xff]
    %v946 = vld [vmem:[#allocation10 + $0x12f0] sm:$0xff]
    %v947 = vld [vmem:[#allocation10 + $0x12f8] sm:$0xff]
    %v948 = vld [vmem:[#allocation10 + $0x1300] sm:$0xff]
    %v949 = vld [vmem:[#allocation10 + $0x1308] sm:$0xff]
    %v950 = vld [vmem:[#allocation10 + $0x1310] sm:$0xff]
    %v951 = vld [vmem:[#allocation10 + $0x1318] sm:$0xff]
    %v952 = vld [vmem:[#allocation10 + $0x1320] sm:$0xff]
    %v953 = vld [vmem:[#allocation10 + $0x1328] sm:$0xff]
    %v954 = vld [vmem:[#allocation10 + $0x1330] sm:$0xff]
    %v955 = vld [vmem:[#allocation10 + $0x1338] sm:$0xff]
    %v956 = vld [vmem:[#allocation10 + $0x1340] sm:$0xff]
    %v957 = vld [vmem:[#allocation10 + $0x1348] sm:$0xff]
    %v958 = vld [vmem:[#allocation10 + $0x1350] sm:$0xff]
    %v959 = vld [vmem:[#allocation10 + $0x1358] sm:$0xff]
    %v960 = vld [vmem:[#allocation10 + $0x1360] sm:$0xff]
    %v961 = vld [vmem:[#allocation10 + $0x1368] sm:$0xff]
    %v962 = vld [vmem:[#allocation10 + $0x1370] sm:$0xff]
    %v963 = vld [vmem:[#allocation10 + $0x1378] sm:$0xff]
    %v964 = vld [vmem:[#allocation10 + $0x1380] sm:$0xff]
    %v965 = vld [vmem:[#allocation10 + $0x1388] sm:$0xff]
    %v966 = vld [vmem:[#allocation10 + $0x1390] sm:$0xff]
    %v967 = vld [vmem:[#allocation10 + $0x1398] sm:$0xff]
    %v968 = vld [vmem:[#allocation10 + $0x13a0] sm:$0xff]
    %v969 = vld [vmem:[#allocation10 + $0x13a8] sm:$0xff]
    %v970 = vld [vmem:[#allocation10 + $0x13b0] sm:$0xff]
    %v971 = vld [vmem:[#allocation10 + $0x13b8] sm:$0xff]
    %v972 = vld [vmem:[#allocation10 + $0x13c0] sm:$0xff]
    %v973 = vld [vmem:[#allocation10 + $0x13c8] sm:$0xff]
    %v974 = vld [vmem:[#allocation10 + $0x13d0] sm:$0xff]
    %v975 = vld [vmem:[#allocation10 + $0x13d8] sm:$0xff]
    %v976 = vld [vmem:[#allocation10 + $0x13e0] sm:$0xff]
    %v977 = vld [vmem:[#allocation10 + $0x13e8] sm:$0xff]
    %v978 = vld [vmem:[#allocation10 + $0x13f0] sm:$0xff]
    %v979 = vld [vmem:[#allocation10 + $0x13f8] sm:$0xff]
    %v980 = vld [vmem:[#allocation10 + $0x1400] sm:$0xff]
    %v981 = vld [vmem:[#allocation10 + $0x1408] sm:$0xff]
    %v982 = vld [vmem:[#allocation10 + $0x1410] sm:$0xff]
    %v983 = vld [vmem:[#allocation10 + $0x1418] sm:$0xff]
    %v984 = vld [vmem:[#allocation10 + $0x1420] sm:$0xff]
    %v985 = vld [vmem:[#allocation10 + $0x1428] sm:$0xff]
    %v986 = vld [vmem:[#allocation10 + $0x1430] sm:$0xff]
    %v987 = vld [vmem:[#allocation10 + $0x1438] sm:$0xff]
    %v988 = vld [vmem:[#allocation10 + $0x1440] sm:$0xff]
    %v989 = vld [vmem:[#allocation10 + $0x1448] sm:$0xff]
    %v990 = vld [vmem:[#allocation10 + $0x1450] sm:$0xff]
    %v991 = vld [vmem:[#allocation10 + $0x1458] sm:$0xff]
    %v992 = vld [vmem:[#allocation10 + $0x1460] sm:$0xff]
    %v993 = vld [vmem:[#allocation10 + $0x1468] sm:$0xff]
    %v994 = vld [vmem:[#allocation10 + $0x1470] sm:$0xff]
    %v995 = vld [vmem:[#allocation10 + $0x1478] sm:$0xff]
    %v996 = vld [vmem:[#allocation10 + $0x1480] sm:$0xff]
    %v997 = vld [vmem:[#allocation10 + $0x1488] sm:$0xff]
    %v998 = vld [vmem:[#allocation10 + $0x1490] sm:$0xff]
    %v999 = vld [vmem:[#allocation10 + $0x1498] sm:$0xff]
    %v1000 = vld [vmem:[#allocation10 + $0x14a0] sm:$0xff]
    %v1001 = vld [vmem:[#allocation10 + $0x14a8] sm:$0xff]
    %v1002 = vld [vmem:[#allocation10 + $0x14b0] sm:$0xff]
    %v1003 = vld [vmem:[#allocation10 + $0x14b8] sm:$0xff]
    %v1004 = vld [vmem:[#allocation10 + $0x14c0] sm:$0xff]
    %v1005 = vld [vmem:[#allocation10 + $0x14c8] sm:$0xff]
    %v1006 = vld [vmem:[#allocation10 + $0x14d0] sm:$0xff]
    %v1007 = vld [vmem:[#allocation10 + $0x14d8] sm:$0xff]
    %v1008 = vld [vmem:[#allocation10 + $0x14e0] sm:$0xff]
    %v1009 = vld [vmem:[#allocation10 + $0x14e8] sm:$0xff]
    %v1010 = vld [vmem:[#allocation10 + $0x14f0] sm:$0xff]
    %v1011 = vld [vmem:[#allocation10 + $0x14f8] sm:$0xff]
    %v1012 = vld [vmem:[#allocation10 + $0x1500] sm:$0xff]
    %v1013 = vld [vmem:[#allocation10 + $0x1508] sm:$0xff]
    %v1014 = vld [vmem:[#allocation10 + $0x1510] sm:$0xff]
    %v1015 = vld [vmem:[#allocation10 + $0x1518] sm:$0xff]
    %v1016 = vld [vmem:[#allocation10 + $0x1520] sm:$0xff]
    %v1017 = vld [vmem:[#allocation10 + $0x1528] sm:$0xff]
    %v1018 = vld [vmem:[#allocation10 + $0x1530] sm:$0xff]
    %v1019 = vld [vmem:[#allocation10 + $0x1538] sm:$0xff]
    %v1020 = vld [vmem:[#allocation10 + $0x1540] sm:$0xff]
    %v1021 = vld [vmem:[#allocation10 + $0x1548] sm:$0xff]
    %v1022 = vld [vmem:[#allocation10 + $0x1550] sm:$0xff]
    %v1023 = vld [vmem:[#allocation10 + $0x1558] sm:$0xff]
    %v1024 = vld [vmem:[#allocation10 + $0x1560] sm:$0xff]
    %v1025 = vld [vmem:[#allocation10 + $0x1568] sm:$0xff]
    %v1026 = vld [vmem:[#allocation10 + $0x1570] sm:$0xff]
    %v1027 = vld [vmem:[#allocation10 + $0x1578] sm:$0xff]
    %v1028 = vld [vmem:[#allocation10 + $0x1580] sm:$0xff]
    %v1029 = vld [vmem:[#allocation10 + $0x1588] sm:$0xff]
    %v1030 = vld [vmem:[#allocation10 + $0x1590] sm:$0xff]
    %v1031 = vld [vmem:[#allocation10 + $0x1598] sm:$0xff]
    %v1032 = vld [vmem:[#allocation10 + $0x15a0] sm:$0xff]
    %v1033 = vld [vmem:[#allocation10 + $0x15a8] sm:$0xff]
    %v1034 = vld [vmem:[#allocation10 + $0x15b0] sm:$0xff]
    %v1035 = vld [vmem:[#allocation10 + $0x15b8] sm:$0xff]
    %v1036 = vld [vmem:[#allocation10 + $0x15c0] sm:$0xff]
    %v1037 = vld [vmem:[#allocation10 + $0x15c8] sm:$0xff]
    %v1038 = vld [vmem:[#allocation10 + $0x15d0] sm:$0xff]
    %v1039 = vld [vmem:[#allocation10 + $0x15d8] sm:$0xff]
    %v1040 = vld [vmem:[#allocation10 + $0x15e0] sm:$0xff]
    %v1041 = vld [vmem:[#allocation10 + $0x15e8] sm:$0xff]
    %v1042 = vld [vmem:[#allocation10 + $0x15f0] sm:$0xff]
    %v1043 = vld [vmem:[#allocation10 + $0x15f8] sm:$0xff]
    %v1044 = vld [vmem:[#allocation10 + $0x1600] sm:$0xff]
    %v1045 = vld [vmem:[#allocation10 + $0x1608] sm:$0xff]
    %v1046 = vld [vmem:[#allocation10 + $0x1610] sm:$0xff]
    %v1047 = vld [vmem:[#allocation10 + $0x1618] sm:$0xff]
    %v1048 = vld [vmem:[#allocation10 + $0x1620] sm:$0xff]
    %v1049 = vld [vmem:[#allocation10 + $0x1628] sm:$0xff]
    %v1050 = vld [vmem:[#allocation10 + $0x1630] sm:$0xff]
    %v1051 = vld [vmem:[#allocation10 + $0x1638] sm:$0xff]
    %v1052 = vld [vmem:[#allocation10 + $0x1640] sm:$0xff]
    %v1053 = vld [vmem:[#allocation10 + $0x1648] sm:$0xff]
    %v1054 = vld [vmem:[#allocation10 + $0x1650] sm:$0xff]
    %v1055 = vld [vmem:[#allocation10 + $0x1658] sm:$0xff]
    %v1056 = vld [vmem:[#allocation10 + $0x1660] sm:$0xff]
    %v1057 = vld [vmem:[#allocation10 + $0x1668] sm:$0xff]
    %v1058 = vld [vmem:[#allocation10 + $0x1670] sm:$0xff]
    %v1059 = vld [vmem:[#allocation10 + $0x1678] sm:$0xff]
    %v1060 = vld [vmem:[#allocation10 + $0x1680] sm:$0xff]
    %v1061 = vld [vmem:[#allocation10 + $0x1688] sm:$0xff]
    %v1062 = vld [vmem:[#allocation10 + $0x1690] sm:$0xff]
    %v1063 = vld [vmem:[#allocation10 + $0x1698] sm:$0xff]
    %v1064 = vld [vmem:[#allocation10 + $0x16a0] sm:$0xff]
    %v1065 = vld [vmem:[#allocation10 + $0x16a8] sm:$0xff]
    %v1066 = vld [vmem:[#allocation10 + $0x16b0] sm:$0xff]
    %v1067 = vld [vmem:[#allocation10 + $0x16b8] sm:$0xff]
    %v1068 = vld [vmem:[#allocation10 + $0x16c0] sm:$0xff]
    %v1069 = vld [vmem:[#allocation10 + $0x16c8] sm:$0xff]
    %v1070 = vld [vmem:[#allocation10 + $0x16d0] sm:$0xff]
    %v1071 = vld [vmem:[#allocation10 + $0x16d8] sm:$0xff]
    %v1072 = vld [vmem:[#allocation10 + $0x16e0] sm:$0xff]
    %v1073 = vld [vmem:[#allocation10 + $0x16e8] sm:$0xff]
    %v1074 = vld [vmem:[#allocation10 + $0x16f0] sm:$0xff]
    %v1075 = vld [vmem:[#allocation10 + $0x16f8] sm:$0xff]
    %v1076 = vld [vmem:[#allocation10 + $0x1700] sm:$0xff]
    %v1077 = vld [vmem:[#allocation10 + $0x1708] sm:$0xff]
    %v1078 = vld [vmem:[#allocation10 + $0x1710] sm:$0xff]
    %v1079 = vld [vmem:[#allocation10 + $0x1718] sm:$0xff]
    %v1080 = vld [vmem:[#allocation10 + $0x1720] sm:$0xff]
    %v1081 = vld [vmem:[#allocation10 + $0x1728] sm:$0xff]
    %v1082 = vld [vmem:[#allocation10 + $0x1730] sm:$0xff]
    %v1083 = vld [vmem:[#allocation10 + $0x1738] sm:$0xff]
    %v1084 = vld [vmem:[#allocation10 + $0x1740] sm:$0xff]
    %v1085 = vld [vmem:[#allocation10 + $0x1748] sm:$0xff]
    %v1086 = vld [vmem:[#allocation10 + $0x1750] sm:$0xff]
    %v1087 = vld [vmem:[#allocation10 + $0x1758] sm:$0xff]
    %v1088 = vld [vmem:[#allocation10 + $0x1760] sm:$0xff]
    %v1089 = vld [vmem:[#allocation10 + $0x1768] sm:$0xff]
    %v1090 = vld [vmem:[#allocation10 + $0x1770] sm:$0xff]
    %v1091 = vld [vmem:[#allocation10 + $0x1778] sm:$0xff]
    %v1092 = vld [vmem:[#allocation10 + $0x1780] sm:$0xff]
    %v1093 = vld [vmem:[#allocation10 + $0x1788] sm:$0xff]
    %v1094 = vld [vmem:[#allocation10 + $0x1790] sm:$0xff]
    %v1095 = vld [vmem:[#allocation10 + $0x1798] sm:$0xff]
    %v1096 = vld [vmem:[#allocation10 + $0x17a0] sm:$0xff]
    %v1097 = vld [vmem:[#allocation10 + $0x17a8] sm:$0xff]
    %v1098 = vld [vmem:[#allocation10 + $0x17b0] sm:$0xff]
    %v1099 = vld [vmem:[#allocation10 + $0x17b8] sm:$0xff]
    %v1100 = vld [vmem:[#allocation10 + $0x17c0] sm:$0xff]
    %v1101 = vld [vmem:[#allocation10 + $0x17c8] sm:$0xff]
    %v1102 = vld [vmem:[#allocation10 + $0x17d0] sm:$0xff]
    %v1103 = vld [vmem:[#allocation10 + $0x17d8] sm:$0xff]
    %v1104 = vld [vmem:[#allocation10 + $0x17e0] sm:$0xff]
    %v1105 = vld [vmem:[#allocation10 + $0x17e8] sm:$0xff]
    %v1106 = vld [vmem:[#allocation10 + $0x17f0] sm:$0xff]
    %v1107 = vld [vmem:[#allocation10 + $0x17f8] sm:$0xff]
    %v1108 = vld [vmem:[#allocation10 + $0x1800] sm:$0xff]
    %v1109 = vld [vmem:[#allocation10 + $0x1808] sm:$0xff]
    %v1110 = vld [vmem:[#allocation10 + $0x1810] sm:$0xff]
    %v1111 = vld [vmem:[#allocation10 + $0x1818] sm:$0xff]
    %v1112 = vld [vmem:[#allocation10 + $0x1820] sm:$0xff]
    %v1113 = vld [vmem:[#allocation10 + $0x1828] sm:$0xff]
    %v1114 = vld [vmem:[#allocation10 + $0x1830] sm:$0xff]
    %v1115 = vld [vmem:[#allocation10 + $0x1838] sm:$0xff]
    %v1116 = vld [vmem:[#allocation10 + $0x1840] sm:$0xff]
    %v1117 = vld [vmem:[#allocation10 + $0x1848] sm:$0xff]
    %v1118 = vld [vmem:[#allocation10 + $0x1850] sm:$0xff]
    %v1119 = vld [vmem:[#allocation10 + $0x1858] sm:$0xff]
    %v1120 = vld [vmem:[#allocation10 + $0x1860] sm:$0xff]
    %v1121 = vld [vmem:[#allocation10 + $0x1868] sm:$0xff]
    %v1122 = vld [vmem:[#allocation10 + $0x1870] sm:$0xff]
    %v1123 = vld [vmem:[#allocation10 + $0x1878] sm:$0xff]
    %v1124 = vld [vmem:[#allocation10 + $0x1880] sm:$0xff]
    %v1125 = vld [vmem:[#allocation10 + $0x1888] sm:$0xff]
    %v1126 = vld [vmem:[#allocation10 + $0x1890] sm:$0xff]
    %v1127 = vld [vmem:[#allocation10 + $0x1898] sm:$0xff]
    %v1128 = vld [vmem:[#allocation10 + $0x18a0] sm:$0xff]
    %v1129 = vld [vmem:[#allocation10 + $0x18a8] sm:$0xff]
    %v1130 = vld [vmem:[#allocation10 + $0x18b0] sm:$0xff]
    %v1131 = vld [vmem:[#allocation10 + $0x18b8] sm:$0xff]
    %v1132 = vld [vmem:[#allocation10 + $0x18c0] sm:$0xff]
    %v1133 = vld [vmem:[#allocation10 + $0x18c8] sm:$0xff]
    %v1134 = vld [vmem:[#allocation10 + $0x18d0] sm:$0xff]
    %v1135 = vld [vmem:[#allocation10 + $0x18d8] sm:$0xff]
    %v1136 = vld [vmem:[#allocation10 + $0x18e0] sm:$0xff]
    %v1137 = vld [vmem:[#allocation10 + $0x18e8] sm:$0xff]
    %v1138 = vld [vmem:[#allocation10 + $0x18f0] sm:$0xff]
    %v1139 = vld [vmem:[#allocation10 + $0x18f8] sm:$0xff]
    %v1140 = vld [vmem:[#allocation10 + $0x1900] sm:$0xff]
    %v1141 = vld [vmem:[#allocation10 + $0x1908] sm:$0xff]
    %v1142 = vld [vmem:[#allocation10 + $0x1910] sm:$0xff]
    %v1143 = vld [vmem:[#allocation10 + $0x1918] sm:$0xff]
    %v1144 = vld [vmem:[#allocation10 + $0x1920] sm:$0xff]
    %v1145 = vld [vmem:[#allocation10 + $0x1928] sm:$0xff]
    %v1146 = vld [vmem:[#allocation10 + $0x1930] sm:$0xff]
    %v1147 = vld [vmem:[#allocation10 + $0x1938] sm:$0xff]
    %v1148 = vld [vmem:[#allocation10 + $0x1940] sm:$0xff]
    %v1149 = vld [vmem:[#allocation10 + $0x1948] sm:$0xff]
    %v1150 = vld [vmem:[#allocation10 + $0x1950] sm:$0xff]
    %v1151 = vld [vmem:[#allocation10 + $0x1958] sm:$0xff]
    %v1152 = vld [vmem:[#allocation10 + $0x1960] sm:$0xff]
    %v1153 = vld [vmem:[#allocation10 + $0x1968] sm:$0xff]
    %v1154 = vld [vmem:[#allocation10 + $0x1970] sm:$0xff]
    %v1155 = vld [vmem:[#allocation10 + $0x1978] sm:$0xff]
    %v1156 = vld [vmem:[#allocation10 + $0x1980] sm:$0xff]
    %v1157 = vld [vmem:[#allocation10 + $0x1988] sm:$0xff]
    %v1158 = vld [vmem:[#allocation10 + $0x1990] sm:$0xff]
    %v1159 = vld [vmem:[#allocation10 + $0x1998] sm:$0xff]
    %v1160 = vld [vmem:[#allocation10 + $0x19a0] sm:$0xff]
    %v1161 = vld [vmem:[#allocation10 + $0x19a8] sm:$0xff]
    %v1162 = vld [vmem:[#allocation10 + $0x19b0] sm:$0xff]
    %v1163 = vld [vmem:[#allocation10 + $0x19b8] sm:$0xff]
    %v1164 = vld [vmem:[#allocation10 + $0x19c0] sm:$0xff]
    %v1165 = vld [vmem:[#allocation10 + $0x19c8] sm:$0xff]
    %v1166 = vld [vmem:[#allocation10 + $0x19d0] sm:$0xff]
    %v1167 = vld [vmem:[#allocation10 + $0x19d8] sm:$0xff]
    %v1168 = vld [vmem:[#allocation10 + $0x19e0] sm:$0xff]
    %v1169 = vld [vmem:[#allocation10 + $0x19e8] sm:$0xff]
    %v1170 = vld [vmem:[#allocation10 + $0x19f0] sm:$0xff]
    %v1171 = vld [vmem:[#allocation10 + $0x19f8] sm:$0xff]
    %v1172 = vld [vmem:[#allocation10 + $0x1a00] sm:$0xff]
    %v1173 = vld [vmem:[#allocation10 + $0x1a08] sm:$0xff]
    %v1174 = vld [vmem:[#allocation10 + $0x1a10] sm:$0xff]
    %v1175 = vld [vmem:[#allocation10 + $0x1a18] sm:$0xff]
    %v1176 = vld [vmem:[#allocation10 + $0x1a20] sm:$0xff]
    %v1177 = vld [vmem:[#allocation10 + $0x1a28] sm:$0xff]
    %v1178 = vld [vmem:[#allocation10 + $0x1a30] sm:$0xff]
    %v1179 = vld [vmem:[#allocation10 + $0x1a38] sm:$0xff]
    %v1180 = vld [vmem:[#allocation10 + $0x1a40] sm:$0xff]
    %v1181 = vld [vmem:[#allocation10 + $0x1a48] sm:$0xff]
    %v1182 = vld [vmem:[#allocation10 + $0x1a50] sm:$0xff]
    %v1183 = vld [vmem:[#allocation10 + $0x1a58] sm:$0xff]
    %v1184 = vld [vmem:[#allocation10 + $0x1a60] sm:$0xff]
    %v1185 = vld [vmem:[#allocation10 + $0x1a68] sm:$0xff]
    %v1186 = vld [vmem:[#allocation10 + $0x1a70] sm:$0xff]
    %v1187 = vld [vmem:[#allocation10 + $0x1a78] sm:$0xff]
    %v1188 = vld [vmem:[#allocation10 + $0x1a80] sm:$0xff]
    %v1189 = vld [vmem:[#allocation10 + $0x1a88] sm:$0xff]
    %v1190 = vld [vmem:[#allocation10 + $0x1a90] sm:$0xff]
    %v1191 = vld [vmem:[#allocation10 + $0x1a98] sm:$0xff]
    %v1192 = vld [vmem:[#allocation10 + $0x1aa0] sm:$0xff]
    %v1193 = vld [vmem:[#allocation10 + $0x1aa8] sm:$0xff]
    %v1194 = vld [vmem:[#allocation10 + $0x1ab0] sm:$0xff]
    %v1195 = vld [vmem:[#allocation10 + $0x1ab8] sm:$0xff]
    %v1196 = vld [vmem:[#allocation10 + $0x1ac0] sm:$0xff]
    %v1197 = vld [vmem:[#allocation10 + $0x1ac8] sm:$0xff]
    %v1198 = vld [vmem:[#allocation10 + $0x1ad0] sm:$0xff]
    %v1199 = vld [vmem:[#allocation10 + $0x1ad8] sm:$0xff]
    %v1200 = vld [vmem:[#allocation10 + $0x1ae0] sm:$0xff]
    %v1201 = vld [vmem:[#allocation10 + $0x1ae8] sm:$0xff]
    %v1202 = vld [vmem:[#allocation10 + $0x1af0] sm:$0xff]
    %v1203 = vld [vmem:[#allocation10 + $0x1af8] sm:$0xff]
    %v1204 = vld [vmem:[#allocation10 + $0x1b00] sm:$0xff]
    %v1205 = vld [vmem:[#allocation10 + $0x1b08] sm:$0xff]
    %v1206 = vld [vmem:[#allocation10 + $0x1b10] sm:$0xff]
    %v1207 = vld [vmem:[#allocation10 + $0x1b18] sm:$0xff]
    %v1208 = vld [vmem:[#allocation10 + $0x1b20] sm:$0xff]
    %v1209 = vld [vmem:[#allocation10 + $0x1b28] sm:$0xff]
    %v1210 = vld [vmem:[#allocation10 + $0x1b30] sm:$0xff]
    %v1211 = vld [vmem:[#allocation10 + $0x1b38] sm:$0xff]
    %v1212 = vld [vmem:[#allocation10 + $0x1b40] sm:$0xff]
    %v1213 = vld [vmem:[#allocation10 + $0x1b48] sm:$0xff]
    %v1214 = vld [vmem:[#allocation10 + $0x1b50] sm:$0xff]
    %v1215 = vld [vmem:[#allocation10 + $0x1b58] sm:$0xff]
    %v1216 = vld [vmem:[#allocation10 + $0x1b60] sm:$0xff]
    %v1217 = vld [vmem:[#allocation10 + $0x1b68] sm:$0xff]
    %v1218 = vld [vmem:[#allocation10 + $0x1b70] sm:$0xff]
    %v1219 = vld [vmem:[#allocation10 + $0x1b78] sm:$0xff]
    %v1220 = vld [vmem:[#allocation10 + $0x1b80] sm:$0xff]
    %v1221 = vld [vmem:[#allocation10 + $0x1b88] sm:$0xff]
    %v1222 = vld [vmem:[#allocation10 + $0x1b90] sm:$0xff]
    %v1223 = vld [vmem:[#allocation10 + $0x1b98] sm:$0xff]
    %v1224 = vld [vmem:[#allocation10 + $0x1ba0] sm:$0xff]
    %v1225 = vld [vmem:[#allocation10 + $0x1ba8] sm:$0xff]
    %v1226 = vld [vmem:[#allocation10 + $0x1bb0] sm:$0xff]
    %v1227 = vld [vmem:[#allocation10 + $0x1bb8] sm:$0xff]
    %v1228 = vld [vmem:[#allocation10 + $0x1bc0] sm:$0xff]
    %v1229 = vld [vmem:[#allocation10 + $0x1bc8] sm:$0xff]
    %v1230 = vld [vmem:[#allocation10 + $0x1bd0] sm:$0xff]
    %v1231 = vld [vmem:[#allocation10 + $0x1bd8] sm:$0xff]
    %v1232 = vld [vmem:[#allocation10 + $0x1be0] sm:$0xff]
    %v1233 = vld [vmem:[#allocation10 + $0x1be8] sm:$0xff]
    %v1234 = vld [vmem:[#allocation10 + $0x1bf0] sm:$0xff]
    %v1235 = vld [vmem:[#allocation10 + $0x1bf8] sm:$0xff]
    %v1236 = vld [vmem:[#allocation10 + $0x1c00] sm:$0xff]
    %v1237 = vld [vmem:[#allocation10 + $0x1c08] sm:$0xff]
    %v1238 = vld [vmem:[#allocation10 + $0x1c10] sm:$0xff]
    %v1239 = vld [vmem:[#allocation10 + $0x1c18] sm:$0xff]
    %v1240 = vld [vmem:[#allocation10 + $0x1c20] sm:$0xff]
    %v1241 = vld [vmem:[#allocation10 + $0x1c28] sm:$0xff]
    %v1242 = vld [vmem:[#allocation10 + $0x1c30] sm:$0xff]
    %v1243 = vld [vmem:[#allocation10 + $0x1c38] sm:$0xff]
    %v1244 = vld [vmem:[#allocation10 + $0x1c40] sm:$0xff]
    %v1245 = vld [vmem:[#allocation10 + $0x1c48] sm:$0xff]
    %v1246 = vld [vmem:[#allocation10 + $0x1c50] sm:$0xff]
    %v1247 = vld [vmem:[#allocation10 + $0x1c58] sm:$0xff]
    %v1248 = vld [vmem:[#allocation10 + $0x1c60] sm:$0xff]
    %v1249 = vld [vmem:[#allocation10 + $0x1c68] sm:$0xff]
    %v1250 = vld [vmem:[#allocation10 + $0x1c70] sm:$0xff]
    %v1251 = vld [vmem:[#allocation10 + $0x1c78] sm:$0xff]
    %v1252 = vld [vmem:[#allocation10 + $0x1c80] sm:$0xff]
    %v1253 = vld [vmem:[#allocation10 + $0x1c88] sm:$0xff]
    %v1254 = vld [vmem:[#allocation10 + $0x1c90] sm:$0xff]
    %v1255 = vld [vmem:[#allocation10 + $0x1c98] sm:$0xff]
    %v1256 = vld [vmem:[#allocation10 + $0x1ca0] sm:$0xff]
    %v1257 = vld [vmem:[#allocation10 + $0x1ca8] sm:$0xff]
    %v1258 = vld [vmem:[#allocation10 + $0x1cb0] sm:$0xff]
    %v1259 = vld [vmem:[#allocation10 + $0x1cb8] sm:$0xff]
    %v1260 = vld [vmem:[#allocation10 + $0x1cc0] sm:$0xff]
    %v1261 = vld [vmem:[#allocation10 + $0x1cc8] sm:$0xff]
    %v1262 = vld [vmem:[#allocation10 + $0x1cd0] sm:$0xff]
    %v1263 = vld [vmem:[#allocation10 + $0x1cd8] sm:$0xff]
    %v1264 = vld [vmem:[#allocation10 + $0x1ce0] sm:$0xff]
    %v1265 = vld [vmem:[#allocation10 + $0x1ce8] sm:$0xff]
    %v1266 = vld [vmem:[#allocation10 + $0x1cf0] sm:$0xff]
    %v1267 = vld [vmem:[#allocation10 + $0x1cf8] sm:$0xff]
    %v1268 = vld [vmem:[#allocation10 + $0x1d00] sm:$0xff]
    %v1269 = vld [vmem:[#allocation10 + $0x1d08] sm:$0xff]
    %v1270 = vld [vmem:[#allocation10 + $0x1d10] sm:$0xff]
    %v1271 = vld [vmem:[#allocation10 + $0x1d18] sm:$0xff]
    %v1272 = vld [vmem:[#allocation10 + $0x1d20] sm:$0xff]
    %v1273 = vld [vmem:[#allocation10 + $0x1d28] sm:$0xff]
    %v1274 = vld [vmem:[#allocation10 + $0x1d30] sm:$0xff]
    %v1275 = vld [vmem:[#allocation10 + $0x1d38] sm:$0xff]
    %v1276 = vld [vmem:[#allocation10 + $0x1d40] sm:$0xff]
    %v1277 = vld [vmem:[#allocation10 + $0x1d48] sm:$0xff]
    %v1278 = vld [vmem:[#allocation10 + $0x1d50] sm:$0xff]
    %v1279 = vld [vmem:[#allocation10 + $0x1d58] sm:$0xff]
    %v1280 = vld [vmem:[#allocation10 + $0x1d60] sm:$0xff]
    %v1281 = vld [vmem:[#allocation10 + $0x1d68] sm:$0xff]
    %v1282 = vld [vmem:[#allocation10 + $0x1d70] sm:$0xff]
    %v1283 = vld [vmem:[#allocation10 + $0x1d78] sm:$0xff]
    %v1284 = vld [vmem:[#allocation10 + $0x1d80] sm:$0xff]
    %v1285 = vld [vmem:[#allocation10 + $0x1d88] sm:$0xff]
    %v1286 = vld [vmem:[#allocation10 + $0x1d90] sm:$0xff]
    %v1287 = vld [vmem:[#allocation10 + $0x1d98] sm:$0xff]
    %v1288 = vld [vmem:[#allocation10 + $0x1da0] sm:$0xff]
    %v1289 = vld [vmem:[#allocation10 + $0x1da8] sm:$0xff]
    %v1290 = vld [vmem:[#allocation10 + $0x1db0] sm:$0xff]
    %v1291 = vld [vmem:[#allocation10 + $0x1db8] sm:$0xff]
    %v1292 = vld [vmem:[#allocation10 + $0x1dc0] sm:$0xff]
    %v1293 = vld [vmem:[#allocation10 + $0x1dc8] sm:$0xff]
    %v1294 = vld [vmem:[#allocation10 + $0x1dd0] sm:$0xff]
    %v1295 = vld [vmem:[#allocation10 + $0x1dd8] sm:$0xff]
    %v1296 = vld [vmem:[#allocation10 + $0x1de0] sm:$0xff]
    %v1297 = vld [vmem:[#allocation10 + $0x1de8] sm:$0xff]
    %v1298 = vld [vmem:[#allocation10 + $0x1df0] sm:$0xff]
    %v1299 = vld [vmem:[#allocation10 + $0x1df8] sm:$0xff]
    %v1300 = vld [vmem:[#allocation10 + $0x1e00] sm:$0xff]
    %v1301 = vld [vmem:[#allocation10 + $0x1e08] sm:$0xff]
    %v1302 = vld [vmem:[#allocation10 + $0x1e10] sm:$0xff]
    %v1303 = vld [vmem:[#allocation10 + $0x1e18] sm:$0xff]
    %v1304 = vld [vmem:[#allocation10 + $0x1e20] sm:$0xff]
    %v1305 = vld [vmem:[#allocation10 + $0x1e28] sm:$0xff]
    %v1306 = vld [vmem:[#allocation10 + $0x1e30] sm:$0xff]
    %v1307 = vld [vmem:[#allocation10 + $0x1e38] sm:$0xff]
    %v1308 = vld [vmem:[#allocation10 + $0x1e40] sm:$0xff]
    %v1309 = vld [vmem:[#allocation10 + $0x1e48] sm:$0xff]
    %v1310 = vld [vmem:[#allocation10 + $0x1e50] sm:$0xff]
    %v1311 = vld [vmem:[#allocation10 + $0x1e58] sm:$0xff]
    %v1312 = vld [vmem:[#allocation10 + $0x1e60] sm:$0xff]
    %v1313 = vld [vmem:[#allocation10 + $0x1e68] sm:$0xff]
    %v1314 = vld [vmem:[#allocation10 + $0x1e70] sm:$0xff]
    %v1315 = vld [vmem:[#allocation10 + $0x1e78] sm:$0xff]
    %v1316 = vld [vmem:[#allocation10 + $0x1e80] sm:$0xff]
    %v1317 = vld [vmem:[#allocation10 + $0x1e88] sm:$0xff]
    %v1318 = vld [vmem:[#allocation10 + $0x1e90] sm:$0xff]
    %v1319 = vld [vmem:[#allocation10 + $0x1e98] sm:$0xff]
    %v1320 = vld [vmem:[#allocation10 + $0x1ea0] sm:$0xff]
    %v1321 = vld [vmem:[#allocation10 + $0x1ea8] sm:$0xff]
    %v1322 = vld [vmem:[#allocation10 + $0x1eb0] sm:$0xff]
    %v1323 = vld [vmem:[#allocation10 + $0x1eb8] sm:$0xff]
    %v1324 = vld [vmem:[#allocation10 + $0x1ec0] sm:$0xff]
    %v1325 = vld [vmem:[#allocation10 + $0x1ec8] sm:$0xff]
    %v1326 = vld [vmem:[#allocation10 + $0x1ed0] sm:$0xff]
    %v1327 = vld [vmem:[#allocation10 + $0x1ed8] sm:$0xff]
    %v1328 = vld [vmem:[#allocation10 + $0x1ee0] sm:$0xff]
    %v1329 = vld [vmem:[#allocation10 + $0x1ee8] sm:$0xff]
    %v1330 = vld [vmem:[#allocation10 + $0x1ef0] sm:$0xff]
    %v1331 = vld [vmem:[#allocation10 + $0x1ef8] sm:$0xff]
    %v1332 = vld [vmem:[#allocation10 + $0x1f00] sm:$0xff]
    %v1333 = vld [vmem:[#allocation10 + $0x1f08] sm:$0xff]
    %v1334 = vld [vmem:[#allocation10 + $0x1f10] sm:$0xff]
    %v1335 = vld [vmem:[#allocation10 + $0x1f18] sm:$0xff]
    %v1336 = vld [vmem:[#allocation10 + $0x1f20] sm:$0xff]
    %v1337 = vld [vmem:[#allocation10 + $0x1f28] sm:$0xff]
    %v1338 = vld [vmem:[#allocation10 + $0x1f30] sm:$0xff]
    %v1339 = vld [vmem:[#allocation10 + $0x1f38] sm:$0xff]
    %v1340 = vld [vmem:[#allocation10 + $0x1f40] sm:$0xff]
    %v1341 = vld [vmem:[#allocation10 + $0x1f48] sm:$0xff]
    %v1342 = vld [vmem:[#allocation10 + $0x1f50] sm:$0xff]
    %v1343 = vld [vmem:[#allocation10 + $0x1f58] sm:$0xff]
    %v1344 = vld [vmem:[#allocation10 + $0x1f60] sm:$0xff]
    %v1345 = vld [vmem:[#allocation10 + $0x1f68] sm:$0xff]
    %v1346 = vld [vmem:[#allocation10 + $0x1f70] sm:$0xff]
    %v1347 = vld [vmem:[#allocation10 + $0x1f78] sm:$0xff]
    %v1348 = vld [vmem:[#allocation10 + $0x1f80] sm:$0xff]
    %v1349 = vld [vmem:[#allocation10 + $0x1f88] sm:$0xff]
    %v1350 = vld [vmem:[#allocation10 + $0x1f90] sm:$0xff]
    %v1351 = vld [vmem:[#allocation10 + $0x1f98] sm:$0xff]
    %v1352 = vld [vmem:[#allocation10 + $0x1fa0] sm:$0xff]
    %v1353 = vld [vmem:[#allocation10 + $0x1fa8] sm:$0xff]
    %v1354 = vld [vmem:[#allocation10 + $0x1fb0] sm:$0xff]
    %v1355 = vld [vmem:[#allocation10 + $0x1fb8] sm:$0xff]
    %v1356 = vld [vmem:[#allocation10 + $0x1fc0] sm:$0xff]
    %v1357 = vld [vmem:[#allocation10 + $0x1fc8] sm:$0xff]
    %v1358 = vld [vmem:[#allocation10 + $0x1fd0] sm:$0xff]
    %v1359 = vld [vmem:[#allocation10 + $0x1fd8] sm:$0xff]
    %v1360 = vld [vmem:[#allocation10 + $0x1fe0] sm:$0xff]
    %v1361 = vld [vmem:[#allocation10 + $0x1fe8] sm:$0xff]
    %v1362 = vld [vmem:[#allocation10 + $0x1ff0] sm:$0xff]
    %v1363 = vld [vmem:[#allocation10 + $0x1ff8] sm:$0xff]
    %v1364 = vld [vmem:[#allocation11] sm:$0xff]
    %v1365 = vld [vmem:[#allocation11 + $0x8] sm:$0xff]
    %v1366 = vld [vmem:[#allocation11 + $0x10] sm:$0xff]
    %v1367 = vld [vmem:[#allocation11 + $0x18] sm:$0xff]
    %v1372 = vlaneseq
    %v1373 = vshrl.u32 %v1372, 7
    %v1374 = vsub.s32 0, %v1373
    %v1375 = vrot.slane %v1364, %v1374
    %v1376 = vlaneseq
    %v1377 = vshrl.u32 %v1376, 7
    %v1378 = vsub.s32 1, %v1377
    %v1379 = vrot.slane %v1364, %v1378
    %v1380 = vlaneseq
    %v1381 = vshrl.u32 %v1380, 7
    %v1382 = vsub.s32 2, %v1381
    %v1383 = vrot.slane %v1364, %v1382
    %v1384 = vlaneseq
    %v1385 = vshrl.u32 %v1384, 7
    %v1386 = vsub.s32 3, %v1385
    %v1387 = vrot.slane %v1364, %v1386
    %v1388 = vlaneseq
    %v1389 = vshrl.u32 %v1388, 7
    %v1390 = vsub.s32 4, %v1389
    %v1391 = vrot.slane %v1364, %v1390
    %v1392 = vlaneseq
    %v1393 = vshrl.u32 %v1392, 7
    %v1394 = vsub.s32 5, %v1393
    %v1395 = vrot.slane %v1364, %v1394
    %v1396 = vlaneseq
    %v1397 = vshrl.u32 %v1396, 7
    %v1398 = vsub.s32 6, %v1397
    %v1399 = vrot.slane %v1364, %v1398
    %v1400 = vlaneseq
    %v1401 = vshrl.u32 %v1400, 7
    %v1402 = vsub.s32 7, %v1401
    %v1403 = vrot.slane %v1364, %v1402
    %v1404 = vlaneseq
    %v1405 = vshrl.u32 %v1404, 7
    %v1406 = vsub.s32 0, %v1405
    %v1407 = vrot.slane %v1365, %v1406
    %v1408 = vlaneseq
    %v1409 = vshrl.u32 %v1408, 7
    %v1410 = vsub.s32 1, %v1409
    %v1411 = vrot.slane %v1365, %v1410
    %v1412 = vlaneseq
    %v1413 = vshrl.u32 %v1412, 7
    %v1414 = vsub.s32 2, %v1413
    %v1415 = vrot.slane %v1365, %v1414
    %v1416 = vlaneseq
    %v1417 = vshrl.u32 %v1416, 7
    %v1418 = vsub.s32 3, %v1417
    %v1419 = vrot.slane %v1365, %v1418
    %v1420 = vlaneseq
    %v1421 = vshrl.u32 %v1420, 7
    %v1422 = vsub.s32 4, %v1421
    %v1423 = vrot.slane %v1365, %v1422
    %v1424 = vlaneseq
    %v1425 = vshrl.u32 %v1424, 7
    %v1426 = vsub.s32 5, %v1425
    %v1427 = vrot.slane %v1365, %v1426
    %v1428 = vlaneseq
    %v1429 = vshrl.u32 %v1428, 7
    %v1430 = vsub.s32 6, %v1429
    %v1431 = vrot.slane %v1365, %v1430
    %v1432 = vlaneseq
    %v1433 = vshrl.u32 %v1432, 7
    %v1434 = vsub.s32 7, %v1433
    %v1435 = vrot.slane %v1365, %v1434
    %v1436 = vlaneseq
    %v1437 = vshrl.u32 %v1436, 7
    %v1438 = vsub.s32 0, %v1437
    %v1439 = vrot.slane %v1366, %v1438
    %v1440 = vlaneseq
    %v1441 = vshrl.u32 %v1440, 7
    %v1442 = vsub.s32 1, %v1441
    %v1443 = vrot.slane %v1366, %v1442
    %v1444 = vlaneseq
    %v1445 = vshrl.u32 %v1444, 7
    %v1446 = vsub.s32 2, %v1445
    %v1447 = vrot.slane %v1366, %v1446
    %v1448 = vlaneseq
    %v1449 = vshrl.u32 %v1448, 7
    %v1450 = vsub.s32 3, %v1449
    %v1451 = vrot.slane %v1366, %v1450
    %v1452 = vlaneseq
    %v1453 = vshrl.u32 %v1452, 7
    %v1454 = vsub.s32 4, %v1453
    %v1455 = vrot.slane %v1366, %v1454
    %v1456 = vlaneseq
    %v1457 = vshrl.u32 %v1456, 7
    %v1458 = vsub.s32 5, %v1457
    %v1459 = vrot.slane %v1366, %v1458
    %v1460 = vlaneseq
    %v1461 = vshrl.u32 %v1460, 7
    %v1462 = vsub.s32 6, %v1461
    %v1463 = vrot.slane %v1366, %v1462
    %v1464 = vlaneseq
    %v1465 = vshrl.u32 %v1464, 7
    %v1466 = vsub.s32 7, %v1465
    %v1467 = vrot.slane %v1366, %v1466
    %v1468 = vlaneseq
    %v1469 = vshrl.u32 %v1468, 7
    %v1470 = vsub.s32 0, %v1469
    %v1471 = vrot.slane %v1367, %v1470
    %v1472 = vlaneseq
    %v1473 = vshrl.u32 %v1472, 7
    %v1474 = vsub.s32 1, %v1473
    %v1475 = vrot.slane %v1367, %v1474
    %v1476 = vlaneseq
    %v1477 = vshrl.u32 %v1476, 7
    %v1478 = vsub.s32 2, %v1477
    %v1479 = vrot.slane %v1367, %v1478
    %v1480 = vlaneseq
    %v1481 = vshrl.u32 %v1480, 7
    %v1482 = vsub.s32 3, %v1481
    %v1483 = vrot.slane %v1367, %v1482
    %v1484 = vlaneseq
    %v1485 = vshrl.u32 %v1484, 7
    %v1486 = vsub.s32 4, %v1485
    %v1487 = vrot.slane %v1367, %v1486
    %v1488 = vlaneseq
    %v1489 = vshrl.u32 %v1488, 7
    %v1490 = vsub.s32 5, %v1489
    %v1491 = vrot.slane %v1367, %v1490
    %v1492 = vlaneseq
    %v1493 = vshrl.u32 %v1492, 7
    %v1494 = vsub.s32 6, %v1493
    %v1495 = vrot.slane %v1367, %v1494
    %v1496 = vlaneseq
    %v1497 = vshrl.u32 %v1496, 7
    %v1498 = vsub.s32 7, %v1497
    %v1499 = vrot.slane %v1367, %v1498
    %v2556 = vunpack.c.l.b16 %v340
    %v2557 = vunpack.c.h.b16 %v340
    %v2558 = vunpack.c.l.b16 %v341
    %v2559 = vunpack.c.h.b16 %v341
    %v2560 = vunpack.c.l.b16 %v342
    %v2561 = vunpack.c.h.b16 %v342
    %v2562 = vunpack.c.l.b16 %v343
    %v2563 = vunpack.c.h.b16 %v343
    %v2564 = vunpack.c.l.b16 %v344
    %v2565 = vunpack.c.h.b16 %v344
    %v2566 = vunpack.c.l.b16 %v345
    %v2567 = vunpack.c.h.b16 %v345
    %v2568 = vunpack.c.l.b16 %v346
    %v2569 = vunpack.c.h.b16 %v346
    %v2570 = vunpack.c.l.b16 %v347
    %v2571 = vunpack.c.h.b16 %v347
    %v2572 = vunpack.c.l.b16 %v348
    %v2573 = vunpack.c.h.b16 %v348
    %v2574 = vunpack.c.l.b16 %v349
    %v2575 = vunpack.c.h.b16 %v349
    %v2576 = vunpack.c.l.b16 %v350
    %v2577 = vunpack.c.h.b16 %v350
    %v2578 = vunpack.c.l.b16 %v351
    %v2579 = vunpack.c.h.b16 %v351
    %v2580 = vunpack.c.l.b16 %v352
    %v2581 = vunpack.c.h.b16 %v352
    %v2582 = vunpack.c.l.b16 %v353
    %v2583 = vunpack.c.h.b16 %v353
    %v2584 = vunpack.c.l.b16 %v354
    %v2585 = vunpack.c.h.b16 %v354
    %v2586 = vunpack.c.l.b16 %v355
    %v2587 = vunpack.c.h.b16 %v355
    %v2588 = vunpack.c.l.b16 %v356
    %v2589 = vunpack.c.h.b16 %v356
    %v2590 = vunpack.c.l.b16 %v357
    %v2591 = vunpack.c.h.b16 %v357
    %v2592 = vunpack.c.l.b16 %v358
    %v2593 = vunpack.c.h.b16 %v358
    %v2594 = vunpack.c.l.b16 %v359
    %v2595 = vunpack.c.h.b16 %v359
    %v2596 = vunpack.c.l.b16 %v360
    %v2597 = vunpack.c.h.b16 %v360
    %v2598 = vunpack.c.l.b16 %v361
    %v2599 = vunpack.c.h.b16 %v361
    %v2600 = vunpack.c.l.b16 %v362
    %v2601 = vunpack.c.h.b16 %v362
    %v2602 = vunpack.c.l.b16 %v363
    %v2603 = vunpack.c.h.b16 %v363
    %v2604 = vunpack.c.l.b16 %v364
    %v2605 = vunpack.c.h.b16 %v364
    %v2606 = vunpack.c.l.b16 %v365
    %v2607 = vunpack.c.h.b16 %v365
    %v2608 = vunpack.c.l.b16 %v366
    %v2609 = vunpack.c.h.b16 %v366
    %v2610 = vunpack.c.l.b16 %v367
    %v2611 = vunpack.c.h.b16 %v367
    %v2612 = vunpack.c.l.b16 %v368
    %v2613 = vunpack.c.h.b16 %v368
    %v2614 = vunpack.c.l.b16 %v369
    %v2615 = vunpack.c.h.b16 %v369
    %v2616 = vunpack.c.l.b16 %v370
    %v2617 = vunpack.c.h.b16 %v370
    %v2618 = vunpack.c.l.b16 %v371
    %v2619 = vunpack.c.h.b16 %v371
    %v2620 = vunpack.c.l.b16 %v372
    %v2621 = vunpack.c.h.b16 %v372
    %v2622 = vunpack.c.l.b16 %v373
    %v2623 = vunpack.c.h.b16 %v373
    %v2624 = vunpack.c.l.b16 %v374
    %v2625 = vunpack.c.h.b16 %v374
    %v2626 = vunpack.c.l.b16 %v375
    %v2627 = vunpack.c.h.b16 %v375
    %v2628 = vunpack.c.l.b16 %v376
    %v2629 = vunpack.c.h.b16 %v376
    %v2630 = vunpack.c.l.b16 %v377
    %v2631 = vunpack.c.h.b16 %v377
    %v2632 = vunpack.c.l.b16 %v378
    %v2633 = vunpack.c.h.b16 %v378
    %v2634 = vunpack.c.l.b16 %v379
    %v2635 = vunpack.c.h.b16 %v379
    %v2636 = vunpack.c.l.b16 %v380
    %v2637 = vunpack.c.h.b16 %v380
    %v2638 = vunpack.c.l.b16 %v381
    %v2639 = vunpack.c.h.b16 %v381
    %v2640 = vunpack.c.l.b16 %v382
    %v2641 = vunpack.c.h.b16 %v382
    %v2642 = vunpack.c.l.b16 %v383
    %v2643 = vunpack.c.h.b16 %v383
    %v2644 = vunpack.c.l.b16 %v384
    %v2645 = vunpack.c.h.b16 %v384
    %v2646 = vunpack.c.l.b16 %v385
    %v2647 = vunpack.c.h.b16 %v385
    %v2648 = vunpack.c.l.b16 %v386
    %v2649 = vunpack.c.h.b16 %v386
    %v2650 = vunpack.c.l.b16 %v387
    %v2651 = vunpack.c.h.b16 %v387
    %v2652 = vunpack.c.l.b16 %v388
    %v2653 = vunpack.c.h.b16 %v388
    %v2654 = vunpack.c.l.b16 %v389
    %v2655 = vunpack.c.h.b16 %v389
    %v2656 = vunpack.c.l.b16 %v390
    %v2657 = vunpack.c.h.b16 %v390
    %v2658 = vunpack.c.l.b16 %v391
    %v2659 = vunpack.c.h.b16 %v391
    %v2660 = vunpack.c.l.b16 %v392
    %v2661 = vunpack.c.h.b16 %v392
    %v2662 = vunpack.c.l.b16 %v393
    %v2663 = vunpack.c.h.b16 %v393
    %v2664 = vunpack.c.l.b16 %v394
    %v2665 = vunpack.c.h.b16 %v394
    %v2666 = vunpack.c.l.b16 %v395
    %v2667 = vunpack.c.h.b16 %v395
    %v2668 = vunpack.c.l.b16 %v396
    %v2669 = vunpack.c.h.b16 %v396
    %v2670 = vunpack.c.l.b16 %v397
    %v2671 = vunpack.c.h.b16 %v397
    %v2672 = vunpack.c.l.b16 %v398
    %v2673 = vunpack.c.h.b16 %v398
    %v2674 = vunpack.c.l.b16 %v399
    %v2675 = vunpack.c.h.b16 %v399
    %v2676 = vunpack.c.l.b16 %v400
    %v2677 = vunpack.c.h.b16 %v400
    %v2678 = vunpack.c.l.b16 %v401
    %v2679 = vunpack.c.h.b16 %v401
    %v2680 = vunpack.c.l.b16 %v402
    %v2681 = vunpack.c.h.b16 %v402
    %v2682 = vunpack.c.l.b16 %v403
    %v2683 = vunpack.c.h.b16 %v403
    %v2684 = vunpack.c.l.b16 %v404
    %v2685 = vunpack.c.h.b16 %v404
    %v2686 = vunpack.c.l.b16 %v405
    %v2687 = vunpack.c.h.b16 %v405
    %v2688 = vunpack.c.l.b16 %v406
    %v2689 = vunpack.c.h.b16 %v406
    %v2690 = vunpack.c.l.b16 %v407
    %v2691 = vunpack.c.h.b16 %v407
    %v2692 = vunpack.c.l.b16 %v408
    %v2693 = vunpack.c.h.b16 %v408
    %v2694 = vunpack.c.l.b16 %v409
    %v2695 = vunpack.c.h.b16 %v409
    %v2696 = vunpack.c.l.b16 %v410
    %v2697 = vunpack.c.h.b16 %v410
    %v2698 = vunpack.c.l.b16 %v411
    %v2699 = vunpack.c.h.b16 %v411
    %v2700 = vunpack.c.l.b16 %v412
    %v2701 = vunpack.c.h.b16 %v412
    %v2702 = vunpack.c.l.b16 %v413
    %v2703 = vunpack.c.h.b16 %v413
    %v2704 = vunpack.c.l.b16 %v414
    %v2705 = vunpack.c.h.b16 %v414
    %v2706 = vunpack.c.l.b16 %v415
    %v2707 = vunpack.c.h.b16 %v415
    %v2708 = vunpack.c.l.b16 %v416
    %v2709 = vunpack.c.h.b16 %v416
    %v2710 = vunpack.c.l.b16 %v417
    %v2711 = vunpack.c.h.b16 %v417
    %v2712 = vunpack.c.l.b16 %v418
    %v2713 = vunpack.c.h.b16 %v418
    %v2714 = vunpack.c.l.b16 %v419
    %v2715 = vunpack.c.h.b16 %v419
    %v2716 = vunpack.c.l.b16 %v420
    %v2717 = vunpack.c.h.b16 %v420
    %v2718 = vunpack.c.l.b16 %v421
    %v2719 = vunpack.c.h.b16 %v421
    %v2720 = vunpack.c.l.b16 %v422
    %v2721 = vunpack.c.h.b16 %v422
    %v2722 = vunpack.c.l.b16 %v423
    %v2723 = vunpack.c.h.b16 %v423
    %v2724 = vunpack.c.l.b16 %v424
    %v2725 = vunpack.c.h.b16 %v424
    %v2726 = vunpack.c.l.b16 %v425
    %v2727 = vunpack.c.h.b16 %v425
    %v2728 = vunpack.c.l.b16 %v426
    %v2729 = vunpack.c.h.b16 %v426
    %v2730 = vunpack.c.l.b16 %v427
    %v2731 = vunpack.c.h.b16 %v427
    %v2732 = vunpack.c.l.b16 %v428
    %v2733 = vunpack.c.h.b16 %v428
    %v2734 = vunpack.c.l.b16 %v429
    %v2735 = vunpack.c.h.b16 %v429
    %v2736 = vunpack.c.l.b16 %v430
    %v2737 = vunpack.c.h.b16 %v430
    %v2738 = vunpack.c.l.b16 %v431
    %v2739 = vunpack.c.h.b16 %v431
    %v2740 = vunpack.c.l.b16 %v432
    %v2741 = vunpack.c.h.b16 %v432
    %v2742 = vunpack.c.l.b16 %v433
    %v2743 = vunpack.c.h.b16 %v433
    %v2744 = vunpack.c.l.b16 %v434
    %v2745 = vunpack.c.h.b16 %v434
    %v2746 = vunpack.c.l.b16 %v435
    %v2747 = vunpack.c.h.b16 %v435
    %v2748 = vunpack.c.l.b16 %v436
    %v2749 = vunpack.c.h.b16 %v436
    %v2750 = vunpack.c.l.b16 %v437
    %v2751 = vunpack.c.h.b16 %v437
    %v2752 = vunpack.c.l.b16 %v438
    %v2753 = vunpack.c.h.b16 %v438
    %v2754 = vunpack.c.l.b16 %v439
    %v2755 = vunpack.c.h.b16 %v439
    %v2756 = vunpack.c.l.b16 %v440
    %v2757 = vunpack.c.h.b16 %v440
    %v2758 = vunpack.c.l.b16 %v441
    %v2759 = vunpack.c.h.b16 %v441
    %v2760 = vunpack.c.l.b16 %v442
    %v2761 = vunpack.c.h.b16 %v442
    %v2762 = vunpack.c.l.b16 %v443
    %v2763 = vunpack.c.h.b16 %v443
    %v2764 = vunpack.c.l.b16 %v444
    %v2765 = vunpack.c.h.b16 %v444
    %v2766 = vunpack.c.l.b16 %v445
    %v2767 = vunpack.c.h.b16 %v445
    %v2768 = vunpack.c.l.b16 %v446
    %v2769 = vunpack.c.h.b16 %v446
    %v2770 = vunpack.c.l.b16 %v447
    %v2771 = vunpack.c.h.b16 %v447
    %v2772 = vunpack.c.l.b16 %v448
    %v2773 = vunpack.c.h.b16 %v448
    %v2774 = vunpack.c.l.b16 %v449
    %v2775 = vunpack.c.h.b16 %v449
    %v2776 = vunpack.c.l.b16 %v450
    %v2777 = vunpack.c.h.b16 %v450
    %v2778 = vunpack.c.l.b16 %v451
    %v2779 = vunpack.c.h.b16 %v451
    %v2780 = vunpack.c.l.b16 %v452
    %v2781 = vunpack.c.h.b16 %v452
    %v2782 = vunpack.c.l.b16 %v453
    %v2783 = vunpack.c.h.b16 %v453
    %v2784 = vunpack.c.l.b16 %v454
    %v2785 = vunpack.c.h.b16 %v454
    %v2786 = vunpack.c.l.b16 %v455
    %v2787 = vunpack.c.h.b16 %v455
    %v2788 = vunpack.c.l.b16 %v456
    %v2789 = vunpack.c.h.b16 %v456
    %v2790 = vunpack.c.l.b16 %v457
    %v2791 = vunpack.c.h.b16 %v457
    %v2792 = vunpack.c.l.b16 %v458
    %v2793 = vunpack.c.h.b16 %v458
    %v2794 = vunpack.c.l.b16 %v459
    %v2795 = vunpack.c.h.b16 %v459
    %v2796 = vunpack.c.l.b16 %v460
    %v2797 = vunpack.c.h.b16 %v460
    %v2798 = vunpack.c.l.b16 %v461
    %v2799 = vunpack.c.h.b16 %v461
    %v2800 = vunpack.c.l.b16 %v462
    %v2801 = vunpack.c.h.b16 %v462
    %v2802 = vunpack.c.l.b16 %v463
    %v2803 = vunpack.c.h.b16 %v463
    %v2804 = vunpack.c.l.b16 %v464
    %v2805 = vunpack.c.h.b16 %v464
    %v2806 = vunpack.c.l.b16 %v465
    %v2807 = vunpack.c.h.b16 %v465
    %v2808 = vunpack.c.l.b16 %v466
    %v2809 = vunpack.c.h.b16 %v466
    %v2810 = vunpack.c.l.b16 %v467
    %v2811 = vunpack.c.h.b16 %v467
    %v2812 = vunpack.c.l.b16 %v468
    %v2813 = vunpack.c.h.b16 %v468
    %v2814 = vunpack.c.l.b16 %v469
    %v2815 = vunpack.c.h.b16 %v469
    %v2816 = vunpack.c.l.b16 %v470
    %v2817 = vunpack.c.h.b16 %v470
    %v2818 = vunpack.c.l.b16 %v471
    %v2819 = vunpack.c.h.b16 %v471
    %v2820 = vunpack.c.l.b16 %v472
    %v2821 = vunpack.c.h.b16 %v472
    %v2822 = vunpack.c.l.b16 %v473
    %v2823 = vunpack.c.h.b16 %v473
    %v2824 = vunpack.c.l.b16 %v474
    %v2825 = vunpack.c.h.b16 %v474
    %v2826 = vunpack.c.l.b16 %v475
    %v2827 = vunpack.c.h.b16 %v475
    %v2828 = vunpack.c.l.b16 %v476
    %v2829 = vunpack.c.h.b16 %v476
    %v2830 = vunpack.c.l.b16 %v477
    %v2831 = vunpack.c.h.b16 %v477
    %v2832 = vunpack.c.l.b16 %v478
    %v2833 = vunpack.c.h.b16 %v478
    %v2834 = vunpack.c.l.b16 %v479
    %v2835 = vunpack.c.h.b16 %v479
    %v2836 = vunpack.c.l.b16 %v480
    %v2837 = vunpack.c.h.b16 %v480
    %v2838 = vunpack.c.l.b16 %v481
    %v2839 = vunpack.c.h.b16 %v481
    %v2840 = vunpack.c.l.b16 %v482
    %v2841 = vunpack.c.h.b16 %v482
    %v2842 = vunpack.c.l.b16 %v483
    %v2843 = vunpack.c.h.b16 %v483
    %v2844 = vunpack.c.l.b16 %v484
    %v2845 = vunpack.c.h.b16 %v484
    %v2846 = vunpack.c.l.b16 %v485
    %v2847 = vunpack.c.h.b16 %v485
    %v2848 = vunpack.c.l.b16 %v486
    %v2849 = vunpack.c.h.b16 %v486
    %v2850 = vunpack.c.l.b16 %v487
    %v2851 = vunpack.c.h.b16 %v487
    %v2852 = vunpack.c.l.b16 %v488
    %v2853 = vunpack.c.h.b16 %v488
    %v2854 = vunpack.c.l.b16 %v489
    %v2855 = vunpack.c.h.b16 %v489
    %v2856 = vunpack.c.l.b16 %v490
    %v2857 = vunpack.c.h.b16 %v490
    %v2858 = vunpack.c.l.b16 %v491
    %v2859 = vunpack.c.h.b16 %v491
    %v2860 = vunpack.c.l.b16 %v492
    %v2861 = vunpack.c.h.b16 %v492
    %v2862 = vunpack.c.l.b16 %v493
    %v2863 = vunpack.c.h.b16 %v493
    %v2864 = vunpack.c.l.b16 %v494
    %v2865 = vunpack.c.h.b16 %v494
    %v2866 = vunpack.c.l.b16 %v495
    %v2867 = vunpack.c.h.b16 %v495
    %v2868 = vunpack.c.l.b16 %v496
    %v2869 = vunpack.c.h.b16 %v496
    %v2870 = vunpack.c.l.b16 %v497
    %v2871 = vunpack.c.h.b16 %v497
    %v2872 = vunpack.c.l.b16 %v498
    %v2873 = vunpack.c.h.b16 %v498
    %v2874 = vunpack.c.l.b16 %v499
    %v2875 = vunpack.c.h.b16 %v499
    %v2876 = vunpack.c.l.b16 %v500
    %v2877 = vunpack.c.h.b16 %v500
    %v2878 = vunpack.c.l.b16 %v501
    %v2879 = vunpack.c.h.b16 %v501
    %v2880 = vunpack.c.l.b16 %v502
    %v2881 = vunpack.c.h.b16 %v502
    %v2882 = vunpack.c.l.b16 %v503
    %v2883 = vunpack.c.h.b16 %v503
    %v2884 = vunpack.c.l.b16 %v504
    %v2885 = vunpack.c.h.b16 %v504
    %v2886 = vunpack.c.l.b16 %v505
    %v2887 = vunpack.c.h.b16 %v505
    %v2888 = vunpack.c.l.b16 %v506
    %v2889 = vunpack.c.h.b16 %v506
    %v2890 = vunpack.c.l.b16 %v507
    %v2891 = vunpack.c.h.b16 %v507
    %v2892 = vunpack.c.l.b16 %v508
    %v2893 = vunpack.c.h.b16 %v508
    %v2894 = vunpack.c.l.b16 %v509
    %v2895 = vunpack.c.h.b16 %v509
    %v2896 = vunpack.c.l.b16 %v510
    %v2897 = vunpack.c.h.b16 %v510
    %v2898 = vunpack.c.l.b16 %v511
    %v2899 = vunpack.c.h.b16 %v511
    %v2900 = vunpack.c.l.b16 %v512
    %v2901 = vunpack.c.h.b16 %v512
    %v2902 = vunpack.c.l.b16 %v513
    %v2903 = vunpack.c.h.b16 %v513
    %v2904 = vunpack.c.l.b16 %v514
    %v2905 = vunpack.c.h.b16 %v514
    %v2906 = vunpack.c.l.b16 %v515
    %v2907 = vunpack.c.h.b16 %v515
    %v2908 = vunpack.c.l.b16 %v516
    %v2909 = vunpack.c.h.b16 %v516
    %v2910 = vunpack.c.l.b16 %v517
    %v2911 = vunpack.c.h.b16 %v517
    %v2912 = vunpack.c.l.b16 %v518
    %v2913 = vunpack.c.h.b16 %v518
    %v2914 = vunpack.c.l.b16 %v519
    %v2915 = vunpack.c.h.b16 %v519
    %v2916 = vunpack.c.l.b16 %v520
    %v2917 = vunpack.c.h.b16 %v520
    %v2918 = vunpack.c.l.b16 %v521
    %v2919 = vunpack.c.h.b16 %v521
    %v2920 = vunpack.c.l.b16 %v522
    %v2921 = vunpack.c.h.b16 %v522
    %v2922 = vunpack.c.l.b16 %v523
    %v2923 = vunpack.c.h.b16 %v523
    %v2924 = vunpack.c.l.b16 %v524
    %v2925 = vunpack.c.h.b16 %v524
    %v2926 = vunpack.c.l.b16 %v525
    %v2927 = vunpack.c.h.b16 %v525
    %v2928 = vunpack.c.l.b16 %v526
    %v2929 = vunpack.c.h.b16 %v526
    %v2930 = vunpack.c.l.b16 %v527
    %v2931 = vunpack.c.h.b16 %v527
    %v2932 = vunpack.c.l.b16 %v528
    %v2933 = vunpack.c.h.b16 %v528
    %v2934 = vunpack.c.l.b16 %v529
    %v2935 = vunpack.c.h.b16 %v529
    %v2936 = vunpack.c.l.b16 %v530
    %v2937 = vunpack.c.h.b16 %v530
    %v2938 = vunpack.c.l.b16 %v531
    %v2939 = vunpack.c.h.b16 %v531
    %v2940 = vunpack.c.l.b16 %v532
    %v2941 = vunpack.c.h.b16 %v532
    %v2942 = vunpack.c.l.b16 %v533
    %v2943 = vunpack.c.h.b16 %v533
    %v2944 = vunpack.c.l.b16 %v534
    %v2945 = vunpack.c.h.b16 %v534
    %v2946 = vunpack.c.l.b16 %v535
    %v2947 = vunpack.c.h.b16 %v535
    %v2948 = vunpack.c.l.b16 %v536
    %v2949 = vunpack.c.h.b16 %v536
    %v2950 = vunpack.c.l.b16 %v537
    %v2951 = vunpack.c.h.b16 %v537
    %v2952 = vunpack.c.l.b16 %v538
    %v2953 = vunpack.c.h.b16 %v538
    %v2954 = vunpack.c.l.b16 %v539
    %v2955 = vunpack.c.h.b16 %v539
    %v2956 = vunpack.c.l.b16 %v540
    %v2957 = vunpack.c.h.b16 %v540
    %v2958 = vunpack.c.l.b16 %v541
    %v2959 = vunpack.c.h.b16 %v541
    %v2960 = vunpack.c.l.b16 %v542
    %v2961 = vunpack.c.h.b16 %v542
    %v2962 = vunpack.c.l.b16 %v543
    %v2963 = vunpack.c.h.b16 %v543
    %v2964 = vunpack.c.l.b16 %v544
    %v2965 = vunpack.c.h.b16 %v544
    %v2966 = vunpack.c.l.b16 %v545
    %v2967 = vunpack.c.h.b16 %v545
    %v2968 = vunpack.c.l.b16 %v546
    %v2969 = vunpack.c.h.b16 %v546
    %v2970 = vunpack.c.l.b16 %v547
    %v2971 = vunpack.c.h.b16 %v547
    %v2972 = vunpack.c.l.b16 %v548
    %v2973 = vunpack.c.h.b16 %v548
    %v2974 = vunpack.c.l.b16 %v549
    %v2975 = vunpack.c.h.b16 %v549
    %v2976 = vunpack.c.l.b16 %v550
    %v2977 = vunpack.c.h.b16 %v550
    %v2978 = vunpack.c.l.b16 %v551
    %v2979 = vunpack.c.h.b16 %v551
    %v2980 = vunpack.c.l.b16 %v552
    %v2981 = vunpack.c.h.b16 %v552
    %v2982 = vunpack.c.l.b16 %v553
    %v2983 = vunpack.c.h.b16 %v553
    %v2984 = vunpack.c.l.b16 %v554
    %v2985 = vunpack.c.h.b16 %v554
    %v2986 = vunpack.c.l.b16 %v555
    %v2987 = vunpack.c.h.b16 %v555
    %v2988 = vunpack.c.l.b16 %v556
    %v2989 = vunpack.c.h.b16 %v556
    %v2990 = vunpack.c.l.b16 %v557
    %v2991 = vunpack.c.h.b16 %v557
    %v2992 = vunpack.c.l.b16 %v558
    %v2993 = vunpack.c.h.b16 %v558
    %v2994 = vunpack.c.l.b16 %v559
    %v2995 = vunpack.c.h.b16 %v559
    %v2996 = vunpack.c.l.b16 %v560
    %v2997 = vunpack.c.h.b16 %v560
    %v2998 = vunpack.c.l.b16 %v561
    %v2999 = vunpack.c.h.b16 %v561
    %v3000 = vunpack.c.l.b16 %v562
    %v3001 = vunpack.c.h.b16 %v562
    %v3002 = vunpack.c.l.b16 %v563
    %v3003 = vunpack.c.h.b16 %v563
    %v3004 = vunpack.c.l.b16 %v564
    %v3005 = vunpack.c.h.b16 %v564
    %v3006 = vunpack.c.l.b16 %v565
    %v3007 = vunpack.c.h.b16 %v565
    %v3008 = vunpack.c.l.b16 %v566
    %v3009 = vunpack.c.h.b16 %v566
    %v3010 = vunpack.c.l.b16 %v567
    %v3011 = vunpack.c.h.b16 %v567
    %v3012 = vunpack.c.l.b16 %v568
    %v3013 = vunpack.c.h.b16 %v568
    %v3014 = vunpack.c.l.b16 %v569
    %v3015 = vunpack.c.h.b16 %v569
    %v3016 = vunpack.c.l.b16 %v570
    %v3017 = vunpack.c.h.b16 %v570
    %v3018 = vunpack.c.l.b16 %v571
    %v3019 = vunpack.c.h.b16 %v571
    %v3020 = vunpack.c.l.b16 %v572
    %v3021 = vunpack.c.h.b16 %v572
    %v3022 = vunpack.c.l.b16 %v573
    %v3023 = vunpack.c.h.b16 %v573
    %v3024 = vunpack.c.l.b16 %v574
    %v3025 = vunpack.c.h.b16 %v574
    %v3026 = vunpack.c.l.b16 %v575
    %v3027 = vunpack.c.h.b16 %v575
    %v3028 = vunpack.c.l.b16 %v576
    %v3029 = vunpack.c.h.b16 %v576
    %v3030 = vunpack.c.l.b16 %v577
    %v3031 = vunpack.c.h.b16 %v577
    %v3032 = vunpack.c.l.b16 %v578
    %v3033 = vunpack.c.h.b16 %v578
    %v3034 = vunpack.c.l.b16 %v579
    %v3035 = vunpack.c.h.b16 %v579
    %v3036 = vunpack.c.l.b16 %v580
    %v3037 = vunpack.c.h.b16 %v580
    %v3038 = vunpack.c.l.b16 %v581
    %v3039 = vunpack.c.h.b16 %v581
    %v3040 = vunpack.c.l.b16 %v582
    %v3041 = vunpack.c.h.b16 %v582
    %v3042 = vunpack.c.l.b16 %v583
    %v3043 = vunpack.c.h.b16 %v583
    %v3044 = vunpack.c.l.b16 %v584
    %v3045 = vunpack.c.h.b16 %v584
    %v3046 = vunpack.c.l.b16 %v585
    %v3047 = vunpack.c.h.b16 %v585
    %v3048 = vunpack.c.l.b16 %v586
    %v3049 = vunpack.c.h.b16 %v586
    %v3050 = vunpack.c.l.b16 %v587
    %v3051 = vunpack.c.h.b16 %v587
    %v3052 = vunpack.c.l.b16 %v588
    %v3053 = vunpack.c.h.b16 %v588
    %v3054 = vunpack.c.l.b16 %v589
    %v3055 = vunpack.c.h.b16 %v589
    %v3056 = vunpack.c.l.b16 %v590
    %v3057 = vunpack.c.h.b16 %v590
    %v3058 = vunpack.c.l.b16 %v591
    %v3059 = vunpack.c.h.b16 %v591
    %v3060 = vunpack.c.l.b16 %v592
    %v3061 = vunpack.c.h.b16 %v592
    %v3062 = vunpack.c.l.b16 %v593
    %v3063 = vunpack.c.h.b16 %v593
    %v3064 = vunpack.c.l.b16 %v594
    %v3065 = vunpack.c.h.b16 %v594
    %v3066 = vunpack.c.l.b16 %v595
    %v3067 = vunpack.c.h.b16 %v595
    %v3068 = vunpack.c.l.b16 %v596
    %v3069 = vunpack.c.h.b16 %v596
    %v3070 = vunpack.c.l.b16 %v597
    %v3071 = vunpack.c.h.b16 %v597
    %v3072 = vunpack.c.l.b16 %v598
    %v3073 = vunpack.c.h.b16 %v598
    %v3074 = vunpack.c.l.b16 %v599
    %v3075 = vunpack.c.h.b16 %v599
    %v3076 = vunpack.c.l.b16 %v600
    %v3077 = vunpack.c.h.b16 %v600
    %v3078 = vunpack.c.l.b16 %v601
    %v3079 = vunpack.c.h.b16 %v601
    %v3080 = vunpack.c.l.b16 %v602
    %v3081 = vunpack.c.h.b16 %v602
    %v3082 = vunpack.c.l.b16 %v603
    %v3083 = vunpack.c.h.b16 %v603
    %v3084 = vunpack.c.l.b16 %v604
    %v3085 = vunpack.c.h.b16 %v604
    %v3086 = vunpack.c.l.b16 %v605
    %v3087 = vunpack.c.h.b16 %v605
    %v3088 = vunpack.c.l.b16 %v606
    %v3089 = vunpack.c.h.b16 %v606
    %v3090 = vunpack.c.l.b16 %v607
    %v3091 = vunpack.c.h.b16 %v607
    %v3092 = vunpack.c.l.b16 %v608
    %v3093 = vunpack.c.h.b16 %v608
    %v3094 = vunpack.c.l.b16 %v609
    %v3095 = vunpack.c.h.b16 %v609
    %v3096 = vunpack.c.l.b16 %v610
    %v3097 = vunpack.c.h.b16 %v610
    %v3098 = vunpack.c.l.b16 %v611
    %v3099 = vunpack.c.h.b16 %v611
    %v3100 = vunpack.c.l.b16 %v612
    %v3101 = vunpack.c.h.b16 %v612
    %v3102 = vunpack.c.l.b16 %v613
    %v3103 = vunpack.c.h.b16 %v613
    %v3104 = vunpack.c.l.b16 %v614
    %v3105 = vunpack.c.h.b16 %v614
    %v3106 = vunpack.c.l.b16 %v615
    %v3107 = vunpack.c.h.b16 %v615
    %v3108 = vunpack.c.l.b16 %v616
    %v3109 = vunpack.c.h.b16 %v616
    %v3110 = vunpack.c.l.b16 %v617
    %v3111 = vunpack.c.h.b16 %v617
    %v3112 = vunpack.c.l.b16 %v618
    %v3113 = vunpack.c.h.b16 %v618
    %v3114 = vunpack.c.l.b16 %v619
    %v3115 = vunpack.c.h.b16 %v619
    %v3116 = vunpack.c.l.b16 %v620
    %v3117 = vunpack.c.h.b16 %v620
    %v3118 = vunpack.c.l.b16 %v621
    %v3119 = vunpack.c.h.b16 %v621
    %v3120 = vunpack.c.l.b16 %v622
    %v3121 = vunpack.c.h.b16 %v622
    %v3122 = vunpack.c.l.b16 %v623
    %v3123 = vunpack.c.h.b16 %v623
    %v3124 = vunpack.c.l.b16 %v624
    %v3125 = vunpack.c.h.b16 %v624
    %v3126 = vunpack.c.l.b16 %v625
    %v3127 = vunpack.c.h.b16 %v625
    %v3128 = vunpack.c.l.b16 %v626
    %v3129 = vunpack.c.h.b16 %v626
    %v3130 = vunpack.c.l.b16 %v627
    %v3131 = vunpack.c.h.b16 %v627
    %v3132 = vunpack.c.l.b16 %v628
    %v3133 = vunpack.c.h.b16 %v628
    %v3134 = vunpack.c.l.b16 %v629
    %v3135 = vunpack.c.h.b16 %v629
    %v3136 = vunpack.c.l.b16 %v630
    %v3137 = vunpack.c.h.b16 %v630
    %v3138 = vunpack.c.l.b16 %v631
    %v3139 = vunpack.c.h.b16 %v631
    %v3140 = vunpack.c.l.b16 %v632
    %v3141 = vunpack.c.h.b16 %v632
    %v3142 = vunpack.c.l.b16 %v633
    %v3143 = vunpack.c.h.b16 %v633
    %v3144 = vunpack.c.l.b16 %v634
    %v3145 = vunpack.c.h.b16 %v634
    %v3146 = vunpack.c.l.b16 %v635
    %v3147 = vunpack.c.h.b16 %v635
    %v3148 = vunpack.c.l.b16 %v636
    %v3149 = vunpack.c.h.b16 %v636
    %v3150 = vunpack.c.l.b16 %v637
    %v3151 = vunpack.c.h.b16 %v637
    %v3152 = vunpack.c.l.b16 %v638
    %v3153 = vunpack.c.h.b16 %v638
    %v3154 = vunpack.c.l.b16 %v639
    %v3155 = vunpack.c.h.b16 %v639
    %v3156 = vunpack.c.l.b16 %v640
    %v3157 = vunpack.c.h.b16 %v640
    %v3158 = vunpack.c.l.b16 %v641
    %v3159 = vunpack.c.h.b16 %v641
    %v3160 = vunpack.c.l.b16 %v642
    %v3161 = vunpack.c.h.b16 %v642
    %v3162 = vunpack.c.l.b16 %v643
    %v3163 = vunpack.c.h.b16 %v643
    %v3164 = vunpack.c.l.b16 %v644
    %v3165 = vunpack.c.h.b16 %v644
    %v3166 = vunpack.c.l.b16 %v645
    %v3167 = vunpack.c.h.b16 %v645
    %v3168 = vunpack.c.l.b16 %v646
    %v3169 = vunpack.c.h.b16 %v646
    %v3170 = vunpack.c.l.b16 %v647
    %v3171 = vunpack.c.h.b16 %v647
    %v3172 = vunpack.c.l.b16 %v648
    %v3173 = vunpack.c.h.b16 %v648
    %v3174 = vunpack.c.l.b16 %v649
    %v3175 = vunpack.c.h.b16 %v649
    %v3176 = vunpack.c.l.b16 %v650
    %v3177 = vunpack.c.h.b16 %v650
    %v3178 = vunpack.c.l.b16 %v651
    %v3179 = vunpack.c.h.b16 %v651
    %v3180 = vunpack.c.l.b16 %v652
    %v3181 = vunpack.c.h.b16 %v652
    %v3182 = vunpack.c.l.b16 %v653
    %v3183 = vunpack.c.h.b16 %v653
    %v3184 = vunpack.c.l.b16 %v654
    %v3185 = vunpack.c.h.b16 %v654
    %v3186 = vunpack.c.l.b16 %v655
    %v3187 = vunpack.c.h.b16 %v655
    %v3188 = vunpack.c.l.b16 %v656
    %v3189 = vunpack.c.h.b16 %v656
    %v3190 = vunpack.c.l.b16 %v657
    %v3191 = vunpack.c.h.b16 %v657
    %v3192 = vunpack.c.l.b16 %v658
    %v3193 = vunpack.c.h.b16 %v658
    %v3194 = vunpack.c.l.b16 %v659
    %v3195 = vunpack.c.h.b16 %v659
    %v3196 = vunpack.c.l.b16 %v660
    %v3197 = vunpack.c.h.b16 %v660
    %v3198 = vunpack.c.l.b16 %v661
    %v3199 = vunpack.c.h.b16 %v661
    %v3200 = vunpack.c.l.b16 %v662
    %v3201 = vunpack.c.h.b16 %v662
    %v3202 = vunpack.c.l.b16 %v663
    %v3203 = vunpack.c.h.b16 %v663
    %v3204 = vunpack.c.l.b16 %v664
    %v3205 = vunpack.c.h.b16 %v664
    %v3206 = vunpack.c.l.b16 %v665
    %v3207 = vunpack.c.h.b16 %v665
    %v3208 = vunpack.c.l.b16 %v666
    %v3209 = vunpack.c.h.b16 %v666
    %v3210 = vunpack.c.l.b16 %v667
    %v3211 = vunpack.c.h.b16 %v667
    %v3212 = vunpack.c.l.b16 %v668
    %v3213 = vunpack.c.h.b16 %v668
    %v3214 = vunpack.c.l.b16 %v669
    %v3215 = vunpack.c.h.b16 %v669
    %v3216 = vunpack.c.l.b16 %v670
    %v3217 = vunpack.c.h.b16 %v670
    %v3218 = vunpack.c.l.b16 %v671
    %v3219 = vunpack.c.h.b16 %v671
    %v3220 = vunpack.c.l.b16 %v672
    %v3221 = vunpack.c.h.b16 %v672
    %v3222 = vunpack.c.l.b16 %v673
    %v3223 = vunpack.c.h.b16 %v673
    %v3224 = vunpack.c.l.b16 %v674
    %v3225 = vunpack.c.h.b16 %v674
    %v3226 = vunpack.c.l.b16 %v675
    %v3227 = vunpack.c.h.b16 %v675
    %v3228 = vunpack.c.l.b16 %v676
    %v3229 = vunpack.c.h.b16 %v676
    %v3230 = vunpack.c.l.b16 %v677
    %v3231 = vunpack.c.h.b16 %v677
    %v3232 = vunpack.c.l.b16 %v678
    %v3233 = vunpack.c.h.b16 %v678
    %v3234 = vunpack.c.l.b16 %v679
    %v3235 = vunpack.c.h.b16 %v679
    %v3236 = vunpack.c.l.b16 %v680
    %v3237 = vunpack.c.h.b16 %v680
    %v3238 = vunpack.c.l.b16 %v681
    %v3239 = vunpack.c.h.b16 %v681
    %v3240 = vunpack.c.l.b16 %v682
    %v3241 = vunpack.c.h.b16 %v682
    %v3242 = vunpack.c.l.b16 %v683
    %v3243 = vunpack.c.h.b16 %v683
    %v3244 = vunpack.c.l.b16 %v684
    %v3245 = vunpack.c.h.b16 %v684
    %v3246 = vunpack.c.l.b16 %v685
    %v3247 = vunpack.c.h.b16 %v685
    %v3248 = vunpack.c.l.b16 %v686
    %v3249 = vunpack.c.h.b16 %v686
    %v3250 = vunpack.c.l.b16 %v687
    %v3251 = vunpack.c.h.b16 %v687
    %v3252 = vunpack.c.l.b16 %v688
    %v3253 = vunpack.c.h.b16 %v688
    %v3254 = vunpack.c.l.b16 %v689
    %v3255 = vunpack.c.h.b16 %v689
    %v3256 = vunpack.c.l.b16 %v690
    %v3257 = vunpack.c.h.b16 %v690
    %v3258 = vunpack.c.l.b16 %v691
    %v3259 = vunpack.c.h.b16 %v691
    %v3260 = vunpack.c.l.b16 %v692
    %v3261 = vunpack.c.h.b16 %v692
    %v3262 = vunpack.c.l.b16 %v693
    %v3263 = vunpack.c.h.b16 %v693
    %v3264 = vunpack.c.l.b16 %v694
    %v3265 = vunpack.c.h.b16 %v694
    %v3266 = vunpack.c.l.b16 %v695
    %v3267 = vunpack.c.h.b16 %v695
    %v3268 = vunpack.c.l.b16 %v696
    %v3269 = vunpack.c.h.b16 %v696
    %v3270 = vunpack.c.l.b16 %v697
    %v3271 = vunpack.c.h.b16 %v697
    %v3272 = vunpack.c.l.b16 %v698
    %v3273 = vunpack.c.h.b16 %v698
    %v3274 = vunpack.c.l.b16 %v699
    %v3275 = vunpack.c.h.b16 %v699
    %v3276 = vunpack.c.l.b16 %v700
    %v3277 = vunpack.c.h.b16 %v700
    %v3278 = vunpack.c.l.b16 %v701
    %v3279 = vunpack.c.h.b16 %v701
    %v3280 = vunpack.c.l.b16 %v702
    %v3281 = vunpack.c.h.b16 %v702
    %v3282 = vunpack.c.l.b16 %v703
    %v3283 = vunpack.c.h.b16 %v703
    %v3284 = vunpack.c.l.b16 %v704
    %v3285 = vunpack.c.h.b16 %v704
    %v3286 = vunpack.c.l.b16 %v705
    %v3287 = vunpack.c.h.b16 %v705
    %v3288 = vunpack.c.l.b16 %v706
    %v3289 = vunpack.c.h.b16 %v706
    %v3290 = vunpack.c.l.b16 %v707
    %v3291 = vunpack.c.h.b16 %v707
    %v3292 = vunpack.c.l.b16 %v708
    %v3293 = vunpack.c.h.b16 %v708
    %v3294 = vunpack.c.l.b16 %v709
    %v3295 = vunpack.c.h.b16 %v709
    %v3296 = vunpack.c.l.b16 %v710
    %v3297 = vunpack.c.h.b16 %v710
    %v3298 = vunpack.c.l.b16 %v711
    %v3299 = vunpack.c.h.b16 %v711
    %v3300 = vunpack.c.l.b16 %v712
    %v3301 = vunpack.c.h.b16 %v712
    %v3302 = vunpack.c.l.b16 %v713
    %v3303 = vunpack.c.h.b16 %v713
    %v3304 = vunpack.c.l.b16 %v714
    %v3305 = vunpack.c.h.b16 %v714
    %v3306 = vunpack.c.l.b16 %v715
    %v3307 = vunpack.c.h.b16 %v715
    %v3308 = vunpack.c.l.b16 %v716
    %v3309 = vunpack.c.h.b16 %v716
    %v3310 = vunpack.c.l.b16 %v717
    %v3311 = vunpack.c.h.b16 %v717
    %v3312 = vunpack.c.l.b16 %v718
    %v3313 = vunpack.c.h.b16 %v718
    %v3314 = vunpack.c.l.b16 %v719
    %v3315 = vunpack.c.h.b16 %v719
    %v3316 = vunpack.c.l.b16 %v720
    %v3317 = vunpack.c.h.b16 %v720
    %v3318 = vunpack.c.l.b16 %v721
    %v3319 = vunpack.c.h.b16 %v721
    %v3320 = vunpack.c.l.b16 %v722
    %v3321 = vunpack.c.h.b16 %v722
    %v3322 = vunpack.c.l.b16 %v723
    %v3323 = vunpack.c.h.b16 %v723
    %v3324 = vunpack.c.l.b16 %v724
    %v3325 = vunpack.c.h.b16 %v724
    %v3326 = vunpack.c.l.b16 %v725
    %v3327 = vunpack.c.h.b16 %v725
    %v3328 = vunpack.c.l.b16 %v726
    %v3329 = vunpack.c.h.b16 %v726
    %v3330 = vunpack.c.l.b16 %v727
    %v3331 = vunpack.c.h.b16 %v727
    %v3332 = vunpack.c.l.b16 %v728
    %v3333 = vunpack.c.h.b16 %v728
    %v3334 = vunpack.c.l.b16 %v729
    %v3335 = vunpack.c.h.b16 %v729
    %v3336 = vunpack.c.l.b16 %v730
    %v3337 = vunpack.c.h.b16 %v730
    %v3338 = vunpack.c.l.b16 %v731
    %v3339 = vunpack.c.h.b16 %v731
    %v3340 = vunpack.c.l.b16 %v732
    %v3341 = vunpack.c.h.b16 %v732
    %v3342 = vunpack.c.l.b16 %v733
    %v3343 = vunpack.c.h.b16 %v733
    %v3344 = vunpack.c.l.b16 %v734
    %v3345 = vunpack.c.h.b16 %v734
    %v3346 = vunpack.c.l.b16 %v735
    %v3347 = vunpack.c.h.b16 %v735
    %v3348 = vunpack.c.l.b16 %v736
    %v3349 = vunpack.c.h.b16 %v736
    %v3350 = vunpack.c.l.b16 %v737
    %v3351 = vunpack.c.h.b16 %v737
    %v3352 = vunpack.c.l.b16 %v738
    %v3353 = vunpack.c.h.b16 %v738
    %v3354 = vunpack.c.l.b16 %v739
    %v3355 = vunpack.c.h.b16 %v739
    %v3356 = vunpack.c.l.b16 %v740
    %v3357 = vunpack.c.h.b16 %v740
    %v3358 = vunpack.c.l.b16 %v741
    %v3359 = vunpack.c.h.b16 %v741
    %v3360 = vunpack.c.l.b16 %v742
    %v3361 = vunpack.c.h.b16 %v742
    %v3362 = vunpack.c.l.b16 %v743
    %v3363 = vunpack.c.h.b16 %v743
    %v3364 = vunpack.c.l.b16 %v744
    %v3365 = vunpack.c.h.b16 %v744
    %v3366 = vunpack.c.l.b16 %v745
    %v3367 = vunpack.c.h.b16 %v745
    %v3368 = vunpack.c.l.b16 %v746
    %v3369 = vunpack.c.h.b16 %v746
    %v3370 = vunpack.c.l.b16 %v747
    %v3371 = vunpack.c.h.b16 %v747
    %v3372 = vunpack.c.l.b16 %v748
    %v3373 = vunpack.c.h.b16 %v748
    %v3374 = vunpack.c.l.b16 %v749
    %v3375 = vunpack.c.h.b16 %v749
    %v3376 = vunpack.c.l.b16 %v750
    %v3377 = vunpack.c.h.b16 %v750
    %v3378 = vunpack.c.l.b16 %v751
    %v3379 = vunpack.c.h.b16 %v751
    %v3380 = vunpack.c.l.b16 %v752
    %v3381 = vunpack.c.h.b16 %v752
    %v3382 = vunpack.c.l.b16 %v753
    %v3383 = vunpack.c.h.b16 %v753
    %v3384 = vunpack.c.l.b16 %v754
    %v3385 = vunpack.c.h.b16 %v754
    %v3386 = vunpack.c.l.b16 %v755
    %v3387 = vunpack.c.h.b16 %v755
    %v3388 = vunpack.c.l.b16 %v756
    %v3389 = vunpack.c.h.b16 %v756
    %v3390 = vunpack.c.l.b16 %v757
    %v3391 = vunpack.c.h.b16 %v757
    %v3392 = vunpack.c.l.b16 %v758
    %v3393 = vunpack.c.h.b16 %v758
    %v3394 = vunpack.c.l.b16 %v759
    %v3395 = vunpack.c.h.b16 %v759
    %v3396 = vunpack.c.l.b16 %v760
    %v3397 = vunpack.c.h.b16 %v760
    %v3398 = vunpack.c.l.b16 %v761
    %v3399 = vunpack.c.h.b16 %v761
    %v3400 = vunpack.c.l.b16 %v762
    %v3401 = vunpack.c.h.b16 %v762
    %v3402 = vunpack.c.l.b16 %v763
    %v3403 = vunpack.c.h.b16 %v763
    %v3404 = vunpack.c.l.b16 %v764
    %v3405 = vunpack.c.h.b16 %v764
    %v3406 = vunpack.c.l.b16 %v765
    %v3407 = vunpack.c.h.b16 %v765
    %v3408 = vunpack.c.l.b16 %v766
    %v3409 = vunpack.c.h.b16 %v766
    %v3410 = vunpack.c.l.b16 %v767
    %v3411 = vunpack.c.h.b16 %v767
    %v3412 = vunpack.c.l.b16 %v768
    %v3413 = vunpack.c.h.b16 %v768
    %v3414 = vunpack.c.l.b16 %v769
    %v3415 = vunpack.c.h.b16 %v769
    %v3416 = vunpack.c.l.b16 %v770
    %v3417 = vunpack.c.h.b16 %v770
    %v3418 = vunpack.c.l.b16 %v771
    %v3419 = vunpack.c.h.b16 %v771
    %v3420 = vunpack.c.l.b16 %v772
    %v3421 = vunpack.c.h.b16 %v772
    %v3422 = vunpack.c.l.b16 %v773
    %v3423 = vunpack.c.h.b16 %v773
    %v3424 = vunpack.c.l.b16 %v774
    %v3425 = vunpack.c.h.b16 %v774
    %v3426 = vunpack.c.l.b16 %v775
    %v3427 = vunpack.c.h.b16 %v775
    %v3428 = vunpack.c.l.b16 %v776
    %v3429 = vunpack.c.h.b16 %v776
    %v3430 = vunpack.c.l.b16 %v777
    %v3431 = vunpack.c.h.b16 %v777
    %v3432 = vunpack.c.l.b16 %v778
    %v3433 = vunpack.c.h.b16 %v778
    %v3434 = vunpack.c.l.b16 %v779
    %v3435 = vunpack.c.h.b16 %v779
    %v3436 = vunpack.c.l.b16 %v780
    %v3437 = vunpack.c.h.b16 %v780
    %v3438 = vunpack.c.l.b16 %v781
    %v3439 = vunpack.c.h.b16 %v781
    %v3440 = vunpack.c.l.b16 %v782
    %v3441 = vunpack.c.h.b16 %v782
    %v3442 = vunpack.c.l.b16 %v783
    %v3443 = vunpack.c.h.b16 %v783
    %v3444 = vunpack.c.l.b16 %v784
    %v3445 = vunpack.c.h.b16 %v784
    %v3446 = vunpack.c.l.b16 %v785
    %v3447 = vunpack.c.h.b16 %v785
    %v3448 = vunpack.c.l.b16 %v786
    %v3449 = vunpack.c.h.b16 %v786
    %v3450 = vunpack.c.l.b16 %v787
    %v3451 = vunpack.c.h.b16 %v787
    %v3452 = vunpack.c.l.b16 %v788
    %v3453 = vunpack.c.h.b16 %v788
    %v3454 = vunpack.c.l.b16 %v789
    %v3455 = vunpack.c.h.b16 %v789
    %v3456 = vunpack.c.l.b16 %v790
    %v3457 = vunpack.c.h.b16 %v790
    %v3458 = vunpack.c.l.b16 %v791
    %v3459 = vunpack.c.h.b16 %v791
    %v3460 = vunpack.c.l.b16 %v792
    %v3461 = vunpack.c.h.b16 %v792
    %v3462 = vunpack.c.l.b16 %v793
    %v3463 = vunpack.c.h.b16 %v793
    %v3464 = vunpack.c.l.b16 %v794
    %v3465 = vunpack.c.h.b16 %v794
    %v3466 = vunpack.c.l.b16 %v795
    %v3467 = vunpack.c.h.b16 %v795
    %v3468 = vunpack.c.l.b16 %v796
    %v3469 = vunpack.c.h.b16 %v796
    %v3470 = vunpack.c.l.b16 %v797
    %v3471 = vunpack.c.h.b16 %v797
    %v3472 = vunpack.c.l.b16 %v798
    %v3473 = vunpack.c.h.b16 %v798
    %v3474 = vunpack.c.l.b16 %v799
    %v3475 = vunpack.c.h.b16 %v799
    %v3476 = vunpack.c.l.b16 %v800
    %v3477 = vunpack.c.h.b16 %v800
    %v3478 = vunpack.c.l.b16 %v801
    %v3479 = vunpack.c.h.b16 %v801
    %v3480 = vunpack.c.l.b16 %v802
    %v3481 = vunpack.c.h.b16 %v802
    %v3482 = vunpack.c.l.b16 %v803
    %v3483 = vunpack.c.h.b16 %v803
    %v3484 = vunpack.c.l.b16 %v804
    %v3485 = vunpack.c.h.b16 %v804
    %v3486 = vunpack.c.l.b16 %v805
    %v3487 = vunpack.c.h.b16 %v805
    %v3488 = vunpack.c.l.b16 %v806
    %v3489 = vunpack.c.h.b16 %v806
    %v3490 = vunpack.c.l.b16 %v807
    %v3491 = vunpack.c.h.b16 %v807
    %v3492 = vunpack.c.l.b16 %v808
    %v3493 = vunpack.c.h.b16 %v808
    %v3494 = vunpack.c.l.b16 %v809
    %v3495 = vunpack.c.h.b16 %v809
    %v3496 = vunpack.c.l.b16 %v810
    %v3497 = vunpack.c.h.b16 %v810
    %v3498 = vunpack.c.l.b16 %v811
    %v3499 = vunpack.c.h.b16 %v811
    %v3500 = vunpack.c.l.b16 %v812
    %v3501 = vunpack.c.h.b16 %v812
    %v3502 = vunpack.c.l.b16 %v813
    %v3503 = vunpack.c.h.b16 %v813
    %v3504 = vunpack.c.l.b16 %v814
    %v3505 = vunpack.c.h.b16 %v814
    %v3506 = vunpack.c.l.b16 %v815
    %v3507 = vunpack.c.h.b16 %v815
    %v3508 = vunpack.c.l.b16 %v816
    %v3509 = vunpack.c.h.b16 %v816
    %v3510 = vunpack.c.l.b16 %v817
    %v3511 = vunpack.c.h.b16 %v817
    %v3512 = vunpack.c.l.b16 %v818
    %v3513 = vunpack.c.h.b16 %v818
    %v3514 = vunpack.c.l.b16 %v819
    %v3515 = vunpack.c.h.b16 %v819
    %v3516 = vunpack.c.l.b16 %v820
    %v3517 = vunpack.c.h.b16 %v820
    %v3518 = vunpack.c.l.b16 %v821
    %v3519 = vunpack.c.h.b16 %v821
    %v3520 = vunpack.c.l.b16 %v822
    %v3521 = vunpack.c.h.b16 %v822
    %v3522 = vunpack.c.l.b16 %v823
    %v3523 = vunpack.c.h.b16 %v823
    %v3524 = vunpack.c.l.b16 %v824
    %v3525 = vunpack.c.h.b16 %v824
    %v3526 = vunpack.c.l.b16 %v825
    %v3527 = vunpack.c.h.b16 %v825
    %v3528 = vunpack.c.l.b16 %v826
    %v3529 = vunpack.c.h.b16 %v826
    %v3530 = vunpack.c.l.b16 %v827
    %v3531 = vunpack.c.h.b16 %v827
    %v3532 = vunpack.c.l.b16 %v828
    %v3533 = vunpack.c.h.b16 %v828
    %v3534 = vunpack.c.l.b16 %v829
    %v3535 = vunpack.c.h.b16 %v829
    %v3536 = vunpack.c.l.b16 %v830
    %v3537 = vunpack.c.h.b16 %v830
    %v3538 = vunpack.c.l.b16 %v831
    %v3539 = vunpack.c.h.b16 %v831
    %v3540 = vunpack.c.l.b16 %v832
    %v3541 = vunpack.c.h.b16 %v832
    %v3542 = vunpack.c.l.b16 %v833
    %v3543 = vunpack.c.h.b16 %v833
    %v3544 = vunpack.c.l.b16 %v834
    %v3545 = vunpack.c.h.b16 %v834
    %v3546 = vunpack.c.l.b16 %v835
    %v3547 = vunpack.c.h.b16 %v835
    %v3548 = vunpack.c.l.b16 %v836
    %v3549 = vunpack.c.h.b16 %v836
    %v3550 = vunpack.c.l.b16 %v837
    %v3551 = vunpack.c.h.b16 %v837
    %v3552 = vunpack.c.l.b16 %v838
    %v3553 = vunpack.c.h.b16 %v838
    %v3554 = vunpack.c.l.b16 %v839
    %v3555 = vunpack.c.h.b16 %v839
    %v3556 = vunpack.c.l.b16 %v840
    %v3557 = vunpack.c.h.b16 %v840
    %v3558 = vunpack.c.l.b16 %v841
    %v3559 = vunpack.c.h.b16 %v841
    %v3560 = vunpack.c.l.b16 %v842
    %v3561 = vunpack.c.h.b16 %v842
    %v3562 = vunpack.c.l.b16 %v843
    %v3563 = vunpack.c.h.b16 %v843
    %v3564 = vunpack.c.l.b16 %v844
    %v3565 = vunpack.c.h.b16 %v844
    %v3566 = vunpack.c.l.b16 %v845
    %v3567 = vunpack.c.h.b16 %v845
    %v3568 = vunpack.c.l.b16 %v846
    %v3569 = vunpack.c.h.b16 %v846
    %v3570 = vunpack.c.l.b16 %v847
    %v3571 = vunpack.c.h.b16 %v847
    %v3572 = vunpack.c.l.b16 %v848
    %v3573 = vunpack.c.h.b16 %v848
    %v3574 = vunpack.c.l.b16 %v849
    %v3575 = vunpack.c.h.b16 %v849
    %v3576 = vunpack.c.l.b16 %v850
    %v3577 = vunpack.c.h.b16 %v850
    %v3578 = vunpack.c.l.b16 %v851
    %v3579 = vunpack.c.h.b16 %v851
    %v3580 = vunpack.c.l.b16 %v852
    %v3581 = vunpack.c.h.b16 %v852
    %v3582 = vunpack.c.l.b16 %v853
    %v3583 = vunpack.c.h.b16 %v853
    %v3584 = vunpack.c.l.b16 %v854
    %v3585 = vunpack.c.h.b16 %v854
    %v3586 = vunpack.c.l.b16 %v855
    %v3587 = vunpack.c.h.b16 %v855
    %v3588 = vunpack.c.l.b16 %v856
    %v3589 = vunpack.c.h.b16 %v856
    %v3590 = vunpack.c.l.b16 %v857
    %v3591 = vunpack.c.h.b16 %v857
    %v3592 = vunpack.c.l.b16 %v858
    %v3593 = vunpack.c.h.b16 %v858
    %v3594 = vunpack.c.l.b16 %v859
    %v3595 = vunpack.c.h.b16 %v859
    %v3596 = vunpack.c.l.b16 %v860
    %v3597 = vunpack.c.h.b16 %v860
    %v3598 = vunpack.c.l.b16 %v861
    %v3599 = vunpack.c.h.b16 %v861
    %v3600 = vunpack.c.l.b16 %v862
    %v3601 = vunpack.c.h.b16 %v862
    %v3602 = vunpack.c.l.b16 %v863
    %v3603 = vunpack.c.h.b16 %v863
    %v3604 = vunpack.c.l.b16 %v864
    %v3605 = vunpack.c.h.b16 %v864
    %v3606 = vunpack.c.l.b16 %v865
    %v3607 = vunpack.c.h.b16 %v865
    %v3608 = vunpack.c.l.b16 %v866
    %v3609 = vunpack.c.h.b16 %v866
    %v3610 = vunpack.c.l.b16 %v867
    %v3611 = vunpack.c.h.b16 %v867
    %v3612 = vunpack.c.l.b16 %v868
    %v3613 = vunpack.c.h.b16 %v868
    %v3614 = vunpack.c.l.b16 %v869
    %v3615 = vunpack.c.h.b16 %v869
    %v3616 = vunpack.c.l.b16 %v870
    %v3617 = vunpack.c.h.b16 %v870
    %v3618 = vunpack.c.l.b16 %v871
    %v3619 = vunpack.c.h.b16 %v871
    %v3620 = vunpack.c.l.b16 %v872
    %v3621 = vunpack.c.h.b16 %v872
    %v3622 = vunpack.c.l.b16 %v873
    %v3623 = vunpack.c.h.b16 %v873
    %v3624 = vunpack.c.l.b16 %v874
    %v3625 = vunpack.c.h.b16 %v874
    %v3626 = vunpack.c.l.b16 %v875
    %v3627 = vunpack.c.h.b16 %v875
    %v3628 = vunpack.c.l.b16 %v876
    %v3629 = vunpack.c.h.b16 %v876
    %v3630 = vunpack.c.l.b16 %v877
    %v3631 = vunpack.c.h.b16 %v877
    %v3632 = vunpack.c.l.b16 %v878
    %v3633 = vunpack.c.h.b16 %v878
    %v3634 = vunpack.c.l.b16 %v879
    %v3635 = vunpack.c.h.b16 %v879
    %v3636 = vunpack.c.l.b16 %v880
    %v3637 = vunpack.c.h.b16 %v880
    %v3638 = vunpack.c.l.b16 %v881
    %v3639 = vunpack.c.h.b16 %v881
    %v3640 = vunpack.c.l.b16 %v882
    %v3641 = vunpack.c.h.b16 %v882
    %v3642 = vunpack.c.l.b16 %v883
    %v3643 = vunpack.c.h.b16 %v883
    %v3644 = vunpack.c.l.b16 %v884
    %v3645 = vunpack.c.h.b16 %v884
    %v3646 = vunpack.c.l.b16 %v885
    %v3647 = vunpack.c.h.b16 %v885
    %v3648 = vunpack.c.l.b16 %v886
    %v3649 = vunpack.c.h.b16 %v886
    %v3650 = vunpack.c.l.b16 %v887
    %v3651 = vunpack.c.h.b16 %v887
    %v3652 = vunpack.c.l.b16 %v888
    %v3653 = vunpack.c.h.b16 %v888
    %v3654 = vunpack.c.l.b16 %v889
    %v3655 = vunpack.c.h.b16 %v889
    %v3656 = vunpack.c.l.b16 %v890
    %v3657 = vunpack.c.h.b16 %v890
    %v3658 = vunpack.c.l.b16 %v891
    %v3659 = vunpack.c.h.b16 %v891
    %v3660 = vunpack.c.l.b16 %v892
    %v3661 = vunpack.c.h.b16 %v892
    %v3662 = vunpack.c.l.b16 %v893
    %v3663 = vunpack.c.h.b16 %v893
    %v3664 = vunpack.c.l.b16 %v894
    %v3665 = vunpack.c.h.b16 %v894
    %v3666 = vunpack.c.l.b16 %v895
    %v3667 = vunpack.c.h.b16 %v895
    %v3668 = vunpack.c.l.b16 %v896
    %v3669 = vunpack.c.h.b16 %v896
    %v3670 = vunpack.c.l.b16 %v897
    %v3671 = vunpack.c.h.b16 %v897
    %v3672 = vunpack.c.l.b16 %v898
    %v3673 = vunpack.c.h.b16 %v898
    %v3674 = vunpack.c.l.b16 %v899
    %v3675 = vunpack.c.h.b16 %v899
    %v3676 = vunpack.c.l.b16 %v900
    %v3677 = vunpack.c.h.b16 %v900
    %v3678 = vunpack.c.l.b16 %v901
    %v3679 = vunpack.c.h.b16 %v901
    %v3680 = vunpack.c.l.b16 %v902
    %v3681 = vunpack.c.h.b16 %v902
    %v3682 = vunpack.c.l.b16 %v903
    %v3683 = vunpack.c.h.b16 %v903
    %v3684 = vunpack.c.l.b16 %v904
    %v3685 = vunpack.c.h.b16 %v904
    %v3686 = vunpack.c.l.b16 %v905
    %v3687 = vunpack.c.h.b16 %v905
    %v3688 = vunpack.c.l.b16 %v906
    %v3689 = vunpack.c.h.b16 %v906
    %v3690 = vunpack.c.l.b16 %v907
    %v3691 = vunpack.c.h.b16 %v907
    %v3692 = vunpack.c.l.b16 %v908
    %v3693 = vunpack.c.h.b16 %v908
    %v3694 = vunpack.c.l.b16 %v909
    %v3695 = vunpack.c.h.b16 %v909
    %v3696 = vunpack.c.l.b16 %v910
    %v3697 = vunpack.c.h.b16 %v910
    %v3698 = vunpack.c.l.b16 %v911
    %v3699 = vunpack.c.h.b16 %v911
    %v3700 = vunpack.c.l.b16 %v912
    %v3701 = vunpack.c.h.b16 %v912
    %v3702 = vunpack.c.l.b16 %v913
    %v3703 = vunpack.c.h.b16 %v913
    %v3704 = vunpack.c.l.b16 %v914
    %v3705 = vunpack.c.h.b16 %v914
    %v3706 = vunpack.c.l.b16 %v915
    %v3707 = vunpack.c.h.b16 %v915
    %v3708 = vunpack.c.l.b16 %v916
    %v3709 = vunpack.c.h.b16 %v916
    %v3710 = vunpack.c.l.b16 %v917
    %v3711 = vunpack.c.h.b16 %v917
    %v3712 = vunpack.c.l.b16 %v918
    %v3713 = vunpack.c.h.b16 %v918
    %v3714 = vunpack.c.l.b16 %v919
    %v3715 = vunpack.c.h.b16 %v919
    %v3716 = vunpack.c.l.b16 %v920
    %v3717 = vunpack.c.h.b16 %v920
    %v3718 = vunpack.c.l.b16 %v921
    %v3719 = vunpack.c.h.b16 %v921
    %v3720 = vunpack.c.l.b16 %v922
    %v3721 = vunpack.c.h.b16 %v922
    %v3722 = vunpack.c.l.b16 %v923
    %v3723 = vunpack.c.h.b16 %v923
    %v3724 = vunpack.c.l.b16 %v924
    %v3725 = vunpack.c.h.b16 %v924
    %v3726 = vunpack.c.l.b16 %v925
    %v3727 = vunpack.c.h.b16 %v925
    %v3728 = vunpack.c.l.b16 %v926
    %v3729 = vunpack.c.h.b16 %v926
    %v3730 = vunpack.c.l.b16 %v927
    %v3731 = vunpack.c.h.b16 %v927
    %v3732 = vunpack.c.l.b16 %v928
    %v3733 = vunpack.c.h.b16 %v928
    %v3734 = vunpack.c.l.b16 %v929
    %v3735 = vunpack.c.h.b16 %v929
    %v3736 = vunpack.c.l.b16 %v930
    %v3737 = vunpack.c.h.b16 %v930
    %v3738 = vunpack.c.l.b16 %v931
    %v3739 = vunpack.c.h.b16 %v931
    %v3740 = vunpack.c.l.b16 %v932
    %v3741 = vunpack.c.h.b16 %v932
    %v3742 = vunpack.c.l.b16 %v933
    %v3743 = vunpack.c.h.b16 %v933
    %v3744 = vunpack.c.l.b16 %v934
    %v3745 = vunpack.c.h.b16 %v934
    %v3746 = vunpack.c.l.b16 %v935
    %v3747 = vunpack.c.h.b16 %v935
    %v3748 = vunpack.c.l.b16 %v936
    %v3749 = vunpack.c.h.b16 %v936
    %v3750 = vunpack.c.l.b16 %v937
    %v3751 = vunpack.c.h.b16 %v937
    %v3752 = vunpack.c.l.b16 %v938
    %v3753 = vunpack.c.h.b16 %v938
    %v3754 = vunpack.c.l.b16 %v939
    %v3755 = vunpack.c.h.b16 %v939
    %v3756 = vunpack.c.l.b16 %v940
    %v3757 = vunpack.c.h.b16 %v940
    %v3758 = vunpack.c.l.b16 %v941
    %v3759 = vunpack.c.h.b16 %v941
    %v3760 = vunpack.c.l.b16 %v942
    %v3761 = vunpack.c.h.b16 %v942
    %v3762 = vunpack.c.l.b16 %v943
    %v3763 = vunpack.c.h.b16 %v943
    %v3764 = vunpack.c.l.b16 %v944
    %v3765 = vunpack.c.h.b16 %v944
    %v3766 = vunpack.c.l.b16 %v945
    %v3767 = vunpack.c.h.b16 %v945
    %v3768 = vunpack.c.l.b16 %v946
    %v3769 = vunpack.c.h.b16 %v946
    %v3770 = vunpack.c.l.b16 %v947
    %v3771 = vunpack.c.h.b16 %v947
    %v3772 = vunpack.c.l.b16 %v948
    %v3773 = vunpack.c.h.b16 %v948
    %v3774 = vunpack.c.l.b16 %v949
    %v3775 = vunpack.c.h.b16 %v949
    %v3776 = vunpack.c.l.b16 %v950
    %v3777 = vunpack.c.h.b16 %v950
    %v3778 = vunpack.c.l.b16 %v951
    %v3779 = vunpack.c.h.b16 %v951
    %v3780 = vunpack.c.l.b16 %v952
    %v3781 = vunpack.c.h.b16 %v952
    %v3782 = vunpack.c.l.b16 %v953
    %v3783 = vunpack.c.h.b16 %v953
    %v3784 = vunpack.c.l.b16 %v954
    %v3785 = vunpack.c.h.b16 %v954
    %v3786 = vunpack.c.l.b16 %v955
    %v3787 = vunpack.c.h.b16 %v955
    %v3788 = vunpack.c.l.b16 %v956
    %v3789 = vunpack.c.h.b16 %v956
    %v3790 = vunpack.c.l.b16 %v957
    %v3791 = vunpack.c.h.b16 %v957
    %v3792 = vunpack.c.l.b16 %v958
    %v3793 = vunpack.c.h.b16 %v958
    %v3794 = vunpack.c.l.b16 %v959
    %v3795 = vunpack.c.h.b16 %v959
    %v3796 = vunpack.c.l.b16 %v960
    %v3797 = vunpack.c.h.b16 %v960
    %v3798 = vunpack.c.l.b16 %v961
    %v3799 = vunpack.c.h.b16 %v961
    %v3800 = vunpack.c.l.b16 %v962
    %v3801 = vunpack.c.h.b16 %v962
    %v3802 = vunpack.c.l.b16 %v963
    %v3803 = vunpack.c.h.b16 %v963
    %v3804 = vunpack.c.l.b16 %v964
    %v3805 = vunpack.c.h.b16 %v964
    %v3806 = vunpack.c.l.b16 %v965
    %v3807 = vunpack.c.h.b16 %v965
    %v3808 = vunpack.c.l.b16 %v966
    %v3809 = vunpack.c.h.b16 %v966
    %v3810 = vunpack.c.l.b16 %v967
    %v3811 = vunpack.c.h.b16 %v967
    %v3812 = vunpack.c.l.b16 %v968
    %v3813 = vunpack.c.h.b16 %v968
    %v3814 = vunpack.c.l.b16 %v969
    %v3815 = vunpack.c.h.b16 %v969
    %v3816 = vunpack.c.l.b16 %v970
    %v3817 = vunpack.c.h.b16 %v970
    %v3818 = vunpack.c.l.b16 %v971
    %v3819 = vunpack.c.h.b16 %v971
    %v3820 = vunpack.c.l.b16 %v972
    %v3821 = vunpack.c.h.b16 %v972
    %v3822 = vunpack.c.l.b16 %v973
    %v3823 = vunpack.c.h.b16 %v973
    %v3824 = vunpack.c.l.b16 %v974
    %v3825 = vunpack.c.h.b16 %v974
    %v3826 = vunpack.c.l.b16 %v975
    %v3827 = vunpack.c.h.b16 %v975
    %v3828 = vunpack.c.l.b16 %v976
    %v3829 = vunpack.c.h.b16 %v976
    %v3830 = vunpack.c.l.b16 %v977
    %v3831 = vunpack.c.h.b16 %v977
    %v3832 = vunpack.c.l.b16 %v978
    %v3833 = vunpack.c.h.b16 %v978
    %v3834 = vunpack.c.l.b16 %v979
    %v3835 = vunpack.c.h.b16 %v979
    %v3836 = vunpack.c.l.b16 %v980
    %v3837 = vunpack.c.h.b16 %v980
    %v3838 = vunpack.c.l.b16 %v981
    %v3839 = vunpack.c.h.b16 %v981
    %v3840 = vunpack.c.l.b16 %v982
    %v3841 = vunpack.c.h.b16 %v982
    %v3842 = vunpack.c.l.b16 %v983
    %v3843 = vunpack.c.h.b16 %v983
    %v3844 = vunpack.c.l.b16 %v984
    %v3845 = vunpack.c.h.b16 %v984
    %v3846 = vunpack.c.l.b16 %v985
    %v3847 = vunpack.c.h.b16 %v985
    %v3848 = vunpack.c.l.b16 %v986
    %v3849 = vunpack.c.h.b16 %v986
    %v3850 = vunpack.c.l.b16 %v987
    %v3851 = vunpack.c.h.b16 %v987
    %v3852 = vunpack.c.l.b16 %v988
    %v3853 = vunpack.c.h.b16 %v988
    %v3854 = vunpack.c.l.b16 %v989
    %v3855 = vunpack.c.h.b16 %v989
    %v3856 = vunpack.c.l.b16 %v990
    %v3857 = vunpack.c.h.b16 %v990
    %v3858 = vunpack.c.l.b16 %v991
    %v3859 = vunpack.c.h.b16 %v991
    %v3860 = vunpack.c.l.b16 %v992
    %v3861 = vunpack.c.h.b16 %v992
    %v3862 = vunpack.c.l.b16 %v993
    %v3863 = vunpack.c.h.b16 %v993
    %v3864 = vunpack.c.l.b16 %v994
    %v3865 = vunpack.c.h.b16 %v994
    %v3866 = vunpack.c.l.b16 %v995
    %v3867 = vunpack.c.h.b16 %v995
    %v3868 = vunpack.c.l.b16 %v996
    %v3869 = vunpack.c.h.b16 %v996
    %v3870 = vunpack.c.l.b16 %v997
    %v3871 = vunpack.c.h.b16 %v997
    %v3872 = vunpack.c.l.b16 %v998
    %v3873 = vunpack.c.h.b16 %v998
    %v3874 = vunpack.c.l.b16 %v999
    %v3875 = vunpack.c.h.b16 %v999
    %v3876 = vunpack.c.l.b16 %v1000
    %v3877 = vunpack.c.h.b16 %v1000
    %v3878 = vunpack.c.l.b16 %v1001
    %v3879 = vunpack.c.h.b16 %v1001
    %v3880 = vunpack.c.l.b16 %v1002
    %v3881 = vunpack.c.h.b16 %v1002
    %v3882 = vunpack.c.l.b16 %v1003
    %v3883 = vunpack.c.h.b16 %v1003
    %v3884 = vunpack.c.l.b16 %v1004
    %v3885 = vunpack.c.h.b16 %v1004
    %v3886 = vunpack.c.l.b16 %v1005
    %v3887 = vunpack.c.h.b16 %v1005
    %v3888 = vunpack.c.l.b16 %v1006
    %v3889 = vunpack.c.h.b16 %v1006
    %v3890 = vunpack.c.l.b16 %v1007
    %v3891 = vunpack.c.h.b16 %v1007
    %v3892 = vunpack.c.l.b16 %v1008
    %v3893 = vunpack.c.h.b16 %v1008
    %v3894 = vunpack.c.l.b16 %v1009
    %v3895 = vunpack.c.h.b16 %v1009
    %v3896 = vunpack.c.l.b16 %v1010
    %v3897 = vunpack.c.h.b16 %v1010
    %v3898 = vunpack.c.l.b16 %v1011
    %v3899 = vunpack.c.h.b16 %v1011
    %v3900 = vunpack.c.l.b16 %v1012
    %v3901 = vunpack.c.h.b16 %v1012
    %v3902 = vunpack.c.l.b16 %v1013
    %v3903 = vunpack.c.h.b16 %v1013
    %v3904 = vunpack.c.l.b16 %v1014
    %v3905 = vunpack.c.h.b16 %v1014
    %v3906 = vunpack.c.l.b16 %v1015
    %v3907 = vunpack.c.h.b16 %v1015
    %v3908 = vunpack.c.l.b16 %v1016
    %v3909 = vunpack.c.h.b16 %v1016
    %v3910 = vunpack.c.l.b16 %v1017
    %v3911 = vunpack.c.h.b16 %v1017
    %v3912 = vunpack.c.l.b16 %v1018
    %v3913 = vunpack.c.h.b16 %v1018
    %v3914 = vunpack.c.l.b16 %v1019
    %v3915 = vunpack.c.h.b16 %v1019
    %v3916 = vunpack.c.l.b16 %v1020
    %v3917 = vunpack.c.h.b16 %v1020
    %v3918 = vunpack.c.l.b16 %v1021
    %v3919 = vunpack.c.h.b16 %v1021
    %v3920 = vunpack.c.l.b16 %v1022
    %v3921 = vunpack.c.h.b16 %v1022
    %v3922 = vunpack.c.l.b16 %v1023
    %v3923 = vunpack.c.h.b16 %v1023
    %v3924 = vunpack.c.l.b16 %v1024
    %v3925 = vunpack.c.h.b16 %v1024
    %v3926 = vunpack.c.l.b16 %v1025
    %v3927 = vunpack.c.h.b16 %v1025
    %v3928 = vunpack.c.l.b16 %v1026
    %v3929 = vunpack.c.h.b16 %v1026
    %v3930 = vunpack.c.l.b16 %v1027
    %v3931 = vunpack.c.h.b16 %v1027
    %v3932 = vunpack.c.l.b16 %v1028
    %v3933 = vunpack.c.h.b16 %v1028
    %v3934 = vunpack.c.l.b16 %v1029
    %v3935 = vunpack.c.h.b16 %v1029
    %v3936 = vunpack.c.l.b16 %v1030
    %v3937 = vunpack.c.h.b16 %v1030
    %v3938 = vunpack.c.l.b16 %v1031
    %v3939 = vunpack.c.h.b16 %v1031
    %v3940 = vunpack.c.l.b16 %v1032
    %v3941 = vunpack.c.h.b16 %v1032
    %v3942 = vunpack.c.l.b16 %v1033
    %v3943 = vunpack.c.h.b16 %v1033
    %v3944 = vunpack.c.l.b16 %v1034
    %v3945 = vunpack.c.h.b16 %v1034
    %v3946 = vunpack.c.l.b16 %v1035
    %v3947 = vunpack.c.h.b16 %v1035
    %v3948 = vunpack.c.l.b16 %v1036
    %v3949 = vunpack.c.h.b16 %v1036
    %v3950 = vunpack.c.l.b16 %v1037
    %v3951 = vunpack.c.h.b16 %v1037
    %v3952 = vunpack.c.l.b16 %v1038
    %v3953 = vunpack.c.h.b16 %v1038
    %v3954 = vunpack.c.l.b16 %v1039
    %v3955 = vunpack.c.h.b16 %v1039
    %v3956 = vunpack.c.l.b16 %v1040
    %v3957 = vunpack.c.h.b16 %v1040
    %v3958 = vunpack.c.l.b16 %v1041
    %v3959 = vunpack.c.h.b16 %v1041
    %v3960 = vunpack.c.l.b16 %v1042
    %v3961 = vunpack.c.h.b16 %v1042
    %v3962 = vunpack.c.l.b16 %v1043
    %v3963 = vunpack.c.h.b16 %v1043
    %v3964 = vunpack.c.l.b16 %v1044
    %v3965 = vunpack.c.h.b16 %v1044
    %v3966 = vunpack.c.l.b16 %v1045
    %v3967 = vunpack.c.h.b16 %v1045
    %v3968 = vunpack.c.l.b16 %v1046
    %v3969 = vunpack.c.h.b16 %v1046
    %v3970 = vunpack.c.l.b16 %v1047
    %v3971 = vunpack.c.h.b16 %v1047
    %v3972 = vunpack.c.l.b16 %v1048
    %v3973 = vunpack.c.h.b16 %v1048
    %v3974 = vunpack.c.l.b16 %v1049
    %v3975 = vunpack.c.h.b16 %v1049
    %v3976 = vunpack.c.l.b16 %v1050
    %v3977 = vunpack.c.h.b16 %v1050
    %v3978 = vunpack.c.l.b16 %v1051
    %v3979 = vunpack.c.h.b16 %v1051
    %v3980 = vunpack.c.l.b16 %v1052
    %v3981 = vunpack.c.h.b16 %v1052
    %v3982 = vunpack.c.l.b16 %v1053
    %v3983 = vunpack.c.h.b16 %v1053
    %v3984 = vunpack.c.l.b16 %v1054
    %v3985 = vunpack.c.h.b16 %v1054
    %v3986 = vunpack.c.l.b16 %v1055
    %v3987 = vunpack.c.h.b16 %v1055
    %v3988 = vunpack.c.l.b16 %v1056
    %v3989 = vunpack.c.h.b16 %v1056
    %v3990 = vunpack.c.l.b16 %v1057
    %v3991 = vunpack.c.h.b16 %v1057
    %v3992 = vunpack.c.l.b16 %v1058
    %v3993 = vunpack.c.h.b16 %v1058
    %v3994 = vunpack.c.l.b16 %v1059
    %v3995 = vunpack.c.h.b16 %v1059
    %v3996 = vunpack.c.l.b16 %v1060
    %v3997 = vunpack.c.h.b16 %v1060
    %v3998 = vunpack.c.l.b16 %v1061
    %v3999 = vunpack.c.h.b16 %v1061
    %v4000 = vunpack.c.l.b16 %v1062
    %v4001 = vunpack.c.h.b16 %v1062
    %v4002 = vunpack.c.l.b16 %v1063
    %v4003 = vunpack.c.h.b16 %v1063
    %v4004 = vunpack.c.l.b16 %v1064
    %v4005 = vunpack.c.h.b16 %v1064
    %v4006 = vunpack.c.l.b16 %v1065
    %v4007 = vunpack.c.h.b16 %v1065
    %v4008 = vunpack.c.l.b16 %v1066
    %v4009 = vunpack.c.h.b16 %v1066
    %v4010 = vunpack.c.l.b16 %v1067
    %v4011 = vunpack.c.h.b16 %v1067
    %v4012 = vunpack.c.l.b16 %v1068
    %v4013 = vunpack.c.h.b16 %v1068
    %v4014 = vunpack.c.l.b16 %v1069
    %v4015 = vunpack.c.h.b16 %v1069
    %v4016 = vunpack.c.l.b16 %v1070
    %v4017 = vunpack.c.h.b16 %v1070
    %v4018 = vunpack.c.l.b16 %v1071
    %v4019 = vunpack.c.h.b16 %v1071
    %v4020 = vunpack.c.l.b16 %v1072
    %v4021 = vunpack.c.h.b16 %v1072
    %v4022 = vunpack.c.l.b16 %v1073
    %v4023 = vunpack.c.h.b16 %v1073
    %v4024 = vunpack.c.l.b16 %v1074
    %v4025 = vunpack.c.h.b16 %v1074
    %v4026 = vunpack.c.l.b16 %v1075
    %v4027 = vunpack.c.h.b16 %v1075
    %v4028 = vunpack.c.l.b16 %v1076
    %v4029 = vunpack.c.h.b16 %v1076
    %v4030 = vunpack.c.l.b16 %v1077
    %v4031 = vunpack.c.h.b16 %v1077
    %v4032 = vunpack.c.l.b16 %v1078
    %v4033 = vunpack.c.h.b16 %v1078
    %v4034 = vunpack.c.l.b16 %v1079
    %v4035 = vunpack.c.h.b16 %v1079
    %v4036 = vunpack.c.l.b16 %v1080
    %v4037 = vunpack.c.h.b16 %v1080
    %v4038 = vunpack.c.l.b16 %v1081
    %v4039 = vunpack.c.h.b16 %v1081
    %v4040 = vunpack.c.l.b16 %v1082
    %v4041 = vunpack.c.h.b16 %v1082
    %v4042 = vunpack.c.l.b16 %v1083
    %v4043 = vunpack.c.h.b16 %v1083
    %v4044 = vunpack.c.l.b16 %v1084
    %v4045 = vunpack.c.h.b16 %v1084
    %v4046 = vunpack.c.l.b16 %v1085
    %v4047 = vunpack.c.h.b16 %v1085
    %v4048 = vunpack.c.l.b16 %v1086
    %v4049 = vunpack.c.h.b16 %v1086
    %v4050 = vunpack.c.l.b16 %v1087
    %v4051 = vunpack.c.h.b16 %v1087
    %v4052 = vunpack.c.l.b16 %v1088
    %v4053 = vunpack.c.h.b16 %v1088
    %v4054 = vunpack.c.l.b16 %v1089
    %v4055 = vunpack.c.h.b16 %v1089
    %v4056 = vunpack.c.l.b16 %v1090
    %v4057 = vunpack.c.h.b16 %v1090
    %v4058 = vunpack.c.l.b16 %v1091
    %v4059 = vunpack.c.h.b16 %v1091
    %v4060 = vunpack.c.l.b16 %v1092
    %v4061 = vunpack.c.h.b16 %v1092
    %v4062 = vunpack.c.l.b16 %v1093
    %v4063 = vunpack.c.h.b16 %v1093
    %v4064 = vunpack.c.l.b16 %v1094
    %v4065 = vunpack.c.h.b16 %v1094
    %v4066 = vunpack.c.l.b16 %v1095
    %v4067 = vunpack.c.h.b16 %v1095
    %v4068 = vunpack.c.l.b16 %v1096
    %v4069 = vunpack.c.h.b16 %v1096
    %v4070 = vunpack.c.l.b16 %v1097
    %v4071 = vunpack.c.h.b16 %v1097
    %v4072 = vunpack.c.l.b16 %v1098
    %v4073 = vunpack.c.h.b16 %v1098
    %v4074 = vunpack.c.l.b16 %v1099
    %v4075 = vunpack.c.h.b16 %v1099
    %v4076 = vunpack.c.l.b16 %v1100
    %v4077 = vunpack.c.h.b16 %v1100
    %v4078 = vunpack.c.l.b16 %v1101
    %v4079 = vunpack.c.h.b16 %v1101
    %v4080 = vunpack.c.l.b16 %v1102
    %v4081 = vunpack.c.h.b16 %v1102
    %v4082 = vunpack.c.l.b16 %v1103
    %v4083 = vunpack.c.h.b16 %v1103
    %v4084 = vunpack.c.l.b16 %v1104
    %v4085 = vunpack.c.h.b16 %v1104
    %v4086 = vunpack.c.l.b16 %v1105
    %v4087 = vunpack.c.h.b16 %v1105
    %v4088 = vunpack.c.l.b16 %v1106
    %v4089 = vunpack.c.h.b16 %v1106
    %v4090 = vunpack.c.l.b16 %v1107
    %v4091 = vunpack.c.h.b16 %v1107
    %v4092 = vunpack.c.l.b16 %v1108
    %v4093 = vunpack.c.h.b16 %v1108
    %v4094 = vunpack.c.l.b16 %v1109
    %v4095 = vunpack.c.h.b16 %v1109
    %v4096 = vunpack.c.l.b16 %v1110
    %v4097 = vunpack.c.h.b16 %v1110
    %v4098 = vunpack.c.l.b16 %v1111
    %v4099 = vunpack.c.h.b16 %v1111
    %v4100 = vunpack.c.l.b16 %v1112
    %v4101 = vunpack.c.h.b16 %v1112
    %v4102 = vunpack.c.l.b16 %v1113
    %v4103 = vunpack.c.h.b16 %v1113
    %v4104 = vunpack.c.l.b16 %v1114
    %v4105 = vunpack.c.h.b16 %v1114
    %v4106 = vunpack.c.l.b16 %v1115
    %v4107 = vunpack.c.h.b16 %v1115
    %v4108 = vunpack.c.l.b16 %v1116
    %v4109 = vunpack.c.h.b16 %v1116
    %v4110 = vunpack.c.l.b16 %v1117
    %v4111 = vunpack.c.h.b16 %v1117
    %v4112 = vunpack.c.l.b16 %v1118
    %v4113 = vunpack.c.h.b16 %v1118
    %v4114 = vunpack.c.l.b16 %v1119
    %v4115 = vunpack.c.h.b16 %v1119
    %v4116 = vunpack.c.l.b16 %v1120
    %v4117 = vunpack.c.h.b16 %v1120
    %v4118 = vunpack.c.l.b16 %v1121
    %v4119 = vunpack.c.h.b16 %v1121
    %v4120 = vunpack.c.l.b16 %v1122
    %v4121 = vunpack.c.h.b16 %v1122
    %v4122 = vunpack.c.l.b16 %v1123
    %v4123 = vunpack.c.h.b16 %v1123
    %v4124 = vunpack.c.l.b16 %v1124
    %v4125 = vunpack.c.h.b16 %v1124
    %v4126 = vunpack.c.l.b16 %v1125
    %v4127 = vunpack.c.h.b16 %v1125
    %v4128 = vunpack.c.l.b16 %v1126
    %v4129 = vunpack.c.h.b16 %v1126
    %v4130 = vunpack.c.l.b16 %v1127
    %v4131 = vunpack.c.h.b16 %v1127
    %v4132 = vunpack.c.l.b16 %v1128
    %v4133 = vunpack.c.h.b16 %v1128
    %v4134 = vunpack.c.l.b16 %v1129
    %v4135 = vunpack.c.h.b16 %v1129
    %v4136 = vunpack.c.l.b16 %v1130
    %v4137 = vunpack.c.h.b16 %v1130
    %v4138 = vunpack.c.l.b16 %v1131
    %v4139 = vunpack.c.h.b16 %v1131
    %v4140 = vunpack.c.l.b16 %v1132
    %v4141 = vunpack.c.h.b16 %v1132
    %v4142 = vunpack.c.l.b16 %v1133
    %v4143 = vunpack.c.h.b16 %v1133
    %v4144 = vunpack.c.l.b16 %v1134
    %v4145 = vunpack.c.h.b16 %v1134
    %v4146 = vunpack.c.l.b16 %v1135
    %v4147 = vunpack.c.h.b16 %v1135
    %v4148 = vunpack.c.l.b16 %v1136
    %v4149 = vunpack.c.h.b16 %v1136
    %v4150 = vunpack.c.l.b16 %v1137
    %v4151 = vunpack.c.h.b16 %v1137
    %v4152 = vunpack.c.l.b16 %v1138
    %v4153 = vunpack.c.h.b16 %v1138
    %v4154 = vunpack.c.l.b16 %v1139
    %v4155 = vunpack.c.h.b16 %v1139
    %v4156 = vunpack.c.l.b16 %v1140
    %v4157 = vunpack.c.h.b16 %v1140
    %v4158 = vunpack.c.l.b16 %v1141
    %v4159 = vunpack.c.h.b16 %v1141
    %v4160 = vunpack.c.l.b16 %v1142
    %v4161 = vunpack.c.h.b16 %v1142
    %v4162 = vunpack.c.l.b16 %v1143
    %v4163 = vunpack.c.h.b16 %v1143
    %v4164 = vunpack.c.l.b16 %v1144
    %v4165 = vunpack.c.h.b16 %v1144
    %v4166 = vunpack.c.l.b16 %v1145
    %v4167 = vunpack.c.h.b16 %v1145
    %v4168 = vunpack.c.l.b16 %v1146
    %v4169 = vunpack.c.h.b16 %v1146
    %v4170 = vunpack.c.l.b16 %v1147
    %v4171 = vunpack.c.h.b16 %v1147
    %v4172 = vunpack.c.l.b16 %v1148
    %v4173 = vunpack.c.h.b16 %v1148
    %v4174 = vunpack.c.l.b16 %v1149
    %v4175 = vunpack.c.h.b16 %v1149
    %v4176 = vunpack.c.l.b16 %v1150
    %v4177 = vunpack.c.h.b16 %v1150
    %v4178 = vunpack.c.l.b16 %v1151
    %v4179 = vunpack.c.h.b16 %v1151
    %v4180 = vunpack.c.l.b16 %v1152
    %v4181 = vunpack.c.h.b16 %v1152
    %v4182 = vunpack.c.l.b16 %v1153
    %v4183 = vunpack.c.h.b16 %v1153
    %v4184 = vunpack.c.l.b16 %v1154
    %v4185 = vunpack.c.h.b16 %v1154
    %v4186 = vunpack.c.l.b16 %v1155
    %v4187 = vunpack.c.h.b16 %v1155
    %v4188 = vunpack.c.l.b16 %v1156
    %v4189 = vunpack.c.h.b16 %v1156
    %v4190 = vunpack.c.l.b16 %v1157
    %v4191 = vunpack.c.h.b16 %v1157
    %v4192 = vunpack.c.l.b16 %v1158
    %v4193 = vunpack.c.h.b16 %v1158
    %v4194 = vunpack.c.l.b16 %v1159
    %v4195 = vunpack.c.h.b16 %v1159
    %v4196 = vunpack.c.l.b16 %v1160
    %v4197 = vunpack.c.h.b16 %v1160
    %v4198 = vunpack.c.l.b16 %v1161
    %v4199 = vunpack.c.h.b16 %v1161
    %v4200 = vunpack.c.l.b16 %v1162
    %v4201 = vunpack.c.h.b16 %v1162
    %v4202 = vunpack.c.l.b16 %v1163
    %v4203 = vunpack.c.h.b16 %v1163
    %v4204 = vunpack.c.l.b16 %v1164
    %v4205 = vunpack.c.h.b16 %v1164
    %v4206 = vunpack.c.l.b16 %v1165
    %v4207 = vunpack.c.h.b16 %v1165
    %v4208 = vunpack.c.l.b16 %v1166
    %v4209 = vunpack.c.h.b16 %v1166
    %v4210 = vunpack.c.l.b16 %v1167
    %v4211 = vunpack.c.h.b16 %v1167
    %v4212 = vunpack.c.l.b16 %v1168
    %v4213 = vunpack.c.h.b16 %v1168
    %v4214 = vunpack.c.l.b16 %v1169
    %v4215 = vunpack.c.h.b16 %v1169
    %v4216 = vunpack.c.l.b16 %v1170
    %v4217 = vunpack.c.h.b16 %v1170
    %v4218 = vunpack.c.l.b16 %v1171
    %v4219 = vunpack.c.h.b16 %v1171
    %v4220 = vunpack.c.l.b16 %v1172
    %v4221 = vunpack.c.h.b16 %v1172
    %v4222 = vunpack.c.l.b16 %v1173
    %v4223 = vunpack.c.h.b16 %v1173
    %v4224 = vunpack.c.l.b16 %v1174
    %v4225 = vunpack.c.h.b16 %v1174
    %v4226 = vunpack.c.l.b16 %v1175
    %v4227 = vunpack.c.h.b16 %v1175
    %v4228 = vunpack.c.l.b16 %v1176
    %v4229 = vunpack.c.h.b16 %v1176
    %v4230 = vunpack.c.l.b16 %v1177
    %v4231 = vunpack.c.h.b16 %v1177
    %v4232 = vunpack.c.l.b16 %v1178
    %v4233 = vunpack.c.h.b16 %v1178
    %v4234 = vunpack.c.l.b16 %v1179
    %v4235 = vunpack.c.h.b16 %v1179
    %v4236 = vunpack.c.l.b16 %v1180
    %v4237 = vunpack.c.h.b16 %v1180
    %v4238 = vunpack.c.l.b16 %v1181
    %v4239 = vunpack.c.h.b16 %v1181
    %v4240 = vunpack.c.l.b16 %v1182
    %v4241 = vunpack.c.h.b16 %v1182
    %v4242 = vunpack.c.l.b16 %v1183
    %v4243 = vunpack.c.h.b16 %v1183
    %v4244 = vunpack.c.l.b16 %v1184
    %v4245 = vunpack.c.h.b16 %v1184
    %v4246 = vunpack.c.l.b16 %v1185
    %v4247 = vunpack.c.h.b16 %v1185
    %v4248 = vunpack.c.l.b16 %v1186
    %v4249 = vunpack.c.h.b16 %v1186
    %v4250 = vunpack.c.l.b16 %v1187
    %v4251 = vunpack.c.h.b16 %v1187
    %v4252 = vunpack.c.l.b16 %v1188
    %v4253 = vunpack.c.h.b16 %v1188
    %v4254 = vunpack.c.l.b16 %v1189
    %v4255 = vunpack.c.h.b16 %v1189
    %v4256 = vunpack.c.l.b16 %v1190
    %v4257 = vunpack.c.h.b16 %v1190
    %v4258 = vunpack.c.l.b16 %v1191
    %v4259 = vunpack.c.h.b16 %v1191
    %v4260 = vunpack.c.l.b16 %v1192
    %v4261 = vunpack.c.h.b16 %v1192
    %v4262 = vunpack.c.l.b16 %v1193
    %v4263 = vunpack.c.h.b16 %v1193
    %v4264 = vunpack.c.l.b16 %v1194
    %v4265 = vunpack.c.h.b16 %v1194
    %v4266 = vunpack.c.l.b16 %v1195
    %v4267 = vunpack.c.h.b16 %v1195
    %v4268 = vunpack.c.l.b16 %v1196
    %v4269 = vunpack.c.h.b16 %v1196
    %v4270 = vunpack.c.l.b16 %v1197
    %v4271 = vunpack.c.h.b16 %v1197
    %v4272 = vunpack.c.l.b16 %v1198
    %v4273 = vunpack.c.h.b16 %v1198
    %v4274 = vunpack.c.l.b16 %v1199
    %v4275 = vunpack.c.h.b16 %v1199
    %v4276 = vunpack.c.l.b16 %v1200
    %v4277 = vunpack.c.h.b16 %v1200
    %v4278 = vunpack.c.l.b16 %v1201
    %v4279 = vunpack.c.h.b16 %v1201
    %v4280 = vunpack.c.l.b16 %v1202
    %v4281 = vunpack.c.h.b16 %v1202
    %v4282 = vunpack.c.l.b16 %v1203
    %v4283 = vunpack.c.h.b16 %v1203
    %v4284 = vunpack.c.l.b16 %v1204
    %v4285 = vunpack.c.h.b16 %v1204
    %v4286 = vunpack.c.l.b16 %v1205
    %v4287 = vunpack.c.h.b16 %v1205
    %v4288 = vunpack.c.l.b16 %v1206
    %v4289 = vunpack.c.h.b16 %v1206
    %v4290 = vunpack.c.l.b16 %v1207
    %v4291 = vunpack.c.h.b16 %v1207
    %v4292 = vunpack.c.l.b16 %v1208
    %v4293 = vunpack.c.h.b16 %v1208
    %v4294 = vunpack.c.l.b16 %v1209
    %v4295 = vunpack.c.h.b16 %v1209
    %v4296 = vunpack.c.l.b16 %v1210
    %v4297 = vunpack.c.h.b16 %v1210
    %v4298 = vunpack.c.l.b16 %v1211
    %v4299 = vunpack.c.h.b16 %v1211
    %v4300 = vunpack.c.l.b16 %v1212
    %v4301 = vunpack.c.h.b16 %v1212
    %v4302 = vunpack.c.l.b16 %v1213
    %v4303 = vunpack.c.h.b16 %v1213
    %v4304 = vunpack.c.l.b16 %v1214
    %v4305 = vunpack.c.h.b16 %v1214
    %v4306 = vunpack.c.l.b16 %v1215
    %v4307 = vunpack.c.h.b16 %v1215
    %v4308 = vunpack.c.l.b16 %v1216
    %v4309 = vunpack.c.h.b16 %v1216
    %v4310 = vunpack.c.l.b16 %v1217
    %v4311 = vunpack.c.h.b16 %v1217
    %v4312 = vunpack.c.l.b16 %v1218
    %v4313 = vunpack.c.h.b16 %v1218
    %v4314 = vunpack.c.l.b16 %v1219
    %v4315 = vunpack.c.h.b16 %v1219
    %v4316 = vunpack.c.l.b16 %v1220
    %v4317 = vunpack.c.h.b16 %v1220
    %v4318 = vunpack.c.l.b16 %v1221
    %v4319 = vunpack.c.h.b16 %v1221
    %v4320 = vunpack.c.l.b16 %v1222
    %v4321 = vunpack.c.h.b16 %v1222
    %v4322 = vunpack.c.l.b16 %v1223
    %v4323 = vunpack.c.h.b16 %v1223
    %v4324 = vunpack.c.l.b16 %v1224
    %v4325 = vunpack.c.h.b16 %v1224
    %v4326 = vunpack.c.l.b16 %v1225
    %v4327 = vunpack.c.h.b16 %v1225
    %v4328 = vunpack.c.l.b16 %v1226
    %v4329 = vunpack.c.h.b16 %v1226
    %v4330 = vunpack.c.l.b16 %v1227
    %v4331 = vunpack.c.h.b16 %v1227
    %v4332 = vunpack.c.l.b16 %v1228
    %v4333 = vunpack.c.h.b16 %v1228
    %v4334 = vunpack.c.l.b16 %v1229
    %v4335 = vunpack.c.h.b16 %v1229
    %v4336 = vunpack.c.l.b16 %v1230
    %v4337 = vunpack.c.h.b16 %v1230
    %v4338 = vunpack.c.l.b16 %v1231
    %v4339 = vunpack.c.h.b16 %v1231
    %v4340 = vunpack.c.l.b16 %v1232
    %v4341 = vunpack.c.h.b16 %v1232
    %v4342 = vunpack.c.l.b16 %v1233
    %v4343 = vunpack.c.h.b16 %v1233
    %v4344 = vunpack.c.l.b16 %v1234
    %v4345 = vunpack.c.h.b16 %v1234
    %v4346 = vunpack.c.l.b16 %v1235
    %v4347 = vunpack.c.h.b16 %v1235
    %v4348 = vunpack.c.l.b16 %v1236
    %v4349 = vunpack.c.h.b16 %v1236
    %v4350 = vunpack.c.l.b16 %v1237
    %v4351 = vunpack.c.h.b16 %v1237
    %v4352 = vunpack.c.l.b16 %v1238
    %v4353 = vunpack.c.h.b16 %v1238
    %v4354 = vunpack.c.l.b16 %v1239
    %v4355 = vunpack.c.h.b16 %v1239
    %v4356 = vunpack.c.l.b16 %v1240
    %v4357 = vunpack.c.h.b16 %v1240
    %v4358 = vunpack.c.l.b16 %v1241
    %v4359 = vunpack.c.h.b16 %v1241
    %v4360 = vunpack.c.l.b16 %v1242
    %v4361 = vunpack.c.h.b16 %v1242
    %v4362 = vunpack.c.l.b16 %v1243
    %v4363 = vunpack.c.h.b16 %v1243
    %v4364 = vunpack.c.l.b16 %v1244
    %v4365 = vunpack.c.h.b16 %v1244
    %v4366 = vunpack.c.l.b16 %v1245
    %v4367 = vunpack.c.h.b16 %v1245
    %v4368 = vunpack.c.l.b16 %v1246
    %v4369 = vunpack.c.h.b16 %v1246
    %v4370 = vunpack.c.l.b16 %v1247
    %v4371 = vunpack.c.h.b16 %v1247
    %v4372 = vunpack.c.l.b16 %v1248
    %v4373 = vunpack.c.h.b16 %v1248
    %v4374 = vunpack.c.l.b16 %v1249
    %v4375 = vunpack.c.h.b16 %v1249
    %v4376 = vunpack.c.l.b16 %v1250
    %v4377 = vunpack.c.h.b16 %v1250
    %v4378 = vunpack.c.l.b16 %v1251
    %v4379 = vunpack.c.h.b16 %v1251
    %v4380 = vunpack.c.l.b16 %v1252
    %v4381 = vunpack.c.h.b16 %v1252
    %v4382 = vunpack.c.l.b16 %v1253
    %v4383 = vunpack.c.h.b16 %v1253
    %v4384 = vunpack.c.l.b16 %v1254
    %v4385 = vunpack.c.h.b16 %v1254
    %v4386 = vunpack.c.l.b16 %v1255
    %v4387 = vunpack.c.h.b16 %v1255
    %v4388 = vunpack.c.l.b16 %v1256
    %v4389 = vunpack.c.h.b16 %v1256
    %v4390 = vunpack.c.l.b16 %v1257
    %v4391 = vunpack.c.h.b16 %v1257
    %v4392 = vunpack.c.l.b16 %v1258
    %v4393 = vunpack.c.h.b16 %v1258
    %v4394 = vunpack.c.l.b16 %v1259
    %v4395 = vunpack.c.h.b16 %v1259
    %v4396 = vunpack.c.l.b16 %v1260
    %v4397 = vunpack.c.h.b16 %v1260
    %v4398 = vunpack.c.l.b16 %v1261
    %v4399 = vunpack.c.h.b16 %v1261
    %v4400 = vunpack.c.l.b16 %v1262
    %v4401 = vunpack.c.h.b16 %v1262
    %v4402 = vunpack.c.l.b16 %v1263
    %v4403 = vunpack.c.h.b16 %v1263
    %v4404 = vunpack.c.l.b16 %v1264
    %v4405 = vunpack.c.h.b16 %v1264
    %v4406 = vunpack.c.l.b16 %v1265
    %v4407 = vunpack.c.h.b16 %v1265
    %v4408 = vunpack.c.l.b16 %v1266
    %v4409 = vunpack.c.h.b16 %v1266
    %v4410 = vunpack.c.l.b16 %v1267
    %v4411 = vunpack.c.h.b16 %v1267
    %v4412 = vunpack.c.l.b16 %v1268
    %v4413 = vunpack.c.h.b16 %v1268
    %v4414 = vunpack.c.l.b16 %v1269
    %v4415 = vunpack.c.h.b16 %v1269
    %v4416 = vunpack.c.l.b16 %v1270
    %v4417 = vunpack.c.h.b16 %v1270
    %v4418 = vunpack.c.l.b16 %v1271
    %v4419 = vunpack.c.h.b16 %v1271
    %v4420 = vunpack.c.l.b16 %v1272
    %v4421 = vunpack.c.h.b16 %v1272
    %v4422 = vunpack.c.l.b16 %v1273
    %v4423 = vunpack.c.h.b16 %v1273
    %v4424 = vunpack.c.l.b16 %v1274
    %v4425 = vunpack.c.h.b16 %v1274
    %v4426 = vunpack.c.l.b16 %v1275
    %v4427 = vunpack.c.h.b16 %v1275
    %v4428 = vunpack.c.l.b16 %v1276
    %v4429 = vunpack.c.h.b16 %v1276
    %v4430 = vunpack.c.l.b16 %v1277
    %v4431 = vunpack.c.h.b16 %v1277
    %v4432 = vunpack.c.l.b16 %v1278
    %v4433 = vunpack.c.h.b16 %v1278
    %v4434 = vunpack.c.l.b16 %v1279
    %v4435 = vunpack.c.h.b16 %v1279
    %v4436 = vunpack.c.l.b16 %v1280
    %v4437 = vunpack.c.h.b16 %v1280
    %v4438 = vunpack.c.l.b16 %v1281
    %v4439 = vunpack.c.h.b16 %v1281
    %v4440 = vunpack.c.l.b16 %v1282
    %v4441 = vunpack.c.h.b16 %v1282
    %v4442 = vunpack.c.l.b16 %v1283
    %v4443 = vunpack.c.h.b16 %v1283
    %v4444 = vunpack.c.l.b16 %v1284
    %v4445 = vunpack.c.h.b16 %v1284
    %v4446 = vunpack.c.l.b16 %v1285
    %v4447 = vunpack.c.h.b16 %v1285
    %v4448 = vunpack.c.l.b16 %v1286
    %v4449 = vunpack.c.h.b16 %v1286
    %v4450 = vunpack.c.l.b16 %v1287
    %v4451 = vunpack.c.h.b16 %v1287
    %v4452 = vunpack.c.l.b16 %v1288
    %v4453 = vunpack.c.h.b16 %v1288
    %v4454 = vunpack.c.l.b16 %v1289
    %v4455 = vunpack.c.h.b16 %v1289
    %v4456 = vunpack.c.l.b16 %v1290
    %v4457 = vunpack.c.h.b16 %v1290
    %v4458 = vunpack.c.l.b16 %v1291
    %v4459 = vunpack.c.h.b16 %v1291
    %v4460 = vunpack.c.l.b16 %v1292
    %v4461 = vunpack.c.h.b16 %v1292
    %v4462 = vunpack.c.l.b16 %v1293
    %v4463 = vunpack.c.h.b16 %v1293
    %v4464 = vunpack.c.l.b16 %v1294
    %v4465 = vunpack.c.h.b16 %v1294
    %v4466 = vunpack.c.l.b16 %v1295
    %v4467 = vunpack.c.h.b16 %v1295
    %v4468 = vunpack.c.l.b16 %v1296
    %v4469 = vunpack.c.h.b16 %v1296
    %v4470 = vunpack.c.l.b16 %v1297
    %v4471 = vunpack.c.h.b16 %v1297
    %v4472 = vunpack.c.l.b16 %v1298
    %v4473 = vunpack.c.h.b16 %v1298
    %v4474 = vunpack.c.l.b16 %v1299
    %v4475 = vunpack.c.h.b16 %v1299
    %v4476 = vunpack.c.l.b16 %v1300
    %v4477 = vunpack.c.h.b16 %v1300
    %v4478 = vunpack.c.l.b16 %v1301
    %v4479 = vunpack.c.h.b16 %v1301
    %v4480 = vunpack.c.l.b16 %v1302
    %v4481 = vunpack.c.h.b16 %v1302
    %v4482 = vunpack.c.l.b16 %v1303
    %v4483 = vunpack.c.h.b16 %v1303
    %v4484 = vunpack.c.l.b16 %v1304
    %v4485 = vunpack.c.h.b16 %v1304
    %v4486 = vunpack.c.l.b16 %v1305
    %v4487 = vunpack.c.h.b16 %v1305
    %v4488 = vunpack.c.l.b16 %v1306
    %v4489 = vunpack.c.h.b16 %v1306
    %v4490 = vunpack.c.l.b16 %v1307
    %v4491 = vunpack.c.h.b16 %v1307
    %v4492 = vunpack.c.l.b16 %v1308
    %v4493 = vunpack.c.h.b16 %v1308
    %v4494 = vunpack.c.l.b16 %v1309
    %v4495 = vunpack.c.h.b16 %v1309
    %v4496 = vunpack.c.l.b16 %v1310
    %v4497 = vunpack.c.h.b16 %v1310
    %v4498 = vunpack.c.l.b16 %v1311
    %v4499 = vunpack.c.h.b16 %v1311
    %v4500 = vunpack.c.l.b16 %v1312
    %v4501 = vunpack.c.h.b16 %v1312
    %v4502 = vunpack.c.l.b16 %v1313
    %v4503 = vunpack.c.h.b16 %v1313
    %v4504 = vunpack.c.l.b16 %v1314
    %v4505 = vunpack.c.h.b16 %v1314
    %v4506 = vunpack.c.l.b16 %v1315
    %v4507 = vunpack.c.h.b16 %v1315
    %v4508 = vunpack.c.l.b16 %v1316
    %v4509 = vunpack.c.h.b16 %v1316
    %v4510 = vunpack.c.l.b16 %v1317
    %v4511 = vunpack.c.h.b16 %v1317
    %v4512 = vunpack.c.l.b16 %v1318
    %v4513 = vunpack.c.h.b16 %v1318
    %v4514 = vunpack.c.l.b16 %v1319
    %v4515 = vunpack.c.h.b16 %v1319
    %v4516 = vunpack.c.l.b16 %v1320
    %v4517 = vunpack.c.h.b16 %v1320
    %v4518 = vunpack.c.l.b16 %v1321
    %v4519 = vunpack.c.h.b16 %v1321
    %v4520 = vunpack.c.l.b16 %v1322
    %v4521 = vunpack.c.h.b16 %v1322
    %v4522 = vunpack.c.l.b16 %v1323
    %v4523 = vunpack.c.h.b16 %v1323
    %v4524 = vunpack.c.l.b16 %v1324
    %v4525 = vunpack.c.h.b16 %v1324
    %v4526 = vunpack.c.l.b16 %v1325
    %v4527 = vunpack.c.h.b16 %v1325
    %v4528 = vunpack.c.l.b16 %v1326
    %v4529 = vunpack.c.h.b16 %v1326
    %v4530 = vunpack.c.l.b16 %v1327
    %v4531 = vunpack.c.h.b16 %v1327
    %v4532 = vunpack.c.l.b16 %v1328
    %v4533 = vunpack.c.h.b16 %v1328
    %v4534 = vunpack.c.l.b16 %v1329
    %v4535 = vunpack.c.h.b16 %v1329
    %v4536 = vunpack.c.l.b16 %v1330
    %v4537 = vunpack.c.h.b16 %v1330
    %v4538 = vunpack.c.l.b16 %v1331
    %v4539 = vunpack.c.h.b16 %v1331
    %v4540 = vunpack.c.l.b16 %v1332
    %v4541 = vunpack.c.h.b16 %v1332
    %v4542 = vunpack.c.l.b16 %v1333
    %v4543 = vunpack.c.h.b16 %v1333
    %v4544 = vunpack.c.l.b16 %v1334
    %v4545 = vunpack.c.h.b16 %v1334
    %v4546 = vunpack.c.l.b16 %v1335
    %v4547 = vunpack.c.h.b16 %v1335
    %v4548 = vunpack.c.l.b16 %v1336
    %v4549 = vunpack.c.h.b16 %v1336
    %v4550 = vunpack.c.l.b16 %v1337
    %v4551 = vunpack.c.h.b16 %v1337
    %v4552 = vunpack.c.l.b16 %v1338
    %v4553 = vunpack.c.h.b16 %v1338
    %v4554 = vunpack.c.l.b16 %v1339
    %v4555 = vunpack.c.h.b16 %v1339
    %v4556 = vunpack.c.l.b16 %v1340
    %v4557 = vunpack.c.h.b16 %v1340
    %v4558 = vunpack.c.l.b16 %v1341
    %v4559 = vunpack.c.h.b16 %v1341
    %v4560 = vunpack.c.l.b16 %v1342
    %v4561 = vunpack.c.h.b16 %v1342
    %v4562 = vunpack.c.l.b16 %v1343
    %v4563 = vunpack.c.h.b16 %v1343
    %v4564 = vunpack.c.l.b16 %v1344
    %v4565 = vunpack.c.h.b16 %v1344
    %v4566 = vunpack.c.l.b16 %v1345
    %v4567 = vunpack.c.h.b16 %v1345
    %v4568 = vunpack.c.l.b16 %v1346
    %v4569 = vunpack.c.h.b16 %v1346
    %v4570 = vunpack.c.l.b16 %v1347
    %v4571 = vunpack.c.h.b16 %v1347
    %v4572 = vunpack.c.l.b16 %v1348
    %v4573 = vunpack.c.h.b16 %v1348
    %v4574 = vunpack.c.l.b16 %v1349
    %v4575 = vunpack.c.h.b16 %v1349
    %v4576 = vunpack.c.l.b16 %v1350
    %v4577 = vunpack.c.h.b16 %v1350
    %v4578 = vunpack.c.l.b16 %v1351
    %v4579 = vunpack.c.h.b16 %v1351
    %v4580 = vunpack.c.l.b16 %v1352
    %v4581 = vunpack.c.h.b16 %v1352
    %v4582 = vunpack.c.l.b16 %v1353
    %v4583 = vunpack.c.h.b16 %v1353
    %v4584 = vunpack.c.l.b16 %v1354
    %v4585 = vunpack.c.h.b16 %v1354
    %v4586 = vunpack.c.l.b16 %v1355
    %v4587 = vunpack.c.h.b16 %v1355
    %v4588 = vunpack.c.l.b16 %v1356
    %v4589 = vunpack.c.h.b16 %v1356
    %v4590 = vunpack.c.l.b16 %v1357
    %v4591 = vunpack.c.h.b16 %v1357
    %v4592 = vunpack.c.l.b16 %v1358
    %v4593 = vunpack.c.h.b16 %v1358
    %v4594 = vunpack.c.l.b16 %v1359
    %v4595 = vunpack.c.h.b16 %v1359
    %v4596 = vunpack.c.l.b16 %v1360
    %v4597 = vunpack.c.h.b16 %v1360
    %v4598 = vunpack.c.l.b16 %v1361
    %v4599 = vunpack.c.h.b16 %v1361
    %v4600 = vunpack.c.l.b16 %v1362
    %v4601 = vunpack.c.h.b16 %v1362
    %v4602 = vunpack.c.l.b16 %v1363
    %v4603 = vunpack.c.h.b16 %v1363
    %v4604 = vpack.c.b16 %v2588, %v2556
    %v4605 = vpack.c.b16 %v2589, %v2557
    %v4606 = vpack.c.b16 %v2590, %v2558
    %v4607 = vpack.c.b16 %v2591, %v2559
    %v4608 = vpack.c.b16 %v2592, %v2560
    %v4609 = vpack.c.b16 %v2593, %v2561
    %v4610 = vpack.c.b16 %v2594, %v2562
    %v4611 = vpack.c.b16 %v2595, %v2563
    %v4612 = vpack.c.b16 %v2596, %v2564
    %v4613 = vpack.c.b16 %v2597, %v2565
    %v4614 = vpack.c.b16 %v2598, %v2566
    %v4615 = vpack.c.b16 %v2599, %v2567
    %v4616 = vpack.c.b16 %v2600, %v2568
    %v4617 = vpack.c.b16 %v2601, %v2569
    %v4618 = vpack.c.b16 %v2602, %v2570
    %v4619 = vpack.c.b16 %v2603, %v2571
    %v4620 = vpack.c.b16 %v2604, %v2572
    %v4621 = vpack.c.b16 %v2605, %v2573
    %v4622 = vpack.c.b16 %v2606, %v2574
    %v4623 = vpack.c.b16 %v2607, %v2575
    %v4624 = vpack.c.b16 %v2608, %v2576
    %v4625 = vpack.c.b16 %v2609, %v2577
    %v4626 = vpack.c.b16 %v2610, %v2578
    %v4627 = vpack.c.b16 %v2611, %v2579
    %v4628 = vpack.c.b16 %v2612, %v2580
    %v4629 = vpack.c.b16 %v2613, %v2581
    %v4630 = vpack.c.b16 %v2614, %v2582
    %v4631 = vpack.c.b16 %v2615, %v2583
    %v4632 = vpack.c.b16 %v2616, %v2584
    %v4633 = vpack.c.b16 %v2617, %v2585
    %v4634 = vpack.c.b16 %v2618, %v2586
    %v4635 = vpack.c.b16 %v2619, %v2587
    %v4636 = vpack.c.b16 %v2652, %v2620
    %v4637 = vpack.c.b16 %v2653, %v2621
    %v4638 = vpack.c.b16 %v2654, %v2622
    %v4639 = vpack.c.b16 %v2655, %v2623
    %v4640 = vpack.c.b16 %v2656, %v2624
    %v4641 = vpack.c.b16 %v2657, %v2625
    %v4642 = vpack.c.b16 %v2658, %v2626
    %v4643 = vpack.c.b16 %v2659, %v2627
    %v4644 = vpack.c.b16 %v2660, %v2628
    %v4645 = vpack.c.b16 %v2661, %v2629
    %v4646 = vpack.c.b16 %v2662, %v2630
    %v4647 = vpack.c.b16 %v2663, %v2631
    %v4648 = vpack.c.b16 %v2664, %v2632
    %v4649 = vpack.c.b16 %v2665, %v2633
    %v4650 = vpack.c.b16 %v2666, %v2634
    %v4651 = vpack.c.b16 %v2667, %v2635
    %v4652 = vpack.c.b16 %v2668, %v2636
    %v4653 = vpack.c.b16 %v2669, %v2637
    %v4654 = vpack.c.b16 %v2670, %v2638
    %v4655 = vpack.c.b16 %v2671, %v2639
    %v4656 = vpack.c.b16 %v2672, %v2640
    %v4657 = vpack.c.b16 %v2673, %v2641
    %v4658 = vpack.c.b16 %v2674, %v2642
    %v4659 = vpack.c.b16 %v2675, %v2643
    %v4660 = vpack.c.b16 %v2676, %v2644
    %v4661 = vpack.c.b16 %v2677, %v2645
    %v4662 = vpack.c.b16 %v2678, %v2646
    %v4663 = vpack.c.b16 %v2679, %v2647
    %v4664 = vpack.c.b16 %v2680, %v2648
    %v4665 = vpack.c.b16 %v2681, %v2649
    %v4666 = vpack.c.b16 %v2682, %v2650
    %v4667 = vpack.c.b16 %v2683, %v2651
    %v4668 = vpack.c.b16 %v2716, %v2684
    %v4669 = vpack.c.b16 %v2717, %v2685
    %v4670 = vpack.c.b16 %v2718, %v2686
    %v4671 = vpack.c.b16 %v2719, %v2687
    %v4672 = vpack.c.b16 %v2720, %v2688
    %v4673 = vpack.c.b16 %v2721, %v2689
    %v4674 = vpack.c.b16 %v2722, %v2690
    %v4675 = vpack.c.b16 %v2723, %v2691
    %v4676 = vpack.c.b16 %v2724, %v2692
    %v4677 = vpack.c.b16 %v2725, %v2693
    %v4678 = vpack.c.b16 %v2726, %v2694
    %v4679 = vpack.c.b16 %v2727, %v2695
    %v4680 = vpack.c.b16 %v2728, %v2696
    %v4681 = vpack.c.b16 %v2729, %v2697
    %v4682 = vpack.c.b16 %v2730, %v2698
    %v4683 = vpack.c.b16 %v2731, %v2699
    %v4684 = vpack.c.b16 %v2732, %v2700
    %v4685 = vpack.c.b16 %v2733, %v2701
    %v4686 = vpack.c.b16 %v2734, %v2702
    %v4687 = vpack.c.b16 %v2735, %v2703
    %v4688 = vpack.c.b16 %v2736, %v2704
    %v4689 = vpack.c.b16 %v2737, %v2705
    %v4690 = vpack.c.b16 %v2738, %v2706
    %v4691 = vpack.c.b16 %v2739, %v2707
    %v4692 = vpack.c.b16 %v2740, %v2708
    %v4693 = vpack.c.b16 %v2741, %v2709
    %v4694 = vpack.c.b16 %v2742, %v2710
    %v4695 = vpack.c.b16 %v2743, %v2711
    %v4696 = vpack.c.b16 %v2744, %v2712
    %v4697 = vpack.c.b16 %v2745, %v2713
    %v4698 = vpack.c.b16 %v2746, %v2714
    %v4699 = vpack.c.b16 %v2747, %v2715
    %v4700 = vpack.c.b16 %v2780, %v2748
    %v4701 = vpack.c.b16 %v2781, %v2749
    %v4702 = vpack.c.b16 %v2782, %v2750
    %v4703 = vpack.c.b16 %v2783, %v2751
    %v4704 = vpack.c.b16 %v2784, %v2752
    %v4705 = vpack.c.b16 %v2785, %v2753
    %v4706 = vpack.c.b16 %v2786, %v2754
    %v4707 = vpack.c.b16 %v2787, %v2755
    %v4708 = vpack.c.b16 %v2788, %v2756
    %v4709 = vpack.c.b16 %v2789, %v2757
    %v4710 = vpack.c.b16 %v2790, %v2758
    %v4711 = vpack.c.b16 %v2791, %v2759
    %v4712 = vpack.c.b16 %v2792, %v2760
    %v4713 = vpack.c.b16 %v2793, %v2761
    %v4714 = vpack.c.b16 %v2794, %v2762
    %v4715 = vpack.c.b16 %v2795, %v2763
    %v4716 = vpack.c.b16 %v2796, %v2764
    %v4717 = vpack.c.b16 %v2797, %v2765
    %v4718 = vpack.c.b16 %v2798, %v2766
    %v4719 = vpack.c.b16 %v2799, %v2767
    %v4720 = vpack.c.b16 %v2800, %v2768
    %v4721 = vpack.c.b16 %v2801, %v2769
    %v4722 = vpack.c.b16 %v2802, %v2770
    %v4723 = vpack.c.b16 %v2803, %v2771
    %v4724 = vpack.c.b16 %v2804, %v2772
    %v4725 = vpack.c.b16 %v2805, %v2773
    %v4726 = vpack.c.b16 %v2806, %v2774
    %v4727 = vpack.c.b16 %v2807, %v2775
    %v4728 = vpack.c.b16 %v2808, %v2776
    %v4729 = vpack.c.b16 %v2809, %v2777
    %v4730 = vpack.c.b16 %v2810, %v2778
    %v4731 = vpack.c.b16 %v2811, %v2779
    %v4732 = vpack.c.b16 %v2844, %v2812
    %v4733 = vpack.c.b16 %v2845, %v2813
    %v4734 = vpack.c.b16 %v2846, %v2814
    %v4735 = vpack.c.b16 %v2847, %v2815
    %v4736 = vpack.c.b16 %v2848, %v2816
    %v4737 = vpack.c.b16 %v2849, %v2817
    %v4738 = vpack.c.b16 %v2850, %v2818
    %v4739 = vpack.c.b16 %v2851, %v2819
    %v4740 = vpack.c.b16 %v2852, %v2820
    %v4741 = vpack.c.b16 %v2853, %v2821
    %v4742 = vpack.c.b16 %v2854, %v2822
    %v4743 = vpack.c.b16 %v2855, %v2823
    %v4744 = vpack.c.b16 %v2856, %v2824
    %v4745 = vpack.c.b16 %v2857, %v2825
    %v4746 = vpack.c.b16 %v2858, %v2826
    %v4747 = vpack.c.b16 %v2859, %v2827
    %v4748 = vpack.c.b16 %v2860, %v2828
    %v4749 = vpack.c.b16 %v2861, %v2829
    %v4750 = vpack.c.b16 %v2862, %v2830
    %v4751 = vpack.c.b16 %v2863, %v2831
    %v4752 = vpack.c.b16 %v2864, %v2832
    %v4753 = vpack.c.b16 %v2865, %v2833
    %v4754 = vpack.c.b16 %v2866, %v2834
    %v4755 = vpack.c.b16 %v2867, %v2835
    %v4756 = vpack.c.b16 %v2868, %v2836
    %v4757 = vpack.c.b16 %v2869, %v2837
    %v4758 = vpack.c.b16 %v2870, %v2838
    %v4759 = vpack.c.b16 %v2871, %v2839
    %v4760 = vpack.c.b16 %v2872, %v2840
    %v4761 = vpack.c.b16 %v2873, %v2841
    %v4762 = vpack.c.b16 %v2874, %v2842
    %v4763 = vpack.c.b16 %v2875, %v2843
    %v4764 = vpack.c.b16 %v2908, %v2876
    %v4765 = vpack.c.b16 %v2909, %v2877
    %v4766 = vpack.c.b16 %v2910, %v2878
    %v4767 = vpack.c.b16 %v2911, %v2879
    %v4768 = vpack.c.b16 %v2912, %v2880
    %v4769 = vpack.c.b16 %v2913, %v2881
    %v4770 = vpack.c.b16 %v2914, %v2882
    %v4771 = vpack.c.b16 %v2915, %v2883
    %v4772 = vpack.c.b16 %v2916, %v2884
    %v4773 = vpack.c.b16 %v2917, %v2885
    %v4774 = vpack.c.b16 %v2918, %v2886
    %v4775 = vpack.c.b16 %v2919, %v2887
    %v4776 = vpack.c.b16 %v2920, %v2888
    %v4777 = vpack.c.b16 %v2921, %v2889
    %v4778 = vpack.c.b16 %v2922, %v2890
    %v4779 = vpack.c.b16 %v2923, %v2891
    %v4780 = vpack.c.b16 %v2924, %v2892
    %v4781 = vpack.c.b16 %v2925, %v2893
    %v4782 = vpack.c.b16 %v2926, %v2894
    %v4783 = vpack.c.b16 %v2927, %v2895
    %v4784 = vpack.c.b16 %v2928, %v2896
    %v4785 = vpack.c.b16 %v2929, %v2897
    %v4786 = vpack.c.b16 %v2930, %v2898
    %v4787 = vpack.c.b16 %v2931, %v2899
    %v4788 = vpack.c.b16 %v2932, %v2900
    %v4789 = vpack.c.b16 %v2933, %v2901
    %v4790 = vpack.c.b16 %v2934, %v2902
    %v4791 = vpack.c.b16 %v2935, %v2903
    %v4792 = vpack.c.b16 %v2936, %v2904
    %v4793 = vpack.c.b16 %v2937, %v2905
    %v4794 = vpack.c.b16 %v2938, %v2906
    %v4795 = vpack.c.b16 %v2939, %v2907
    %v4796 = vpack.c.b16 %v2972, %v2940
    %v4797 = vpack.c.b16 %v2973, %v2941
    %v4798 = vpack.c.b16 %v2974, %v2942
    %v4799 = vpack.c.b16 %v2975, %v2943
    %v4800 = vpack.c.b16 %v2976, %v2944
    %v4801 = vpack.c.b16 %v2977, %v2945
    %v4802 = vpack.c.b16 %v2978, %v2946
    %v4803 = vpack.c.b16 %v2979, %v2947
    %v4804 = vpack.c.b16 %v2980, %v2948
    %v4805 = vpack.c.b16 %v2981, %v2949
    %v4806 = vpack.c.b16 %v2982, %v2950
    %v4807 = vpack.c.b16 %v2983, %v2951
    %v4808 = vpack.c.b16 %v2984, %v2952
    %v4809 = vpack.c.b16 %v2985, %v2953
    %v4810 = vpack.c.b16 %v2986, %v2954
    %v4811 = vpack.c.b16 %v2987, %v2955
    %v4812 = vpack.c.b16 %v2988, %v2956
    %v4813 = vpack.c.b16 %v2989, %v2957
    %v4814 = vpack.c.b16 %v2990, %v2958
    %v4815 = vpack.c.b16 %v2991, %v2959
    %v4816 = vpack.c.b16 %v2992, %v2960
    %v4817 = vpack.c.b16 %v2993, %v2961
    %v4818 = vpack.c.b16 %v2994, %v2962
    %v4819 = vpack.c.b16 %v2995, %v2963
    %v4820 = vpack.c.b16 %v2996, %v2964
    %v4821 = vpack.c.b16 %v2997, %v2965
    %v4822 = vpack.c.b16 %v2998, %v2966
    %v4823 = vpack.c.b16 %v2999, %v2967
    %v4824 = vpack.c.b16 %v3000, %v2968
    %v4825 = vpack.c.b16 %v3001, %v2969
    %v4826 = vpack.c.b16 %v3002, %v2970
    %v4827 = vpack.c.b16 %v3003, %v2971
    %v4828 = vpack.c.b16 %v3036, %v3004
    %v4829 = vpack.c.b16 %v3037, %v3005
    %v4830 = vpack.c.b16 %v3038, %v3006
    %v4831 = vpack.c.b16 %v3039, %v3007
    %v4832 = vpack.c.b16 %v3040, %v3008
    %v4833 = vpack.c.b16 %v3041, %v3009
    %v4834 = vpack.c.b16 %v3042, %v3010
    %v4835 = vpack.c.b16 %v3043, %v3011
    %v4836 = vpack.c.b16 %v3044, %v3012
    %v4837 = vpack.c.b16 %v3045, %v3013
    %v4838 = vpack.c.b16 %v3046, %v3014
    %v4839 = vpack.c.b16 %v3047, %v3015
    %v4840 = vpack.c.b16 %v3048, %v3016
    %v4841 = vpack.c.b16 %v3049, %v3017
    %v4842 = vpack.c.b16 %v3050, %v3018
    %v4843 = vpack.c.b16 %v3051, %v3019
    %v4844 = vpack.c.b16 %v3052, %v3020
    %v4845 = vpack.c.b16 %v3053, %v3021
    %v4846 = vpack.c.b16 %v3054, %v3022
    %v4847 = vpack.c.b16 %v3055, %v3023
    %v4848 = vpack.c.b16 %v3056, %v3024
    %v4849 = vpack.c.b16 %v3057, %v3025
    %v4850 = vpack.c.b16 %v3058, %v3026
    %v4851 = vpack.c.b16 %v3059, %v3027
    %v4852 = vpack.c.b16 %v3060, %v3028
    %v4853 = vpack.c.b16 %v3061, %v3029
    %v4854 = vpack.c.b16 %v3062, %v3030
    %v4855 = vpack.c.b16 %v3063, %v3031
    %v4856 = vpack.c.b16 %v3064, %v3032
    %v4857 = vpack.c.b16 %v3065, %v3033
    %v4858 = vpack.c.b16 %v3066, %v3034
    %v4859 = vpack.c.b16 %v3067, %v3035
    %v4860 = vpack.c.b16 %v3100, %v3068
    %v4861 = vpack.c.b16 %v3101, %v3069
    %v4862 = vpack.c.b16 %v3102, %v3070
    %v4863 = vpack.c.b16 %v3103, %v3071
    %v4864 = vpack.c.b16 %v3104, %v3072
    %v4865 = vpack.c.b16 %v3105, %v3073
    %v4866 = vpack.c.b16 %v3106, %v3074
    %v4867 = vpack.c.b16 %v3107, %v3075
    %v4868 = vpack.c.b16 %v3108, %v3076
    %v4869 = vpack.c.b16 %v3109, %v3077
    %v4870 = vpack.c.b16 %v3110, %v3078
    %v4871 = vpack.c.b16 %v3111, %v3079
    %v4872 = vpack.c.b16 %v3112, %v3080
    %v4873 = vpack.c.b16 %v3113, %v3081
    %v4874 = vpack.c.b16 %v3114, %v3082
    %v4875 = vpack.c.b16 %v3115, %v3083
    %v4876 = vpack.c.b16 %v3116, %v3084
    %v4877 = vpack.c.b16 %v3117, %v3085
    %v4878 = vpack.c.b16 %v3118, %v3086
    %v4879 = vpack.c.b16 %v3119, %v3087
    %v4880 = vpack.c.b16 %v3120, %v3088
    %v4881 = vpack.c.b16 %v3121, %v3089
    %v4882 = vpack.c.b16 %v3122, %v3090
    %v4883 = vpack.c.b16 %v3123, %v3091
    %v4884 = vpack.c.b16 %v3124, %v3092
    %v4885 = vpack.c.b16 %v3125, %v3093
    %v4886 = vpack.c.b16 %v3126, %v3094
    %v4887 = vpack.c.b16 %v3127, %v3095
    %v4888 = vpack.c.b16 %v3128, %v3096
    %v4889 = vpack.c.b16 %v3129, %v3097
    %v4890 = vpack.c.b16 %v3130, %v3098
    %v4891 = vpack.c.b16 %v3131, %v3099
    %v4892 = vpack.c.b16 %v3164, %v3132
    %v4893 = vpack.c.b16 %v3165, %v3133
    %v4894 = vpack.c.b16 %v3166, %v3134
    %v4895 = vpack.c.b16 %v3167, %v3135
    %v4896 = vpack.c.b16 %v3168, %v3136
    %v4897 = vpack.c.b16 %v3169, %v3137
    %v4898 = vpack.c.b16 %v3170, %v3138
    %v4899 = vpack.c.b16 %v3171, %v3139
    %v4900 = vpack.c.b16 %v3172, %v3140
    %v4901 = vpack.c.b16 %v3173, %v3141
    %v4902 = vpack.c.b16 %v3174, %v3142
    %v4903 = vpack.c.b16 %v3175, %v3143
    %v4904 = vpack.c.b16 %v3176, %v3144
    %v4905 = vpack.c.b16 %v3177, %v3145
    %v4906 = vpack.c.b16 %v3178, %v3146
    %v4907 = vpack.c.b16 %v3179, %v3147
    %v4908 = vpack.c.b16 %v3180, %v3148
    %v4909 = vpack.c.b16 %v3181, %v3149
    %v4910 = vpack.c.b16 %v3182, %v3150
    %v4911 = vpack.c.b16 %v3183, %v3151
    %v4912 = vpack.c.b16 %v3184, %v3152
    %v4913 = vpack.c.b16 %v3185, %v3153
    %v4914 = vpack.c.b16 %v3186, %v3154
    %v4915 = vpack.c.b16 %v3187, %v3155
    %v4916 = vpack.c.b16 %v3188, %v3156
    %v4917 = vpack.c.b16 %v3189, %v3157
    %v4918 = vpack.c.b16 %v3190, %v3158
    %v4919 = vpack.c.b16 %v3191, %v3159
    %v4920 = vpack.c.b16 %v3192, %v3160
    %v4921 = vpack.c.b16 %v3193, %v3161
    %v4922 = vpack.c.b16 %v3194, %v3162
    %v4923 = vpack.c.b16 %v3195, %v3163
    %v4924 = vpack.c.b16 %v3228, %v3196
    %v4925 = vpack.c.b16 %v3229, %v3197
    %v4926 = vpack.c.b16 %v3230, %v3198
    %v4927 = vpack.c.b16 %v3231, %v3199
    %v4928 = vpack.c.b16 %v3232, %v3200
    %v4929 = vpack.c.b16 %v3233, %v3201
    %v4930 = vpack.c.b16 %v3234, %v3202
    %v4931 = vpack.c.b16 %v3235, %v3203
    %v4932 = vpack.c.b16 %v3236, %v3204
    %v4933 = vpack.c.b16 %v3237, %v3205
    %v4934 = vpack.c.b16 %v3238, %v3206
    %v4935 = vpack.c.b16 %v3239, %v3207
    %v4936 = vpack.c.b16 %v3240, %v3208
    %v4937 = vpack.c.b16 %v3241, %v3209
    %v4938 = vpack.c.b16 %v3242, %v3210
    %v4939 = vpack.c.b16 %v3243, %v3211
    %v4940 = vpack.c.b16 %v3244, %v3212
    %v4941 = vpack.c.b16 %v3245, %v3213
    %v4942 = vpack.c.b16 %v3246, %v3214
    %v4943 = vpack.c.b16 %v3247, %v3215
    %v4944 = vpack.c.b16 %v3248, %v3216
    %v4945 = vpack.c.b16 %v3249, %v3217
    %v4946 = vpack.c.b16 %v3250, %v3218
    %v4947 = vpack.c.b16 %v3251, %v3219
    %v4948 = vpack.c.b16 %v3252, %v3220
    %v4949 = vpack.c.b16 %v3253, %v3221
    %v4950 = vpack.c.b16 %v3254, %v3222
    %v4951 = vpack.c.b16 %v3255, %v3223
    %v4952 = vpack.c.b16 %v3256, %v3224
    %v4953 = vpack.c.b16 %v3257, %v3225
    %v4954 = vpack.c.b16 %v3258, %v3226
    %v4955 = vpack.c.b16 %v3259, %v3227
    %v4956 = vpack.c.b16 %v3292, %v3260
    %v4957 = vpack.c.b16 %v3293, %v3261
    %v4958 = vpack.c.b16 %v3294, %v3262
    %v4959 = vpack.c.b16 %v3295, %v3263
    %v4960 = vpack.c.b16 %v3296, %v3264
    %v4961 = vpack.c.b16 %v3297, %v3265
    %v4962 = vpack.c.b16 %v3298, %v3266
    %v4963 = vpack.c.b16 %v3299, %v3267
    %v4964 = vpack.c.b16 %v3300, %v3268
    %v4965 = vpack.c.b16 %v3301, %v3269
    %v4966 = vpack.c.b16 %v3302, %v3270
    %v4967 = vpack.c.b16 %v3303, %v3271
    %v4968 = vpack.c.b16 %v3304, %v3272
    %v4969 = vpack.c.b16 %v3305, %v3273
    %v4970 = vpack.c.b16 %v3306, %v3274
    %v4971 = vpack.c.b16 %v3307, %v3275
    %v4972 = vpack.c.b16 %v3308, %v3276
    %v4973 = vpack.c.b16 %v3309, %v3277
    %v4974 = vpack.c.b16 %v3310, %v3278
    %v4975 = vpack.c.b16 %v3311, %v3279
    %v4976 = vpack.c.b16 %v3312, %v3280
    %v4977 = vpack.c.b16 %v3313, %v3281
    %v4978 = vpack.c.b16 %v3314, %v3282
    %v4979 = vpack.c.b16 %v3315, %v3283
    %v4980 = vpack.c.b16 %v3316, %v3284
    %v4981 = vpack.c.b16 %v3317, %v3285
    %v4982 = vpack.c.b16 %v3318, %v3286
    %v4983 = vpack.c.b16 %v3319, %v3287
    %v4984 = vpack.c.b16 %v3320, %v3288
    %v4985 = vpack.c.b16 %v3321, %v3289
    %v4986 = vpack.c.b16 %v3322, %v3290
    %v4987 = vpack.c.b16 %v3323, %v3291
    %v4988 = vpack.c.b16 %v3356, %v3324
    %v4989 = vpack.c.b16 %v3357, %v3325
    %v4990 = vpack.c.b16 %v3358, %v3326
    %v4991 = vpack.c.b16 %v3359, %v3327
    %v4992 = vpack.c.b16 %v3360, %v3328
    %v4993 = vpack.c.b16 %v3361, %v3329
    %v4994 = vpack.c.b16 %v3362, %v3330
    %v4995 = vpack.c.b16 %v3363, %v3331
    %v4996 = vpack.c.b16 %v3364, %v3332
    %v4997 = vpack.c.b16 %v3365, %v3333
    %v4998 = vpack.c.b16 %v3366, %v3334
    %v4999 = vpack.c.b16 %v3367, %v3335
    %v5000 = vpack.c.b16 %v3368, %v3336
    %v5001 = vpack.c.b16 %v3369, %v3337
    %v5002 = vpack.c.b16 %v3370, %v3338
    %v5003 = vpack.c.b16 %v3371, %v3339
    %v5004 = vpack.c.b16 %v3372, %v3340
    %v5005 = vpack.c.b16 %v3373, %v3341
    %v5006 = vpack.c.b16 %v3374, %v3342
    %v5007 = vpack.c.b16 %v3375, %v3343
    %v5008 = vpack.c.b16 %v3376, %v3344
    %v5009 = vpack.c.b16 %v3377, %v3345
    %v5010 = vpack.c.b16 %v3378, %v3346
    %v5011 = vpack.c.b16 %v3379, %v3347
    %v5012 = vpack.c.b16 %v3380, %v3348
    %v5013 = vpack.c.b16 %v3381, %v3349
    %v5014 = vpack.c.b16 %v3382, %v3350
    %v5015 = vpack.c.b16 %v3383, %v3351
    %v5016 = vpack.c.b16 %v3384, %v3352
    %v5017 = vpack.c.b16 %v3385, %v3353
    %v5018 = vpack.c.b16 %v3386, %v3354
    %v5019 = vpack.c.b16 %v3387, %v3355
    %v5020 = vpack.c.b16 %v3420, %v3388
    %v5021 = vpack.c.b16 %v3421, %v3389
    %v5022 = vpack.c.b16 %v3422, %v3390
    %v5023 = vpack.c.b16 %v3423, %v3391
    %v5024 = vpack.c.b16 %v3424, %v3392
    %v5025 = vpack.c.b16 %v3425, %v3393
    %v5026 = vpack.c.b16 %v3426, %v3394
    %v5027 = vpack.c.b16 %v3427, %v3395
    %v5028 = vpack.c.b16 %v3428, %v3396
    %v5029 = vpack.c.b16 %v3429, %v3397
    %v5030 = vpack.c.b16 %v3430, %v3398
    %v5031 = vpack.c.b16 %v3431, %v3399
    %v5032 = vpack.c.b16 %v3432, %v3400
    %v5033 = vpack.c.b16 %v3433, %v3401
    %v5034 = vpack.c.b16 %v3434, %v3402
    %v5035 = vpack.c.b16 %v3435, %v3403
    %v5036 = vpack.c.b16 %v3436, %v3404
    %v5037 = vpack.c.b16 %v3437, %v3405
    %v5038 = vpack.c.b16 %v3438, %v3406
    %v5039 = vpack.c.b16 %v3439, %v3407
    %v5040 = vpack.c.b16 %v3440, %v3408
    %v5041 = vpack.c.b16 %v3441, %v3409
    %v5042 = vpack.c.b16 %v3442, %v3410
    %v5043 = vpack.c.b16 %v3443, %v3411
    %v5044 = vpack.c.b16 %v3444, %v3412
    %v5045 = vpack.c.b16 %v3445, %v3413
    %v5046 = vpack.c.b16 %v3446, %v3414
    %v5047 = vpack.c.b16 %v3447, %v3415
    %v5048 = vpack.c.b16 %v3448, %v3416
    %v5049 = vpack.c.b16 %v3449, %v3417
    %v5050 = vpack.c.b16 %v3450, %v3418
    %v5051 = vpack.c.b16 %v3451, %v3419
    %v5052 = vpack.c.b16 %v3484, %v3452
    %v5053 = vpack.c.b16 %v3485, %v3453
    %v5054 = vpack.c.b16 %v3486, %v3454
    %v5055 = vpack.c.b16 %v3487, %v3455
    %v5056 = vpack.c.b16 %v3488, %v3456
    %v5057 = vpack.c.b16 %v3489, %v3457
    %v5058 = vpack.c.b16 %v3490, %v3458
    %v5059 = vpack.c.b16 %v3491, %v3459
    %v5060 = vpack.c.b16 %v3492, %v3460
    %v5061 = vpack.c.b16 %v3493, %v3461
    %v5062 = vpack.c.b16 %v3494, %v3462
    %v5063 = vpack.c.b16 %v3495, %v3463
    %v5064 = vpack.c.b16 %v3496, %v3464
    %v5065 = vpack.c.b16 %v3497, %v3465
    %v5066 = vpack.c.b16 %v3498, %v3466
    %v5067 = vpack.c.b16 %v3499, %v3467
    %v5068 = vpack.c.b16 %v3500, %v3468
    %v5069 = vpack.c.b16 %v3501, %v3469
    %v5070 = vpack.c.b16 %v3502, %v3470
    %v5071 = vpack.c.b16 %v3503, %v3471
    %v5072 = vpack.c.b16 %v3504, %v3472
    %v5073 = vpack.c.b16 %v3505, %v3473
    %v5074 = vpack.c.b16 %v3506, %v3474
    %v5075 = vpack.c.b16 %v3507, %v3475
    %v5076 = vpack.c.b16 %v3508, %v3476
    %v5077 = vpack.c.b16 %v3509, %v3477
    %v5078 = vpack.c.b16 %v3510, %v3478
    %v5079 = vpack.c.b16 %v3511, %v3479
    %v5080 = vpack.c.b16 %v3512, %v3480
    %v5081 = vpack.c.b16 %v3513, %v3481
    %v5082 = vpack.c.b16 %v3514, %v3482
    %v5083 = vpack.c.b16 %v3515, %v3483
    %v5084 = vpack.c.b16 %v3548, %v3516
    %v5085 = vpack.c.b16 %v3549, %v3517
    %v5086 = vpack.c.b16 %v3550, %v3518
    %v5087 = vpack.c.b16 %v3551, %v3519
    %v5088 = vpack.c.b16 %v3552, %v3520
    %v5089 = vpack.c.b16 %v3553, %v3521
    %v5090 = vpack.c.b16 %v3554, %v3522
    %v5091 = vpack.c.b16 %v3555, %v3523
    %v5092 = vpack.c.b16 %v3556, %v3524
    %v5093 = vpack.c.b16 %v3557, %v3525
    %v5094 = vpack.c.b16 %v3558, %v3526
    %v5095 = vpack.c.b16 %v3559, %v3527
    %v5096 = vpack.c.b16 %v3560, %v3528
    %v5097 = vpack.c.b16 %v3561, %v3529
    %v5098 = vpack.c.b16 %v3562, %v3530
    %v5099 = vpack.c.b16 %v3563, %v3531
    %v5100 = vpack.c.b16 %v3564, %v3532
    %v5101 = vpack.c.b16 %v3565, %v3533
    %v5102 = vpack.c.b16 %v3566, %v3534
    %v5103 = vpack.c.b16 %v3567, %v3535
    %v5104 = vpack.c.b16 %v3568, %v3536
    %v5105 = vpack.c.b16 %v3569, %v3537
    %v5106 = vpack.c.b16 %v3570, %v3538
    %v5107 = vpack.c.b16 %v3571, %v3539
    %v5108 = vpack.c.b16 %v3572, %v3540
    %v5109 = vpack.c.b16 %v3573, %v3541
    %v5110 = vpack.c.b16 %v3574, %v3542
    %v5111 = vpack.c.b16 %v3575, %v3543
    %v5112 = vpack.c.b16 %v3576, %v3544
    %v5113 = vpack.c.b16 %v3577, %v3545
    %v5114 = vpack.c.b16 %v3578, %v3546
    %v5115 = vpack.c.b16 %v3579, %v3547
    %v5116 = vpack.c.b16 %v3612, %v3580
    %v5117 = vpack.c.b16 %v3613, %v3581
    %v5118 = vpack.c.b16 %v3614, %v3582
    %v5119 = vpack.c.b16 %v3615, %v3583
    %v5120 = vpack.c.b16 %v3616, %v3584
    %v5121 = vpack.c.b16 %v3617, %v3585
    %v5122 = vpack.c.b16 %v3618, %v3586
    %v5123 = vpack.c.b16 %v3619, %v3587
    %v5124 = vpack.c.b16 %v3620, %v3588
    %v5125 = vpack.c.b16 %v3621, %v3589
    %v5126 = vpack.c.b16 %v3622, %v3590
    %v5127 = vpack.c.b16 %v3623, %v3591
    %v5128 = vpack.c.b16 %v3624, %v3592
    %v5129 = vpack.c.b16 %v3625, %v3593
    %v5130 = vpack.c.b16 %v3626, %v3594
    %v5131 = vpack.c.b16 %v3627, %v3595
    %v5132 = vpack.c.b16 %v3628, %v3596
    %v5133 = vpack.c.b16 %v3629, %v3597
    %v5134 = vpack.c.b16 %v3630, %v3598
    %v5135 = vpack.c.b16 %v3631, %v3599
    %v5136 = vpack.c.b16 %v3632, %v3600
    %v5137 = vpack.c.b16 %v3633, %v3601
    %v5138 = vpack.c.b16 %v3634, %v3602
    %v5139 = vpack.c.b16 %v3635, %v3603
    %v5140 = vpack.c.b16 %v3636, %v3604
    %v5141 = vpack.c.b16 %v3637, %v3605
    %v5142 = vpack.c.b16 %v3638, %v3606
    %v5143 = vpack.c.b16 %v3639, %v3607
    %v5144 = vpack.c.b16 %v3640, %v3608
    %v5145 = vpack.c.b16 %v3641, %v3609
    %v5146 = vpack.c.b16 %v3642, %v3610
    %v5147 = vpack.c.b16 %v3643, %v3611
    %v5148 = vpack.c.b16 %v3676, %v3644
    %v5149 = vpack.c.b16 %v3677, %v3645
    %v5150 = vpack.c.b16 %v3678, %v3646
    %v5151 = vpack.c.b16 %v3679, %v3647
    %v5152 = vpack.c.b16 %v3680, %v3648
    %v5153 = vpack.c.b16 %v3681, %v3649
    %v5154 = vpack.c.b16 %v3682, %v3650
    %v5155 = vpack.c.b16 %v3683, %v3651
    %v5156 = vpack.c.b16 %v3684, %v3652
    %v5157 = vpack.c.b16 %v3685, %v3653
    %v5158 = vpack.c.b16 %v3686, %v3654
    %v5159 = vpack.c.b16 %v3687, %v3655
    %v5160 = vpack.c.b16 %v3688, %v3656
    %v5161 = vpack.c.b16 %v3689, %v3657
    %v5162 = vpack.c.b16 %v3690, %v3658
    %v5163 = vpack.c.b16 %v3691, %v3659
    %v5164 = vpack.c.b16 %v3692, %v3660
    %v5165 = vpack.c.b16 %v3693, %v3661
    %v5166 = vpack.c.b16 %v3694, %v3662
    %v5167 = vpack.c.b16 %v3695, %v3663
    %v5168 = vpack.c.b16 %v3696, %v3664
    %v5169 = vpack.c.b16 %v3697, %v3665
    %v5170 = vpack.c.b16 %v3698, %v3666
    %v5171 = vpack.c.b16 %v3699, %v3667
    %v5172 = vpack.c.b16 %v3700, %v3668
    %v5173 = vpack.c.b16 %v3701, %v3669
    %v5174 = vpack.c.b16 %v3702, %v3670
    %v5175 = vpack.c.b16 %v3703, %v3671
    %v5176 = vpack.c.b16 %v3704, %v3672
    %v5177 = vpack.c.b16 %v3705, %v3673
    %v5178 = vpack.c.b16 %v3706, %v3674
    %v5179 = vpack.c.b16 %v3707, %v3675
    %v5180 = vpack.c.b16 %v3740, %v3708
    %v5181 = vpack.c.b16 %v3741, %v3709
    %v5182 = vpack.c.b16 %v3742, %v3710
    %v5183 = vpack.c.b16 %v3743, %v3711
    %v5184 = vpack.c.b16 %v3744, %v3712
    %v5185 = vpack.c.b16 %v3745, %v3713
    %v5186 = vpack.c.b16 %v3746, %v3714
    %v5187 = vpack.c.b16 %v3747, %v3715
    %v5188 = vpack.c.b16 %v3748, %v3716
    %v5189 = vpack.c.b16 %v3749, %v3717
    %v5190 = vpack.c.b16 %v3750, %v3718
    %v5191 = vpack.c.b16 %v3751, %v3719
    %v5192 = vpack.c.b16 %v3752, %v3720
    %v5193 = vpack.c.b16 %v3753, %v3721
    %v5194 = vpack.c.b16 %v3754, %v3722
    %v5195 = vpack.c.b16 %v3755, %v3723
    %v5196 = vpack.c.b16 %v3756, %v3724
    %v5197 = vpack.c.b16 %v3757, %v3725
    %v5198 = vpack.c.b16 %v3758, %v3726
    %v5199 = vpack.c.b16 %v3759, %v3727
    %v5200 = vpack.c.b16 %v3760, %v3728
    %v5201 = vpack.c.b16 %v3761, %v3729
    %v5202 = vpack.c.b16 %v3762, %v3730
    %v5203 = vpack.c.b16 %v3763, %v3731
    %v5204 = vpack.c.b16 %v3764, %v3732
    %v5205 = vpack.c.b16 %v3765, %v3733
    %v5206 = vpack.c.b16 %v3766, %v3734
    %v5207 = vpack.c.b16 %v3767, %v3735
    %v5208 = vpack.c.b16 %v3768, %v3736
    %v5209 = vpack.c.b16 %v3769, %v3737
    %v5210 = vpack.c.b16 %v3770, %v3738
    %v5211 = vpack.c.b16 %v3771, %v3739
    %v5212 = vpack.c.b16 %v3804, %v3772
    %v5213 = vpack.c.b16 %v3805, %v3773
    %v5214 = vpack.c.b16 %v3806, %v3774
    %v5215 = vpack.c.b16 %v3807, %v3775
    %v5216 = vpack.c.b16 %v3808, %v3776
    %v5217 = vpack.c.b16 %v3809, %v3777
    %v5218 = vpack.c.b16 %v3810, %v3778
    %v5219 = vpack.c.b16 %v3811, %v3779
    %v5220 = vpack.c.b16 %v3812, %v3780
    %v5221 = vpack.c.b16 %v3813, %v3781
    %v5222 = vpack.c.b16 %v3814, %v3782
    %v5223 = vpack.c.b16 %v3815, %v3783
    %v5224 = vpack.c.b16 %v3816, %v3784
    %v5225 = vpack.c.b16 %v3817, %v3785
    %v5226 = vpack.c.b16 %v3818, %v3786
    %v5227 = vpack.c.b16 %v3819, %v3787
    %v5228 = vpack.c.b16 %v3820, %v3788
    %v5229 = vpack.c.b16 %v3821, %v3789
    %v5230 = vpack.c.b16 %v3822, %v3790
    %v5231 = vpack.c.b16 %v3823, %v3791
    %v5232 = vpack.c.b16 %v3824, %v3792
    %v5233 = vpack.c.b16 %v3825, %v3793
    %v5234 = vpack.c.b16 %v3826, %v3794
    %v5235 = vpack.c.b16 %v3827, %v3795
    %v5236 = vpack.c.b16 %v3828, %v3796
    %v5237 = vpack.c.b16 %v3829, %v3797
    %v5238 = vpack.c.b16 %v3830, %v3798
    %v5239 = vpack.c.b16 %v3831, %v3799
    %v5240 = vpack.c.b16 %v3832, %v3800
    %v5241 = vpack.c.b16 %v3833, %v3801
    %v5242 = vpack.c.b16 %v3834, %v3802
    %v5243 = vpack.c.b16 %v3835, %v3803
    %v5244 = vpack.c.b16 %v3868, %v3836
    %v5245 = vpack.c.b16 %v3869, %v3837
    %v5246 = vpack.c.b16 %v3870, %v3838
    %v5247 = vpack.c.b16 %v3871, %v3839
    %v5248 = vpack.c.b16 %v3872, %v3840
    %v5249 = vpack.c.b16 %v3873, %v3841
    %v5250 = vpack.c.b16 %v3874, %v3842
    %v5251 = vpack.c.b16 %v3875, %v3843
    %v5252 = vpack.c.b16 %v3876, %v3844
    %v5253 = vpack.c.b16 %v3877, %v3845
    %v5254 = vpack.c.b16 %v3878, %v3846
    %v5255 = vpack.c.b16 %v3879, %v3847
    %v5256 = vpack.c.b16 %v3880, %v3848
    %v5257 = vpack.c.b16 %v3881, %v3849
    %v5258 = vpack.c.b16 %v3882, %v3850
    %v5259 = vpack.c.b16 %v3883, %v3851
    %v5260 = vpack.c.b16 %v3884, %v3852
    %v5261 = vpack.c.b16 %v3885, %v3853
    %v5262 = vpack.c.b16 %v3886, %v3854
    %v5263 = vpack.c.b16 %v3887, %v3855
    %v5264 = vpack.c.b16 %v3888, %v3856
    %v5265 = vpack.c.b16 %v3889, %v3857
    %v5266 = vpack.c.b16 %v3890, %v3858
    %v5267 = vpack.c.b16 %v3891, %v3859
    %v5268 = vpack.c.b16 %v3892, %v3860
    %v5269 = vpack.c.b16 %v3893, %v3861
    %v5270 = vpack.c.b16 %v3894, %v3862
    %v5271 = vpack.c.b16 %v3895, %v3863
    %v5272 = vpack.c.b16 %v3896, %v3864
    %v5273 = vpack.c.b16 %v3897, %v3865
    %v5274 = vpack.c.b16 %v3898, %v3866
    %v5275 = vpack.c.b16 %v3899, %v3867
    %v5276 = vpack.c.b16 %v3932, %v3900
    %v5277 = vpack.c.b16 %v3933, %v3901
    %v5278 = vpack.c.b16 %v3934, %v3902
    %v5279 = vpack.c.b16 %v3935, %v3903
    %v5280 = vpack.c.b16 %v3936, %v3904
    %v5281 = vpack.c.b16 %v3937, %v3905
    %v5282 = vpack.c.b16 %v3938, %v3906
    %v5283 = vpack.c.b16 %v3939, %v3907
    %v5284 = vpack.c.b16 %v3940, %v3908
    %v5285 = vpack.c.b16 %v3941, %v3909
    %v5286 = vpack.c.b16 %v3942, %v3910
    %v5287 = vpack.c.b16 %v3943, %v3911
    %v5288 = vpack.c.b16 %v3944, %v3912
    %v5289 = vpack.c.b16 %v3945, %v3913
    %v5290 = vpack.c.b16 %v3946, %v3914
    %v5291 = vpack.c.b16 %v3947, %v3915
    %v5292 = vpack.c.b16 %v3948, %v3916
    %v5293 = vpack.c.b16 %v3949, %v3917
    %v5294 = vpack.c.b16 %v3950, %v3918
    %v5295 = vpack.c.b16 %v3951, %v3919
    %v5296 = vpack.c.b16 %v3952, %v3920
    %v5297 = vpack.c.b16 %v3953, %v3921
    %v5298 = vpack.c.b16 %v3954, %v3922
    %v5299 = vpack.c.b16 %v3955, %v3923
    %v5300 = vpack.c.b16 %v3956, %v3924
    %v5301 = vpack.c.b16 %v3957, %v3925
    %v5302 = vpack.c.b16 %v3958, %v3926
    %v5303 = vpack.c.b16 %v3959, %v3927
    %v5304 = vpack.c.b16 %v3960, %v3928
    %v5305 = vpack.c.b16 %v3961, %v3929
    %v5306 = vpack.c.b16 %v3962, %v3930
    %v5307 = vpack.c.b16 %v3963, %v3931
    %v5308 = vpack.c.b16 %v3996, %v3964
    %v5309 = vpack.c.b16 %v3997, %v3965
    %v5310 = vpack.c.b16 %v3998, %v3966
    %v5311 = vpack.c.b16 %v3999, %v3967
    %v5312 = vpack.c.b16 %v4000, %v3968
    %v5313 = vpack.c.b16 %v4001, %v3969
    %v5314 = vpack.c.b16 %v4002, %v3970
    %v5315 = vpack.c.b16 %v4003, %v3971
    %v5316 = vpack.c.b16 %v4004, %v3972
    %v5317 = vpack.c.b16 %v4005, %v3973
    %v5318 = vpack.c.b16 %v4006, %v3974
    %v5319 = vpack.c.b16 %v4007, %v3975
    %v5320 = vpack.c.b16 %v4008, %v3976
    %v5321 = vpack.c.b16 %v4009, %v3977
    %v5322 = vpack.c.b16 %v4010, %v3978
    %v5323 = vpack.c.b16 %v4011, %v3979
    %v5324 = vpack.c.b16 %v4012, %v3980
    %v5325 = vpack.c.b16 %v4013, %v3981
    %v5326 = vpack.c.b16 %v4014, %v3982
    %v5327 = vpack.c.b16 %v4015, %v3983
    %v5328 = vpack.c.b16 %v4016, %v3984
    %v5329 = vpack.c.b16 %v4017, %v3985
    %v5330 = vpack.c.b16 %v4018, %v3986
    %v5331 = vpack.c.b16 %v4019, %v3987
    %v5332 = vpack.c.b16 %v4020, %v3988
    %v5333 = vpack.c.b16 %v4021, %v3989
    %v5334 = vpack.c.b16 %v4022, %v3990
    %v5335 = vpack.c.b16 %v4023, %v3991
    %v5336 = vpack.c.b16 %v4024, %v3992
    %v5337 = vpack.c.b16 %v4025, %v3993
    %v5338 = vpack.c.b16 %v4026, %v3994
    %v5339 = vpack.c.b16 %v4027, %v3995
    %v5340 = vpack.c.b16 %v4060, %v4028
    %v5341 = vpack.c.b16 %v4061, %v4029
    %v5342 = vpack.c.b16 %v4062, %v4030
    %v5343 = vpack.c.b16 %v4063, %v4031
    %v5344 = vpack.c.b16 %v4064, %v4032
    %v5345 = vpack.c.b16 %v4065, %v4033
    %v5346 = vpack.c.b16 %v4066, %v4034
    %v5347 = vpack.c.b16 %v4067, %v4035
    %v5348 = vpack.c.b16 %v4068, %v4036
    %v5349 = vpack.c.b16 %v4069, %v4037
    %v5350 = vpack.c.b16 %v4070, %v4038
    %v5351 = vpack.c.b16 %v4071, %v4039
    %v5352 = vpack.c.b16 %v4072, %v4040
    %v5353 = vpack.c.b16 %v4073, %v4041
    %v5354 = vpack.c.b16 %v4074, %v4042
    %v5355 = vpack.c.b16 %v4075, %v4043
    %v5356 = vpack.c.b16 %v4076, %v4044
    %v5357 = vpack.c.b16 %v4077, %v4045
    %v5358 = vpack.c.b16 %v4078, %v4046
    %v5359 = vpack.c.b16 %v4079, %v4047
    %v5360 = vpack.c.b16 %v4080, %v4048
    %v5361 = vpack.c.b16 %v4081, %v4049
    %v5362 = vpack.c.b16 %v4082, %v4050
    %v5363 = vpack.c.b16 %v4083, %v4051
    %v5364 = vpack.c.b16 %v4084, %v4052
    %v5365 = vpack.c.b16 %v4085, %v4053
    %v5366 = vpack.c.b16 %v4086, %v4054
    %v5367 = vpack.c.b16 %v4087, %v4055
    %v5368 = vpack.c.b16 %v4088, %v4056
    %v5369 = vpack.c.b16 %v4089, %v4057
    %v5370 = vpack.c.b16 %v4090, %v4058
    %v5371 = vpack.c.b16 %v4091, %v4059
    %v5372 = vpack.c.b16 %v4124, %v4092
    %v5373 = vpack.c.b16 %v4125, %v4093
    %v5374 = vpack.c.b16 %v4126, %v4094
    %v5375 = vpack.c.b16 %v4127, %v4095
    %v5376 = vpack.c.b16 %v4128, %v4096
    %v5377 = vpack.c.b16 %v4129, %v4097
    %v5378 = vpack.c.b16 %v4130, %v4098
    %v5379 = vpack.c.b16 %v4131, %v4099
    %v5380 = vpack.c.b16 %v4132, %v4100
    %v5381 = vpack.c.b16 %v4133, %v4101
    %v5382 = vpack.c.b16 %v4134, %v4102
    %v5383 = vpack.c.b16 %v4135, %v4103
    %v5384 = vpack.c.b16 %v4136, %v4104
    %v5385 = vpack.c.b16 %v4137, %v4105
    %v5386 = vpack.c.b16 %v4138, %v4106
    %v5387 = vpack.c.b16 %v4139, %v4107
    %v5388 = vpack.c.b16 %v4140, %v4108
    %v5389 = vpack.c.b16 %v4141, %v4109
    %v5390 = vpack.c.b16 %v4142, %v4110
    %v5391 = vpack.c.b16 %v4143, %v4111
    %v5392 = vpack.c.b16 %v4144, %v4112
    %v5393 = vpack.c.b16 %v4145, %v4113
    %v5394 = vpack.c.b16 %v4146, %v4114
    %v5395 = vpack.c.b16 %v4147, %v4115
    %v5396 = vpack.c.b16 %v4148, %v4116
    %v5397 = vpack.c.b16 %v4149, %v4117
    %v5398 = vpack.c.b16 %v4150, %v4118
    %v5399 = vpack.c.b16 %v4151, %v4119
    %v5400 = vpack.c.b16 %v4152, %v4120
    %v5401 = vpack.c.b16 %v4153, %v4121
    %v5402 = vpack.c.b16 %v4154, %v4122
    %v5403 = vpack.c.b16 %v4155, %v4123
    %v5404 = vpack.c.b16 %v4188, %v4156
    %v5405 = vpack.c.b16 %v4189, %v4157
    %v5406 = vpack.c.b16 %v4190, %v4158
    %v5407 = vpack.c.b16 %v4191, %v4159
    %v5408 = vpack.c.b16 %v4192, %v4160
    %v5409 = vpack.c.b16 %v4193, %v4161
    %v5410 = vpack.c.b16 %v4194, %v4162
    %v5411 = vpack.c.b16 %v4195, %v4163
    %v5412 = vpack.c.b16 %v4196, %v4164
    %v5413 = vpack.c.b16 %v4197, %v4165
    %v5414 = vpack.c.b16 %v4198, %v4166
    %v5415 = vpack.c.b16 %v4199, %v4167
    %v5416 = vpack.c.b16 %v4200, %v4168
    %v5417 = vpack.c.b16 %v4201, %v4169
    %v5418 = vpack.c.b16 %v4202, %v4170
    %v5419 = vpack.c.b16 %v4203, %v4171
    %v5420 = vpack.c.b16 %v4204, %v4172
    %v5421 = vpack.c.b16 %v4205, %v4173
    %v5422 = vpack.c.b16 %v4206, %v4174
    %v5423 = vpack.c.b16 %v4207, %v4175
    %v5424 = vpack.c.b16 %v4208, %v4176
    %v5425 = vpack.c.b16 %v4209, %v4177
    %v5426 = vpack.c.b16 %v4210, %v4178
    %v5427 = vpack.c.b16 %v4211, %v4179
    %v5428 = vpack.c.b16 %v4212, %v4180
    %v5429 = vpack.c.b16 %v4213, %v4181
    %v5430 = vpack.c.b16 %v4214, %v4182
    %v5431 = vpack.c.b16 %v4215, %v4183
    %v5432 = vpack.c.b16 %v4216, %v4184
    %v5433 = vpack.c.b16 %v4217, %v4185
    %v5434 = vpack.c.b16 %v4218, %v4186
    %v5435 = vpack.c.b16 %v4219, %v4187
    %v5436 = vpack.c.b16 %v4252, %v4220
    %v5437 = vpack.c.b16 %v4253, %v4221
    %v5438 = vpack.c.b16 %v4254, %v4222
    %v5439 = vpack.c.b16 %v4255, %v4223
    %v5440 = vpack.c.b16 %v4256, %v4224
    %v5441 = vpack.c.b16 %v4257, %v4225
    %v5442 = vpack.c.b16 %v4258, %v4226
    %v5443 = vpack.c.b16 %v4259, %v4227
    %v5444 = vpack.c.b16 %v4260, %v4228
    %v5445 = vpack.c.b16 %v4261, %v4229
    %v5446 = vpack.c.b16 %v4262, %v4230
    %v5447 = vpack.c.b16 %v4263, %v4231
    %v5448 = vpack.c.b16 %v4264, %v4232
    %v5449 = vpack.c.b16 %v4265, %v4233
    %v5450 = vpack.c.b16 %v4266, %v4234
    %v5451 = vpack.c.b16 %v4267, %v4235
    %v5452 = vpack.c.b16 %v4268, %v4236
    %v5453 = vpack.c.b16 %v4269, %v4237
    %v5454 = vpack.c.b16 %v4270, %v4238
    %v5455 = vpack.c.b16 %v4271, %v4239
    %v5456 = vpack.c.b16 %v4272, %v4240
    %v5457 = vpack.c.b16 %v4273, %v4241
    %v5458 = vpack.c.b16 %v4274, %v4242
    %v5459 = vpack.c.b16 %v4275, %v4243
    %v5460 = vpack.c.b16 %v4276, %v4244
    %v5461 = vpack.c.b16 %v4277, %v4245
    %v5462 = vpack.c.b16 %v4278, %v4246
    %v5463 = vpack.c.b16 %v4279, %v4247
    %v5464 = vpack.c.b16 %v4280, %v4248
    %v5465 = vpack.c.b16 %v4281, %v4249
    %v5466 = vpack.c.b16 %v4282, %v4250
    %v5467 = vpack.c.b16 %v4283, %v4251
    %v5468 = vpack.c.b16 %v4316, %v4284
    %v5469 = vpack.c.b16 %v4317, %v4285
    %v5470 = vpack.c.b16 %v4318, %v4286
    %v5471 = vpack.c.b16 %v4319, %v4287
    %v5472 = vpack.c.b16 %v4320, %v4288
    %v5473 = vpack.c.b16 %v4321, %v4289
    %v5474 = vpack.c.b16 %v4322, %v4290
    %v5475 = vpack.c.b16 %v4323, %v4291
    %v5476 = vpack.c.b16 %v4324, %v4292
    %v5477 = vpack.c.b16 %v4325, %v4293
    %v5478 = vpack.c.b16 %v4326, %v4294
    %v5479 = vpack.c.b16 %v4327, %v4295
    %v5480 = vpack.c.b16 %v4328, %v4296
    %v5481 = vpack.c.b16 %v4329, %v4297
    %v5482 = vpack.c.b16 %v4330, %v4298
    %v5483 = vpack.c.b16 %v4331, %v4299
    %v5484 = vpack.c.b16 %v4332, %v4300
    %v5485 = vpack.c.b16 %v4333, %v4301
    %v5486 = vpack.c.b16 %v4334, %v4302
    %v5487 = vpack.c.b16 %v4335, %v4303
    %v5488 = vpack.c.b16 %v4336, %v4304
    %v5489 = vpack.c.b16 %v4337, %v4305
    %v5490 = vpack.c.b16 %v4338, %v4306
    %v5491 = vpack.c.b16 %v4339, %v4307
    %v5492 = vpack.c.b16 %v4340, %v4308
    %v5493 = vpack.c.b16 %v4341, %v4309
    %v5494 = vpack.c.b16 %v4342, %v4310
    %v5495 = vpack.c.b16 %v4343, %v4311
    %v5496 = vpack.c.b16 %v4344, %v4312
    %v5497 = vpack.c.b16 %v4345, %v4313
    %v5498 = vpack.c.b16 %v4346, %v4314
    %v5499 = vpack.c.b16 %v4347, %v4315
    %v5500 = vpack.c.b16 %v4380, %v4348
    %v5501 = vpack.c.b16 %v4381, %v4349
    %v5502 = vpack.c.b16 %v4382, %v4350
    %v5503 = vpack.c.b16 %v4383, %v4351
    %v5504 = vpack.c.b16 %v4384, %v4352
    %v5505 = vpack.c.b16 %v4385, %v4353
    %v5506 = vpack.c.b16 %v4386, %v4354
    %v5507 = vpack.c.b16 %v4387, %v4355
    %v5508 = vpack.c.b16 %v4388, %v4356
    %v5509 = vpack.c.b16 %v4389, %v4357
    %v5510 = vpack.c.b16 %v4390, %v4358
    %v5511 = vpack.c.b16 %v4391, %v4359
    %v5512 = vpack.c.b16 %v4392, %v4360
    %v5513 = vpack.c.b16 %v4393, %v4361
    %v5514 = vpack.c.b16 %v4394, %v4362
    %v5515 = vpack.c.b16 %v4395, %v4363
    %v5516 = vpack.c.b16 %v4396, %v4364
    %v5517 = vpack.c.b16 %v4397, %v4365
    %v5518 = vpack.c.b16 %v4398, %v4366
    %v5519 = vpack.c.b16 %v4399, %v4367
    %v5520 = vpack.c.b16 %v4400, %v4368
    %v5521 = vpack.c.b16 %v4401, %v4369
    %v5522 = vpack.c.b16 %v4402, %v4370
    %v5523 = vpack.c.b16 %v4403, %v4371
    %v5524 = vpack.c.b16 %v4404, %v4372
    %v5525 = vpack.c.b16 %v4405, %v4373
    %v5526 = vpack.c.b16 %v4406, %v4374
    %v5527 = vpack.c.b16 %v4407, %v4375
    %v5528 = vpack.c.b16 %v4408, %v4376
    %v5529 = vpack.c.b16 %v4409, %v4377
    %v5530 = vpack.c.b16 %v4410, %v4378
    %v5531 = vpack.c.b16 %v4411, %v4379
    %v5532 = vpack.c.b16 %v4444, %v4412
    %v5533 = vpack.c.b16 %v4445, %v4413
    %v5534 = vpack.c.b16 %v4446, %v4414
    %v5535 = vpack.c.b16 %v4447, %v4415
    %v5536 = vpack.c.b16 %v4448, %v4416
    %v5537 = vpack.c.b16 %v4449, %v4417
    %v5538 = vpack.c.b16 %v4450, %v4418
    %v5539 = vpack.c.b16 %v4451, %v4419
    %v5540 = vpack.c.b16 %v4452, %v4420
    %v5541 = vpack.c.b16 %v4453, %v4421
    %v5542 = vpack.c.b16 %v4454, %v4422
    %v5543 = vpack.c.b16 %v4455, %v4423
    %v5544 = vpack.c.b16 %v4456, %v4424
    %v5545 = vpack.c.b16 %v4457, %v4425
    %v5546 = vpack.c.b16 %v4458, %v4426
    %v5547 = vpack.c.b16 %v4459, %v4427
    %v5548 = vpack.c.b16 %v4460, %v4428
    %v5549 = vpack.c.b16 %v4461, %v4429
    %v5550 = vpack.c.b16 %v4462, %v4430
    %v5551 = vpack.c.b16 %v4463, %v4431
    %v5552 = vpack.c.b16 %v4464, %v4432
    %v5553 = vpack.c.b16 %v4465, %v4433
    %v5554 = vpack.c.b16 %v4466, %v4434
    %v5555 = vpack.c.b16 %v4467, %v4435
    %v5556 = vpack.c.b16 %v4468, %v4436
    %v5557 = vpack.c.b16 %v4469, %v4437
    %v5558 = vpack.c.b16 %v4470, %v4438
    %v5559 = vpack.c.b16 %v4471, %v4439
    %v5560 = vpack.c.b16 %v4472, %v4440
    %v5561 = vpack.c.b16 %v4473, %v4441
    %v5562 = vpack.c.b16 %v4474, %v4442
    %v5563 = vpack.c.b16 %v4475, %v4443
    %v5564 = vpack.c.b16 %v4508, %v4476
    %v5565 = vpack.c.b16 %v4509, %v4477
    %v5566 = vpack.c.b16 %v4510, %v4478
    %v5567 = vpack.c.b16 %v4511, %v4479
    %v5568 = vpack.c.b16 %v4512, %v4480
    %v5569 = vpack.c.b16 %v4513, %v4481
    %v5570 = vpack.c.b16 %v4514, %v4482
    %v5571 = vpack.c.b16 %v4515, %v4483
    %v5572 = vpack.c.b16 %v4516, %v4484
    %v5573 = vpack.c.b16 %v4517, %v4485
    %v5574 = vpack.c.b16 %v4518, %v4486
    %v5575 = vpack.c.b16 %v4519, %v4487
    %v5576 = vpack.c.b16 %v4520, %v4488
    %v5577 = vpack.c.b16 %v4521, %v4489
    %v5578 = vpack.c.b16 %v4522, %v4490
    %v5579 = vpack.c.b16 %v4523, %v4491
    %v5580 = vpack.c.b16 %v4524, %v4492
    %v5581 = vpack.c.b16 %v4525, %v4493
    %v5582 = vpack.c.b16 %v4526, %v4494
    %v5583 = vpack.c.b16 %v4527, %v4495
    %v5584 = vpack.c.b16 %v4528, %v4496
    %v5585 = vpack.c.b16 %v4529, %v4497
    %v5586 = vpack.c.b16 %v4530, %v4498
    %v5587 = vpack.c.b16 %v4531, %v4499
    %v5588 = vpack.c.b16 %v4532, %v4500
    %v5589 = vpack.c.b16 %v4533, %v4501
    %v5590 = vpack.c.b16 %v4534, %v4502
    %v5591 = vpack.c.b16 %v4535, %v4503
    %v5592 = vpack.c.b16 %v4536, %v4504
    %v5593 = vpack.c.b16 %v4537, %v4505
    %v5594 = vpack.c.b16 %v4538, %v4506
    %v5595 = vpack.c.b16 %v4539, %v4507
    %v5596 = vpack.c.b16 %v4572, %v4540
    %v5597 = vpack.c.b16 %v4573, %v4541
    %v5598 = vpack.c.b16 %v4574, %v4542
    %v5599 = vpack.c.b16 %v4575, %v4543
    %v5600 = vpack.c.b16 %v4576, %v4544
    %v5601 = vpack.c.b16 %v4577, %v4545
    %v5602 = vpack.c.b16 %v4578, %v4546
    %v5603 = vpack.c.b16 %v4579, %v4547
    %v5604 = vpack.c.b16 %v4580, %v4548
    %v5605 = vpack.c.b16 %v4581, %v4549
    %v5606 = vpack.c.b16 %v4582, %v4550
    %v5607 = vpack.c.b16 %v4583, %v4551
    %v5608 = vpack.c.b16 %v4584, %v4552
    %v5609 = vpack.c.b16 %v4585, %v4553
    %v5610 = vpack.c.b16 %v4586, %v4554
    %v5611 = vpack.c.b16 %v4587, %v4555
    %v5612 = vpack.c.b16 %v4588, %v4556
    %v5613 = vpack.c.b16 %v4589, %v4557
    %v5614 = vpack.c.b16 %v4590, %v4558
    %v5615 = vpack.c.b16 %v4591, %v4559
    %v5616 = vpack.c.b16 %v4592, %v4560
    %v5617 = vpack.c.b16 %v4593, %v4561
    %v5618 = vpack.c.b16 %v4594, %v4562
    %v5619 = vpack.c.b16 %v4595, %v4563
    %v5620 = vpack.c.b16 %v4596, %v4564
    %v5621 = vpack.c.b16 %v4597, %v4565
    %v5622 = vpack.c.b16 %v4598, %v4566
    %v5623 = vpack.c.b16 %v4599, %v4567
    %v5624 = vpack.c.b16 %v4600, %v4568
    %v5625 = vpack.c.b16 %v4601, %v4569
    %v5626 = vpack.c.b16 %v4602, %v4570
    %v5627 = vpack.c.b16 %v4603, %v4571
    %6652 = vmatprep.subr.bf16.mxu0 %v4605
    %6653 = vmatpush1.bf16.msra.mxu0 %v4604
    %6654 = vmatprep.subr.bf16.mxu0 %v4637
    %6655 = vmatpush1.bf16.msra.mxu0 %v4636
    %6656 = vmatprep.subr.bf16.mxu0 %v4669
    %6657 = vmatpush1.bf16.msra.mxu0 %v4668
    %6658 = vmatprep.subr.bf16.mxu0 %v4701
    %6659 = vmatpush1.bf16.msra.mxu0 %v4700
    %6660 = vmatprep.subr.bf16.mxu0 %v4733
    %6661 = vmatpush1.bf16.msra.mxu0 %v4732
    %6662 = vmatprep.subr.bf16.mxu0 %v4765
    %6663 = vmatpush1.bf16.msra.mxu0 %v4764
    %6664 = vmatprep.subr.bf16.mxu0 %v4797
    %6665 = vmatpush1.bf16.msra.mxu0 %v4796
    %6666 = vmatprep.subr.bf16.mxu0 %v4829
    %6667 = vmatpush1.bf16.msra.mxu0 %v4828
    %6668 = vmatprep.subr.bf16.mxu0 %v4861
    %6669 = vmatpush1.bf16.msra.mxu0 %v4860
    %6670 = vmatprep.subr.bf16.mxu0 %v4893
    %6671 = vmatpush1.bf16.msra.mxu0 %v4892
    %6672 = vmatprep.subr.bf16.mxu0 %v4925
    %6673 = vmatpush1.bf16.msra.mxu0 %v4924
    %6674 = vmatprep.subr.bf16.mxu0 %v4957
    %6675 = vmatpush1.bf16.msra.mxu0 %v4956
    %6676 = vmatprep.subr.bf16.mxu0 %v4989
    %6677 = vmatpush1.bf16.msra.mxu0 %v4988
    %6678 = vmatprep.subr.bf16.mxu0 %v5021
    %6679 = vmatpush1.bf16.msra.mxu0 %v5020
    %6680 = vmatprep.subr.bf16.mxu0 %v5053
    %6681 = vmatpush1.bf16.msra.mxu0 %v5052
    %6682 = vmatprep.subr.bf16.mxu0 %v5085
    %6683 = vmatpush1.bf16.msra.mxu0 %v5084
    %6684 = vmatprep.mubr.bf16.mxu0 %v337
    %6685 = vmatmul.mubr.bf16.gmra.mrb[0].mxu0 %v336
    %v6686 = vpop.f32.mrb[0].mxu0
    %v6687 = vadd.f32 %v1375, %v6686
    %v6688 = vpop.f32.mrb[0].mxu0
    %v6689 = vadd.f32 %v1379, %v6688
    %v6690 = vpop.f32.mrb[0].mxu0
    %v6691 = vpop.f32.mrb[0].mxu0
    %6692 = vdwg.mxu0
    %6693 = vmatprep.subr.bf16.mxu0 %v5117
    %6694 = vmatpush1.bf16.msra.mxu0 %v5116
    %6695 = vmatprep.subr.bf16.mxu0 %v5149
    %6696 = vmatpush1.bf16.msra.mxu0 %v5148
    %6697 = vmatprep.subr.bf16.mxu0 %v5181
    %6698 = vmatpush1.bf16.msra.mxu0 %v5180
    %6699 = vmatprep.subr.bf16.mxu0 %v5213
    %6700 = vmatpush1.bf16.msra.mxu0 %v5212
    %6701 = vmatprep.subr.bf16.mxu0 %v5245
    %6702 = vmatpush1.bf16.msra.mxu0 %v5244
    %6703 = vmatprep.subr.bf16.mxu0 %v5277
    %6704 = vmatpush1.bf16.msra.mxu0 %v5276
    %6705 = vmatprep.subr.bf16.mxu0 %v5309
    %6706 = vmatpush1.bf16.msra.mxu0 %v5308
    %6707 = vmatprep.subr.bf16.mxu0 %v5341
    %6708 = vmatpush1.bf16.msra.mxu0 %v5340
    %6709 = vmatprep.subr.bf16.mxu0 %v5373
    %6710 = vmatpush1.bf16.msra.mxu0 %v5372
    %6711 = vmatprep.subr.bf16.mxu0 %v5405
    %6712 = vmatpush1.bf16.msra.mxu0 %v5404
    %6713 = vmatprep.subr.bf16.mxu0 %v5437
    %6714 = vmatpush1.bf16.msra.mxu0 %v5436
    %6715 = vmatprep.subr.bf16.mxu0 %v5469
    %6716 = vmatpush1.bf16.msra.mxu0 %v5468
    %6717 = vmatprep.subr.bf16.mxu0 %v5501
    %6718 = vmatpush1.bf16.msra.mxu0 %v5500
    %6719 = vmatprep.subr.bf16.mxu0 %v5533
    %6720 = vmatpush1.bf16.msra.mxu0 %v5532
    %6721 = vmatprep.subr.bf16.mxu0 %v5565
    %6722 = vmatpush1.bf16.msra.mxu0 %v5564
    %6723 = vmatprep.subr.bf16.mxu0 %v5597
    %6724 = vmatpush1.bf16.msra.mxu0 %v5596
    %6725 = vmatprep.mubr.bf16.mxu0 %v339
    %6726 = vmatmul.mubr.bf16.gmra.mrb[0].mxu0 %v338
    %v6727 = vpop.f32.mrb[0].mxu0
    %v6728 = vadd.f32 %v6687, %v6727
    %v6729 = vpop.f32.mrb[0].mxu0
    %v6730 = vadd.f32 %v6689, %v6729
    %v6731 = vpop.f32.mrb[0].mxu0
    %v6732 = vpop.f32.mrb[0].mxu0
    %6733 = vdwg.mxu0
    %6734 = vmatprep.subr.bf16.mxu0 %v4607
    %6735 = vmatpush1.bf16.msra.mxu0 %v4606
    %6736 = vmatprep.subr.bf16.mxu0 %v4639
    %6737 = vmatpush1.bf16.msra.mxu0 %v4638
    %6738 = vmatprep.subr.bf16.mxu0 %v4671
    %6739 = vmatpush1.bf16.msra.mxu0 %v4670
    %6740 = vmatprep.subr.bf16.mxu0 %v4703
    %6741 = vmatpush1.bf16.msra.mxu0 %v4702
    %6742 = vmatprep.subr.bf16.mxu0 %v4735
    %6743 = vmatpush1.bf16.msra.mxu0 %v4734
    %6744 = vmatprep.subr.bf16.mxu0 %v4767
    %6745 = vmatpush1.bf16.msra.mxu0 %v4766
    %6746 = vmatprep.subr.bf16.mxu0 %v4799
    %6747 = vmatpush1.bf16.msra.mxu0 %v4798
    %6748 = vmatprep.subr.bf16.mxu0 %v4831
    %6749 = vmatpush1.bf16.msra.mxu0 %v4830
    %6750 = vmatprep.subr.bf16.mxu0 %v4863
    %6751 = vmatpush1.bf16.msra.mxu0 %v4862
    %6752 = vmatprep.subr.bf16.mxu0 %v4895
    %6753 = vmatpush1.bf16.msra.mxu0 %v4894
    %6754 = vmatprep.subr.bf16.mxu0 %v4927
    %6755 = vmatpush1.bf16.msra.mxu0 %v4926
    %6756 = vmatprep.subr.bf16.mxu0 %v4959
    %6757 = vmatpush1.bf16.msra.mxu0 %v4958
    %6758 = vmatprep.subr.bf16.mxu0 %v4991
    %6759 = vmatpush1.bf16.msra.mxu0 %v4990
    %6760 = vmatprep.subr.bf16.mxu0 %v5023
    %6761 = vmatpush1.bf16.msra.mxu0 %v5022
    %6762 = vmatprep.subr.bf16.mxu0 %v5055
    %6763 = vmatpush1.bf16.msra.mxu0 %v5054
    %6764 = vmatprep.subr.bf16.mxu0 %v5087
    %6765 = vmatpush1.bf16.msra.mxu0 %v5086
    %6766 = vmatprep.mubr.bf16.mxu0 %v337
    %6767 = vmatmul.mubr.bf16.gmra.mrb[0].mxu0 %v336
    %v6768 = vpop.f32.mrb[0].mxu0
    %v6769 = vadd.f32 %v1383, %v6768
    %v6770 = vpop.f32.mrb[0].mxu0
    %v6771 = vadd.f32 %v1387, %v6770
    %v6772 = vpop.f32.mrb[0].mxu0
    %v6773 = vpop.f32.mrb[0].mxu0
    %6774 = vdwg.mxu0
    %6775 = vmatprep.subr.bf16.mxu0 %v5119
    %6776 = vmatpush1.bf16.msra.mxu0 %v5118
    %6777 = vmatprep.subr.bf16.mxu0 %v5151
    %6778 = vmatpush1.bf16.msra.mxu0 %v5150
    %6779 = vmatprep.subr.bf16.mxu0 %v5183
    %6780 = vmatpush1.bf16.msra.mxu0 %v5182
    %6781 = vmatprep.subr.bf16.mxu0 %v5215
    %6782 = vmatpush1.bf16.msra.mxu0 %v5214
    %6783 = vmatprep.subr.bf16.mxu0 %v5247
    %6784 = vmatpush1.bf16.msra.mxu0 %v5246
    %6785 = vmatprep.subr.bf16.mxu0 %v5279
    %6786 = vmatpush1.bf16.msra.mxu0 %v5278
    %6787 = vmatprep.subr.bf16.mxu0 %v5311
    %6788 = vmatpush1.bf16.msra.mxu0 %v5310
    %6789 = vmatprep.subr.bf16.mxu0 %v5343
    %6790 = vmatpush1.bf16.msra.mxu0 %v5342
    %6791 = vmatprep.subr.bf16.mxu0 %v5375
    %6792 = vmatpush1.bf16.msra.mxu0 %v5374
    %6793 = vmatprep.subr.bf16.mxu0 %v5407
    %6794 = vmatpush1.bf16.msra.mxu0 %v5406
    %6795 = vmatprep.subr.bf16.mxu0 %v5439
    %6796 = vmatpush1.bf16.msra.mxu0 %v5438
    %6797 = vmatprep.subr.bf16.mxu0 %v5471
    %6798 = vmatpush1.bf16.msra.mxu0 %v5470
    %6799 = vmatprep.subr.bf16.mxu0 %v5503
    %6800 = vmatpush1.bf16.msra.mxu0 %v5502
    %6801 = vmatprep.subr.bf16.mxu0 %v5535
    %6802 = vmatpush1.bf16.msra.mxu0 %v5534
    %6803 = vmatprep.subr.bf16.mxu0 %v5567
    %6804 = vmatpush1.bf16.msra.mxu0 %v5566
    %6805 = vmatprep.subr.bf16.mxu0 %v5599
    %6806 = vmatpush1.bf16.msra.mxu0 %v5598
    %6807 = vmatprep.mubr.bf16.mxu0 %v339
    %6808 = vmatmul.mubr.bf16.gmra.mrb[0].mxu0 %v338
    %v6809 = vpop.f32.mrb[0].mxu0
    %v6810 = vadd.f32 %v6769, %v6809
    %v6811 = vpop.f32.mrb[0].mxu0
    %v6812 = vadd.f32 %v6771, %v6811
    %v6813 = vpop.f32.mrb[0].mxu0
    %v6814 = vpop.f32.mrb[0].mxu0
    %6815 = vdwg.mxu0
    %6816 = vmatprep.subr.bf16.mxu0 %v4609
    %6817 = vmatpush1.bf16.msra.mxu0 %v4608
    %6818 = vmatprep.subr.bf16.mxu0 %v4641
    %6819 = vmatpush1.bf16.msra.mxu0 %v4640
    %6820 = vmatprep.subr.bf16.mxu0 %v4673
    %6821 = vmatpush1.bf16.msra.mxu0 %v4672
    %6822 = vmatprep.subr.bf16.mxu0 %v4705
    %6823 = vmatpush1.bf16.msra.mxu0 %v4704
    %6824 = vmatprep.subr.bf16.mxu0 %v4737
    %6825 = vmatpush1.bf16.msra.mxu0 %v4736
    %6826 = vmatprep.subr.bf16.mxu0 %v4769
    %6827 = vmatpush1.bf16.msra.mxu0 %v4768
    %6828 = vmatprep.subr.bf16.mxu0 %v4801
    %6829 = vmatpush1.bf16.msra.mxu0 %v4800
    %6830 = vmatprep.subr.bf16.mxu0 %v4833
    %6831 = vmatpush1.bf16.msra.mxu0 %v4832
    %6832 = vmatprep.subr.bf16.mxu0 %v4865
    %6833 = vmatpush1.bf16.msra.mxu0 %v4864
    %6834 = vmatprep.subr.bf16.mxu0 %v4897
    %6835 = vmatpush1.bf16.msra.mxu0 %v4896
    %6836 = vmatprep.subr.bf16.mxu0 %v4929
    %6837 = vmatpush1.bf16.msra.mxu0 %v4928
    %6838 = vmatprep.subr.bf16.mxu0 %v4961
    %6839 = vmatpush1.bf16.msra.mxu0 %v4960
    %6840 = vmatprep.subr.bf16.mxu0 %v4993
    %6841 = vmatpush1.bf16.msra.mxu0 %v4992
    %6842 = vmatprep.subr.bf16.mxu0 %v5025
    %6843 = vmatpush1.bf16.msra.mxu0 %v5024
    %6844 = vmatprep.subr.bf16.mxu0 %v5057
    %6845 = vmatpush1.bf16.msra.mxu0 %v5056
    %6846 = vmatprep.subr.bf16.mxu0 %v5089
    %6847 = vmatpush1.bf16.msra.mxu0 %v5088
    %6848 = vmatprep.mubr.bf16.mxu0 %v337
    %6849 = vmatmul.mubr.bf16.gmra.mrb[0].mxu0 %v336
    %v6850 = vpop.f32.mrb[0].mxu0
    %v6851 = vadd.f32 %v1391, %v6850
    %v6852 = vpop.f32.mrb[0].mxu0
    %v6853 = vadd.f32 %v1395, %v6852
    %v6854 = vpop.f32.mrb[0].mxu0
    %v6855 = vpop.f32.mrb[0].mxu0
    %6856 = vdwg.mxu0
    %6857 = vmatprep.subr.bf16.mxu0 %v5121
    %6858 = vmatpush1.bf16.msra.mxu0 %v5120
    %6859 = vmatprep.subr.bf16.mxu0 %v5153
    %6860 = vmatpush1.bf16.msra.mxu0 %v5152
    %6861 = vmatprep.subr.bf16.mxu0 %v5185
    %6862 = vmatpush1.bf16.msra.mxu0 %v5184
    %6863 = vmatprep.subr.bf16.mxu0 %v5217
    %6864 = vmatpush1.bf16.msra.mxu0 %v5216
    %6865 = vmatprep.subr.bf16.mxu0 %v5249
    %6866 = vmatpush1.bf16.msra.mxu0 %v5248
    %6867 = vmatprep.subr.bf16.mxu0 %v5281
    %6868 = vmatpush1.bf16.msra.mxu0 %v5280
    %6869 = vmatprep.subr.bf16.mxu0 %v5313
    %6870 = vmatpush1.bf16.msra.mxu0 %v5312
    %6871 = vmatprep.subr.bf16.mxu0 %v5345
    %6872 = vmatpush1.bf16.msra.mxu0 %v5344
    %6873 = vmatprep.subr.bf16.mxu0 %v5377
    %6874 = vmatpush1.bf16.msra.mxu0 %v5376
    %6875 = vmatprep.subr.bf16.mxu0 %v5409
    %6876 = vmatpush1.bf16.msra.mxu0 %v5408
    %6877 = vmatprep.subr.bf16.mxu0 %v5441
    %6878 = vmatpush1.bf16.msra.mxu0 %v5440
    %6879 = vmatprep.subr.bf16.mxu0 %v5473
    %6880 = vmatpush1.bf16.msra.mxu0 %v5472
    %6881 = vmatprep.subr.bf16.mxu0 %v5505
    %6882 = vmatpush1.bf16.msra.mxu0 %v5504
    %6883 = vmatprep.subr.bf16.mxu0 %v5537
    %6884 = vmatpush1.bf16.msra.mxu0 %v5536
    %6885 = vmatprep.subr.bf16.mxu0 %v5569
    %6886 = vmatpush1.bf16.msra.mxu0 %v5568
    %6887 = vmatprep.subr.bf16.mxu0 %v5601
    %6888 = vmatpush1.bf16.msra.mxu0 %v5600
    %6889 = vmatprep.mubr.bf16.mxu0 %v339
    %6890 = vmatmul.mubr.bf16.gmra.mrb[0].mxu0 %v338
    %v6891 = vpop.f32.mrb[0].mxu0
    %v6892 = vadd.f32 %v6851, %v6891
    %v6893 = vpop.f32.mrb[0].mxu0
    %v6894 = vadd.f32 %v6853, %v6893
    %v6895 = vpop.f32.mrb[0].mxu0
    %v6896 = vpop.f32.mrb[0].mxu0
    %6897 = vdwg.mxu0
    %6898 = vmatprep.subr.bf16.mxu0 %v4611
    %6899 = vmatpush1.bf16.msra.mxu0 %v4610
    %6900 = vmatprep.subr.bf16.mxu0 %v4643
    %6901 = vmatpush1.bf16.msra.mxu0 %v4642
    %6902 = vmatprep.subr.bf16.mxu0 %v4675
    %6903 = vmatpush1.bf16.msra.mxu0 %v4674
    %6904 = vmatprep.subr.bf16.mxu0 %v4707
    %6905 = vmatpush1.bf16.msra.mxu0 %v4706
    %6906 = vmatprep.subr.bf16.mxu0 %v4739
    %6907 = vmatpush1.bf16.msra.mxu0 %v4738
    %6908 = vmatprep.subr.bf16.mxu0 %v4771
    %6909 = vmatpush1.bf16.msra.mxu0 %v4770
    %6910 = vmatprep.subr.bf16.mxu0 %v4803
    %6911 = vmatpush1.bf16.msra.mxu0 %v4802
    %6912 = vmatprep.subr.bf16.mxu0 %v4835
    %6913 = vmatpush1.bf16.msra.mxu0 %v4834
    %6914 = vmatprep.subr.bf16.mxu0 %v4867
    %6915 = vmatpush1.bf16.msra.mxu0 %v4866
    %6916 = vmatprep.subr.bf16.mxu0 %v4899
    %6917 = vmatpush1.bf16.msra.mxu0 %v4898
    %6918 = vmatprep.subr.bf16.mxu0 %v4931
    %6919 = vmatpush1.bf16.msra.mxu0 %v4930
    %6920 = vmatprep.subr.bf16.mxu0 %v4963
    %6921 = vmatpush1.bf16.msra.mxu0 %v4962
    %6922 = vmatprep.subr.bf16.mxu0 %v4995
    %6923 = vmatpush1.bf16.msra.mxu0 %v4994
    %6924 = vmatprep.subr.bf16.mxu0 %v5027
    %6925 = vmatpush1.bf16.msra.mxu0 %v5026
    %6926 = vmatprep.subr.bf16.mxu0 %v5059
    %6927 = vmatpush1.bf16.msra.mxu0 %v5058
    %6928 = vmatprep.subr.bf16.mxu0 %v5091
    %6929 = vmatpush1.bf16.msra.mxu0 %v5090
    %6930 = vmatprep.mubr.bf16.mxu0 %v337
    %6931 = vmatmul.mubr.bf16.gmra.mrb[0].mxu0 %v336
    %v6932 = vpop.f32.mrb[0].mxu0
    %v6933 = vadd.f32 %v1399, %v6932
    %v6934 = vpop.f32.mrb[0].mxu0
    %v6935 = vadd.f32 %v1403, %v6934
    %v6936 = vpop.f32.mrb[0].mxu0
    %v6937 = vpop.f32.mrb[0].mxu0
    %6938 = vdwg.mxu0
    %6939 = vmatprep.subr.bf16.mxu0 %v5123
    %6940 = vmatpush1.bf16.msra.mxu0 %v5122
    %6941 = vmatprep.subr.bf16.mxu0 %v5155
    %6942 = vmatpush1.bf16.msra.mxu0 %v5154
    %6943 = vmatprep.subr.bf16.mxu0 %v5187
    %6944 = vmatpush1.bf16.msra.mxu0 %v5186
    %6945 = vmatprep.subr.bf16.mxu0 %v5219
    %6946 = vmatpush1.bf16.msra.mxu0 %v5218
    %6947 = vmatprep.subr.bf16.mxu0 %v5251
    %6948 = vmatpush1.bf16.msra.mxu0 %v5250
    %6949 = vmatprep.subr.bf16.mxu0 %v5283
    %6950 = vmatpush1.bf16.msra.mxu0 %v5282
    %6951 = vmatprep.subr.bf16.mxu0 %v5315
    %6952 = vmatpush1.bf16.msra.mxu0 %v5314
    %6953 = vmatprep.subr.bf16.mxu0 %v5347
    %6954 = vmatpush1.bf16.msra.mxu0 %v5346
    %6955 = vmatprep.subr.bf16.mxu0 %v5379
    %6956 = vmatpush1.bf16.msra.mxu0 %v5378
    %6957 = vmatprep.subr.bf16.mxu0 %v5411
    %6958 = vmatpush1.bf16.msra.mxu0 %v5410
    %6959 = vmatprep.subr.bf16.mxu0 %v5443
    %6960 = vmatpush1.bf16.msra.mxu0 %v5442
    %6961 = vmatprep.subr.bf16.mxu0 %v5475
    %6962 = vmatpush1.bf16.msra.mxu0 %v5474
    %6963 = vmatprep.subr.bf16.mxu0 %v5507
    %6964 = vmatpush1.bf16.msra.mxu0 %v5506
    %6965 = vmatprep.subr.bf16.mxu0 %v5539
    %6966 = vmatpush1.bf16.msra.mxu0 %v5538
    %6967 = vmatprep.subr.bf16.mxu0 %v5571
    %6968 = vmatpush1.bf16.msra.mxu0 %v5570
    %6969 = vmatprep.subr.bf16.mxu0 %v5603
    %6970 = vmatpush1.bf16.msra.mxu0 %v5602
    %6971 = vmatprep.mubr.bf16.mxu0 %v339
    %6972 = vmatmul.mubr.bf16.gmra.mrb[0].mxu0 %v338
    %v6973 = vpop.f32.mrb[0].mxu0
    %v6974 = vadd.f32 %v6933, %v6973
    %v6975 = vpop.f32.mrb[0].mxu0
    %v6976 = vadd.f32 %v6935, %v6975
    %v6977 = vpop.f32.mrb[0].mxu0
    %v6978 = vpop.f32.mrb[0].mxu0
    %6979 = vdwg.mxu0
    %6980 = vmatprep.subr.bf16.mxu0 %v4613
    %6981 = vmatpush1.bf16.msra.mxu0 %v4612
    %6982 = vmatprep.subr.bf16.mxu0 %v4645
    %6983 = vmatpush1.bf16.msra.mxu0 %v4644
    %6984 = vmatprep.subr.bf16.mxu0 %v4677
    %6985 = vmatpush1.bf16.msra.mxu0 %v4676
    %6986 = vmatprep.subr.bf16.mxu0 %v4709
    %6987 = vmatpush1.bf16.msra.mxu0 %v4708
    %6988 = vmatprep.subr.bf16.mxu0 %v4741
    %6989 = vmatpush1.bf16.msra.mxu0 %v4740
    %6990 = vmatprep.subr.bf16.mxu0 %v4773
    %6991 = vmatpush1.bf16.msra.mxu0 %v4772
    %6992 = vmatprep.subr.bf16.mxu0 %v4805
    %6993 = vmatpush1.bf16.msra.mxu0 %v4804
    %6994 = vmatprep.subr.bf16.mxu0 %v4837
    %6995 = vmatpush1.bf16.msra.mxu0 %v4836
    %6996 = vmatprep.subr.bf16.mxu0 %v4869
    %6997 = vmatpush1.bf16.msra.mxu0 %v4868
    %6998 = vmatprep.subr.bf16.mxu0 %v4901
    %6999 = vmatpush1.bf16.msra.mxu0 %v4900
    %7000 = vmatprep.subr.bf16.mxu0 %v4933
    %7001 = vmatpush1.bf16.msra.mxu0 %v4932
    %7002 = vmatprep.subr.bf16.mxu0 %v4965
    %7003 = vmatpush1.bf16.msra.mxu0 %v4964
    %7004 = vmatprep.subr.bf16.mxu0 %v4997
    %7005 = vmatpush1.bf16.msra.mxu0 %v4996
    %7006 = vmatprep.subr.bf16.mxu0 %v5029
    %7007 = vmatpush1.bf16.msra.mxu0 %v5028
    %7008 = vmatprep.subr.bf16.mxu0 %v5061
    %7009 = vmatpush1.bf16.msra.mxu0 %v5060
    %7010 = vmatprep.subr.bf16.mxu0 %v5093
    %7011 = vmatpush1.bf16.msra.mxu0 %v5092
    %7012 = vmatprep.mubr.bf16.mxu0 %v337
    %7013 = vmatmul.mubr.bf16.gmra.mrb[0].mxu0 %v336
    %v7014 = vpop.f32.mrb[0].mxu0
    %v7015 = vadd.f32 %v1407, %v7014
    %v7016 = vpop.f32.mrb[0].mxu0
    %v7017 = vadd.f32 %v1411, %v7016
    %v7018 = vpop.f32.mrb[0].mxu0
    %v7019 = vpop.f32.mrb[0].mxu0
    %7020 = vdwg.mxu0
    %7021 = vmatprep.subr.bf16.mxu0 %v5125
    %7022 = vmatpush1.bf16.msra.mxu0 %v5124
    %7023 = vmatprep.subr.bf16.mxu0 %v5157
    %7024 = vmatpush1.bf16.msra.mxu0 %v5156
    %7025 = vmatprep.subr.bf16.mxu0 %v5189
    %7026 = vmatpush1.bf16.msra.mxu0 %v5188
    %7027 = vmatprep.subr.bf16.mxu0 %v5221
    %7028 = vmatpush1.bf16.msra.mxu0 %v5220
    %7029 = vmatprep.subr.bf16.mxu0 %v5253
    %7030 = vmatpush1.bf16.msra.mxu0 %v5252
    %7031 = vmatprep.subr.bf16.mxu0 %v5285
    %7032 = vmatpush1.bf16.msra.mxu0 %v5284
    %7033 = vmatprep.subr.bf16.mxu0 %v5317
    %7034 = vmatpush1.bf16.msra.mxu0 %v5316
    %7035 = vmatprep.subr.bf16.mxu0 %v5349
    %7036 = vmatpush1.bf16.msra.mxu0 %v5348
    %7037 = vmatprep.subr.bf16.mxu0 %v5381
    %7038 = vmatpush1.bf16.msra.mxu0 %v5380
    %7039 = vmatprep.subr.bf16.mxu0 %v5413
    %7040 = vmatpush1.bf16.msra.mxu0 %v5412
    %7041 = vmatprep.subr.bf16.mxu0 %v5445
    %7042 = vmatpush1.bf16.msra.mxu0 %v5444
    %7043 = vmatprep.subr.bf16.mxu0 %v5477
    %7044 = vmatpush1.bf16.msra.mxu0 %v5476
    %7045 = vmatprep.subr.bf16.mxu0 %v5509
    %7046 = vmatpush1.bf16.msra.mxu0 %v5508
    %7047 = vmatprep.subr.bf16.mxu0 %v5541
    %7048 = vmatpush1.bf16.msra.mxu0 %v5540
    %7049 = vmatprep.subr.bf16.mxu0 %v5573
    %7050 = vmatpush1.bf16.msra.mxu0 %v5572
    %7051 = vmatprep.subr.bf16.mxu0 %v5605
    %7052 = vmatpush1.bf16.msra.mxu0 %v5604
    %7053 = vmatprep.mubr.bf16.mxu0 %v339
    %7054 = vmatmul.mubr.bf16.gmra.mrb[0].mxu0 %v338
    %v7055 = vpop.f32.mrb[0].mxu0
    %v7056 = vadd.f32 %v7015, %v7055
    %v7057 = vpop.f32.mrb[0].mxu0
    %v7058 = vadd.f32 %v7017, %v7057
    %v7059 = vpop.f32.mrb[0].mxu0
    %v7060 = vpop.f32.mrb[0].mxu0
    %7061 = vdwg.mxu0
    %7062 = vmatprep.subr.bf16.mxu0 %v4615
    %7063 = vmatpush1.bf16.msra.mxu0 %v4614
    %7064 = vmatprep.subr.bf16.mxu0 %v4647
    %7065 = vmatpush1.bf16.msra.mxu0 %v4646
    %7066 = vmatprep.subr.bf16.mxu0 %v4679
    %7067 = vmatpush1.bf16.msra.mxu0 %v4678
    %7068 = vmatprep.subr.bf16.mxu0 %v4711
    %7069 = vmatpush1.bf16.msra.mxu0 %v4710
    %7070 = vmatprep.subr.bf16.mxu0 %v4743
    %7071 = vmatpush1.bf16.msra.mxu0 %v4742
    %7072 = vmatprep.subr.bf16.mxu0 %v4775
    %7073 = vmatpush1.bf16.msra.mxu0 %v4774
    %7074 = vmatprep.subr.bf16.mxu0 %v4807
    %7075 = vmatpush1.bf16.msra.mxu0 %v4806
    %7076 = vmatprep.subr.bf16.mxu0 %v4839
    %7077 = vmatpush1.bf16.msra.mxu0 %v4838
    %7078 = vmatprep.subr.bf16.mxu0 %v4871
    %7079 = vmatpush1.bf16.msra.mxu0 %v4870
    %7080 = vmatprep.subr.bf16.mxu0 %v4903
    %7081 = vmatpush1.bf16.msra.mxu0 %v4902
    %7082 = vmatprep.subr.bf16.mxu0 %v4935
    %7083 = vmatpush1.bf16.msra.mxu0 %v4934
    %7084 = vmatprep.subr.bf16.mxu0 %v4967
    %7085 = vmatpush1.bf16.msra.mxu0 %v4966
    %7086 = vmatprep.subr.bf16.mxu0 %v4999
    %7087 = vmatpush1.bf16.msra.mxu0 %v4998
    %7088 = vmatprep.subr.bf16.mxu0 %v5031
    %7089 = vmatpush1.bf16.msra.mxu0 %v5030
    %7090 = vmatprep.subr.bf16.mxu0 %v5063
    %7091 = vmatpush1.bf16.msra.mxu0 %v5062
    %7092 = vmatprep.subr.bf16.mxu0 %v5095
    %7093 = vmatpush1.bf16.msra.mxu0 %v5094
    %7094 = vmatprep.mubr.bf16.mxu0 %v337
    %7095 = vmatmul.mubr.bf16.gmra.mrb[0].mxu0 %v336
    %v7096 = vpop.f32.mrb[0].mxu0
    %v7097 = vadd.f32 %v1415, %v7096
    %v7098 = vpop.f32.mrb[0].mxu0
    %v7099 = vadd.f32 %v1419, %v7098
    %v7100 = vpop.f32.mrb[0].mxu0
    %v7101 = vpop.f32.mrb[0].mxu0
    %7102 = vdwg.mxu0
    %7103 = vmatprep.subr.bf16.mxu0 %v5127
    %7104 = vmatpush1.bf16.msra.mxu0 %v5126
    %7105 = vmatprep.subr.bf16.mxu0 %v5159
    %7106 = vmatpush1.bf16.msra.mxu0 %v5158
    %7107 = vmatprep.subr.bf16.mxu0 %v5191
    %7108 = vmatpush1.bf16.msra.mxu0 %v5190
    %7109 = vmatprep.subr.bf16.mxu0 %v5223
    %7110 = vmatpush1.bf16.msra.mxu0 %v5222
    %7111 = vmatprep.subr.bf16.mxu0 %v5255
    %7112 = vmatpush1.bf16.msra.mxu0 %v5254
    %7113 = vmatprep.subr.bf16.mxu0 %v5287
    %7114 = vmatpush1.bf16.msra.mxu0 %v5286
    %7115 = vmatprep.subr.bf16.mxu0 %v5319
    %7116 = vmatpush1.bf16.msra.mxu0 %v5318
    %7117 = vmatprep.subr.bf16.mxu0 %v5351
    %7118 = vmatpush1.bf16.msra.mxu0 %v5350
    %7119 = vmatprep.subr.bf16.mxu0 %v5383
    %7120 = vmatpush1.bf16.msra.mxu0 %v5382
    %7121 = vmatprep.subr.bf16.mxu0 %v5415
    %7122 = vmatpush1.bf16.msra.mxu0 %v5414
    %7123 = vmatprep.subr.bf16.mxu0 %v5447
    %7124 = vmatpush1.bf16.msra.mxu0 %v5446
    %7125 = vmatprep.subr.bf16.mxu0 %v5479
    %7126 = vmatpush1.bf16.msra.mxu0 %v5478
    %7127 = vmatprep.subr.bf16.mxu0 %v5511
    %7128 = vmatpush1.bf16.msra.mxu0 %v5510
    %7129 = vmatprep.subr.bf16.mxu0 %v5543
    %7130 = vmatpush1.bf16.msra.mxu0 %v5542
    %7131 = vmatprep.subr.bf16.mxu0 %v5575
    %7132 = vmatpush1.bf16.msra.mxu0 %v5574
    %7133 = vmatprep.subr.bf16.mxu0 %v5607
    %7134 = vmatpush1.bf16.msra.mxu0 %v5606
    %7135 = vmatprep.mubr.bf16.mxu0 %v339
    %7136 = vmatmul.mubr.bf16.gmra.mrb[0].mxu0 %v338
    %v7137 = vpop.f32.mrb[0].mxu0
    %v7138 = vadd.f32 %v7097, %v7137
    %v7139 = vpop.f32.mrb[0].mxu0
    %v7140 = vadd.f32 %v7099, %v7139
    %v7141 = vpop.f32.mrb[0].mxu0
    %v7142 = vpop.f32.mrb[0].mxu0
    %7143 = vdwg.mxu0
    %7144 = vmatprep.subr.bf16.mxu0 %v4617
    %7145 = vmatpush1.bf16.msra.mxu0 %v4616
    %7146 = vmatprep.subr.bf16.mxu0 %v4649
    %7147 = vmatpush1.bf16.msra.mxu0 %v4648
    %7148 = vmatprep.subr.bf16.mxu0 %v4681
    %7149 = vmatpush1.bf16.msra.mxu0 %v4680
    %7150 = vmatprep.subr.bf16.mxu0 %v4713
    %7151 = vmatpush1.bf16.msra.mxu0 %v4712
    %7152 = vmatprep.subr.bf16.mxu0 %v4745
    %7153 = vmatpush1.bf16.msra.mxu0 %v4744
    %7154 = vmatprep.subr.bf16.mxu0 %v4777
    %7155 = vmatpush1.bf16.msra.mxu0 %v4776
    %7156 = vmatprep.subr.bf16.mxu0 %v4809
    %7157 = vmatpush1.bf16.msra.mxu0 %v4808
    %7158 = vmatprep.subr.bf16.mxu0 %v4841
    %7159 = vmatpush1.bf16.msra.mxu0 %v4840
    %7160 = vmatprep.subr.bf16.mxu0 %v4873
    %7161 = vmatpush1.bf16.msra.mxu0 %v4872
    %7162 = vmatprep.subr.bf16.mxu0 %v4905
    %7163 = vmatpush1.bf16.msra.mxu0 %v4904
    %7164 = vmatprep.subr.bf16.mxu0 %v4937
    %7165 = vmatpush1.bf16.msra.mxu0 %v4936
    %7166 = vmatprep.subr.bf16.mxu0 %v4969
    %7167 = vmatpush1.bf16.msra.mxu0 %v4968
    %7168 = vmatprep.subr.bf16.mxu0 %v5001
    %7169 = vmatpush1.bf16.msra.mxu0 %v5000
    %7170 = vmatprep.subr.bf16.mxu0 %v5033
    %7171 = vmatpush1.bf16.msra.mxu0 %v5032
    %7172 = vmatprep.subr.bf16.mxu0 %v5065
    %7173 = vmatpush1.bf16.msra.mxu0 %v5064
    %7174 = vmatprep.subr.bf16.mxu0 %v5097
    %7175 = vmatpush1.bf16.msra.mxu0 %v5096
    %7176 = vmatprep.mubr.bf16.mxu0 %v337
    %7177 = vmatmul.mubr.bf16.gmra.mrb[0].mxu0 %v336
    %v7178 = vpop.f32.mrb[0].mxu0
    %v7179 = vadd.f32 %v1423, %v7178
    %v7180 = vpop.f32.mrb[0].mxu0
    %v7181 = vadd.f32 %v1427, %v7180
    %v7182 = vpop.f32.mrb[0].mxu0
    %v7183 = vpop.f32.mrb[0].mxu0
    %7184 = vdwg.mxu0
    %7185 = vmatprep.subr.bf16.mxu0 %v5129
    %7186 = vmatpush1.bf16.msra.mxu0 %v5128
    %7187 = vmatprep.subr.bf16.mxu0 %v5161
    %7188 = vmatpush1.bf16.msra.mxu0 %v5160
    %7189 = vmatprep.subr.bf16.mxu0 %v5193
    %7190 = vmatpush1.bf16.msra.mxu0 %v5192
    %7191 = vmatprep.subr.bf16.mxu0 %v5225
    %7192 = vmatpush1.bf16.msra.mxu0 %v5224
    %7193 = vmatprep.subr.bf16.mxu0 %v5257
    %7194 = vmatpush1.bf16.msra.mxu0 %v5256
    %7195 = vmatprep.subr.bf16.mxu0 %v5289
    %7196 = vmatpush1.bf16.msra.mxu0 %v5288
    %7197 = vmatprep.subr.bf16.mxu0 %v5321
    %7198 = vmatpush1.bf16.msra.mxu0 %v5320
    %7199 = vmatprep.subr.bf16.mxu0 %v5353
    %7200 = vmatpush1.bf16.msra.mxu0 %v5352
    %7201 = vmatprep.subr.bf16.mxu0 %v5385
    %7202 = vmatpush1.bf16.msra.mxu0 %v5384
    %7203 = vmatprep.subr.bf16.mxu0 %v5417
    %7204 = vmatpush1.bf16.msra.mxu0 %v5416
    %7205 = vmatprep.subr.bf16.mxu0 %v5449
    %7206 = vmatpush1.bf16.msra.mxu0 %v5448
    %7207 = vmatprep.subr.bf16.mxu0 %v5481
    %7208 = vmatpush1.bf16.msra.mxu0 %v5480
    %7209 = vmatprep.subr.bf16.mxu0 %v5513
    %7210 = vmatpush1.bf16.msra.mxu0 %v5512
    %7211 = vmatprep.subr.bf16.mxu0 %v5545
    %7212 = vmatpush1.bf16.msra.mxu0 %v5544
    %7213 = vmatprep.subr.bf16.mxu0 %v5577
    %7214 = vmatpush1.bf16.msra.mxu0 %v5576
    %7215 = vmatprep.subr.bf16.mxu0 %v5609
    %7216 = vmatpush1.bf16.msra.mxu0 %v5608
    %7217 = vmatprep.mubr.bf16.mxu0 %v339
    %7218 = vmatmul.mubr.bf16.gmra.mrb[0].mxu0 %v338
    %v7219 = vpop.f32.mrb[0].mxu0
    %v7220 = vadd.f32 %v7179, %v7219
    %v7221 = vpop.f32.mrb[0].mxu0
    %v7222 = vadd.f32 %v7181, %v7221
    %v7223 = vpop.f32.mrb[0].mxu0
    %v7224 = vpop.f32.mrb[0].mxu0
    %7225 = vdwg.mxu0
    %7226 = vmatprep.subr.bf16.mxu0 %v4619
    %7227 = vmatpush1.bf16.msra.mxu0 %v4618
    %7228 = vmatprep.subr.bf16.mxu0 %v4651
    %7229 = vmatpush1.bf16.msra.mxu0 %v4650
    %7230 = vmatprep.subr.bf16.mxu0 %v4683
    %7231 = vmatpush1.bf16.msra.mxu0 %v4682
    %7232 = vmatprep.subr.bf16.mxu0 %v4715
    %7233 = vmatpush1.bf16.msra.mxu0 %v4714
    %7234 = vmatprep.subr.bf16.mxu0 %v4747
    %7235 = vmatpush1.bf16.msra.mxu0 %v4746
    %7236 = vmatprep.subr.bf16.mxu0 %v4779
    %7237 = vmatpush1.bf16.msra.mxu0 %v4778
    %7238 = vmatprep.subr.bf16.mxu0 %v4811
    %7239 = vmatpush1.bf16.msra.mxu0 %v4810
    %7240 = vmatprep.subr.bf16.mxu0 %v4843
    %7241 = vmatpush1.bf16.msra.mxu0 %v4842
    %7242 = vmatprep.subr.bf16.mxu0 %v4875
    %7243 = vmatpush1.bf16.msra.mxu0 %v4874
    %7244 = vmatprep.subr.bf16.mxu0 %v4907
    %7245 = vmatpush1.bf16.msra.mxu0 %v4906
    %7246 = vmatprep.subr.bf16.mxu0 %v4939
    %7247 = vmatpush1.bf16.msra.mxu0 %v4938
    %7248 = vmatprep.subr.bf16.mxu0 %v4971
    %7249 = vmatpush1.bf16.msra.mxu0 %v4970
    %7250 = vmatprep.subr.bf16.mxu0 %v5003
    %7251 = vmatpush1.bf16.msra.mxu0 %v5002
    %7252 = vmatprep.subr.bf16.mxu0 %v5035
    %7253 = vmatpush1.bf16.msra.mxu0 %v5034
    %7254 = vmatprep.subr.bf16.mxu0 %v5067
    %7255 = vmatpush1.bf16.msra.mxu0 %v5066
    %7256 = vmatprep.subr.bf16.mxu0 %v5099
    %7257 = vmatpush1.bf16.msra.mxu0 %v5098
    %7258 = vmatprep.mubr.bf16.mxu0 %v337
    %7259 = vmatmul.mubr.bf16.gmra.mrb[0].mxu0 %v336
    %v7260 = vpop.f32.mrb[0].mxu0
    %v7261 = vadd.f32 %v1431, %v7260
    %v7262 = vpop.f32.mrb[0].mxu0
    %v7263 = vadd.f32 %v1435, %v7262
    %v7264 = vpop.f32.mrb[0].mxu0
    %v7265 = vpop.f32.mrb[0].mxu0
    %7266 = vdwg.mxu0
    %7267 = vmatprep.subr.bf16.mxu0 %v5131
    %7268 = vmatpush1.bf16.msra.mxu0 %v5130
    %7269 = vmatprep.subr.bf16.mxu0 %v5163
    %7270 = vmatpush1.bf16.msra.mxu0 %v5162
    %7271 = vmatprep.subr.bf16.mxu0 %v5195
    %7272 = vmatpush1.bf16.msra.mxu0 %v5194
    %7273 = vmatprep.subr.bf16.mxu0 %v5227
    %7274 = vmatpush1.bf16.msra.mxu0 %v5226
    %7275 = vmatprep.subr.bf16.mxu0 %v5259
    %7276 = vmatpush1.bf16.msra.mxu0 %v5258
    %7277 = vmatprep.subr.bf16.mxu0 %v5291
    %7278 = vmatpush1.bf16.msra.mxu0 %v5290
    %7279 = vmatprep.subr.bf16.mxu0 %v5323
    %7280 = vmatpush1.bf16.msra.mxu0 %v5322
    %7281 = vmatprep.subr.bf16.mxu0 %v5355
    %7282 = vmatpush1.bf16.msra.mxu0 %v5354
    %7283 = vmatprep.subr.bf16.mxu0 %v5387
    %7284 = vmatpush1.bf16.msra.mxu0 %v5386
    %7285 = vmatprep.subr.bf16.mxu0 %v5419
    %7286 = vmatpush1.bf16.msra.mxu0 %v5418
    %7287 = vmatprep.subr.bf16.mxu0 %v5451
    %7288 = vmatpush1.bf16.msra.mxu0 %v5450
    %7289 = vmatprep.subr.bf16.mxu0 %v5483
    %7290 = vmatpush1.bf16.msra.mxu0 %v5482
    %7291 = vmatprep.subr.bf16.mxu0 %v5515
    %7292 = vmatpush1.bf16.msra.mxu0 %v5514
    %7293 = vmatprep.subr.bf16.mxu0 %v5547
    %7294 = vmatpush1.bf16.msra.mxu0 %v5546
    %7295 = vmatprep.subr.bf16.mxu0 %v5579
    %7296 = vmatpush1.bf16.msra.mxu0 %v5578
    %7297 = vmatprep.subr.bf16.mxu0 %v5611
    %7298 = vmatpush1.bf16.msra.mxu0 %v5610
    %7299 = vmatprep.mubr.bf16.mxu0 %v339
    %7300 = vmatmul.mubr.bf16.gmra.mrb[0].mxu0 %v338
    %v7301 = vpop.f32.mrb[0].mxu0
    %v7302 = vadd.f32 %v7261, %v7301
    %v7303 = vpop.f32.mrb[0].mxu0
    %v7304 = vadd.f32 %v7263, %v7303
    %v7305 = vpop.f32.mrb[0].mxu0
    %v7306 = vpop.f32.mrb[0].mxu0
    %7307 = vdwg.mxu0
    %7308 = vmatprep.subr.bf16.mxu0 %v4621
    %7309 = vmatpush1.bf16.msra.mxu0 %v4620
    %7310 = vmatprep.subr.bf16.mxu0 %v4653
    %7311 = vmatpush1.bf16.msra.mxu0 %v4652
    %7312 = vmatprep.subr.bf16.mxu0 %v4685
    %7313 = vmatpush1.bf16.msra.mxu0 %v4684
    %7314 = vmatprep.subr.bf16.mxu0 %v4717
    %7315 = vmatpush1.bf16.msra.mxu0 %v4716
    %7316 = vmatprep.subr.bf16.mxu0 %v4749
    %7317 = vmatpush1.bf16.msra.mxu0 %v4748
    %7318 = vmatprep.subr.bf16.mxu0 %v4781
    %7319 = vmatpush1.bf16.msra.mxu0 %v4780
    %7320 = vmatprep.subr.bf16.mxu0 %v4813
    %7321 = vmatpush1.bf16.msra.mxu0 %v4812
    %7322 = vmatprep.subr.bf16.mxu0 %v4845
    %7323 = vmatpush1.bf16.msra.mxu0 %v4844
    %7324 = vmatprep.subr.bf16.mxu0 %v4877
    %7325 = vmatpush1.bf16.msra.mxu0 %v4876
    %7326 = vmatprep.subr.bf16.mxu0 %v4909
    %7327 = vmatpush1.bf16.msra.mxu0 %v4908
    %7328 = vmatprep.subr.bf16.mxu0 %v4941
    %7329 = vmatpush1.bf16.msra.mxu0 %v4940
    %7330 = vmatprep.subr.bf16.mxu0 %v4973
    %7331 = vmatpush1.bf16.msra.mxu0 %v4972
    %7332 = vmatprep.subr.bf16.mxu0 %v5005
    %7333 = vmatpush1.bf16.msra.mxu0 %v5004
    %7334 = vmatprep.subr.bf16.mxu0 %v5037
    %7335 = vmatpush1.bf16.msra.mxu0 %v5036
    %7336 = vmatprep.subr.bf16.mxu0 %v5069
    %7337 = vmatpush1.bf16.msra.mxu0 %v5068
    %7338 = vmatprep.subr.bf16.mxu0 %v5101
    %7339 = vmatpush1.bf16.msra.mxu0 %v5100
    %7340 = vmatprep.mubr.bf16.mxu0 %v337
    %7341 = vmatmul.mubr.bf16.gmra.mrb[0].mxu0 %v336
    %v7342 = vpop.f32.mrb[0].mxu0
    %v7343 = vadd.f32 %v1439, %v7342
    %v7344 = vpop.f32.mrb[0].mxu0
    %v7345 = vadd.f32 %v1443, %v7344
    %v7346 = vpop.f32.mrb[0].mxu0
    %v7347 = vpop.f32.mrb[0].mxu0
    %7348 = vdwg.mxu0
    %7349 = vmatprep.subr.bf16.mxu0 %v5133
    %7350 = vmatpush1.bf16.msra.mxu0 %v5132
    %7351 = vmatprep.subr.bf16.mxu0 %v5165
    %7352 = vmatpush1.bf16.msra.mxu0 %v5164
    %7353 = vmatprep.subr.bf16.mxu0 %v5197
    %7354 = vmatpush1.bf16.msra.mxu0 %v5196
    %7355 = vmatprep.subr.bf16.mxu0 %v5229
    %7356 = vmatpush1.bf16.msra.mxu0 %v5228
    %7357 = vmatprep.subr.bf16.mxu0 %v5261
    %7358 = vmatpush1.bf16.msra.mxu0 %v5260
    %7359 = vmatprep.subr.bf16.mxu0 %v5293
    %7360 = vmatpush1.bf16.msra.mxu0 %v5292
    %7361 = vmatprep.subr.bf16.mxu0 %v5325
    %7362 = vmatpush1.bf16.msra.mxu0 %v5324
    %7363 = vmatprep.subr.bf16.mxu0 %v5357
    %7364 = vmatpush1.bf16.msra.mxu0 %v5356
    %7365 = vmatprep.subr.bf16.mxu0 %v5389
    %7366 = vmatpush1.bf16.msra.mxu0 %v5388
    %7367 = vmatprep.subr.bf16.mxu0 %v5421
    %7368 = vmatpush1.bf16.msra.mxu0 %v5420
    %7369 = vmatprep.subr.bf16.mxu0 %v5453
    %7370 = vmatpush1.bf16.msra.mxu0 %v5452
    %7371 = vmatprep.subr.bf16.mxu0 %v5485
    %7372 = vmatpush1.bf16.msra.mxu0 %v5484
    %7373 = vmatprep.subr.bf16.mxu0 %v5517
    %7374 = vmatpush1.bf16.msra.mxu0 %v5516
    %7375 = vmatprep.subr.bf16.mxu0 %v5549
    %7376 = vmatpush1.bf16.msra.mxu0 %v5548
    %7377 = vmatprep.subr.bf16.mxu0 %v5581
    %7378 = vmatpush1.bf16.msra.mxu0 %v5580
    %7379 = vmatprep.subr.bf16.mxu0 %v5613
    %7380 = vmatpush1.bf16.msra.mxu0 %v5612
    %7381 = vmatprep.mubr.bf16.mxu0 %v339
    %7382 = vmatmul.mubr.bf16.gmra.mrb[0].mxu0 %v338
    %v7383 = vpop.f32.mrb[0].mxu0
    %v7384 = vadd.f32 %v7343, %v7383
    %v7385 = vpop.f32.mrb[0].mxu0
    %v7386 = vadd.f32 %v7345, %v7385
    %v7387 = vpop.f32.mrb[0].mxu0
    %v7388 = vpop.f32.mrb[0].mxu0
    %7389 = vdwg.mxu0
    %7390 = vmatprep.subr.bf16.mxu0 %v4623
    %7391 = vmatpush1.bf16.msra.mxu0 %v4622
    %7392 = vmatprep.subr.bf16.mxu0 %v4655
    %7393 = vmatpush1.bf16.msra.mxu0 %v4654
    %7394 = vmatprep.subr.bf16.mxu0 %v4687
    %7395 = vmatpush1.bf16.msra.mxu0 %v4686
    %7396 = vmatprep.subr.bf16.mxu0 %v4719
    %7397 = vmatpush1.bf16.msra.mxu0 %v4718
    %7398 = vmatprep.subr.bf16.mxu0 %v4751
    %7399 = vmatpush1.bf16.msra.mxu0 %v4750
    %7400 = vmatprep.subr.bf16.mxu0 %v4783
    %7401 = vmatpush1.bf16.msra.mxu0 %v4782
    %7402 = vmatprep.subr.bf16.mxu0 %v4815
    %7403 = vmatpush1.bf16.msra.mxu0 %v4814
    %7404 = vmatprep.subr.bf16.mxu0 %v4847
    %7405 = vmatpush1.bf16.msra.mxu0 %v4846
    %7406 = vmatprep.subr.bf16.mxu0 %v4879
    %7407 = vmatpush1.bf16.msra.mxu0 %v4878
    %7408 = vmatprep.subr.bf16.mxu0 %v4911
    %7409 = vmatpush1.bf16.msra.mxu0 %v4910
    %7410 = vmatprep.subr.bf16.mxu0 %v4943
    %7411 = vmatpush1.bf16.msra.mxu0 %v4942
    %7412 = vmatprep.subr.bf16.mxu0 %v4975
    %7413 = vmatpush1.bf16.msra.mxu0 %v4974
    %7414 = vmatprep.subr.bf16.mxu0 %v5007
    %7415 = vmatpush1.bf16.msra.mxu0 %v5006
    %7416 = vmatprep.subr.bf16.mxu0 %v5039
    %7417 = vmatpush1.bf16.msra.mxu0 %v5038
    %7418 = vmatprep.subr.bf16.mxu0 %v5071
    %7419 = vmatpush1.bf16.msra.mxu0 %v5070
    %7420 = vmatprep.subr.bf16.mxu0 %v5103
    %7421 = vmatpush1.bf16.msra.mxu0 %v5102
    %7422 = vmatprep.mubr.bf16.mxu0 %v337
    %7423 = vmatmul.mubr.bf16.gmra.mrb[0].mxu0 %v336
    %v7424 = vpop.f32.mrb[0].mxu0
    %v7425 = vadd.f32 %v1447, %v7424
    %v7426 = vpop.f32.mrb[0].mxu0
    %v7427 = vadd.f32 %v1451, %v7426
    %v7428 = vpop.f32.mrb[0].mxu0
    %v7429 = vpop.f32.mrb[0].mxu0
    %7430 = vdwg.mxu0
    %7431 = vmatprep.subr.bf16.mxu0 %v5135
    %7432 = vmatpush1.bf16.msra.mxu0 %v5134
    %7433 = vmatprep.subr.bf16.mxu0 %v5167
    %7434 = vmatpush1.bf16.msra.mxu0 %v5166
    %7435 = vmatprep.subr.bf16.mxu0 %v5199
    %7436 = vmatpush1.bf16.msra.mxu0 %v5198
    %7437 = vmatprep.subr.bf16.mxu0 %v5231
    %7438 = vmatpush1.bf16.msra.mxu0 %v5230
    %7439 = vmatprep.subr.bf16.mxu0 %v5263
    %7440 = vmatpush1.bf16.msra.mxu0 %v5262
    %7441 = vmatprep.subr.bf16.mxu0 %v5295
    %7442 = vmatpush1.bf16.msra.mxu0 %v5294
    %7443 = vmatprep.subr.bf16.mxu0 %v5327
    %7444 = vmatpush1.bf16.msra.mxu0 %v5326
    %7445 = vmatprep.subr.bf16.mxu0 %v5359
    %7446 = vmatpush1.bf16.msra.mxu0 %v5358
    %7447 = vmatprep.subr.bf16.mxu0 %v5391
    %7448 = vmatpush1.bf16.msra.mxu0 %v5390
    %7449 = vmatprep.subr.bf16.mxu0 %v5423
    %7450 = vmatpush1.bf16.msra.mxu0 %v5422
    %7451 = vmatprep.subr.bf16.mxu0 %v5455
    %7452 = vmatpush1.bf16.msra.mxu0 %v5454
    %7453 = vmatprep.subr.bf16.mxu0 %v5487
    %7454 = vmatpush1.bf16.msra.mxu0 %v5486
    %7455 = vmatprep.subr.bf16.mxu0 %v5519
    %7456 = vmatpush1.bf16.msra.mxu0 %v5518
    %7457 = vmatprep.subr.bf16.mxu0 %v5551
    %7458 = vmatpush1.bf16.msra.mxu0 %v5550
    %7459 = vmatprep.subr.bf16.mxu0 %v5583
    %7460 = vmatpush1.bf16.msra.mxu0 %v5582
    %7461 = vmatprep.subr.bf16.mxu0 %v5615
    %7462 = vmatpush1.bf16.msra.mxu0 %v5614
    %7463 = vmatprep.mubr.bf16.mxu0 %v339
    %7464 = vmatmul.mubr.bf16.gmra.mrb[0].mxu0 %v338
    %v7465 = vpop.f32.mrb[0].mxu0
    %v7466 = vadd.f32 %v7425, %v7465
    %v7467 = vpop.f32.mrb[0].mxu0
    %v7468 = vadd.f32 %v7427, %v7467
    %v7469 = vpop.f32.mrb[0].mxu0
    %v7470 = vpop.f32.mrb[0].mxu0
    %7471 = vdwg.mxu0
    %7472 = vmatprep.subr.bf16.mxu0 %v4625
    %7473 = vmatpush1.bf16.msra.mxu0 %v4624
    %7474 = vmatprep.subr.bf16.mxu0 %v4657
    %7475 = vmatpush1.bf16.msra.mxu0 %v4656
    %7476 = vmatprep.subr.bf16.mxu0 %v4689
    %7477 = vmatpush1.bf16.msra.mxu0 %v4688
    %7478 = vmatprep.subr.bf16.mxu0 %v4721
    %7479 = vmatpush1.bf16.msra.mxu0 %v4720
    %7480 = vmatprep.subr.bf16.mxu0 %v4753
    %7481 = vmatpush1.bf16.msra.mxu0 %v4752
    %7482 = vmatprep.subr.bf16.mxu0 %v4785
    %7483 = vmatpush1.bf16.msra.mxu0 %v4784
    %7484 = vmatprep.subr.bf16.mxu0 %v4817
    %7485 = vmatpush1.bf16.msra.mxu0 %v4816
    %7486 = vmatprep.subr.bf16.mxu0 %v4849
    %7487 = vmatpush1.bf16.msra.mxu0 %v4848
    %7488 = vmatprep.subr.bf16.mxu0 %v4881
    %7489 = vmatpush1.bf16.msra.mxu0 %v4880
    %7490 = vmatprep.subr.bf16.mxu0 %v4913
    %7491 = vmatpush1.bf16.msra.mxu0 %v4912
    %7492 = vmatprep.subr.bf16.mxu0 %v4945
    %7493 = vmatpush1.bf16.msra.mxu0 %v4944
    %7494 = vmatprep.subr.bf16.mxu0 %v4977
    %7495 = vmatpush1.bf16.msra.mxu0 %v4976
    %7496 = vmatprep.subr.bf16.mxu0 %v5009
    %7497 = vmatpush1.bf16.msra.mxu0 %v5008
    %7498 = vmatprep.subr.bf16.mxu0 %v5041
    %7499 = vmatpush1.bf16.msra.mxu0 %v5040
    %7500 = vmatprep.subr.bf16.mxu0 %v5073
    %7501 = vmatpush1.bf16.msra.mxu0 %v5072
    %7502 = vmatprep.subr.bf16.mxu0 %v5105
    %7503 = vmatpush1.bf16.msra.mxu0 %v5104
    %7504 = vmatprep.mubr.bf16.mxu0 %v337
    %7505 = vmatmul.mubr.bf16.gmra.mrb[0].mxu0 %v336
    %v7506 = vpop.f32.mrb[0].mxu0
    %v7507 = vadd.f32 %v1455, %v7506
    %v7508 = vpop.f32.mrb[0].mxu0
    %v7509 = vadd.f32 %v1459, %v7508
    %v7510 = vpop.f32.mrb[0].mxu0
    %v7511 = vpop.f32.mrb[0].mxu0
    %7512 = vdwg.mxu0
    %7513 = vmatprep.subr.bf16.mxu0 %v5137
    %7514 = vmatpush1.bf16.msra.mxu0 %v5136
    %7515 = vmatprep.subr.bf16.mxu0 %v5169
    %7516 = vmatpush1.bf16.msra.mxu0 %v5168
    %7517 = vmatprep.subr.bf16.mxu0 %v5201
    %7518 = vmatpush1.bf16.msra.mxu0 %v5200
    %7519 = vmatprep.subr.bf16.mxu0 %v5233
    %7520 = vmatpush1.bf16.msra.mxu0 %v5232
    %7521 = vmatprep.subr.bf16.mxu0 %v5265
    %7522 = vmatpush1.bf16.msra.mxu0 %v5264
    %7523 = vmatprep.subr.bf16.mxu0 %v5297
    %7524 = vmatpush1.bf16.msra.mxu0 %v5296
    %7525 = vmatprep.subr.bf16.mxu0 %v5329
    %7526 = vmatpush1.bf16.msra.mxu0 %v5328
    %7527 = vmatprep.subr.bf16.mxu0 %v5361
    %7528 = vmatpush1.bf16.msra.mxu0 %v5360
    %7529 = vmatprep.subr.bf16.mxu0 %v5393
    %7530 = vmatpush1.bf16.msra.mxu0 %v5392
    %7531 = vmatprep.subr.bf16.mxu0 %v5425
    %7532 = vmatpush1.bf16.msra.mxu0 %v5424
    %7533 = vmatprep.subr.bf16.mxu0 %v5457
    %7534 = vmatpush1.bf16.msra.mxu0 %v5456
    %7535 = vmatprep.subr.bf16.mxu0 %v5489
    %7536 = vmatpush1.bf16.msra.mxu0 %v5488
    %7537 = vmatprep.subr.bf16.mxu0 %v5521
    %7538 = vmatpush1.bf16.msra.mxu0 %v5520
    %7539 = vmatprep.subr.bf16.mxu0 %v5553
    %7540 = vmatpush1.bf16.msra.mxu0 %v5552
    %7541 = vmatprep.subr.bf16.mxu0 %v5585
    %7542 = vmatpush1.bf16.msra.mxu0 %v5584
    %7543 = vmatprep.subr.bf16.mxu0 %v5617
    %7544 = vmatpush1.bf16.msra.mxu0 %v5616
    %7545 = vmatprep.mubr.bf16.mxu0 %v339
    %7546 = vmatmul.mubr.bf16.gmra.mrb[0].mxu0 %v338
    %v7547 = vpop.f32.mrb[0].mxu0
    %v7548 = vadd.f32 %v7507, %v7547
    %v7549 = vpop.f32.mrb[0].mxu0
    %v7550 = vadd.f32 %v7509, %v7549
    %v7551 = vpop.f32.mrb[0].mxu0
    %v7552 = vpop.f32.mrb[0].mxu0
    %7553 = vdwg.mxu0
    %7554 = vmatprep.subr.bf16.mxu0 %v4627
    %7555 = vmatpush1.bf16.msra.mxu0 %v4626
    %7556 = vmatprep.subr.bf16.mxu0 %v4659
    %7557 = vmatpush1.bf16.msra.mxu0 %v4658
    %7558 = vmatprep.subr.bf16.mxu0 %v4691
    %7559 = vmatpush1.bf16.msra.mxu0 %v4690
    %7560 = vmatprep.subr.bf16.mxu0 %v4723
    %7561 = vmatpush1.bf16.msra.mxu0 %v4722
    %7562 = vmatprep.subr.bf16.mxu0 %v4755
    %7563 = vmatpush1.bf16.msra.mxu0 %v4754
    %7564 = vmatprep.subr.bf16.mxu0 %v4787
    %7565 = vmatpush1.bf16.msra.mxu0 %v4786
    %7566 = vmatprep.subr.bf16.mxu0 %v4819
    %7567 = vmatpush1.bf16.msra.mxu0 %v4818
    %7568 = vmatprep.subr.bf16.mxu0 %v4851
    %7569 = vmatpush1.bf16.msra.mxu0 %v4850
    %7570 = vmatprep.subr.bf16.mxu0 %v4883
    %7571 = vmatpush1.bf16.msra.mxu0 %v4882
    %7572 = vmatprep.subr.bf16.mxu0 %v4915
    %7573 = vmatpush1.bf16.msra.mxu0 %v4914
    %7574 = vmatprep.subr.bf16.mxu0 %v4947
    %7575 = vmatpush1.bf16.msra.mxu0 %v4946
    %7576 = vmatprep.subr.bf16.mxu0 %v4979
    %7577 = vmatpush1.bf16.msra.mxu0 %v4978
    %7578 = vmatprep.subr.bf16.mxu0 %v5011
    %7579 = vmatpush1.bf16.msra.mxu0 %v5010
    %7580 = vmatprep.subr.bf16.mxu0 %v5043
    %7581 = vmatpush1.bf16.msra.mxu0 %v5042
    %7582 = vmatprep.subr.bf16.mxu0 %v5075
    %7583 = vmatpush1.bf16.msra.mxu0 %v5074
    %7584 = vmatprep.subr.bf16.mxu0 %v5107
    %7585 = vmatpush1.bf16.msra.mxu0 %v5106
    %7586 = vmatprep.mubr.bf16.mxu0 %v337
    %7587 = vmatmul.mubr.bf16.gmra.mrb[0].mxu0 %v336
    %v7588 = vpop.f32.mrb[0].mxu0
    %v7589 = vadd.f32 %v1463, %v7588
    %v7590 = vpop.f32.mrb[0].mxu0
    %v7591 = vadd.f32 %v1467, %v7590
    %v7592 = vpop.f32.mrb[0].mxu0
    %v7593 = vpop.f32.mrb[0].mxu0
    %7594 = vdwg.mxu0
    %7595 = vmatprep.subr.bf16.mxu0 %v5139
    %7596 = vmatpush1.bf16.msra.mxu0 %v5138
    %7597 = vmatprep.subr.bf16.mxu0 %v5171
    %7598 = vmatpush1.bf16.msra.mxu0 %v5170
    %7599 = vmatprep.subr.bf16.mxu0 %v5203
    %7600 = vmatpush1.bf16.msra.mxu0 %v5202
    %7601 = vmatprep.subr.bf16.mxu0 %v5235
    %7602 = vmatpush1.bf16.msra.mxu0 %v5234
    %7603 = vmatprep.subr.bf16.mxu0 %v5267
    %7604 = vmatpush1.bf16.msra.mxu0 %v5266
    %7605 = vmatprep.subr.bf16.mxu0 %v5299
    %7606 = vmatpush1.bf16.msra.mxu0 %v5298
    %7607 = vmatprep.subr.bf16.mxu0 %v5331
    %7608 = vmatpush1.bf16.msra.mxu0 %v5330
    %7609 = vmatprep.subr.bf16.mxu0 %v5363
    %7610 = vmatpush1.bf16.msra.mxu0 %v5362
    %7611 = vmatprep.subr.bf16.mxu0 %v5395
    %7612 = vmatpush1.bf16.msra.mxu0 %v5394
    %7613 = vmatprep.subr.bf16.mxu0 %v5427
    %7614 = vmatpush1.bf16.msra.mxu0 %v5426
    %7615 = vmatprep.subr.bf16.mxu0 %v5459
    %7616 = vmatpush1.bf16.msra.mxu0 %v5458
    %7617 = vmatprep.subr.bf16.mxu0 %v5491
    %7618 = vmatpush1.bf16.msra.mxu0 %v5490
    %7619 = vmatprep.subr.bf16.mxu0 %v5523
    %7620 = vmatpush1.bf16.msra.mxu0 %v5522
    %7621 = vmatprep.subr.bf16.mxu0 %v5555
    %7622 = vmatpush1.bf16.msra.mxu0 %v5554
    %7623 = vmatprep.subr.bf16.mxu0 %v5587
    %7624 = vmatpush1.bf16.msra.mxu0 %v5586
    %7625 = vmatprep.subr.bf16.mxu0 %v5619
    %7626 = vmatpush1.bf16.msra.mxu0 %v5618
    %7627 = vmatprep.mubr.bf16.mxu0 %v339
    %7628 = vmatmul.mubr.bf16.gmra.mrb[0].mxu0 %v338
    %v7629 = vpop.f32.mrb[0].mxu0
    %v7630 = vadd.f32 %v7589, %v7629
    %v7631 = vpop.f32.mrb[0].mxu0
    %v7632 = vadd.f32 %v7591, %v7631
    %v7633 = vpop.f32.mrb[0].mxu0
    %v7634 = vpop.f32.mrb[0].mxu0
    %7635 = vdwg.mxu0
    %7636 = vmatprep.subr.bf16.mxu0 %v4629
    %7637 = vmatpush1.bf16.msra.mxu0 %v4628
    %7638 = vmatprep.subr.bf16.mxu0 %v4661
    %7639 = vmatpush1.bf16.msra.mxu0 %v4660
    %7640 = vmatprep.subr.bf16.mxu0 %v4693
    %7641 = vmatpush1.bf16.msra.mxu0 %v4692
    %7642 = vmatprep.subr.bf16.mxu0 %v4725
    %7643 = vmatpush1.bf16.msra.mxu0 %v4724
    %7644 = vmatprep.subr.bf16.mxu0 %v4757
    %7645 = vmatpush1.bf16.msra.mxu0 %v4756
    %7646 = vmatprep.subr.bf16.mxu0 %v4789
    %7647 = vmatpush1.bf16.msra.mxu0 %v4788
    %7648 = vmatprep.subr.bf16.mxu0 %v4821
    %7649 = vmatpush1.bf16.msra.mxu0 %v4820
    %7650 = vmatprep.subr.bf16.mxu0 %v4853
    %7651 = vmatpush1.bf16.msra.mxu0 %v4852
    %7652 = vmatprep.subr.bf16.mxu0 %v4885
    %7653 = vmatpush1.bf16.msra.mxu0 %v4884
    %7654 = vmatprep.subr.bf16.mxu0 %v4917
    %7655 = vmatpush1.bf16.msra.mxu0 %v4916
    %7656 = vmatprep.subr.bf16.mxu0 %v4949
    %7657 = vmatpush1.bf16.msra.mxu0 %v4948
    %7658 = vmatprep.subr.bf16.mxu0 %v4981
    %7659 = vmatpush1.bf16.msra.mxu0 %v4980
    %7660 = vmatprep.subr.bf16.mxu0 %v5013
    %7661 = vmatpush1.bf16.msra.mxu0 %v5012
    %7662 = vmatprep.subr.bf16.mxu0 %v5045
    %7663 = vmatpush1.bf16.msra.mxu0 %v5044
    %7664 = vmatprep.subr.bf16.mxu0 %v5077
    %7665 = vmatpush1.bf16.msra.mxu0 %v5076
    %7666 = vmatprep.subr.bf16.mxu0 %v5109
    %7667 = vmatpush1.bf16.msra.mxu0 %v5108
    %7668 = vmatprep.mubr.bf16.mxu0 %v337
    %7669 = vmatmul.mubr.bf16.gmra.mrb[0].mxu0 %v336
    %v7670 = vpop.f32.mrb[0].mxu0
    %v7671 = vadd.f32 %v1471, %v7670
    %v7672 = vpop.f32.mrb[0].mxu0
    %v7673 = vadd.f32 %v1475, %v7672
    %v7674 = vpop.f32.mrb[0].mxu0
    %v7675 = vpop.f32.mrb[0].mxu0
    %7676 = vdwg.mxu0
    %7677 = vmatprep.subr.bf16.mxu0 %v5141
    %7678 = vmatpush1.bf16.msra.mxu0 %v5140
    %7679 = vmatprep.subr.bf16.mxu0 %v5173
    %7680 = vmatpush1.bf16.msra.mxu0 %v5172
    %7681 = vmatprep.subr.bf16.mxu0 %v5205
    %7682 = vmatpush1.bf16.msra.mxu0 %v5204
    %7683 = vmatprep.subr.bf16.mxu0 %v5237
    %7684 = vmatpush1.bf16.msra.mxu0 %v5236
    %7685 = vmatprep.subr.bf16.mxu0 %v5269
    %7686 = vmatpush1.bf16.msra.mxu0 %v5268
    %7687 = vmatprep.subr.bf16.mxu0 %v5301
    %7688 = vmatpush1.bf16.msra.mxu0 %v5300
    %7689 = vmatprep.subr.bf16.mxu0 %v5333
    %7690 = vmatpush1.bf16.msra.mxu0 %v5332
    %7691 = vmatprep.subr.bf16.mxu0 %v5365
    %7692 = vmatpush1.bf16.msra.mxu0 %v5364
    %7693 = vmatprep.subr.bf16.mxu0 %v5397
    %7694 = vmatpush1.bf16.msra.mxu0 %v5396
    %7695 = vmatprep.subr.bf16.mxu0 %v5429
    %7696 = vmatpush1.bf16.msra.mxu0 %v5428
    %7697 = vmatprep.subr.bf16.mxu0 %v5461
    %7698 = vmatpush1.bf16.msra.mxu0 %v5460
    %7699 = vmatprep.subr.bf16.mxu0 %v5493
    %7700 = vmatpush1.bf16.msra.mxu0 %v5492
    %7701 = vmatprep.subr.bf16.mxu0 %v5525
    %7702 = vmatpush1.bf16.msra.mxu0 %v5524
    %7703 = vmatprep.subr.bf16.mxu0 %v5557
    %7704 = vmatpush1.bf16.msra.mxu0 %v5556
    %7705 = vmatprep.subr.bf16.mxu0 %v5589
    %7706 = vmatpush1.bf16.msra.mxu0 %v5588
    %7707 = vmatprep.subr.bf16.mxu0 %v5621
    %7708 = vmatpush1.bf16.msra.mxu0 %v5620
    %7709 = vmatprep.mubr.bf16.mxu0 %v339
    %7710 = vmatmul.mubr.bf16.gmra.mrb[0].mxu0 %v338
    %v7711 = vpop.f32.mrb[0].mxu0
    %v7712 = vadd.f32 %v7671, %v7711
    %v7713 = vpop.f32.mrb[0].mxu0
    %v7714 = vadd.f32 %v7673, %v7713
    %v7715 = vpop.f32.mrb[0].mxu0
    %v7716 = vpop.f32.mrb[0].mxu0
    %7717 = vdwg.mxu0
    %7718 = vmatprep.subr.bf16.mxu0 %v4631
    %7719 = vmatpush1.bf16.msra.mxu0 %v4630
    %7720 = vmatprep.subr.bf16.mxu0 %v4663
    %7721 = vmatpush1.bf16.msra.mxu0 %v4662
    %7722 = vmatprep.subr.bf16.mxu0 %v4695
    %7723 = vmatpush1.bf16.msra.mxu0 %v4694
    %7724 = vmatprep.subr.bf16.mxu0 %v4727
    %7725 = vmatpush1.bf16.msra.mxu0 %v4726
    %7726 = vmatprep.subr.bf16.mxu0 %v4759
    %7727 = vmatpush1.bf16.msra.mxu0 %v4758
    %7728 = vmatprep.subr.bf16.mxu0 %v4791
    %7729 = vmatpush1.bf16.msra.mxu0 %v4790
    %7730 = vmatprep.subr.bf16.mxu0 %v4823
    %7731 = vmatpush1.bf16.msra.mxu0 %v4822
    %7732 = vmatprep.subr.bf16.mxu0 %v4855
    %7733 = vmatpush1.bf16.msra.mxu0 %v4854
    %7734 = vmatprep.subr.bf16.mxu0 %v4887
    %7735 = vmatpush1.bf16.msra.mxu0 %v4886
    %7736 = vmatprep.subr.bf16.mxu0 %v4919
    %7737 = vmatpush1.bf16.msra.mxu0 %v4918
    %7738 = vmatprep.subr.bf16.mxu0 %v4951
    %7739 = vmatpush1.bf16.msra.mxu0 %v4950
    %7740 = vmatprep.subr.bf16.mxu0 %v4983
    %7741 = vmatpush1.bf16.msra.mxu0 %v4982
    %7742 = vmatprep.subr.bf16.mxu0 %v5015
    %7743 = vmatpush1.bf16.msra.mxu0 %v5014
    %7744 = vmatprep.subr.bf16.mxu0 %v5047
    %7745 = vmatpush1.bf16.msra.mxu0 %v5046
    %7746 = vmatprep.subr.bf16.mxu0 %v5079
    %7747 = vmatpush1.bf16.msra.mxu0 %v5078
    %7748 = vmatprep.subr.bf16.mxu0 %v5111
    %7749 = vmatpush1.bf16.msra.mxu0 %v5110
    %7750 = vmatprep.mubr.bf16.mxu0 %v337
    %7751 = vmatmul.mubr.bf16.gmra.mrb[0].mxu0 %v336
    %v7752 = vpop.f32.mrb[0].mxu0
    %v7753 = vadd.f32 %v1479, %v7752
    %v7754 = vpop.f32.mrb[0].mxu0
    %v7755 = vadd.f32 %v1483, %v7754
    %v7756 = vpop.f32.mrb[0].mxu0
    %v7757 = vpop.f32.mrb[0].mxu0
    %7758 = vdwg.mxu0
    %7759 = vmatprep.subr.bf16.mxu0 %v5143
    %7760 = vmatpush1.bf16.msra.mxu0 %v5142
    %7761 = vmatprep.subr.bf16.mxu0 %v5175
    %7762 = vmatpush1.bf16.msra.mxu0 %v5174
    %7763 = vmatprep.subr.bf16.mxu0 %v5207
    %7764 = vmatpush1.bf16.msra.mxu0 %v5206
    %7765 = vmatprep.subr.bf16.mxu0 %v5239
    %7766 = vmatpush1.bf16.msra.mxu0 %v5238
    %7767 = vmatprep.subr.bf16.mxu0 %v5271
    %7768 = vmatpush1.bf16.msra.mxu0 %v5270
    %7769 = vmatprep.subr.bf16.mxu0 %v5303
    %7770 = vmatpush1.bf16.msra.mxu0 %v5302
    %7771 = vmatprep.subr.bf16.mxu0 %v5335
    %7772 = vmatpush1.bf16.msra.mxu0 %v5334
    %7773 = vmatprep.subr.bf16.mxu0 %v5367
    %7774 = vmatpush1.bf16.msra.mxu0 %v5366
    %7775 = vmatprep.subr.bf16.mxu0 %v5399
    %7776 = vmatpush1.bf16.msra.mxu0 %v5398
    %7777 = vmatprep.subr.bf16.mxu0 %v5431
    %7778 = vmatpush1.bf16.msra.mxu0 %v5430
    %7779 = vmatprep.subr.bf16.mxu0 %v5463
    %7780 = vmatpush1.bf16.msra.mxu0 %v5462
    %7781 = vmatprep.subr.bf16.mxu0 %v5495
    %7782 = vmatpush1.bf16.msra.mxu0 %v5494
    %7783 = vmatprep.subr.bf16.mxu0 %v5527
    %7784 = vmatpush1.bf16.msra.mxu0 %v5526
    %7785 = vmatprep.subr.bf16.mxu0 %v5559
    %7786 = vmatpush1.bf16.msra.mxu0 %v5558
    %7787 = vmatprep.subr.bf16.mxu0 %v5591
    %7788 = vmatpush1.bf16.msra.mxu0 %v5590
    %7789 = vmatprep.subr.bf16.mxu0 %v5623
    %7790 = vmatpush1.bf16.msra.mxu0 %v5622
    %7791 = vmatprep.mubr.bf16.mxu0 %v339
    %7792 = vmatmul.mubr.bf16.gmra.mrb[0].mxu0 %v338
    %v7793 = vpop.f32.mrb[0].mxu0
    %v7794 = vadd.f32 %v7753, %v7793
    %v7795 = vpop.f32.mrb[0].mxu0
    %v7796 = vadd.f32 %v7755, %v7795
    %v7797 = vpop.f32.mrb[0].mxu0
    %v7798 = vpop.f32.mrb[0].mxu0
    %7799 = vdwg.mxu0
    %7800 = vmatprep.subr.bf16.mxu0 %v4633
    %7801 = vmatpush1.bf16.msra.mxu0 %v4632
    %7802 = vmatprep.subr.bf16.mxu0 %v4665
    %7803 = vmatpush1.bf16.msra.mxu0 %v4664
    %7804 = vmatprep.subr.bf16.mxu0 %v4697
    %7805 = vmatpush1.bf16.msra.mxu0 %v4696
    %7806 = vmatprep.subr.bf16.mxu0 %v4729
    %7807 = vmatpush1.bf16.msra.mxu0 %v4728
    %7808 = vmatprep.subr.bf16.mxu0 %v4761
    %7809 = vmatpush1.bf16.msra.mxu0 %v4760
    %7810 = vmatprep.subr.bf16.mxu0 %v4793
    %7811 = vmatpush1.bf16.msra.mxu0 %v4792
    %7812 = vmatprep.subr.bf16.mxu0 %v4825
    %7813 = vmatpush1.bf16.msra.mxu0 %v4824
    %7814 = vmatprep.subr.bf16.mxu0 %v4857
    %7815 = vmatpush1.bf16.msra.mxu0 %v4856
    %7816 = vmatprep.subr.bf16.mxu0 %v4889
    %7817 = vmatpush1.bf16.msra.mxu0 %v4888
    %7818 = vmatprep.subr.bf16.mxu0 %v4921
    %7819 = vmatpush1.bf16.msra.mxu0 %v4920
    %7820 = vmatprep.subr.bf16.mxu0 %v4953
    %7821 = vmatpush1.bf16.msra.mxu0 %v4952
    %7822 = vmatprep.subr.bf16.mxu0 %v4985
    %7823 = vmatpush1.bf16.msra.mxu0 %v4984
    %7824 = vmatprep.subr.bf16.mxu0 %v5017
    %7825 = vmatpush1.bf16.msra.mxu0 %v5016
    %7826 = vmatprep.subr.bf16.mxu0 %v5049
    %7827 = vmatpush1.bf16.msra.mxu0 %v5048
    %7828 = vmatprep.subr.bf16.mxu0 %v5081
    %7829 = vmatpush1.bf16.msra.mxu0 %v5080
    %7830 = vmatprep.subr.bf16.mxu0 %v5113
    %7831 = vmatpush1.bf16.msra.mxu0 %v5112
    %7832 = vmatprep.mubr.bf16.mxu0 %v337
    %7833 = vmatmul.mubr.bf16.gmra.mrb[0].mxu0 %v336
    %v7834 = vpop.f32.mrb[0].mxu0
    %v7835 = vadd.f32 %v1487, %v7834
    %v7836 = vpop.f32.mrb[0].mxu0
    %v7837 = vadd.f32 %v1491, %v7836
    %v7838 = vpop.f32.mrb[0].mxu0
    %v7839 = vpop.f32.mrb[0].mxu0
    %7840 = vdwg.mxu0
    %7841 = vmatprep.subr.bf16.mxu0 %v5145
    %7842 = vmatpush1.bf16.msra.mxu0 %v5144
    %7843 = vmatprep.subr.bf16.mxu0 %v5177
    %7844 = vmatpush1.bf16.msra.mxu0 %v5176
    %7845 = vmatprep.subr.bf16.mxu0 %v5209
    %7846 = vmatpush1.bf16.msra.mxu0 %v5208
    %7847 = vmatprep.subr.bf16.mxu0 %v5241
    %7848 = vmatpush1.bf16.msra.mxu0 %v5240
    %7849 = vmatprep.subr.bf16.mxu0 %v5273
    %7850 = vmatpush1.bf16.msra.mxu0 %v5272
    %7851 = vmatprep.subr.bf16.mxu0 %v5305
    %7852 = vmatpush1.bf16.msra.mxu0 %v5304
    %7853 = vmatprep.subr.bf16.mxu0 %v5337
    %7854 = vmatpush1.bf16.msra.mxu0 %v5336
    %7855 = vmatprep.subr.bf16.mxu0 %v5369
    %7856 = vmatpush1.bf16.msra.mxu0 %v5368
    %7857 = vmatprep.subr.bf16.mxu0 %v5401
    %7858 = vmatpush1.bf16.msra.mxu0 %v5400
    %7859 = vmatprep.subr.bf16.mxu0 %v5433
    %7860 = vmatpush1.bf16.msra.mxu0 %v5432
    %7861 = vmatprep.subr.bf16.mxu0 %v5465
    %7862 = vmatpush1.bf16.msra.mxu0 %v5464
    %7863 = vmatprep.subr.bf16.mxu0 %v5497
    %7864 = vmatpush1.bf16.msra.mxu0 %v5496
    %7865 = vmatprep.subr.bf16.mxu0 %v5529
    %7866 = vmatpush1.bf16.msra.mxu0 %v5528
    %7867 = vmatprep.subr.bf16.mxu0 %v5561
    %7868 = vmatpush1.bf16.msra.mxu0 %v5560
    %7869 = vmatprep.subr.bf16.mxu0 %v5593
    %7870 = vmatpush1.bf16.msra.mxu0 %v5592
    %7871 = vmatprep.subr.bf16.mxu0 %v5625
    %7872 = vmatpush1.bf16.msra.mxu0 %v5624
    %7873 = vmatprep.mubr.bf16.mxu0 %v339
    %7874 = vmatmul.mubr.bf16.gmra.mrb[0].mxu0 %v338
    %v7875 = vpop.f32.mrb[0].mxu0
    %v7876 = vadd.f32 %v7835, %v7875
    %v7877 = vpop.f32.mrb[0].mxu0
    %v7878 = vadd.f32 %v7837, %v7877
    %v7879 = vpop.f32.mrb[0].mxu0
    %v7880 = vpop.f32.mrb[0].mxu0
    %7881 = vdwg.mxu0
    %7882 = vmatprep.subr.bf16.mxu0 %v4635
    %7883 = vmatpush1.bf16.msra.mxu0 %v4634
    %7884 = vmatprep.subr.bf16.mxu0 %v4667
    %7885 = vmatpush1.bf16.msra.mxu0 %v4666
    %7886 = vmatprep.subr.bf16.mxu0 %v4699
    %7887 = vmatpush1.bf16.msra.mxu0 %v4698
    %7888 = vmatprep.subr.bf16.mxu0 %v4731
    %7889 = vmatpush1.bf16.msra.mxu0 %v4730
    %7890 = vmatprep.subr.bf16.mxu0 %v4763
    %7891 = vmatpush1.bf16.msra.mxu0 %v4762
    %7892 = vmatprep.subr.bf16.mxu0 %v4795
    %7893 = vmatpush1.bf16.msra.mxu0 %v4794
    %7894 = vmatprep.subr.bf16.mxu0 %v4827
    %7895 = vmatpush1.bf16.msra.mxu0 %v4826
    %7896 = vmatprep.subr.bf16.mxu0 %v4859
    %7897 = vmatpush1.bf16.msra.mxu0 %v4858
    %7898 = vmatprep.subr.bf16.mxu0 %v4891
    %7899 = vmatpush1.bf16.msra.mxu0 %v4890
    %7900 = vmatprep.subr.bf16.mxu0 %v4923
    %7901 = vmatpush1.bf16.msra.mxu0 %v4922
    %7902 = vmatprep.subr.bf16.mxu0 %v4955
    %7903 = vmatpush1.bf16.msra.mxu0 %v4954
    %7904 = vmatprep.subr.bf16.mxu0 %v4987
    %7905 = vmatpush1.bf16.msra.mxu0 %v4986
    %7906 = vmatprep.subr.bf16.mxu0 %v5019
    %7907 = vmatpush1.bf16.msra.mxu0 %v5018
    %7908 = vmatprep.subr.bf16.mxu0 %v5051
    %7909 = vmatpush1.bf16.msra.mxu0 %v5050
    %7910 = vmatprep.subr.bf16.mxu0 %v5083
    %7911 = vmatpush1.bf16.msra.mxu0 %v5082
    %7912 = vmatprep.subr.bf16.mxu0 %v5115
    %7913 = vmatpush1.bf16.msra.mxu0 %v5114
    %7914 = vmatprep.mubr.bf16.mxu0 %v337
    %7915 = vmatmul.mubr.bf16.gmra.mrb[0].mxu0 %v336
    %v7916 = vpop.f32.mrb[0].mxu0
    %v7917 = vadd.f32 %v1495, %v7916
    %v7918 = vpop.f32.mrb[0].mxu0
    %v7919 = vadd.f32 %v1499, %v7918
    %v7920 = vpop.f32.mrb[0].mxu0
    %v7921 = vpop.f32.mrb[0].mxu0
    %7922 = vdwg.mxu0
    %7923 = vmatprep.subr.bf16.mxu0 %v5147
    %7924 = vmatpush1.bf16.msra.mxu0 %v5146
    %7925 = vmatprep.subr.bf16.mxu0 %v5179
    %7926 = vmatpush1.bf16.msra.mxu0 %v5178
    %7927 = vmatprep.subr.bf16.mxu0 %v5211
    %7928 = vmatpush1.bf16.msra.mxu0 %v5210
    %7929 = vmatprep.subr.bf16.mxu0 %v5243
    %7930 = vmatpush1.bf16.msra.mxu0 %v5242
    %7931 = vmatprep.subr.bf16.mxu0 %v5275
    %7932 = vmatpush1.bf16.msra.mxu0 %v5274
    %7933 = vmatprep.subr.bf16.mxu0 %v5307
    %7934 = vmatpush1.bf16.msra.mxu0 %v5306
    %7935 = vmatprep.subr.bf16.mxu0 %v5339
    %7936 = vmatpush1.bf16.msra.mxu0 %v5338
    %7937 = vmatprep.subr.bf16.mxu0 %v5371
    %7938 = vmatpush1.bf16.msra.mxu0 %v5370
    %7939 = vmatprep.subr.bf16.mxu0 %v5403
    %7940 = vmatpush1.bf16.msra.mxu0 %v5402
    %7941 = vmatprep.subr.bf16.mxu0 %v5435
    %7942 = vmatpush1.bf16.msra.mxu0 %v5434
    %7943 = vmatprep.subr.bf16.mxu0 %v5467
    %7944 = vmatpush1.bf16.msra.mxu0 %v5466
    %7945 = vmatprep.subr.bf16.mxu0 %v5499
    %7946 = vmatpush1.bf16.msra.mxu0 %v5498
    %7947 = vmatprep.subr.bf16.mxu0 %v5531
    %7948 = vmatpush1.bf16.msra.mxu0 %v5530
    %7949 = vmatprep.subr.bf16.mxu0 %v5563
    %7950 = vmatpush1.bf16.msra.mxu0 %v5562
    %7951 = vmatprep.subr.bf16.mxu0 %v5595
    %7952 = vmatpush1.bf16.msra.mxu0 %v5594
    %7953 = vmatprep.subr.bf16.mxu0 %v5627
    %7954 = vmatpush1.bf16.msra.mxu0 %v5626
    %7955 = vmatprep.mubr.bf16.mxu0 %v339
    %7956 = vmatmul.mubr.bf16.gmra.mrb[0].mxu0 %v338
    %v7957 = vpop.f32.mrb[0].mxu0
    %v7958 = vadd.f32 %v7917, %v7957
    %v7959 = vpop.f32.mrb[0].mxu0
    %v7960 = vadd.f32 %v7919, %v7959
    %v7961 = vpop.f32.mrb[0].mxu0
    %v7962 = vpop.f32.mrb[0].mxu0
    %7963 = vdwg.mxu0
    %v7964 = vmax.f32 %v6728, 0.0
    %v7965 = vmax.f32 %v6730, 0.0
    %v7966 = vmax.f32 %v6810, 0.0
    %v7967 = vmax.f32 %v6812, 0.0
    %v7968 = vmax.f32 %v6892, 0.0
    %v7969 = vmax.f32 %v6894, 0.0
    %v7970 = vmax.f32 %v6974, 0.0
    %v7971 = vmax.f32 %v6976, 0.0
    %v7972 = vmax.f32 %v7056, 0.0
    %v7973 = vmax.f32 %v7058, 0.0
    %v7974 = vmax.f32 %v7138, 0.0
    %v7975 = vmax.f32 %v7140, 0.0
    %v7976 = vmax.f32 %v7220, 0.0
    %v7977 = vmax.f32 %v7222, 0.0
    %v7978 = vmax.f32 %v7302, 0.0
    %v7979 = vmax.f32 %v7304, 0.0
    %v7980 = vmax.f32 %v7384, 0.0
    %v7981 = vmax.f32 %v7386, 0.0
    %v7982 = vmax.f32 %v7466, 0.0
    %v7983 = vmax.f32 %v7468, 0.0
    %v7984 = vmax.f32 %v7548, 0.0
    %v7985 = vmax.f32 %v7550, 0.0
    %v7986 = vmax.f32 %v7630, 0.0
    %v7987 = vmax.f32 %v7632, 0.0
    %v7988 = vmax.f32 %v7712, 0.0
    %v7989 = vmax.f32 %v7714, 0.0
    %v7990 = vmax.f32 %v7794, 0.0
    %v7991 = vmax.f32 %v7796, 0.0
    %v7992 = vmax.f32 %v7876, 0.0
    %v7993 = vmax.f32 %v7878, 0.0
    %v7994 = vmax.f32 %v7958, 0.0
    %v7995 = vmax.f32 %v7960, 0.0
    %v7996 = vld [vmem:[#allocation13] sm:$0xff]
    %v7997 = vld [vmem:[#allocation13 + $0x8] sm:$0xff]
    %v7998 = vld [vmem:[#allocation13 + $0x10] sm:$0xff]
    %v7999 = vld [vmem:[#allocation13 + $0x18] sm:$0xff]
    %v8000 = vld [vmem:[#allocation14] sm:$0xff]
    %v8001 = vld [vmem:[#allocation14 + $0x8] sm:$0xff]
    %v8002 = vld [vmem:[#allocation14 + $0x10] sm:$0xff]
    %v8003 = vld [vmem:[#allocation14 + $0x18] sm:$0xff]
    %v8004 = vadd.f32 %v7964, %v7965
    %v8005 = vadd.f32 %v8004, %v7966
    %v8006 = vadd.f32 %v8005, %v7967
    %v8007 = vadd.f32 %v8006, %v7968
    %v8008 = vadd.f32 %v8007, %v7969
    %v8009 = vadd.f32 %v8008, %v7970
    %v8010 = vadd.f32 %v8009, %v7971
    %v8011 = vadd.f32 %v8010, %v7972
    %v8012 = vadd.f32 %v8011, %v7973
    %v8013 = vadd.f32 %v8012, %v7974
    %v8014 = vadd.f32 %v8013, %v7975
    %v8015 = vadd.f32 %v8014, %v7976
    %v8016 = vadd.f32 %v8015, %v7977
    %v8017 = vadd.f32 %v8016, %v7978
    %v8018 = vadd.f32 %v8017, %v7979
    %v8019 = vadd.f32 %v8018, %v7980
    %v8020 = vadd.f32 %v8019, %v7981
    %v8021 = vadd.f32 %v8020, %v7982
    %v8022 = vadd.f32 %v8021, %v7983
    %v8023 = vadd.f32 %v8022, %v7984
    %v8024 = vadd.f32 %v8023, %v7985
    %v8025 = vadd.f32 %v8024, %v7986
    %v8026 = vadd.f32 %v8025, %v7987
    %v8027 = vadd.f32 %v8026, %v7988
    %v8028 = vadd.f32 %v8027, %v7989
    %v8029 = vadd.f32 %v8028, %v7990
    %v8030 = vadd.f32 %v8029, %v7991
    %v8031 = vadd.f32 %v8030, %v7992
    %v8032 = vadd.f32 %v8031, %v7993
    %v8033 = vadd.f32 %v8032, %v7994
    %v8034 = vadd.f32 %v8033, %v7995
    %8035 = vadd.xlane.f32.xlu0 %v8034
    %v8036 = vpop.xlane.xlu0 %8035
    %v8037 = vmul.f32 %v8036, 0.00024414063
    %v8038 = vsub.f32 %v7964, %v8037
    %v8039 = vsub.f32 %v7965, %v8037
    %v8040 = vsub.f32 %v7966, %v8037
    %v8041 = vsub.f32 %v7967, %v8037
    %v8042 = vsub.f32 %v7968, %v8037
    %v8043 = vsub.f32 %v7969, %v8037
    %v8044 = vsub.f32 %v7970, %v8037
    %v8045 = vsub.f32 %v7971, %v8037
    %v8046 = vsub.f32 %v7972, %v8037
    %v8047 = vsub.f32 %v7973, %v8037
    %v8048 = vsub.f32 %v7974, %v8037
    %v8049 = vsub.f32 %v7975, %v8037
    %v8050 = vsub.f32 %v7976, %v8037
    %v8051 = vsub.f32 %v7977, %v8037
    %v8052 = vsub.f32 %v7978, %v8037
    %v8053 = vsub.f32 %v7979, %v8037
    %v8054 = vsub.f32 %v7980, %v8037
    %v8055 = vsub.f32 %v7981, %v8037
    %v8056 = vsub.f32 %v7982, %v8037
    %v8057 = vsub.f32 %v7983, %v8037
    %v8058 = vsub.f32 %v7984, %v8037
    %v8059 = vsub.f32 %v7985, %v8037
    %v8060 = vsub.f32 %v7986, %v8037
    %v8061 = vsub.f32 %v7987, %v8037
    %v8062 = vsub.f32 %v7988, %v8037
    %v8063 = vsub.f32 %v7989, %v8037
    %v8064 = vsub.f32 %v7990, %v8037
    %v8065 = vsub.f32 %v7991, %v8037
    %v8066 = vsub.f32 %v7992, %v8037
    %v8067 = vsub.f32 %v7993, %v8037
    %v8068 = vsub.f32 %v7994, %v8037
    %v8069 = vsub.f32 %v7995, %v8037
    %v8070 = vmul.f32 %v8038, %v8038
    %v8071 = vmul.f32 %v8039, %v8039
    %v8072 = vmul.f32 %v8040, %v8040
    %v8073 = vmul.f32 %v8041, %v8041
    %v8074 = vmul.f32 %v8042, %v8042
    %v8075 = vmul.f32 %v8043, %v8043
    %v8076 = vmul.f32 %v8044, %v8044
    %v8077 = vmul.f32 %v8045, %v8045
    %v8078 = vmul.f32 %v8046, %v8046
    %v8079 = vmul.f32 %v8047, %v8047
    %v8080 = vmul.f32 %v8048, %v8048
    %v8081 = vmul.f32 %v8049, %v8049
    %v8082 = vmul.f32 %v8050, %v8050
    %v8083 = vmul.f32 %v8051, %v8051
    %v8084 = vmul.f32 %v8052, %v8052
    %v8085 = vmul.f32 %v8053, %v8053
    %v8086 = vmul.f32 %v8054, %v8054
    %v8087 = vmul.f32 %v8055, %v8055
    %v8088 = vmul.f32 %v8056, %v8056
    %v8089 = vmul.f32 %v8057, %v8057
    %v8090 = vmul.f32 %v8058, %v8058
    %v8091 = vmul.f32 %v8059, %v8059
    %v8092 = vmul.f32 %v8060, %v8060
    %v8093 = vmul.f32 %v8061, %v8061
    %v8094 = vmul.f32 %v8062, %v8062
    %v8095 = vmul.f32 %v8063, %v8063
    %v8096 = vmul.f32 %v8064, %v8064
    %v8097 = vmul.f32 %v8065, %v8065
    %v8098 = vmul.f32 %v8066, %v8066
    %v8099 = vmul.f32 %v8067, %v8067
    %v8100 = vmul.f32 %v8068, %v8068
    %v8101 = vmul.f32 %v8069, %v8069
    %v8102 = vadd.f32 %v8070, %v8071
    %v8103 = vadd.f32 %v8102, %v8072
    %v8104 = vadd.f32 %v8103, %v8073
    %v8105 = vadd.f32 %v8104, %v8074
    %v8106 = vadd.f32 %v8105, %v8075
    %v8107 = vadd.f32 %v8106, %v8076
    %v8108 = vadd.f32 %v8107, %v8077
    %v8109 = vadd.f32 %v8108, %v8078
    %v8110 = vadd.f32 %v8109, %v8079
    %v8111 = vadd.f32 %v8110, %v8080
    %v8112 = vadd.f32 %v8111, %v8081
    %v8113 = vadd.f32 %v8112, %v8082
    %v8114 = vadd.f32 %v8113, %v8083
    %v8115 = vadd.f32 %v8114, %v8084
    %v8116 = vadd.f32 %v8115, %v8085
    %v8117 = vadd.f32 %v8116, %v8086
    %v8118 = vadd.f32 %v8117, %v8087
    %v8119 = vadd.f32 %v8118, %v8088
    %v8120 = vadd.f32 %v8119, %v8089
    %v8121 = vadd.f32 %v8120, %v8090
    %v8122 = vadd.f32 %v8121, %v8091
    %v8123 = vadd.f32 %v8122, %v8092
    %v8124 = vadd.f32 %v8123, %v8093
    %v8125 = vadd.f32 %v8124, %v8094
    %v8126 = vadd.f32 %v8125, %v8095
    %v8127 = vadd.f32 %v8126, %v8096
    %v8128 = vadd.f32 %v8127, %v8097
    %v8129 = vadd.f32 %v8128, %v8098
    %v8130 = vadd.f32 %v8129, %v8099
    %v8131 = vadd.f32 %v8130, %v8100
    %v8132 = vadd.f32 %v8131, %v8101
    %8133 = vadd.xlane.f32.xlu0 %v8132
    %v8134 = vpop.xlane.xlu0 %8133
    %v8135 = vmul.f32 %v8134, 0.00024414063
    %v8136 = vadd.f32 %v8135, 1e-05
    %v8137 = vrsqrt.pop %v8136
    %v8138 = vmul.f32 %v8038, %v8137
    %v8139 = vmul.f32 %v8039, %v8137
    %v8140 = vmul.f32 %v8040, %v8137
    %v8141 = vmul.f32 %v8041, %v8137
    %v8142 = vmul.f32 %v8042, %v8137
    %v8143 = vmul.f32 %v8043, %v8137
    %v8144 = vmul.f32 %v8044, %v8137
    %v8145 = vmul.f32 %v8045, %v8137
    %v8146 = vmul.f32 %v8046, %v8137
    %v8147 = vmul.f32 %v8047, %v8137
    %v8148 = vmul.f32 %v8048, %v8137
    %v8149 = vmul.f32 %v8049, %v8137
    %v8150 = vmul.f32 %v8050, %v8137
    %v8151 = vmul.f32 %v8051, %v8137
    %v8152 = vmul.f32 %v8052, %v8137
    %v8153 = vmul.f32 %v8053, %v8137
    %v8154 = vmul.f32 %v8054, %v8137
    %v8155 = vmul.f32 %v8055, %v8137
    %v8156 = vmul.f32 %v8056, %v8137
    %v8157 = vmul.f32 %v8057, %v8137
    %v8158 = vmul.f32 %v8058, %v8137
    %v8159 = vmul.f32 %v8059, %v8137
    %v8160 = vmul.f32 %v8060, %v8137
    %v8161 = vmul.f32 %v8061, %v8137
    %v8162 = vmul.f32 %v8062, %v8137
    %v8163 = vmul.f32 %v8063, %v8137
    %v8164 = vmul.f32 %v8064, %v8137
    %v8165 = vmul.f32 %v8065, %v8137
    %v8166 = vmul.f32 %v8066, %v8137
    %v8167 = vmul.f32 %v8067, %v8137
    %v8168 = vmul.f32 %v8068, %v8137
    %v8169 = vmul.f32 %v8069, %v8137
    %v8174 = vlaneseq
    %v8175 = vshrl.u32 %v8174, 7
    %v8176 = vsub.s32 0, %v8175
    %v8177 = vrot.slane %v7996, %v8176
    %v8178 = vlaneseq
    %v8179 = vshrl.u32 %v8178, 7
    %v8180 = vsub.s32 1, %v8179
    %v8181 = vrot.slane %v7996, %v8180
    %v8182 = vlaneseq
    %v8183 = vshrl.u32 %v8182, 7
    %v8184 = vsub.s32 2, %v8183
    %v8185 = vrot.slane %v7996, %v8184
    %v8186 = vlaneseq
    %v8187 = vshrl.u32 %v8186, 7
    %v8188 = vsub.s32 3, %v8187
    %v8189 = vrot.slane %v7996, %v8188
    %v8190 = vlaneseq
    %v8191 = vshrl.u32 %v8190, 7
    %v8192 = vsub.s32 4, %v8191
    %v8193 = vrot.slane %v7996, %v8192
    %v8194 = vlaneseq
    %v8195 = vshrl.u32 %v8194, 7
    %v8196 = vsub.s32 5, %v8195
    %v8197 = vrot.slane %v7996, %v8196
    %v8198 = vlaneseq
    %v8199 = vshrl.u32 %v8198, 7
    %v8200 = vsub.s32 6, %v8199
    %v8201 = vrot.slane %v7996, %v8200
    %v8202 = vlaneseq
    %v8203 = vshrl.u32 %v8202, 7
    %v8204 = vsub.s32 7, %v8203
    %v8205 = vrot.slane %v7996, %v8204
    %v8206 = vlaneseq
    %v8207 = vshrl.u32 %v8206, 7
    %v8208 = vsub.s32 0, %v8207
    %v8209 = vrot.slane %v7997, %v8208
    %v8210 = vlaneseq
    %v8211 = vshrl.u32 %v8210, 7
    %v8212 = vsub.s32 1, %v8211
    %v8213 = vrot.slane %v7997, %v8212
    %v8214 = vlaneseq
    %v8215 = vshrl.u32 %v8214, 7
    %v8216 = vsub.s32 2, %v8215
    %v8217 = vrot.slane %v7997, %v8216
    %v8218 = vlaneseq
    %v8219 = vshrl.u32 %v8218, 7
    %v8220 = vsub.s32 3, %v8219
    %v8221 = vrot.slane %v7997, %v8220
    %v8222 = vlaneseq
    %v8223 = vshrl.u32 %v8222, 7
    %v8224 = vsub.s32 4, %v8223
    %v8225 = vrot.slane %v7997, %v8224
    %v8226 = vlaneseq
    %v8227 = vshrl.u32 %v8226, 7
    %v8228 = vsub.s32 5, %v8227
    %v8229 = vrot.slane %v7997, %v8228
    %v8230 = vlaneseq
    %v8231 = vshrl.u32 %v8230, 7
    %v8232 = vsub.s32 6, %v8231
    %v8233 = vrot.slane %v7997, %v8232
    %v8234 = vlaneseq
    %v8235 = vshrl.u32 %v8234, 7
    %v8236 = vsub.s32 7, %v8235
    %v8237 = vrot.slane %v7997, %v8236
    %v8238 = vlaneseq
    %v8239 = vshrl.u32 %v8238, 7
    %v8240 = vsub.s32 0, %v8239
    %v8241 = vrot.slane %v7998, %v8240
    %v8242 = vlaneseq
    %v8243 = vshrl.u32 %v8242, 7
    %v8244 = vsub.s32 1, %v8243
    %v8245 = vrot.slane %v7998, %v8244
    %v8246 = vlaneseq
    %v8247 = vshrl.u32 %v8246, 7
    %v8248 = vsub.s32 2, %v8247
    %v8249 = vrot.slane %v7998, %v8248
    %v8250 = vlaneseq
    %v8251 = vshrl.u32 %v8250, 7
    %v8252 = vsub.s32 3, %v8251
    %v8253 = vrot.slane %v7998, %v8252
    %v8254 = vlaneseq
    %v8255 = vshrl.u32 %v8254, 7
    %v8256 = vsub.s32 4, %v8255
    %v8257 = vrot.slane %v7998, %v8256
    %v8258 = vlaneseq
    %v8259 = vshrl.u32 %v8258, 7
    %v8260 = vsub.s32 5, %v8259
    %v8261 = vrot.slane %v7998, %v8260
    %v8262 = vlaneseq
    %v8263 = vshrl.u32 %v8262, 7
    %v8264 = vsub.s32 6, %v8263
    %v8265 = vrot.slane %v7998, %v8264
    %v8266 = vlaneseq
    %v8267 = vshrl.u32 %v8266, 7
    %v8268 = vsub.s32 7, %v8267
    %v8269 = vrot.slane %v7998, %v8268
    %v8270 = vlaneseq
    %v8271 = vshrl.u32 %v8270, 7
    %v8272 = vsub.s32 0, %v8271
    %v8273 = vrot.slane %v7999, %v8272
    %v8274 = vlaneseq
    %v8275 = vshrl.u32 %v8274, 7
    %v8276 = vsub.s32 1, %v8275
    %v8277 = vrot.slane %v7999, %v8276
    %v8278 = vlaneseq
    %v8279 = vshrl.u32 %v8278, 7
    %v8280 = vsub.s32 2, %v8279
    %v8281 = vrot.slane %v7999, %v8280
    %v8282 = vlaneseq
    %v8283 = vshrl.u32 %v8282, 7
    %v8284 = vsub.s32 3, %v8283
    %v8285 = vrot.slane %v7999, %v8284
    %v8286 = vlaneseq
    %v8287 = vshrl.u32 %v8286, 7
    %v8288 = vsub.s32 4, %v8287
    %v8289 = vrot.slane %v7999, %v8288
    %v8290 = vlaneseq
    %v8291 = vshrl.u32 %v8290, 7
    %v8292 = vsub.s32 5, %v8291
    %v8293 = vrot.slane %v7999, %v8292
    %v8294 = vlaneseq
    %v8295 = vshrl.u32 %v8294, 7
    %v8296 = vsub.s32 6, %v8295
    %v8297 = vrot.slane %v7999, %v8296
    %v8298 = vlaneseq
    %v8299 = vshrl.u32 %v8298, 7
    %v8300 = vsub.s32 7, %v8299
    %v8301 = vrot.slane %v7999, %v8300
    %v8334 = vmul.f32 %v8138, %v8177
    %v8335 = vmul.f32 %v8139, %v8181
    %v8336 = vmul.f32 %v8140, %v8185
    %v8337 = vmul.f32 %v8141, %v8189
    %v8338 = vmul.f32 %v8142, %v8193
    %v8339 = vmul.f32 %v8143, %v8197
    %v8340 = vmul.f32 %v8144, %v8201
    %v8341 = vmul.f32 %v8145, %v8205
    %v8342 = vmul.f32 %v8146, %v8209
    %v8343 = vmul.f32 %v8147, %v8213
    %v8344 = vmul.f32 %v8148, %v8217
    %v8345 = vmul.f32 %v8149, %v8221
    %v8346 = vmul.f32 %v8150, %v8225
    %v8347 = vmul.f32 %v8151, %v8229
    %v8348 = vmul.f32 %v8152, %v8233
    %v8349 = vmul.f32 %v8153, %v8237
    %v8350 = vmul.f32 %v8154, %v8241
    %v8351 = vmul.f32 %v8155, %v8245
    %v8352 = vmul.f32 %v8156, %v8249
    %v8353 = vmul.f32 %v8157, %v8253
    %v8354 = vmul.f32 %v8158, %v8257
    %v8355 = vmul.f32 %v8159, %v8261
    %v8356 = vmul.f32 %v8160, %v8265
    %v8357 = vmul.f32 %v8161, %v8269
    %v8358 = vmul.f32 %v8162, %v8273
    %v8359 = vmul.f32 %v8163, %v8277
    %v8360 = vmul.f32 %v8164, %v8281
    %v8361 = vmul.f32 %v8165, %v8285
    %v8362 = vmul.f32 %v8166, %v8289
    %v8363 = vmul.f32 %v8167, %v8293
    %v8364 = vmul.f32 %v8168, %v8297
    %v8365 = vmul.f32 %v8169, %v8301
    %v8370 = vlaneseq
    %v8371 = vshrl.u32 %v8370, 7
    %v8372 = vsub.s32 0, %v8371
    %v8373 = vrot.slane %v8000, %v8372
    %v8374 = vlaneseq
    %v8375 = vshrl.u32 %v8374, 7
    %v8376 = vsub.s32 1, %v8375
    %v8377 = vrot.slane %v8000, %v8376
    %v8378 = vlaneseq
    %v8379 = vshrl.u32 %v8378, 7
    %v8380 = vsub.s32 2, %v8379
    %v8381 = vrot.slane %v8000, %v8380
    %v8382 = vlaneseq
    %v8383 = vshrl.u32 %v8382, 7
    %v8384 = vsub.s32 3, %v8383
    %v8385 = vrot.slane %v8000, %v8384
    %v8386 = vlaneseq
    %v8387 = vshrl.u32 %v8386, 7
    %v8388 = vsub.s32 4, %v8387
    %v8389 = vrot.slane %v8000, %v8388
    %v8390 = vlaneseq
    %v8391 = vshrl.u32 %v8390, 7
    %v8392 = vsub.s32 5, %v8391
    %v8393 = vrot.slane %v8000, %v8392
    %v8394 = vlaneseq
    %v8395 = vshrl.u32 %v8394, 7
    %v8396 = vsub.s32 6, %v8395
    %v8397 = vrot.slane %v8000, %v8396
    %v8398 = vlaneseq
    %v8399 = vshrl.u32 %v8398, 7
    %v8400 = vsub.s32 7, %v8399
    %v8401 = vrot.slane %v8000, %v8400
    %v8402 = vlaneseq
    %v8403 = vshrl.u32 %v8402, 7
    %v8404 = vsub.s32 0, %v8403
    %v8405 = vrot.slane %v8001, %v8404
    %v8406 = vlaneseq
    %v8407 = vshrl.u32 %v8406, 7
    %v8408 = vsub.s32 1, %v8407
    %v8409 = vrot.slane %v8001, %v8408
    %v8410 = vlaneseq
    %v8411 = vshrl.u32 %v8410, 7
    %v8412 = vsub.s32 2, %v8411
    %v8413 = vrot.slane %v8001, %v8412
    %v8414 = vlaneseq
    %v8415 = vshrl.u32 %v8414, 7
    %v8416 = vsub.s32 3, %v8415
    %v8417 = vrot.slane %v8001, %v8416
    %v8418 = vlaneseq
    %v8419 = vshrl.u32 %v8418, 7
    %v8420 = vsub.s32 4, %v8419
    %v8421 = vrot.slane %v8001, %v8420
    %v8422 = vlaneseq
    %v8423 = vshrl.u32 %v8422, 7
    %v8424 = vsub.s32 5, %v8423
    %v8425 = vrot.slane %v8001, %v8424
    %v8426 = vlaneseq
    %v8427 = vshrl.u32 %v8426, 7
    %v8428 = vsub.s32 6, %v8427
    %v8429 = vrot.slane %v8001, %v8428
    %v8430 = vlaneseq
    %v8431 = vshrl.u32 %v8430, 7
    %v8432 = vsub.s32 7, %v8431
    %v8433 = vrot.slane %v8001, %v8432
    %v8434 = vlaneseq
    %v8435 = vshrl.u32 %v8434, 7
    %v8436 = vsub.s32 0, %v8435
    %v8437 = vrot.slane %v8002, %v8436
    %v8438 = vlaneseq
    %v8439 = vshrl.u32 %v8438, 7
    %v8440 = vsub.s32 1, %v8439
    %v8441 = vrot.slane %v8002, %v8440
    %v8442 = vlaneseq
    %v8443 = vshrl.u32 %v8442, 7
    %v8444 = vsub.s32 2, %v8443
    %v8445 = vrot.slane %v8002, %v8444
    %v8446 = vlaneseq
    %v8447 = vshrl.u32 %v8446, 7
    %v8448 = vsub.s32 3, %v8447
    %v8449 = vrot.slane %v8002, %v8448
    %v8450 = vlaneseq
    %v8451 = vshrl.u32 %v8450, 7
    %v8452 = vsub.s32 4, %v8451
    %v8453 = vrot.slane %v8002, %v8452
    %v8454 = vlaneseq
    %v8455 = vshrl.u32 %v8454, 7
    %v8456 = vsub.s32 5, %v8455
    %v8457 = vrot.slane %v8002, %v8456
    %v8458 = vlaneseq
    %v8459 = vshrl.u32 %v8458, 7
    %v8460 = vsub.s32 6, %v8459
    %v8461 = vrot.slane %v8002, %v8460
    %v8462 = vlaneseq
    %v8463 = vshrl.u32 %v8462, 7
    %v8464 = vsub.s32 7, %v8463
    %v8465 = vrot.slane %v8002, %v8464
    %v8466 = vlaneseq
    %v8467 = vshrl.u32 %v8466, 7
    %v8468 = vsub.s32 0, %v8467
    %v8469 = vrot.slane %v8003, %v8468
    %v8470 = vlaneseq
    %v8471 = vshrl.u32 %v8470, 7
    %v8472 = vsub.s32 1, %v8471
    %v8473 = vrot.slane %v8003, %v8472
    %v8474 = vlaneseq
    %v8475 = vshrl.u32 %v8474, 7
    %v8476 = vsub.s32 2, %v8475
    %v8477 = vrot.slane %v8003, %v8476
    %v8478 = vlaneseq
    %v8479 = vshrl.u32 %v8478, 7
    %v8480 = vsub.s32 3, %v8479
    %v8481 = vrot.slane %v8003, %v8480
    %v8482 = vlaneseq
    %v8483 = vshrl.u32 %v8482, 7
    %v8484 = vsub.s32 4, %v8483
    %v8485 = vrot.slane %v8003, %v8484
    %v8486 = vlaneseq
    %v8487 = vshrl.u32 %v8486, 7
    %v8488 = vsub.s32 5, %v8487
    %v8489 = vrot.slane %v8003, %v8488
    %v8490 = vlaneseq
    %v8491 = vshrl.u32 %v8490, 7
    %v8492 = vsub.s32 6, %v8491
    %v8493 = vrot.slane %v8003, %v8492
    %v8494 = vlaneseq
    %v8495 = vshrl.u32 %v8494, 7
    %v8496 = vsub.s32 7, %v8495
    %v8497 = vrot.slane %v8003, %v8496
    %v8530 = vadd.f32 %v8334, %v8373
    %v8531 = vadd.f32 %v8335, %v8377
    %v8532 = vadd.f32 %v8336, %v8381
    %v8533 = vadd.f32 %v8337, %v8385
    %v8534 = vadd.f32 %v8338, %v8389
    %v8535 = vadd.f32 %v8339, %v8393
    %v8536 = vadd.f32 %v8340, %v8397
    %v8537 = vadd.f32 %v8341, %v8401
    %v8538 = vadd.f32 %v8342, %v8405
    %v8539 = vadd.f32 %v8343, %v8409
    %v8540 = vadd.f32 %v8344, %v8413
    %v8541 = vadd.f32 %v8345, %v8417
    %v8542 = vadd.f32 %v8346, %v8421
    %v8543 = vadd.f32 %v8347, %v8425
    %v8544 = vadd.f32 %v8348, %v8429
    %v8545 = vadd.f32 %v8349, %v8433
    %v8546 = vadd.f32 %v8350, %v8437
    %v8547 = vadd.f32 %v8351, %v8441
    %v8548 = vadd.f32 %v8352, %v8445
    %v8549 = vadd.f32 %v8353, %v8449
    %v8550 = vadd.f32 %v8354, %v8453
    %v8551 = vadd.f32 %v8355, %v8457
    %v8552 = vadd.f32 %v8356, %v8461
    %v8553 = vadd.f32 %v8357, %v8465
    %v8554 = vadd.f32 %v8358, %v8469
    %v8555 = vadd.f32 %v8359, %v8473
    %v8556 = vadd.f32 %v8360, %v8477
    %v8557 = vadd.f32 %v8361, %v8481
    %v8558 = vadd.f32 %v8362, %v8485
    %v8559 = vadd.f32 %v8363, %v8489
    %v8560 = vadd.f32 %v8364, %v8493
    %v8561 = vadd.f32 %v8365, %v8497
    %v8562 = vpack.c.bf16 %v8530, %v8530
    %v8563 = vpack.c.bf16 %v8531, %v8531
    %v8564 = vpack.c.bf16 %v8532, %v8532
    %v8565 = vpack.c.bf16 %v8533, %v8533
    %v8566 = vpack.c.bf16 %v8534, %v8534
    %v8567 = vpack.c.bf16 %v8535, %v8535
    %v8568 = vpack.c.bf16 %v8536, %v8536
    %v8569 = vpack.c.bf16 %v8537, %v8537
    %v8570 = vpack.c.bf16 %v8538, %v8538
    %v8571 = vpack.c.bf16 %v8539, %v8539
    %v8572 = vpack.c.bf16 %v8540, %v8540
    %v8573 = vpack.c.bf16 %v8541, %v8541
    %v8574 = vpack.c.bf16 %v8542, %v8542
    %v8575 = vpack.c.bf16 %v8543, %v8543
    %v8576 = vpack.c.bf16 %v8544, %v8544
    %v8577 = vpack.c.bf16 %v8545, %v8545
    %v8578 = vpack.c.bf16 %v8546, %v8546
    %v8579 = vpack.c.bf16 %v8547, %v8547
    %v8580 = vpack.c.bf16 %v8548, %v8548
    %v8581 = vpack.c.bf16 %v8549, %v8549
    %v8582 = vpack.c.bf16 %v8550, %v8550
    %v8583 = vpack.c.bf16 %v8551, %v8551
    %v8584 = vpack.c.bf16 %v8552, %v8552
    %v8585 = vpack.c.bf16 %v8553, %v8553
    %v8586 = vpack.c.bf16 %v8554, %v8554
    %v8587 = vpack.c.bf16 %v8555, %v8555
    %v8588 = vpack.c.bf16 %v8556, %v8556
    %v8589 = vpack.c.bf16 %v8557, %v8557
    %v8590 = vpack.c.bf16 %v8558, %v8558
    %v8591 = vpack.c.bf16 %v8559, %v8559
    %v8592 = vpack.c.bf16 %v8560, %v8560
    %v8593 = vpack.c.bf16 %v8561, %v8561
    %v8626 = vunpack.c.l.b16 %v8562
    %v8627 = vunpack.c.l.b16 %v8563
    %v8628 = vunpack.c.l.b16 %v8564
    %v8629 = vunpack.c.l.b16 %v8565
    %v8630 = vunpack.c.l.b16 %v8566
    %v8631 = vunpack.c.l.b16 %v8567
    %v8632 = vunpack.c.l.b16 %v8568
    %v8633 = vunpack.c.l.b16 %v8569
    %v8634 = vunpack.c.l.b16 %v8570
    %v8635 = vunpack.c.l.b16 %v8571
    %v8636 = vunpack.c.l.b16 %v8572
    %v8637 = vunpack.c.l.b16 %v8573
    %v8638 = vunpack.c.l.b16 %v8574
    %v8639 = vunpack.c.l.b16 %v8575
    %v8640 = vunpack.c.l.b16 %v8576
    %v8641 = vunpack.c.l.b16 %v8577
    %v8642 = vunpack.c.l.b16 %v8578
    %v8643 = vunpack.c.l.b16 %v8579
    %v8644 = vunpack.c.l.b16 %v8580
    %v8645 = vunpack.c.l.b16 %v8581
    %v8646 = vunpack.c.l.b16 %v8582
    %v8647 = vunpack.c.l.b16 %v8583
    %v8648 = vunpack.c.l.b16 %v8584
    %v8649 = vunpack.c.l.b16 %v8585
    %v8650 = vunpack.c.l.b16 %v8586
    %v8651 = vunpack.c.l.b16 %v8587
    %v8652 = vunpack.c.l.b16 %v8588
    %v8653 = vunpack.c.l.b16 %v8589
    %v8654 = vunpack.c.l.b16 %v8590
    %v8655 = vunpack.c.l.b16 %v8591
    %v8656 = vunpack.c.l.b16 %v8592
    %v8657 = vunpack.c.l.b16 %v8593
    %v8658 = vpack.c.b16 %v8627, %v8626
    %v8659 = vpack.c.b16 %v8629, %v8628
    %v8660 = vpack.c.b16 %v8631, %v8630
    %v8661 = vpack.c.b16 %v8633, %v8632
    %v8662 = vpack.c.b16 %v8635, %v8634
    %v8663 = vpack.c.b16 %v8637, %v8636
    %v8664 = vpack.c.b16 %v8639, %v8638
    %v8665 = vpack.c.b16 %v8641, %v8640
    %v8666 = vpack.c.b16 %v8643, %v8642
    %v8667 = vpack.c.b16 %v8645, %v8644
    %v8668 = vpack.c.b16 %v8647, %v8646
    %v8669 = vpack.c.b16 %v8649, %v8648
    %v8670 = vpack.c.b16 %v8651, %v8650
    %v8671 = vpack.c.b16 %v8653, %v8652
    %v8672 = vpack.c.b16 %v8655, %v8654
    %v8673 = vpack.c.b16 %v8657, %v8656
    %8690 = vst [vmem:[#allocation16] sm:$0xff] %v8658
    %8691 = vst [vmem:[#allocation16 + $0x8] sm:$0xff] %v8659
    %8692 = vst [vmem:[#allocation16 + $0x10] sm:$0xff] %v8660
    %8693 = vst [vmem:[#allocation16 + $0x18] sm:$0xff] %v8661
    %8694 = vst [vmem:[#allocation16 + $0x20] sm:$0xff] %v8662
    %8695 = vst [vmem:[#allocation16 + $0x28] sm:$0xff] %v8663
    %8696 = vst [vmem:[#allocation16 + $0x30] sm:$0xff] %v8664
    %8697 = vst [vmem:[#allocation16 + $0x38] sm:$0xff] %v8665
    %8698 = vst [vmem:[#allocation16 + $0x40] sm:$0xff] %v8666
    %8699 = vst [vmem:[#allocation16 + $0x48] sm:$0xff] %v8667
    %8700 = vst [vmem:[#allocation16 + $0x50] sm:$0xff] %v8668
    %8701 = vst [vmem:[#allocation16 + $0x58] sm:$0xff] %v8669
    %8702 = vst [vmem:[#allocation16 + $0x60] sm:$0xff] %v8670
    %8703 = vst [vmem:[#allocation16 + $0x68] sm:$0xff] %v8671
    %8704 = vst [vmem:[#allocation16 + $0x70] sm:$0xff] %v8672
    %8705 = vst [vmem:[#allocation16 + $0x78] sm:$0xff] %v8673
    %v8706 = vand.u32 2147483647, %v8530
    %v8707 = vand.u32 2147483647, %v8531
    %v8708 = vand.u32 2147483647, %v8532
    %v8709 = vand.u32 2147483647, %v8533
    %v8710 = vand.u32 2147483647, %v8534
    %v8711 = vand.u32 2147483647, %v8535
    %v8712 = vand.u32 2147483647, %v8536
    %v8713 = vand.u32 2147483647, %v8537
    %v8714 = vand.u32 2147483647, %v8538
    %v8715 = vand.u32 2147483647, %v8539
    %v8716 = vand.u32 2147483647, %v8540
    %v8717 = vand.u32 2147483647, %v8541
    %v8718 = vand.u32 2147483647, %v8542
    %v8719 = vand.u32 2147483647, %v8543
    %v8720 = vand.u32 2147483647, %v8544
    %v8721 = vand.u32 2147483647, %v8545
    %v8722 = vand.u32 2147483647, %v8546
    %v8723 = vand.u32 2147483647, %v8547
    %v8724 = vand.u32 2147483647, %v8548
    %v8725 = vand.u32 2147483647, %v8549
    %v8726 = vand.u32 2147483647, %v8550
    %v8727 = vand.u32 2147483647, %v8551
    %v8728 = vand.u32 2147483647, %v8552
    %v8729 = vand.u32 2147483647, %v8553
    %v8730 = vand.u32 2147483647, %v8554
    %v8731 = vand.u32 2147483647, %v8555
    %v8732 = vand.u32 2147483647, %v8556
    %v8733 = vand.u32 2147483647, %v8557
    %v8734 = vand.u32 2147483647, %v8558
    %v8735 = vand.u32 2147483647, %v8559
    %v8736 = vand.u32 2147483647, %v8560
    %v8737 = vand.u32 2147483647, %v8561
    %v8738 = vmax.f32 %v8706, %v8710
    %v8739 = vmax.f32 %v8707, %v8711
    %v8740 = vmax.f32 %v8708, %v8712
    %v8741 = vmax.f32 %v8709, %v8713
    %v8742 = vmax.f32 %v8738, %v8714
    %v8743 = vmax.f32 %v8739, %v8715
    %v8744 = vmax.f32 %v8740, %v8716
    %v8745 = vmax.f32 %v8741, %v8717
    %v8746 = vmax.f32 %v8742, %v8718
    %v8747 = vmax.f32 %v8743, %v8719
    %v8748 = vmax.f32 %v8744, %v8720
    %v8749 = vmax.f32 %v8745, %v8721
    %v8750 = vmax.f32 %v8746, %v8722
    %v8751 = vmax.f32 %v8747, %v8723
    %v8752 = vmax.f32 %v8748, %v8724
    %v8753 = vmax.f32 %v8749, %v8725
    %v8754 = vmax.f32 %v8750, %v8726
    %v8755 = vmax.f32 %v8751, %v8727
    %v8756 = vmax.f32 %v8752, %v8728
    %v8757 = vmax.f32 %v8753, %v8729
    %v8758 = vmax.f32 %v8754, %v8730
    %v8759 = vmax.f32 %v8755, %v8731
    %v8760 = vmax.f32 %v8756, %v8732
    %v8761 = vmax.f32 %v8757, %v8733
    %v8762 = vmax.f32 %v8758, %v8734
    %v8763 = vmax.f32 %v8759, %v8735
    %v8764 = vmax.f32 %v8760, %v8736
    %v8765 = vmax.f32 %v8761, %v8737
    %v8766 = vmax.f32 %v8762, %v8763
    %v8767 = vmax.f32 %v8764, %v8765
    %v8768 = vmax.f32 %v8766, %v8767
    %8769 = vmax.xlane.f32.xlu0 %v8768
    %v8770 = vpop.xlane.xlu0 %8769
    %vm8771 = vcmp.gt.f32.partialorder %v8770, 0.0
    %v8772 = vrcp.pop 127.0
    %v8773 = vmul.f32 %v8770, %v8772
    %v8774 = vsel %vm8771, %v8773, 1.0
    %v8775 = vrcp.pop %v8774
    %v8776 = vmul.f32 %v8530, %v8775
    %v8777 = vmul.f32 %v8531, %v8775
    %v8778 = vmul.f32 %v8532, %v8775
    %v8779 = vmul.f32 %v8533, %v8775
    %v8780 = vmul.f32 %v8534, %v8775
    %v8781 = vmul.f32 %v8535, %v8775
    %v8782 = vmul.f32 %v8536, %v8775
    %v8783 = vmul.f32 %v8537, %v8775
    %v8784 = vmul.f32 %v8538, %v8775
    %v8785 = vmul.f32 %v8539, %v8775
    %v8786 = vmul.f32 %v8540, %v8775
    %v8787 = vmul.f32 %v8541, %v8775
    %v8788 = vmul.f32 %v8542, %v8775
    %v8789 = vmul.f32 %v8543, %v8775
    %v8790 = vmul.f32 %v8544, %v8775
    %v8791 = vmul.f32 %v8545, %v8775
    %v8792 = vmul.f32 %v8546, %v8775
    %v8793 = vmul.f32 %v8547, %v8775
    %v8794 = vmul.f32 %v8548, %v8775
    %v8795 = vmul.f32 %v8549, %v8775
    %v8796 = vmul.f32 %v8550, %v8775
    %v8797 = vmul.f32 %v8551, %v8775
    %v8798 = vmul.f32 %v8552, %v8775
    %v8799 = vmul.f32 %v8553, %v8775
    %v8800 = vmul.f32 %v8554, %v8775
    %v8801 = vmul.f32 %v8555, %v8775
    %v8802 = vmul.f32 %v8556, %v8775
    %v8803 = vmul.f32 %v8557, %v8775
    %v8804 = vmul.f32 %v8558, %v8775
    %v8805 = vmul.f32 %v8559, %v8775
    %v8806 = vmul.f32 %v8560, %v8775
    %v8807 = vmul.f32 %v8561, %v8775
    %v8808 = vround.ne.pseudo %v8776
    %v8809 = vround.ne.pseudo %v8777
    %v8810 = vround.ne.pseudo %v8778
    %v8811 = vround.ne.pseudo %v8779
    %v8812 = vround.ne.pseudo %v8780
    %v8813 = vround.ne.pseudo %v8781
    %v8814 = vround.ne.pseudo %v8782
    %v8815 = vround.ne.pseudo %v8783
    %v8816 = vround.ne.pseudo %v8784
    %v8817 = vround.ne.pseudo %v8785
    %v8818 = vround.ne.pseudo %v8786
    %v8819 = vround.ne.pseudo %v8787
    %v8820 = vround.ne.pseudo %v8788
    %v8821 = vround.ne.pseudo %v8789
    %v8822 = vround.ne.pseudo %v8790
    %v8823 = vround.ne.pseudo %v8791
    %v8824 = vround.ne.pseudo %v8792
    %v8825 = vround.ne.pseudo %v8793
    %v8826 = vround.ne.pseudo %v8794
    %v8827 = vround.ne.pseudo %v8795
    %v8828 = vround.ne.pseudo %v8796
    %v8829 = vround.ne.pseudo %v8797
    %v8830 = vround.ne.pseudo %v8798
    %v8831 = vround.ne.pseudo %v8799
    %v8832 = vround.ne.pseudo %v8800
    %v8833 = vround.ne.pseudo %v8801
    %v8834 = vround.ne.pseudo %v8802
    %v8835 = vround.ne.pseudo %v8803
    %v8836 = vround.ne.pseudo %v8804
    %v8837 = vround.ne.pseudo %v8805
    %v8838 = vround.ne.pseudo %v8806
    %v8839 = vround.ne.pseudo %v8807
    %v8840 = vmax.f32 %v8808, -127.0
    %v8841 = vmax.f32 %v8809, -127.0
    %v8842 = vmax.f32 %v8810, -127.0
    %v8843 = vmax.f32 %v8811, -127.0
    %v8844 = vmax.f32 %v8812, -127.0
    %v8845 = vmax.f32 %v8813, -127.0
    %v8846 = vmax.f32 %v8814, -127.0
    %v8847 = vmax.f32 %v8815, -127.0
    %v8848 = vmax.f32 %v8816, -127.0
    %v8849 = vmax.f32 %v8817, -127.0
    %v8850 = vmax.f32 %v8818, -127.0
    %v8851 = vmax.f32 %v8819, -127.0
    %v8852 = vmax.f32 %v8820, -127.0
    %v8853 = vmax.f32 %v8821, -127.0
    %v8854 = vmax.f32 %v8822, -127.0
    %v8855 = vmax.f32 %v8823, -127.0
    %v8856 = vmax.f32 %v8824, -127.0
    %v8857 = vmax.f32 %v8825, -127.0
    %v8858 = vmax.f32 %v8826, -127.0
    %v8859 = vmax.f32 %v8827, -127.0
    %v8860 = vmax.f32 %v8828, -127.0
    %v8861 = vmax.f32 %v8829, -127.0
    %v8862 = vmax.f32 %v8830, -127.0
    %v8863 = vmax.f32 %v8831, -127.0
    %v8864 = vmax.f32 %v8832, -127.0
    %v8865 = vmax.f32 %v8833, -127.0
    %v8866 = vmax.f32 %v8834, -127.0
    %v8867 = vmax.f32 %v8835, -127.0
    %v8868 = vmax.f32 %v8836, -127.0
    %v8869 = vmax.f32 %v8837, -127.0
    %v8870 = vmax.f32 %v8838, -127.0
    %v8871 = vmax.f32 %v8839, -127.0
    %v8872 = vmin.f32 %v8840, 127.0
    %v8873 = vmin.f32 %v8841, 127.0
    %v8874 = vmin.f32 %v8842, 127.0
    %v8875 = vmin.f32 %v8843, 127.0
    %v8876 = vmin.f32 %v8844, 127.0
    %v8877 = vmin.f32 %v8845, 127.0
    %v8878 = vmin.f32 %v8846, 127.0
    %v8879 = vmin.f32 %v8847, 127.0
    %v8880 = vmin.f32 %v8848, 127.0
    %v8881 = vmin.f32 %v8849, 127.0
    %v8882 = vmin.f32 %v8850, 127.0
    %v8883 = vmin.f32 %v8851, 127.0
    %v8884 = vmin.f32 %v8852, 127.0
    %v8885 = vmin.f32 %v8853, 127.0
    %v8886 = vmin.f32 %v8854, 127.0
    %v8887 = vmin.f32 %v8855, 127.0
    %v8888 = vmin.f32 %v8856, 127.0
    %v8889 = vmin.f32 %v8857, 127.0
    %v8890 = vmin.f32 %v8858, 127.0
    %v8891 = vmin.f32 %v8859, 127.0
    %v8892 = vmin.f32 %v8860, 127.0
    %v8893 = vmin.f32 %v8861, 127.0
    %v8894 = vmin.f32 %v8862, 127.0
    %v8895 = vmin.f32 %v8863, 127.0
    %v8896 = vmin.f32 %v8864, 127.0
    %v8897 = vmin.f32 %v8865, 127.0
    %v8898 = vmin.f32 %v8866, 127.0
    %v8899 = vmin.f32 %v8867, 127.0
    %v8900 = vmin.f32 %v8868, 127.0
    %v8901 = vmin.f32 %v8869, 127.0
    %v8902 = vmin.f32 %v8870, 127.0
    %v8903 = vmin.f32 %v8871, 127.0
    %v8904 = vtrunc.f32 %v8872
    %v8905 = vtrunc.f32 %v8873
    %v8906 = vtrunc.f32 %v8874
    %v8907 = vtrunc.f32 %v8875
    %v8908 = vtrunc.f32 %v8876
    %v8909 = vtrunc.f32 %v8877
    %v8910 = vtrunc.f32 %v8878
    %v8911 = vtrunc.f32 %v8879
    %v8912 = vtrunc.f32 %v8880
    %v8913 = vtrunc.f32 %v8881
    %v8914 = vtrunc.f32 %v8882
    %v8915 = vtrunc.f32 %v8883
    %v8916 = vtrunc.f32 %v8884
    %v8917 = vtrunc.f32 %v8885
    %v8918 = vtrunc.f32 %v8886
    %v8919 = vtrunc.f32 %v8887
    %v8920 = vtrunc.f32 %v8888
    %v8921 = vtrunc.f32 %v8889
    %v8922 = vtrunc.f32 %v8890
    %v8923 = vtrunc.f32 %v8891
    %v8924 = vtrunc.f32 %v8892
    %v8925 = vtrunc.f32 %v8893
    %v8926 = vtrunc.f32 %v8894
    %v8927 = vtrunc.f32 %v8895
    %v8928 = vtrunc.f32 %v8896
    %v8929 = vtrunc.f32 %v8897
    %v8930 = vtrunc.f32 %v8898
    %v8931 = vtrunc.f32 %v8899
    %v8932 = vtrunc.f32 %v8900
    %v8933 = vtrunc.f32 %v8901
    %v8934 = vtrunc.f32 %v8902
    %v8935 = vtrunc.f32 %v8903
    %v8936 = vpack.c.f32.eXmY %v8904, %v8904, 312
    %v8940 = vpack.c.b8 %v8936, %v8936
    %v8942 = vpack.c.f32.eXmY %v8905, %v8905, 312
    %v8946 = vpack.c.b8 %v8942, %v8942
    %v8948 = vpack.c.f32.eXmY %v8906, %v8906, 312
    %v8952 = vpack.c.b8 %v8948, %v8948
    %v8954 = vpack.c.f32.eXmY %v8907, %v8907, 312
    %v8958 = vpack.c.b8 %v8954, %v8954
    %v8960 = vpack.c.f32.eXmY %v8908, %v8908, 312
    %v8964 = vpack.c.b8 %v8960, %v8960
    %v8966 = vpack.c.f32.eXmY %v8909, %v8909, 312
    %v8970 = vpack.c.b8 %v8966, %v8966
    %v8972 = vpack.c.f32.eXmY %v8910, %v8910, 312
    %v8976 = vpack.c.b8 %v8972, %v8972
    %v8978 = vpack.c.f32.eXmY %v8911, %v8911, 312
    %v8982 = vpack.c.b8 %v8978, %v8978
    %v8984 = vpack.c.f32.eXmY %v8912, %v8912, 312
    %v8988 = vpack.c.b8 %v8984, %v8984
    %v8990 = vpack.c.f32.eXmY %v8913, %v8913, 312
    %v8994 = vpack.c.b8 %v8990, %v8990
    %v8996 = vpack.c.f32.eXmY %v8914, %v8914, 312
    %v9000 = vpack.c.b8 %v8996, %v8996
    %v9002 = vpack.c.f32.eXmY %v8915, %v8915, 312
    %v9006 = vpack.c.b8 %v9002, %v9002
    %v9008 = vpack.c.f32.eXmY %v8916, %v8916, 312
    %v9012 = vpack.c.b8 %v9008, %v9008
    %v9014 = vpack.c.f32.eXmY %v8917, %v8917, 312
    %v9018 = vpack.c.b8 %v9014, %v9014
    %v9020 = vpack.c.f32.eXmY %v8918, %v8918, 312
    %v9024 = vpack.c.b8 %v9020, %v9020
    %v9026 = vpack.c.f32.eXmY %v8919, %v8919, 312
    %v9030 = vpack.c.b8 %v9026, %v9026
    %v9032 = vpack.c.f32.eXmY %v8920, %v8920, 312
    %v9036 = vpack.c.b8 %v9032, %v9032
    %v9038 = vpack.c.f32.eXmY %v8921, %v8921, 312
    %v9042 = vpack.c.b8 %v9038, %v9038
    %v9044 = vpack.c.f32.eXmY %v8922, %v8922, 312
    %v9048 = vpack.c.b8 %v9044, %v9044
    %v9050 = vpack.c.f32.eXmY %v8923, %v8923, 312
    %v9054 = vpack.c.b8 %v9050, %v9050
    %v9056 = vpack.c.f32.eXmY %v8924, %v8924, 312
    %v9060 = vpack.c.b8 %v9056, %v9056
    %v9062 = vpack.c.f32.eXmY %v8925, %v8925, 312
    %v9066 = vpack.c.b8 %v9062, %v9062
    %v9068 = vpack.c.f32.eXmY %v8926, %v8926, 312
    %v9072 = vpack.c.b8 %v9068, %v9068
    %v9074 = vpack.c.f32.eXmY %v8927, %v8927, 312
    %v9078 = vpack.c.b8 %v9074, %v9074
    %v9080 = vpack.c.f32.eXmY %v8928, %v8928, 312
    %v9084 = vpack.c.b8 %v9080, %v9080
    %v9086 = vpack.c.f32.eXmY %v8929, %v8929, 312
    %v9090 = vpack.c.b8 %v9086, %v9086
    %v9092 = vpack.c.f32.eXmY %v8930, %v8930, 312
    %v9096 = vpack.c.b8 %v9092, %v9092
    %v9098 = vpack.c.f32.eXmY %v8931, %v8931, 312
    %v9102 = vpack.c.b8 %v9098, %v9098
    %v9104 = vpack.c.f32.eXmY %v8932, %v8932, 312
    %v9108 = vpack.c.b8 %v9104, %v9104
    %v9110 = vpack.c.f32.eXmY %v8933, %v8933, 312
    %v9114 = vpack.c.b8 %v9110, %v9110
    %v9116 = vpack.c.f32.eXmY %v8934, %v8934, 312
    %v9120 = vpack.c.b8 %v9116, %v9116
    %v9122 = vpack.c.f32.eXmY %v8935, %v8935, 312
    %v9126 = vpack.c.b8 %v9122, %v9122
    %v9128 = vunpack.c.0.s8 %v8940
    %v9129 = vunpack.c.0.s8 %v8946
    %v9130 = vunpack.c.0.s8 %v8952
    %v9131 = vunpack.c.0.s8 %v8958
    %v9132 = vunpack.c.0.s8 %v8964
    %v9133 = vunpack.c.0.s8 %v8970
    %v9134 = vunpack.c.0.s8 %v8976
    %v9135 = vunpack.c.0.s8 %v8982
    %v9136 = vunpack.c.0.s8 %v8988
    %v9137 = vunpack.c.0.s8 %v8994
    %v9138 = vunpack.c.0.s8 %v9000
    %v9139 = vunpack.c.0.s8 %v9006
    %v9140 = vunpack.c.0.s8 %v9012
    %v9141 = vunpack.c.0.s8 %v9018
    %v9142 = vunpack.c.0.s8 %v9024
    %v9143 = vunpack.c.0.s8 %v9030
    %v9144 = vunpack.c.0.s8 %v9036
    %v9145 = vunpack.c.0.s8 %v9042
    %v9146 = vunpack.c.0.s8 %v9048
    %v9147 = vunpack.c.0.s8 %v9054
    %v9148 = vunpack.c.0.s8 %v9060
    %v9149 = vunpack.c.0.s8 %v9066
    %v9150 = vunpack.c.0.s8 %v9072
    %v9151 = vunpack.c.0.s8 %v9078
    %v9152 = vunpack.c.0.s8 %v9084
    %v9153 = vunpack.c.0.s8 %v9090
    %v9154 = vunpack.c.0.s8 %v9096
    %v9155 = vunpack.c.0.s8 %v9102
    %v9156 = vunpack.c.0.s8 %v9108
    %v9157 = vunpack.c.0.s8 %v9114
    %v9158 = vunpack.c.0.s8 %v9120
    %v9159 = vunpack.c.0.s8 %v9126
    %v9160 = vpack.c.b16 %v9129, %v9128
    %v9161 = vpack.c.b16 %v9131, %v9130
    %v9162 = vpack.c.b8 %v9161, %v9160
    %v9163 = vpack.c.b16 %v9133, %v9132
    %v9164 = vpack.c.b16 %v9135, %v9134
    %v9165 = vpack.c.b8 %v9164, %v9163
    %v9166 = vpack.c.b16 %v9137, %v9136
    %v9167 = vpack.c.b16 %v9139, %v9138
    %v9168 = vpack.c.b8 %v9167, %v9166
    %v9169 = vpack.c.b16 %v9141, %v9140
    %v9170 = vpack.c.b16 %v9143, %v9142
    %v9171 = vpack.c.b8 %v9170, %v9169
    %v9172 = vpack.c.b16 %v9145, %v9144
    %v9173 = vpack.c.b16 %v9147, %v9146
    %v9174 = vpack.c.b8 %v9173, %v9172
    %v9175 = vpack.c.b16 %v9149, %v9148
    %v9176 = vpack.c.b16 %v9151, %v9150
    %v9177 = vpack.c.b8 %v9176, %v9175
    %v9178 = vpack.c.b16 %v9153, %v9152
    %v9179 = vpack.c.b16 %v9155, %v9154
    %v9180 = vpack.c.b8 %v9179, %v9178
    %v9181 = vpack.c.b16 %v9157, %v9156
    %v9182 = vpack.c.b16 %v9159, %v9158
    %v9183 = vpack.c.b8 %v9182, %v9181
    %9184 = vst [vmem:[#allocation17] sm:$0xff] %v9162
    %9185 = vst [vmem:[#allocation17 + $0x8] sm:$0xff] %v9165
    %9186 = vst [vmem:[#allocation17 + $0x10] sm:$0xff] %v9168
    %9187 = vst [vmem:[#allocation17 + $0x18] sm:$0xff] %v9171
    %9188 = vst [vmem:[#allocation17 + $0x20] sm:$0xff] %v9174
    %9189 = vst [vmem:[#allocation17 + $0x28] sm:$0xff] %v9177
    %9190 = vst [vmem:[#allocation17 + $0x30] sm:$0xff] %v9180
    %9191 = vst [vmem:[#allocation17 + $0x38] sm:$0xff] %v9183
    %vm9192 = vcmask 7168
    %9193 = vst.msk [vmem:[%s11] sm:$0xff] %vm9192, %v8774
    // Predicated region
    $region70: #{tpu_custom_call.1} parent=1 // pred_check
      _
    $region71: #{tpu_custom_call.1} parent=1 // pred_check_branch
      %9195 = sbr.rel (0) target = $region73
    $region72: #{tpu_custom_call.1} parent=1 // pred_region
      %s9197 = ssub.s32 2048, 2048
      %9198 = vsyncadd [#allocation4], %s9197
      %s9200 = sshll.u32 [#allocation16], 4
      %s9201 = int_to_ptr.vmem [resolvable:$true] %s9200
      %9203 = dma.vmem_to_hbm [thread:$0]  %s9201, 2048, %s9, [#allocation4]
    $region73: #{tpu_custom_call.1} parent=1 // pred_fallthru
      _
    // Predicated region
    $region74: #{tpu_custom_call.1} parent=1 // pred_check
      _
    $region75: #{tpu_custom_call.1} parent=1 // pred_check_branch
      %9205 = sbr.rel (0) target = $region77
    $region76: #{tpu_custom_call.1} parent=1 // pred_region
      %s9207 = ssub.s32 1024, 1024
      %9208 = vsyncadd [#allocation18], %s9207
      %s9210 = sshll.u32 [#allocation17], 4
      %s9211 = int_to_ptr.vmem [resolvable:$true] %s9210
      %9213 = dma.vmem_to_hbm [thread:$0]  %s9211, 1024, %s10, [#allocation18]
    $region77: #{tpu_custom_call.1} parent=1 // pred_fallthru
      _
    // Predicated region
    $region78: #{tpu_custom_call.1} parent=1 // pred_check
      _
    $region79: #{tpu_custom_call.1} parent=1 // pred_check_branch
      %9215 = sbr.rel (0) target = $region81
    $region80: #{tpu_custom_call.1} parent=1 // pred_region
      _
    $region81: #{tpu_custom_call.1} parent=1 // pred_fallthru
      _
    // Predicated region
    $region82: #{tpu_custom_call.1} parent=1 // pred_check
      _
    $region83: #{tpu_custom_call.1} parent=1 // pred_check_branch
      %9217 = sbr.rel (0) target = $region85
    $region84: #{tpu_custom_call.1} parent=1 // pred_region
      %9218 = dma.done [#allocation4], 2048
    $region85: #{tpu_custom_call.1} parent=1 // pred_fallthru
      _
    // Predicated region
    $region86: #{tpu_custom_call.1} parent=1 // pred_check
      _
    $region87: #{tpu_custom_call.1} parent=1 // pred_check_branch
      %9220 = sbr.rel (0) target = $region89
    $region88: #{tpu_custom_call.1} parent=1 // pred_region
      %9221 = dma.done [#allocation18], 1024
    $region89: #{tpu_custom_call.1} parent=1 // pred_fallthru
      _
    // Predicated region
    $region90: #{tpu_custom_call.1} parent=1 // pred_check
      _
    $region91: #{tpu_custom_call.1} parent=1 // pred_check_branch
      %9223 = sbr.rel (0) target = $region93
    $region92: #{tpu_custom_call.1} parent=1 // pred_region
      _
    $region93: #{tpu_custom_call.1} parent=1 // pred_fallthru
      _
    %9224 = vsyncpa [#allocation3], 1
    %9225 = vsyncpa [#allocation6], 1
    %9226 = vsyncpa [#allocation9], 1
    %9227 = vsyncpa [#allocation12], 1
    %9228 = vsyncpa [#allocation15], 1
    %9229 = vsyncpa [#allocation4], 1
    %9230 = vsyncpa [#allocation18], 1

</llo_original>
